<compile_context>
chip_gen: v7x
topology: tpu7x:2x2x1
jax: 0.10.0
libtpu: 0.0.40
codegen_flags: <defaults>
</compile_context>

<pallas_src>
import math

import numpy as np
import jax
import jax.numpy as jnp
from jax.experimental import pallas as pl
from jax.experimental.pallas import tpu as pltpu

LMAX = 7
L_TOTAL = LMAX + 1
MULS = [2 * l + 1 for l in range(L_TOTAL)]            # multiplicity of irrep l
DIMS = MULS                                           # so3_irreps: mul == dim == 2l+1
BLOCK_SIZES = [m * d for m, d in zip(MULS, DIMS)]     # (2l+1)^2 per block
OFFSETS = [0]
for _s in BLOCK_SIZES:
    OFFSETS.append(OFFSETS[-1] + _s)
IRREPS_DIM = OFFSETS[-1]                              # sum (2l+1)^2 = 680 for lmax=7

PAD = 16                                              # pad mul/dim 15 -> 16 (lane/sublane friendly)


# ------------------------- static packing tables (numpy, compile-time constants) ----------
def _build_pack_tables():
    x_idx = np.zeros((L_TOTAL, PAD, PAD), dtype=np.int32)    # [l, m, u] -> position in I axis
    x_mask = np.zeros((L_TOTAL, PAD, PAD), dtype=np.float32)
    d_idx = np.zeros((L_TOTAL, PAD, PAD), dtype=np.int32)    # [l, u, w] -> position in I axis
    d_mask = np.zeros((L_TOTAL, PAD, PAD), dtype=np.float32)
    out_idx = np.zeros((IRREPS_DIM,), dtype=np.int32)        # irreps pos -> packed (l, w, m) pos
    for l in range(L_TOTAL):
        mul, dim, off = MULS[l], DIMS[l], OFFSETS[l]
        for m in range(dim):
            for u in range(mul):
                x_idx[l, m, u] = off + u * dim + m
                x_mask[l, m, u] = 1.0
        for u in range(mul):
            for w in range(mul):
                d_idx[l, u, w] = off + u * mul + w
                d_mask[l, u, w] = 1.0
        for w in range(mul):
            for m in range(dim):
                out_idx[off + w * dim + m] = l * PAD * PAD + w * PAD + m
    return x_idx, x_mask, d_idx, d_mask, out_idx


X_IDX, X_MASK, D_IDX, D_MASK, OUT_IDX = _build_pack_tables()


def _pick_b_tile(B):
    # Largest batch tile <= 8 that divides B (8*PAD = 128 rows per step at scale).
    for t in (8, 4, 2, 1):
        if B % t == 0:
            return t
    return 1


# ------------------------- fused Pallas kernel: one block-diagonal MXU matmul -------------
def _so3_blockdiag_matmul_kernel(a_ref, w_ref, o_ref):
    # a_ref: (B_TILE*PAD, L*f_in*PAD)      e.g. (32, 512)
    # w_ref: (L*f_in*PAD, L*f_out*PAD)     e.g. (512, 1024)  block-diagonal, VMEM-resident
    # o_ref: (B_TILE*PAD, L*f_out*PAD)     e.g. (32, 1024)   lane-dense unmasked stores
    # TODO(synk): for a tighter match to torch's f32 math, pass precision=HIGHEST (multi-pass
    # MXU) once verified on the target Mosaic version; default precision holds 1e-2 here.
    o_ref[...] = jnp.dot(a_ref[...], w_ref[...], preferred_element_type=jnp.float32)


# ------------------------- SO3Conv forward ------------------------------------------------
def so3_conv_forward(x, w, D):
    B, f_in, _ = x.shape
    f_out = w.shape[1]
    n = D.shape[0]

    K_BD = L_TOTAL * f_in * PAD     # block-diagonal contraction dim (512 for f_in=4)
    N_BD = L_TOTAL * f_out * PAD    # block-diagonal output dim      (1024 for f_out=8)

    # ---- batch-independent weight path (psi projection fused with repack), plain XLA ----
    # d_pack[n, l, u, w] = alpha_l/sqrt(N) * D[n, off_l + u*mul_l + w]   (0 where padded)
    alpha = np.array([1.0 / math.sqrt(f_in * MULS[l]) for l in range(L_TOTAL)],
                     dtype=np.float32).reshape(L_TOTAL, 1, 1)
    d_scale = jnp.asarray(D_MASK * alpha / math.sqrt(n))                       # (L, PAD, PAD)
    d_pack = jnp.take(D, jnp.asarray(D_IDX), axis=1) * d_scale[None]           # (n, L, PAD, PAD)
    # w_blocks[l, x*PAD+u, y*PAD+w] = alpha_l/sqrt(N) * psi_unnorm[x, y, off_l + u*mul_l + w]
    w_blocks = jnp.einsum('xyn,nluw->lxuyw', w, d_pack,
                          precision=jax.lax.Precision.HIGHEST)
    w_blocks = w_blocks.reshape(L_TOTAL, f_in * PAD, f_out * PAD)
    # Embed the 8 per-l weight tiles into one block-diagonal RHS (broadcast-eye mul + reshape).
    eye_l = jnp.asarray(np.eye(L_TOTAL, dtype=np.float32))
    w_bd = (w_blocks[:, :, None, :] * eye_l[:, None, :, None]).reshape(K_BD, N_BD)

    # ---- x repack: single gather + mask + transpose into the packed LHS ----
    # a_pack[b*PAD+m, l*f_in*PAD + x*PAD + u] = x[b, x, off_l + u*dim_l + m]   (0 where padded)
    xg = jnp.take(x, jnp.asarray(X_IDX), axis=2) * jnp.asarray(X_MASK)[None, None]
    a_pack = jnp.transpose(xg, (0, 3, 2, 1, 4)).reshape(B * PAD, K_BD)

    # ---- single fused Pallas call: one MXU matmul, grid over batch tiles ----
    b_tile = _pick_b_tile(B)
    grid = (B // b_tile,)            # grid=(1,) at B=2: no per-step overhead on v5e/v6e
    m_tile = b_tile * PAD

    flops = 2 * (B * PAD) * K_BD * N_BD
    bytes_accessed = 4 * (a_pack.size + w_bd.size + B * PAD * N_BD)
    # VMEM footprint per step: LHS 64 KiB + resident RHS 2 MiB + out 128 KiB (double-buffered
    # LHS/out only, RHS index_map is constant) -- far under the 32 MiB default scoped limit
    # on all generations, including v7x's 64 MiB physical VMEM.
    o_pack = pl.pallas_call(
        _so3_blockdiag_matmul_kernel,
        out_shape=jax.ShapeDtypeStruct((B * PAD, N_BD), jnp.float32),
        grid=grid,
        in_specs=[
            pl.BlockSpec((m_tile, K_BD), lambda i: (i, 0)),
            pl.BlockSpec((K_BD, N_BD), lambda i: (0, 0)),   # constant -> weights stay resident
        ],
        out_specs=pl.BlockSpec((m_tile, N_BD), lambda i: (i, 0)),
        compiler_params=pltpu.CompilerParams(dimension_semantics=("parallel",)),
        cost_estimate=pl.CostEstimate(flops=flops, transcendentals=0,
                                      bytes_accessed=bytes_accessed),
    )(a_pack, w_bd)

    # ---- output unpack: packed padded layout -> irreps layout (one fused reshape/T/gather) ----
    # TODO(synk): could be folded into the kernel store path via in-kernel XLU transposes once
    # the surrounding-op count matters; kept outside for lowering robustness at these sizes.
    o5 = o_pack.reshape(B, PAD, L_TOTAL, f_out, PAD)                 # [b, m, l, y, w]
    o5 = jnp.transpose(o5, (0, 3, 2, 4, 1))                          # [b, y, l, w, m]
    o_flat = o5.reshape(B, f_out, L_TOTAL * PAD * PAD)
    return jnp.take(o_flat, jnp.asarray(OUT_IDX), axis=2)            # (B, f_out, IRREPS_DIM)


# ------------------------- pure-JAX reference (same math, no Pallas) ----------------------
def reference_forward(x, w, D):
    B, f_in, _ = x.shape
    f_out = w.shape[1]
    n = D.shape[0]
    psi = jnp.einsum('ni,xyn->xyi', D, w,
                     precision=jax.lax.Precision.HIGHEST) / math.sqrt(n)
    outs = []
    for l in range(L_TOTAL):
        mul, dim, off = MULS[l], DIMS[l], OFFSETS[l]
        xb = x[:, :, off:off + mul * dim].reshape(B, f_in, mul, dim)
        wb = psi[:, :, off:off + mul * mul].reshape(f_in, f_out, mul, mul)
        alpha = 1.0 / math.sqrt(f_in * mul)
        ob = alpha * jnp.einsum('xyuw,bxum->bywm', wb, xb,
                                precision=jax.lax.Precision.HIGHEST)
        outs.append(ob.reshape(B, f_out, mul * dim))
    return jnp.concatenate(outs, axis=-1)


if __name__ == "__main__":
    B, F_IN, F_OUT, N_GRID = 2, 4, 8, 12

    key = jax.random.PRNGKey(0)
    k_x, k_w, k_d = jax.random.split(key, 3)

    # parameter w ~ randn(f_in, f_out, kernel_grid.shape[1]), as in the module's __init__
    w = jax.random.normal(k_w, (F_IN, F_OUT, N_GRID), dtype=jnp.float32)

    # TODO(synk): D is a deterministic synthetic stand-in (correct shape / sqrt(2l+1) scaling
    # structure) rather than real Wigner-D matrices from o3.wigner_D / flat_wigner.
    d_blocks = []
    kd = k_d
    for l in range(L_TOTAL):
        kd, sub = jax.random.split(kd)
        d_blocks.append(
            math.sqrt(2 * l + 1)
            * jax.random.normal(sub, (N_GRID, (2 * l + 1) ** 2), dtype=jnp.float32)
        )
    D = jnp.concatenate(d_blocks, axis=-1)            # (N_GRID, IRREPS_DIM)

    # input signal over SO(3) irreps
    x = jax.random.normal(k_x, (B, F_IN, IRREPS_DIM), dtype=jnp.float32)

    fwd = jax.jit(so3_conv_forward)
    out = jax.block_until_ready(fwd(x, w, D))
    ref = jax.block_until_ready(reference_forward(x, w, D))

    assert out.shape == (B, F_OUT, IRREPS_DIM), out.shape
    max_err = float(jnp.max(jnp.abs(out - ref)))
    assert jnp.allclose(out, ref, rtol=1e-2, atol=1e-2), max_err

    print("KERNEL_OK")
</pallas_src>

<mosaic_0001>
module attributes {stable_mosaic.version = 11 : i64} {
  func.func @_so3_blockdiag_matmul_kernel(%arg0: i32, %arg1: memref<32x512xf32, #tpu.memory_space<vmem>>, %arg2: memref<512x1024xf32, #tpu.memory_space<vmem>>, %arg3: memref<32x1024xf32, #tpu.memory_space<vmem>>) attributes {dimension_semantics = [#tpu.dimension_semantics<parallel>], iteration_bounds = array<i64: 1>, scalar_prefetch = 0 : i64, scratch_operands = 0 : i64, tpu.core_type = #tpu.core_type<tc>, window_params = [{transform_indices = @transform_0, window_bounds = array<i64: 32, 512>}, {pipeline_mode = #tpu.pipeline_mode<synchronous>, transform_indices = @transform_1, window_bounds = array<i64: 512, 1024>}, {transform_indices = @transform_2, window_bounds = array<i64: 32, 1024>}]} {
    %c0 = arith.constant 0 : index
    %c0_0 = arith.constant 0 : index
    %0 = vector.load %arg1[%c0, %c0_0] : memref<32x512xf32, #tpu.memory_space<vmem>>, vector<32x512xf32>
    %c0_1 = arith.constant 0 : index
    %c0_2 = arith.constant 0 : index
    %1 = vector.load %arg2[%c0_1, %c0_2] : memref<512x1024xf32, #tpu.memory_space<vmem>>, vector<512x1024xf32>
    %cst = arith.constant dense<0.000000e+00> : vector<32x1024xf32>
    %2 = tpu.matmul %0, %1, %cst {dimension_numbers = #tpu.dot_dimension_numbers<[1], [0], [0], [1], [0, 0, 1, 1], [], []>} : vector<32x512xf32>, vector<512x1024xf32>, vector<32x1024xf32> -> vector<32x1024xf32>
    %c0_3 = arith.constant 0 : index
    %c0_4 = arith.constant 0 : index
    %3 = vector.load %arg3[%c0_3, %c0_4] : memref<32x1024xf32, #tpu.memory_space<vmem>>, vector<32x1024xf32>
    tpu.vector_store %arg3[%c0_3, %c0_4], %2 {strides = array<i32>} : memref<32x1024xf32, #tpu.memory_space<vmem>>, vector<32x1024xf32>,
    return
  }
  func.func @transform_0(%arg0: i32) -> (i32, i32) {
    %c0_i32 = arith.constant 0 : i32
    %c0_i32_0 = arith.constant 0 : i32
    return %arg0, %c0_i32 : i32, i32
  }
  func.func @transform_1(%arg0: i32) -> (i32, i32) {
    %c0_i32 = arith.constant 0 : i32
    %c0_i32_0 = arith.constant 0 : i32
    %c0_i32_1 = arith.constant 0 : i32
    return %c0_i32, %c0_i32_0 : i32, i32
  }
  func.func @transform_2(%arg0: i32) -> (i32, i32) {
    %c0_i32 = arith.constant 0 : i32
    %c0_i32_0 = arith.constant 0 : i32
    return %arg0, %c0_i32 : i32, i32
  }
}

</mosaic_0001>

<llo_original>
// kernel: mul.20
$region0: #{mul.20}
  %s0 = inlined_call_operand.vmem [shape: f32[8,4,16,8,16], index: 0, kind: input, shape index: {}]
  %s1 = inlined_call_operand.vmem [shape: f32[8,64,128], index: 1, kind: output, shape index: {}]
  %v2 = vld [vmem:[%s0] ss:$8 sm:$0xf]
  %v3 = vld [vmem:[%s0] ss:$8 sm:$0xf0]
  %vm4 = vcmask 1047556
  %v5 = vsel %vm4, %v3, %v2
  %vm6 = vcmask 130048
  %7 = vst.msk [vmem:[%s1] sm:$0xff] %vm6, %v5
  %s8 = scalar_lea.vmem %s0, 64
  %v9 = vld [vmem:[%s8] ss:$8 sm:$0xf]
  %s10 = scalar_lea.vmem %s0, 64
  %v11 = vld [vmem:[%s10] ss:$8 sm:$0xf0]
  %vm12 = vcmask 1047556
  %v13 = vsel %vm12, %v11, %v9
  %vm14 = vcmask 130048
  %s15 = scalar_lea.vmem %s1, 8
  %16 = vst.msk [vmem:[%s15] sm:$0xff] %vm14, %v13
  %s17 = scalar_lea.vmem %s0, 128
  %v18 = vld [vmem:[%s17] ss:$8 sm:$0xf]
  %s19 = scalar_lea.vmem %s0, 128
  %v20 = vld [vmem:[%s19] ss:$8 sm:$0xf0]
  %vm21 = vcmask 1047556
  %v22 = vsel %vm21, %v20, %v18
  %vm23 = vcmask 130048
  %s24 = scalar_lea.vmem %s1, 16
  %25 = vst.msk [vmem:[%s24] sm:$0xff] %vm23, %v22
  %s26 = scalar_lea.vmem %s0, 192
  %v27 = vld [vmem:[%s26] ss:$8 sm:$0xf]
  %s28 = scalar_lea.vmem %s0, 192
  %v29 = vld [vmem:[%s28] ss:$8 sm:$0xf0]
  %vm30 = vcmask 1047556
  %v31 = vsel %vm30, %v29, %v27
  %vm32 = vcmask 130048
  %s33 = scalar_lea.vmem %s1, 24
  %34 = vst.msk [vmem:[%s33] sm:$0xff] %vm32, %v31
  %s35 = scalar_lea.vmem %s0, 256
  %v36 = vld [vmem:[%s35] ss:$8 sm:$0xf]
  %s37 = scalar_lea.vmem %s0, 256
  %v38 = vld [vmem:[%s37] ss:$8 sm:$0xf0]
  %vm39 = vcmask 1047556
  %v40 = vsel %vm39, %v38, %v36
  %vm41 = vcmask 130048
  %s42 = scalar_lea.vmem %s1, 32
  %43 = vst.msk [vmem:[%s42] sm:$0xff] %vm41, %v40
  %s44 = scalar_lea.vmem %s0, 320
  %v45 = vld [vmem:[%s44] ss:$8 sm:$0xf]
  %s46 = scalar_lea.vmem %s0, 320
  %v47 = vld [vmem:[%s46] ss:$8 sm:$0xf0]
  %vm48 = vcmask 1047556
  %v49 = vsel %vm48, %v47, %v45
  %vm50 = vcmask 130048
  %s51 = scalar_lea.vmem %s1, 40
  %52 = vst.msk [vmem:[%s51] sm:$0xff] %vm50, %v49
  %s53 = scalar_lea.vmem %s0, 384
  %v54 = vld [vmem:[%s53] ss:$8 sm:$0xf]
  %s55 = scalar_lea.vmem %s0, 384
  %v56 = vld [vmem:[%s55] ss:$8 sm:$0xf0]
  %vm57 = vcmask 1047556
  %v58 = vsel %vm57, %v56, %v54
  %vm59 = vcmask 130048
  %s60 = scalar_lea.vmem %s1, 48
  %61 = vst.msk [vmem:[%s60] sm:$0xff] %vm59, %v58
  %s62 = scalar_lea.vmem %s0, 448
  %v63 = vld [vmem:[%s62] ss:$8 sm:$0xf]
  %s64 = scalar_lea.vmem %s0, 448
  %v65 = vld [vmem:[%s64] ss:$8 sm:$0xf0]
  %vm66 = vcmask 1047556
  %v67 = vsel %vm66, %v65, %v63
  %vm68 = vcmask 130048
  %s69 = scalar_lea.vmem %s1, 56
  %70 = vst.msk [vmem:[%s69] sm:$0xff] %vm68, %v67
  %s71 = scalar_lea.vmem %s0, 512
  %v72 = vld [vmem:[%s71] ss:$8 sm:$0xf]
  %s73 = scalar_lea.vmem %s0, 512
  %v74 = vld [vmem:[%s73] ss:$8 sm:$0xf0]
  %vm75 = vcmask 1047556
  %v76 = vsel %vm75, %v74, %v72
  %vm77 = vcmask 130048
  %s78 = scalar_lea.vmem %s1, 64
  %79 = vst.msk [vmem:[%s78] sm:$0xff] %vm77, %v76
  %s80 = scalar_lea.vmem %s0, 576
  %v81 = vld [vmem:[%s80] ss:$8 sm:$0xf]
  %s82 = scalar_lea.vmem %s0, 576
  %v83 = vld [vmem:[%s82] ss:$8 sm:$0xf0]
  %vm84 = vcmask 1047556
  %v85 = vsel %vm84, %v83, %v81
  %vm86 = vcmask 130048
  %s87 = scalar_lea.vmem %s1, 72
  %88 = vst.msk [vmem:[%s87] sm:$0xff] %vm86, %v85
  %s89 = scalar_lea.vmem %s0, 640
  %v90 = vld [vmem:[%s89] ss:$8 sm:$0xf]
  %s91 = scalar_lea.vmem %s0, 640
  %v92 = vld [vmem:[%s91] ss:$8 sm:$0xf0]
  %vm93 = vcmask 1047556
  %v94 = vsel %vm93, %v92, %v90
  %vm95 = vcmask 130048
  %s96 = scalar_lea.vmem %s1, 80
  %97 = vst.msk [vmem:[%s96] sm:$0xff] %vm95, %v94
  %s98 = scalar_lea.vmem %s0, 704
  %v99 = vld [vmem:[%s98] ss:$8 sm:$0xf]
  %s100 = scalar_lea.vmem %s0, 704
  %v101 = vld [vmem:[%s100] ss:$8 sm:$0xf0]
  %vm102 = vcmask 1047556
  %v103 = vsel %vm102, %v101, %v99
  %vm104 = vcmask 130048
  %s105 = scalar_lea.vmem %s1, 88
  %106 = vst.msk [vmem:[%s105] sm:$0xff] %vm104, %v103
  %s107 = scalar_lea.vmem %s0, 768
  %v108 = vld [vmem:[%s107] ss:$8 sm:$0xf]
  %s109 = scalar_lea.vmem %s0, 768
  %v110 = vld [vmem:[%s109] ss:$8 sm:$0xf0]
  %vm111 = vcmask 1047556
  %v112 = vsel %vm111, %v110, %v108
  %vm113 = vcmask 130048
  %s114 = scalar_lea.vmem %s1, 96
  %115 = vst.msk [vmem:[%s114] sm:$0xff] %vm113, %v112
  %s116 = scalar_lea.vmem %s0, 832
  %v117 = vld [vmem:[%s116] ss:$8 sm:$0xf]
  %s118 = scalar_lea.vmem %s0, 832
  %v119 = vld [vmem:[%s118] ss:$8 sm:$0xf0]
  %vm120 = vcmask 1047556
  %v121 = vsel %vm120, %v119, %v117
  %vm122 = vcmask 130048
  %s123 = scalar_lea.vmem %s1, 104
  %124 = vst.msk [vmem:[%s123] sm:$0xff] %vm122, %v121
  %s125 = scalar_lea.vmem %s0, 896
  %v126 = vld [vmem:[%s125] ss:$8 sm:$0xf]
  %s127 = scalar_lea.vmem %s0, 896
  %v128 = vld [vmem:[%s127] ss:$8 sm:$0xf0]
  %vm129 = vcmask 1047556
  %v130 = vsel %vm129, %v128, %v126
  %vm131 = vcmask 130048
  %s132 = scalar_lea.vmem %s1, 112
  %133 = vst.msk [vmem:[%s132] sm:$0xff] %vm131, %v130
  %s134 = scalar_lea.vmem %s0, 960
  %v135 = vld [vmem:[%s134] ss:$8 sm:$0xf]
  %s136 = scalar_lea.vmem %s0, 960
  %v137 = vld [vmem:[%s136] ss:$8 sm:$0xf0]
  %vm138 = vcmask 1047556
  %v139 = vsel %vm138, %v137, %v135
  %vm140 = vcmask 130048
  %s141 = scalar_lea.vmem %s1, 120
  %142 = vst.msk [vmem:[%s141] sm:$0xff] %vm140, %v139
  %s143 = scalar_lea.vmem %s0, 1024
  %v144 = vld [vmem:[%s143] ss:$8 sm:$0xf]
  %s145 = scalar_lea.vmem %s0, 1024
  %v146 = vld [vmem:[%s145] ss:$8 sm:$0xf0]
  %vm147 = vcmask 1047556
  %v148 = vsel %vm147, %v146, %v144
  %vm149 = vcmask 130048
  %s150 = scalar_lea.vmem %s1, 128
  %151 = vst.msk [vmem:[%s150] sm:$0xff] %vm149, %v148
  %s152 = scalar_lea.vmem %s0, 1088
  %v153 = vld [vmem:[%s152] ss:$8 sm:$0xf]
  %s154 = scalar_lea.vmem %s0, 1088
  %v155 = vld [vmem:[%s154] ss:$8 sm:$0xf0]
  %vm156 = vcmask 1047556
  %v157 = vsel %vm156, %v155, %v153
  %vm158 = vcmask 130048
  %s159 = scalar_lea.vmem %s1, 136
  %160 = vst.msk [vmem:[%s159] sm:$0xff] %vm158, %v157
  %s161 = scalar_lea.vmem %s0, 1152
  %v162 = vld [vmem:[%s161] ss:$8 sm:$0xf]
  %s163 = scalar_lea.vmem %s0, 1152
  %v164 = vld [vmem:[%s163] ss:$8 sm:$0xf0]
  %vm165 = vcmask 1047556
  %v166 = vsel %vm165, %v164, %v162
  %vm167 = vcmask 130048
  %s168 = scalar_lea.vmem %s1, 144
  %169 = vst.msk [vmem:[%s168] sm:$0xff] %vm167, %v166
  %s170 = scalar_lea.vmem %s0, 1216
  %v171 = vld [vmem:[%s170] ss:$8 sm:$0xf]
  %s172 = scalar_lea.vmem %s0, 1216
  %v173 = vld [vmem:[%s172] ss:$8 sm:$0xf0]
  %vm174 = vcmask 1047556
  %v175 = vsel %vm174, %v173, %v171
  %vm176 = vcmask 130048
  %s177 = scalar_lea.vmem %s1, 152
  %178 = vst.msk [vmem:[%s177] sm:$0xff] %vm176, %v175
  %s179 = scalar_lea.vmem %s0, 1280
  %v180 = vld [vmem:[%s179] ss:$8 sm:$0xf]
  %s181 = scalar_lea.vmem %s0, 1280
  %v182 = vld [vmem:[%s181] ss:$8 sm:$0xf0]
  %vm183 = vcmask 1047556
  %v184 = vsel %vm183, %v182, %v180
  %vm185 = vcmask 130048
  %s186 = scalar_lea.vmem %s1, 160
  %187 = vst.msk [vmem:[%s186] sm:$0xff] %vm185, %v184
  %s188 = scalar_lea.vmem %s0, 1344
  %v189 = vld [vmem:[%s188] ss:$8 sm:$0xf]
  %s190 = scalar_lea.vmem %s0, 1344
  %v191 = vld [vmem:[%s190] ss:$8 sm:$0xf0]
  %vm192 = vcmask 1047556
  %v193 = vsel %vm192, %v191, %v189
  %vm194 = vcmask 130048
  %s195 = scalar_lea.vmem %s1, 168
  %196 = vst.msk [vmem:[%s195] sm:$0xff] %vm194, %v193
  %s197 = scalar_lea.vmem %s0, 1408
  %v198 = vld [vmem:[%s197] ss:$8 sm:$0xf]
  %s199 = scalar_lea.vmem %s0, 1408
  %v200 = vld [vmem:[%s199] ss:$8 sm:$0xf0]
  %vm201 = vcmask 1047556
  %v202 = vsel %vm201, %v200, %v198
  %vm203 = vcmask 130048
  %s204 = scalar_lea.vmem %s1, 176
  %205 = vst.msk [vmem:[%s204] sm:$0xff] %vm203, %v202
  %s206 = scalar_lea.vmem %s0, 1472
  %v207 = vld [vmem:[%s206] ss:$8 sm:$0xf]
  %s208 = scalar_lea.vmem %s0, 1472
  %v209 = vld [vmem:[%s208] ss:$8 sm:$0xf0]
  %vm210 = vcmask 1047556
  %v211 = vsel %vm210, %v209, %v207
  %vm212 = vcmask 130048
  %s213 = scalar_lea.vmem %s1, 184
  %214 = vst.msk [vmem:[%s213] sm:$0xff] %vm212, %v211
  %s215 = scalar_lea.vmem %s0, 1536
  %v216 = vld [vmem:[%s215] ss:$8 sm:$0xf]
  %s217 = scalar_lea.vmem %s0, 1536
  %v218 = vld [vmem:[%s217] ss:$8 sm:$0xf0]
  %vm219 = vcmask 1047556
  %v220 = vsel %vm219, %v218, %v216
  %vm221 = vcmask 130048
  %s222 = scalar_lea.vmem %s1, 192
  %223 = vst.msk [vmem:[%s222] sm:$0xff] %vm221, %v220
  %s224 = scalar_lea.vmem %s0, 1600
  %v225 = vld [vmem:[%s224] ss:$8 sm:$0xf]
  %s226 = scalar_lea.vmem %s0, 1600
  %v227 = vld [vmem:[%s226] ss:$8 sm:$0xf0]
  %vm228 = vcmask 1047556
  %v229 = vsel %vm228, %v227, %v225
  %vm230 = vcmask 130048
  %s231 = scalar_lea.vmem %s1, 200
  %232 = vst.msk [vmem:[%s231] sm:$0xff] %vm230, %v229
  %s233 = scalar_lea.vmem %s0, 1664
  %v234 = vld [vmem:[%s233] ss:$8 sm:$0xf]
  %s235 = scalar_lea.vmem %s0, 1664
  %v236 = vld [vmem:[%s235] ss:$8 sm:$0xf0]
  %vm237 = vcmask 1047556
  %v238 = vsel %vm237, %v236, %v234
  %vm239 = vcmask 130048
  %s240 = scalar_lea.vmem %s1, 208
  %241 = vst.msk [vmem:[%s240] sm:$0xff] %vm239, %v238
  %s242 = scalar_lea.vmem %s0, 1728
  %v243 = vld [vmem:[%s242] ss:$8 sm:$0xf]
  %s244 = scalar_lea.vmem %s0, 1728
  %v245 = vld [vmem:[%s244] ss:$8 sm:$0xf0]
  %vm246 = vcmask 1047556
  %v247 = vsel %vm246, %v245, %v243
  %vm248 = vcmask 130048
  %s249 = scalar_lea.vmem %s1, 216
  %250 = vst.msk [vmem:[%s249] sm:$0xff] %vm248, %v247
  %s251 = scalar_lea.vmem %s0, 1792
  %v252 = vld [vmem:[%s251] ss:$8 sm:$0xf]
  %s253 = scalar_lea.vmem %s0, 1792
  %v254 = vld [vmem:[%s253] ss:$8 sm:$0xf0]
  %vm255 = vcmask 1047556
  %v256 = vsel %vm255, %v254, %v252
  %vm257 = vcmask 130048
  %s258 = scalar_lea.vmem %s1, 224
  %259 = vst.msk [vmem:[%s258] sm:$0xff] %vm257, %v256
  %s260 = scalar_lea.vmem %s0, 1856
  %v261 = vld [vmem:[%s260] ss:$8 sm:$0xf]
  %s262 = scalar_lea.vmem %s0, 1856
  %v263 = vld [vmem:[%s262] ss:$8 sm:$0xf0]
  %vm264 = vcmask 1047556
  %v265 = vsel %vm264, %v263, %v261
  %vm266 = vcmask 130048
  %s267 = scalar_lea.vmem %s1, 232
  %268 = vst.msk [vmem:[%s267] sm:$0xff] %vm266, %v265
  %s269 = scalar_lea.vmem %s0, 1920
  %v270 = vld [vmem:[%s269] ss:$8 sm:$0xf]
  %s271 = scalar_lea.vmem %s0, 1920
  %v272 = vld [vmem:[%s271] ss:$8 sm:$0xf0]
  %vm273 = vcmask 1047556
  %v274 = vsel %vm273, %v272, %v270
  %vm275 = vcmask 130048
  %s276 = scalar_lea.vmem %s1, 240
  %277 = vst.msk [vmem:[%s276] sm:$0xff] %vm275, %v274
  %s278 = scalar_lea.vmem %s0, 1984
  %v279 = vld [vmem:[%s278] ss:$8 sm:$0xf]
  %s280 = scalar_lea.vmem %s0, 1984
  %v281 = vld [vmem:[%s280] ss:$8 sm:$0xf0]
  %vm282 = vcmask 1047556
  %v283 = vsel %vm282, %v281, %v279
  %vm284 = vcmask 130048
  %s285 = scalar_lea.vmem %s1, 248
  %286 = vst.msk [vmem:[%s285] sm:$0xff] %vm284, %v283
  %s287 = scalar_lea.vmem %s0, 2048
  %v288 = vld [vmem:[%s287] ss:$8 sm:$0xf]
  %s289 = scalar_lea.vmem %s0, 2048
  %v290 = vld [vmem:[%s289] ss:$8 sm:$0xf0]
  %vm291 = vcmask 1047556
  %v292 = vsel %vm291, %v290, %v288
  %vm293 = vcmask 130048
  %s294 = scalar_lea.vmem %s1, 256
  %295 = vst.msk [vmem:[%s294] sm:$0xff] %vm293, %v292
  %s296 = scalar_lea.vmem %s0, 2112
  %v297 = vld [vmem:[%s296] ss:$8 sm:$0xf]
  %s298 = scalar_lea.vmem %s0, 2112
  %v299 = vld [vmem:[%s298] ss:$8 sm:$0xf0]
  %vm300 = vcmask 1047556
  %v301 = vsel %vm300, %v299, %v297
  %vm302 = vcmask 130048
  %s303 = scalar_lea.vmem %s1, 264
  %304 = vst.msk [vmem:[%s303] sm:$0xff] %vm302, %v301
  %s305 = scalar_lea.vmem %s0, 2176
  %v306 = vld [vmem:[%s305] ss:$8 sm:$0xf]
  %s307 = scalar_lea.vmem %s0, 2176
  %v308 = vld [vmem:[%s307] ss:$8 sm:$0xf0]
  %vm309 = vcmask 1047556
  %v310 = vsel %vm309, %v308, %v306
  %vm311 = vcmask 130048
  %s312 = scalar_lea.vmem %s1, 272
  %313 = vst.msk [vmem:[%s312] sm:$0xff] %vm311, %v310
  %s314 = scalar_lea.vmem %s0, 2240
  %v315 = vld [vmem:[%s314] ss:$8 sm:$0xf]
  %s316 = scalar_lea.vmem %s0, 2240
  %v317 = vld [vmem:[%s316] ss:$8 sm:$0xf0]
  %vm318 = vcmask 1047556
  %v319 = vsel %vm318, %v317, %v315
  %vm320 = vcmask 130048
  %s321 = scalar_lea.vmem %s1, 280
  %322 = vst.msk [vmem:[%s321] sm:$0xff] %vm320, %v319
  %s323 = scalar_lea.vmem %s0, 2304
  %v324 = vld [vmem:[%s323] ss:$8 sm:$0xf]
  %s325 = scalar_lea.vmem %s0, 2304
  %v326 = vld [vmem:[%s325] ss:$8 sm:$0xf0]
  %vm327 = vcmask 1047556
  %v328 = vsel %vm327, %v326, %v324
  %vm329 = vcmask 130048
  %s330 = scalar_lea.vmem %s1, 288
  %331 = vst.msk [vmem:[%s330] sm:$0xff] %vm329, %v328
  %s332 = scalar_lea.vmem %s0, 2368
  %v333 = vld [vmem:[%s332] ss:$8 sm:$0xf]
  %s334 = scalar_lea.vmem %s0, 2368
  %v335 = vld [vmem:[%s334] ss:$8 sm:$0xf0]
  %vm336 = vcmask 1047556
  %v337 = vsel %vm336, %v335, %v333
  %vm338 = vcmask 130048
  %s339 = scalar_lea.vmem %s1, 296
  %340 = vst.msk [vmem:[%s339] sm:$0xff] %vm338, %v337
  %s341 = scalar_lea.vmem %s0, 2432
  %v342 = vld [vmem:[%s341] ss:$8 sm:$0xf]
  %s343 = scalar_lea.vmem %s0, 2432
  %v344 = vld [vmem:[%s343] ss:$8 sm:$0xf0]
  %vm345 = vcmask 1047556
  %v346 = vsel %vm345, %v344, %v342
  %vm347 = vcmask 130048
  %s348 = scalar_lea.vmem %s1, 304
  %349 = vst.msk [vmem:[%s348] sm:$0xff] %vm347, %v346
  %s350 = scalar_lea.vmem %s0, 2496
  %v351 = vld [vmem:[%s350] ss:$8 sm:$0xf]
  %s352 = scalar_lea.vmem %s0, 2496
  %v353 = vld [vmem:[%s352] ss:$8 sm:$0xf0]
  %vm354 = vcmask 1047556
  %v355 = vsel %vm354, %v353, %v351
  %vm356 = vcmask 130048
  %s357 = scalar_lea.vmem %s1, 312
  %358 = vst.msk [vmem:[%s357] sm:$0xff] %vm356, %v355
  %s359 = scalar_lea.vmem %s0, 2560
  %v360 = vld [vmem:[%s359] ss:$8 sm:$0xf]
  %s361 = scalar_lea.vmem %s0, 2560
  %v362 = vld [vmem:[%s361] ss:$8 sm:$0xf0]
  %vm363 = vcmask 1047556
  %v364 = vsel %vm363, %v362, %v360
  %vm365 = vcmask 130048
  %s366 = scalar_lea.vmem %s1, 320
  %367 = vst.msk [vmem:[%s366] sm:$0xff] %vm365, %v364
  %s368 = scalar_lea.vmem %s0, 2624
  %v369 = vld [vmem:[%s368] ss:$8 sm:$0xf]
  %s370 = scalar_lea.vmem %s0, 2624
  %v371 = vld [vmem:[%s370] ss:$8 sm:$0xf0]
  %vm372 = vcmask 1047556
  %v373 = vsel %vm372, %v371, %v369
  %vm374 = vcmask 130048
  %s375 = scalar_lea.vmem %s1, 328
  %376 = vst.msk [vmem:[%s375] sm:$0xff] %vm374, %v373
  %s377 = scalar_lea.vmem %s0, 2688
  %v378 = vld [vmem:[%s377] ss:$8 sm:$0xf]
  %s379 = scalar_lea.vmem %s0, 2688
  %v380 = vld [vmem:[%s379] ss:$8 sm:$0xf0]
  %vm381 = vcmask 1047556
  %v382 = vsel %vm381, %v380, %v378
  %vm383 = vcmask 130048
  %s384 = scalar_lea.vmem %s1, 336
  %385 = vst.msk [vmem:[%s384] sm:$0xff] %vm383, %v382
  %s386 = scalar_lea.vmem %s0, 2752
  %v387 = vld [vmem:[%s386] ss:$8 sm:$0xf]
  %s388 = scalar_lea.vmem %s0, 2752
  %v389 = vld [vmem:[%s388] ss:$8 sm:$0xf0]
  %vm390 = vcmask 1047556
  %v391 = vsel %vm390, %v389, %v387
  %vm392 = vcmask 130048
  %s393 = scalar_lea.vmem %s1, 344
  %394 = vst.msk [vmem:[%s393] sm:$0xff] %vm392, %v391
  %s395 = scalar_lea.vmem %s0, 2816
  %v396 = vld [vmem:[%s395] ss:$8 sm:$0xf]
  %s397 = scalar_lea.vmem %s0, 2816
  %v398 = vld [vmem:[%s397] ss:$8 sm:$0xf0]
  %vm399 = vcmask 1047556
  %v400 = vsel %vm399, %v398, %v396
  %vm401 = vcmask 130048
  %s402 = scalar_lea.vmem %s1, 352
  %403 = vst.msk [vmem:[%s402] sm:$0xff] %vm401, %v400
  %s404 = scalar_lea.vmem %s0, 2880
  %v405 = vld [vmem:[%s404] ss:$8 sm:$0xf]
  %s406 = scalar_lea.vmem %s0, 2880
  %v407 = vld [vmem:[%s406] ss:$8 sm:$0xf0]
  %vm408 = vcmask 1047556
  %v409 = vsel %vm408, %v407, %v405
  %vm410 = vcmask 130048
  %s411 = scalar_lea.vmem %s1, 360
  %412 = vst.msk [vmem:[%s411] sm:$0xff] %vm410, %v409
  %s413 = scalar_lea.vmem %s0, 2944
  %v414 = vld [vmem:[%s413] ss:$8 sm:$0xf]
  %s415 = scalar_lea.vmem %s0, 2944
  %v416 = vld [vmem:[%s415] ss:$8 sm:$0xf0]
  %vm417 = vcmask 1047556
  %v418 = vsel %vm417, %v416, %v414
  %vm419 = vcmask 130048
  %s420 = scalar_lea.vmem %s1, 368
  %421 = vst.msk [vmem:[%s420] sm:$0xff] %vm419, %v418
  %s422 = scalar_lea.vmem %s0, 3008
  %v423 = vld [vmem:[%s422] ss:$8 sm:$0xf]
  %s424 = scalar_lea.vmem %s0, 3008
  %v425 = vld [vmem:[%s424] ss:$8 sm:$0xf0]
  %vm426 = vcmask 1047556
  %v427 = vsel %vm426, %v425, %v423
  %vm428 = vcmask 130048
  %s429 = scalar_lea.vmem %s1, 376
  %430 = vst.msk [vmem:[%s429] sm:$0xff] %vm428, %v427
  %s431 = scalar_lea.vmem %s0, 3072
  %v432 = vld [vmem:[%s431] ss:$8 sm:$0xf]
  %s433 = scalar_lea.vmem %s0, 3072
  %v434 = vld [vmem:[%s433] ss:$8 sm:$0xf0]
  %vm435 = vcmask 1047556
  %v436 = vsel %vm435, %v434, %v432
  %vm437 = vcmask 130048
  %s438 = scalar_lea.vmem %s1, 384
  %439 = vst.msk [vmem:[%s438] sm:$0xff] %vm437, %v436
  %s440 = scalar_lea.vmem %s0, 3136
  %v441 = vld [vmem:[%s440] ss:$8 sm:$0xf]
  %s442 = scalar_lea.vmem %s0, 3136
  %v443 = vld [vmem:[%s442] ss:$8 sm:$0xf0]
  %vm444 = vcmask 1047556
  %v445 = vsel %vm444, %v443, %v441
  %vm446 = vcmask 130048
  %s447 = scalar_lea.vmem %s1, 392
  %448 = vst.msk [vmem:[%s447] sm:$0xff] %vm446, %v445
  %s449 = scalar_lea.vmem %s0, 3200
  %v450 = vld [vmem:[%s449] ss:$8 sm:$0xf]
  %s451 = scalar_lea.vmem %s0, 3200
  %v452 = vld [vmem:[%s451] ss:$8 sm:$0xf0]
  %vm453 = vcmask 1047556
  %v454 = vsel %vm453, %v452, %v450
  %vm455 = vcmask 130048
  %s456 = scalar_lea.vmem %s1, 400
  %457 = vst.msk [vmem:[%s456] sm:$0xff] %vm455, %v454
  %s458 = scalar_lea.vmem %s0, 3264
  %v459 = vld [vmem:[%s458] ss:$8 sm:$0xf]
  %s460 = scalar_lea.vmem %s0, 3264
  %v461 = vld [vmem:[%s460] ss:$8 sm:$0xf0]
  %vm462 = vcmask 1047556
  %v463 = vsel %vm462, %v461, %v459
  %vm464 = vcmask 130048
  %s465 = scalar_lea.vmem %s1, 408
  %466 = vst.msk [vmem:[%s465] sm:$0xff] %vm464, %v463
  %s467 = scalar_lea.vmem %s0, 3328
  %v468 = vld [vmem:[%s467] ss:$8 sm:$0xf]
  %s469 = scalar_lea.vmem %s0, 3328
  %v470 = vld [vmem:[%s469] ss:$8 sm:$0xf0]
  %vm471 = vcmask 1047556
  %v472 = vsel %vm471, %v470, %v468
  %vm473 = vcmask 130048
  %s474 = scalar_lea.vmem %s1, 416
  %475 = vst.msk [vmem:[%s474] sm:$0xff] %vm473, %v472
  %s476 = scalar_lea.vmem %s0, 3392
  %v477 = vld [vmem:[%s476] ss:$8 sm:$0xf]
  %s478 = scalar_lea.vmem %s0, 3392
  %v479 = vld [vmem:[%s478] ss:$8 sm:$0xf0]
  %vm480 = vcmask 1047556
  %v481 = vsel %vm480, %v479, %v477
  %vm482 = vcmask 130048
  %s483 = scalar_lea.vmem %s1, 424
  %484 = vst.msk [vmem:[%s483] sm:$0xff] %vm482, %v481
  %s485 = scalar_lea.vmem %s0, 3456
  %v486 = vld [vmem:[%s485] ss:$8 sm:$0xf]
  %s487 = scalar_lea.vmem %s0, 3456
  %v488 = vld [vmem:[%s487] ss:$8 sm:$0xf0]
  %vm489 = vcmask 1047556
  %v490 = vsel %vm489, %v488, %v486
  %vm491 = vcmask 130048
  %s492 = scalar_lea.vmem %s1, 432
  %493 = vst.msk [vmem:[%s492] sm:$0xff] %vm491, %v490
  %s494 = scalar_lea.vmem %s0, 3520
  %v495 = vld [vmem:[%s494] ss:$8 sm:$0xf]
  %s496 = scalar_lea.vmem %s0, 3520
  %v497 = vld [vmem:[%s496] ss:$8 sm:$0xf0]
  %vm498 = vcmask 1047556
  %v499 = vsel %vm498, %v497, %v495
  %vm500 = vcmask 130048
  %s501 = scalar_lea.vmem %s1, 440
  %502 = vst.msk [vmem:[%s501] sm:$0xff] %vm500, %v499
  %s503 = scalar_lea.vmem %s0, 3584
  %v504 = vld [vmem:[%s503] ss:$8 sm:$0xf]
  %s505 = scalar_lea.vmem %s0, 3584
  %v506 = vld [vmem:[%s505] ss:$8 sm:$0xf0]
  %vm507 = vcmask 1047556
  %v508 = vsel %vm507, %v506, %v504
  %vm509 = vcmask 130048
  %s510 = scalar_lea.vmem %s1, 448
  %511 = vst.msk [vmem:[%s510] sm:$0xff] %vm509, %v508
  %s512 = scalar_lea.vmem %s0, 3648
  %v513 = vld [vmem:[%s512] ss:$8 sm:$0xf]
  %s514 = scalar_lea.vmem %s0, 3648
  %v515 = vld [vmem:[%s514] ss:$8 sm:$0xf0]
  %vm516 = vcmask 1047556
  %v517 = vsel %vm516, %v515, %v513
  %vm518 = vcmask 130048
  %s519 = scalar_lea.vmem %s1, 456
  %520 = vst.msk [vmem:[%s519] sm:$0xff] %vm518, %v517
  %s521 = scalar_lea.vmem %s0, 3712
  %v522 = vld [vmem:[%s521] ss:$8 sm:$0xf]
  %s523 = scalar_lea.vmem %s0, 3712
  %v524 = vld [vmem:[%s523] ss:$8 sm:$0xf0]
  %vm525 = vcmask 1047556
  %v526 = vsel %vm525, %v524, %v522
  %vm527 = vcmask 130048
  %s528 = scalar_lea.vmem %s1, 464
  %529 = vst.msk [vmem:[%s528] sm:$0xff] %vm527, %v526
  %s530 = scalar_lea.vmem %s0, 3776
  %v531 = vld [vmem:[%s530] ss:$8 sm:$0xf]
  %s532 = scalar_lea.vmem %s0, 3776
  %v533 = vld [vmem:[%s532] ss:$8 sm:$0xf0]
  %vm534 = vcmask 1047556
  %v535 = vsel %vm534, %v533, %v531
  %vm536 = vcmask 130048
  %s537 = scalar_lea.vmem %s1, 472
  %538 = vst.msk [vmem:[%s537] sm:$0xff] %vm536, %v535
  %s539 = scalar_lea.vmem %s0, 3840
  %v540 = vld [vmem:[%s539] ss:$8 sm:$0xf]
  %s541 = scalar_lea.vmem %s0, 3840
  %v542 = vld [vmem:[%s541] ss:$8 sm:$0xf0]
  %vm543 = vcmask 1047556
  %v544 = vsel %vm543, %v542, %v540
  %vm545 = vcmask 130048
  %s546 = scalar_lea.vmem %s1, 480
  %547 = vst.msk [vmem:[%s546] sm:$0xff] %vm545, %v544
  %s548 = scalar_lea.vmem %s0, 3904
  %v549 = vld [vmem:[%s548] ss:$8 sm:$0xf]
  %s550 = scalar_lea.vmem %s0, 3904
  %v551 = vld [vmem:[%s550] ss:$8 sm:$0xf0]
  %vm552 = vcmask 1047556
  %v553 = vsel %vm552, %v551, %v549
  %vm554 = vcmask 130048
  %s555 = scalar_lea.vmem %s1, 488
  %556 = vst.msk [vmem:[%s555] sm:$0xff] %vm554, %v553
  %s557 = scalar_lea.vmem %s0, 3968
  %v558 = vld [vmem:[%s557] ss:$8 sm:$0xf]
  %s559 = scalar_lea.vmem %s0, 3968
  %v560 = vld [vmem:[%s559] ss:$8 sm:$0xf0]
  %vm561 = vcmask 1047556
  %v562 = vsel %vm561, %v560, %v558
  %vm563 = vcmask 130048
  %s564 = scalar_lea.vmem %s1, 496
  %565 = vst.msk [vmem:[%s564] sm:$0xff] %vm563, %v562
  %s566 = scalar_lea.vmem %s0, 4032
  %v567 = vld [vmem:[%s566] ss:$8 sm:$0xf]
  %s568 = scalar_lea.vmem %s0, 4032
  %v569 = vld [vmem:[%s568] ss:$8 sm:$0xf0]
  %vm570 = vcmask 1047556
  %v571 = vsel %vm570, %v569, %v567
  %vm572 = vcmask 130048
  %s573 = scalar_lea.vmem %s1, 504
  %574 = vst.msk [vmem:[%s573] sm:$0xff] %vm572, %v571
  %s575 = scalar_lea.vmem %s0, 7
  %v576 = vld [vmem:[%s575] ss:$8 sm:$0xf]
  %s577 = scalar_lea.vmem %s0, 7
  %v578 = vld [vmem:[%s577] ss:$8 sm:$0xf0]
  %vm579 = vcmask 1047556
  %v580 = vsel %vm579, %v578, %v576
  %581 = vrot.lane.b32.xlu0 %v580, 112
  %v582 = vpop.permute.xlu0 %581
  %vm583 = vcmask 1048448
  %584 = vst.msk [vmem:[%s1] sm:$0xff] %vm583, %v582
  %s585 = scalar_lea.vmem %s0, 263
  %v586 = vld [vmem:[%s585] ss:$8 sm:$0xf]
  %s587 = scalar_lea.vmem %s0, 263
  %v588 = vld [vmem:[%s587] ss:$8 sm:$0xf0]
  %vm589 = vcmask 1047556
  %v590 = vsel %vm589, %v588, %v586
  %591 = vrot.lane.b32.xlu0 %v590, 112
  %v592 = vpop.permute.xlu0 %591
  %vm593 = vcmask 1048448
  %s594 = scalar_lea.vmem %s1, 32
  %595 = vst.msk [vmem:[%s594] sm:$0xff] %vm593, %v592
  %s596 = scalar_lea.vmem %s0, 519
  %v597 = vld [vmem:[%s596] ss:$8 sm:$0xf]
  %s598 = scalar_lea.vmem %s0, 519
  %v599 = vld [vmem:[%s598] ss:$8 sm:$0xf0]
  %vm600 = vcmask 1047556
  %v601 = vsel %vm600, %v599, %v597
  %602 = vrot.lane.b32.xlu0 %v601, 112
  %v603 = vpop.permute.xlu0 %602
  %vm604 = vcmask 1048448
  %s605 = scalar_lea.vmem %s1, 64
  %606 = vst.msk [vmem:[%s605] sm:$0xff] %vm604, %v603
  %s607 = scalar_lea.vmem %s0, 775
  %v608 = vld [vmem:[%s607] ss:$8 sm:$0xf]
  %s609 = scalar_lea.vmem %s0, 775
  %v610 = vld [vmem:[%s609] ss:$8 sm:$0xf0]
  %vm611 = vcmask 1047556
  %v612 = vsel %vm611, %v610, %v608
  %613 = vrot.lane.b32.xlu0 %v612, 112
  %v614 = vpop.permute.xlu0 %613
  %vm615 = vcmask 1048448
  %s616 = scalar_lea.vmem %s1, 96
  %617 = vst.msk [vmem:[%s616] sm:$0xff] %vm615, %v614
  %s618 = scalar_lea.vmem %s0, 1031
  %v619 = vld [vmem:[%s618] ss:$8 sm:$0xf]
  %s620 = scalar_lea.vmem %s0, 1031
  %v621 = vld [vmem:[%s620] ss:$8 sm:$0xf0]
  %vm622 = vcmask 1047556
  %v623 = vsel %vm622, %v621, %v619
  %624 = vrot.lane.b32.xlu0 %v623, 112
  %v625 = vpop.permute.xlu0 %624
  %vm626 = vcmask 1048448
  %s627 = scalar_lea.vmem %s1, 128
  %628 = vst.msk [vmem:[%s627] sm:$0xff] %vm626, %v625
  %s629 = scalar_lea.vmem %s0, 1287
  %v630 = vld [vmem:[%s629] ss:$8 sm:$0xf]
  %s631 = scalar_lea.vmem %s0, 1287
  %v632 = vld [vmem:[%s631] ss:$8 sm:$0xf0]
  %vm633 = vcmask 1047556
  %v634 = vsel %vm633, %v632, %v630
  %635 = vrot.lane.b32.xlu0 %v634, 112
  %v636 = vpop.permute.xlu0 %635
  %vm637 = vcmask 1048448
  %s638 = scalar_lea.vmem %s1, 160
  %639 = vst.msk [vmem:[%s638] sm:$0xff] %vm637, %v636
  %s640 = scalar_lea.vmem %s0, 1543
  %v641 = vld [vmem:[%s640] ss:$8 sm:$0xf]
  %s642 = scalar_lea.vmem %s0, 1543
  %v643 = vld [vmem:[%s642] ss:$8 sm:$0xf0]
  %vm644 = vcmask 1047556
  %v645 = vsel %vm644, %v643, %v641
  %646 = vrot.lane.b32.xlu0 %v645, 112
  %v647 = vpop.permute.xlu0 %646
  %vm648 = vcmask 1048448
  %s649 = scalar_lea.vmem %s1, 192
  %650 = vst.msk [vmem:[%s649] sm:$0xff] %vm648, %v647
  %s651 = scalar_lea.vmem %s0, 1799
  %v652 = vld [vmem:[%s651] ss:$8 sm:$0xf]
  %s653 = scalar_lea.vmem %s0, 1799
  %v654 = vld [vmem:[%s653] ss:$8 sm:$0xf0]
  %vm655 = vcmask 1047556
  %v656 = vsel %vm655, %v654, %v652
  %657 = vrot.lane.b32.xlu0 %v656, 112
  %v658 = vpop.permute.xlu0 %657
  %vm659 = vcmask 1048448
  %s660 = scalar_lea.vmem %s1, 224
  %661 = vst.msk [vmem:[%s660] sm:$0xff] %vm659, %v658
  %s662 = scalar_lea.vmem %s0, 2055
  %v663 = vld [vmem:[%s662] ss:$8 sm:$0xf]
  %s664 = scalar_lea.vmem %s0, 2055
  %v665 = vld [vmem:[%s664] ss:$8 sm:$0xf0]
  %vm666 = vcmask 1047556
  %v667 = vsel %vm666, %v665, %v663
  %668 = vrot.lane.b32.xlu0 %v667, 112
  %v669 = vpop.permute.xlu0 %668
  %vm670 = vcmask 1048448
  %s671 = scalar_lea.vmem %s1, 256
  %672 = vst.msk [vmem:[%s671] sm:$0xff] %vm670, %v669
  %s673 = scalar_lea.vmem %s0, 2311
  %v674 = vld [vmem:[%s673] ss:$8 sm:$0xf]
  %s675 = scalar_lea.vmem %s0, 2311
  %v676 = vld [vmem:[%s675] ss:$8 sm:$0xf0]
  %vm677 = vcmask 1047556
  %v678 = vsel %vm677, %v676, %v674
  %679 = vrot.lane.b32.xlu0 %v678, 112
  %v680 = vpop.permute.xlu0 %679
  %vm681 = vcmask 1048448
  %s682 = scalar_lea.vmem %s1, 288
  %683 = vst.msk [vmem:[%s682] sm:$0xff] %vm681, %v680
  %s684 = scalar_lea.vmem %s0, 2567
  %v685 = vld [vmem:[%s684] ss:$8 sm:$0xf]
  %s686 = scalar_lea.vmem %s0, 2567
  %v687 = vld [vmem:[%s686] ss:$8 sm:$0xf0]
  %vm688 = vcmask 1047556
  %v689 = vsel %vm688, %v687, %v685
  %690 = vrot.lane.b32.xlu0 %v689, 112
  %v691 = vpop.permute.xlu0 %690
  %vm692 = vcmask 1048448
  %s693 = scalar_lea.vmem %s1, 320
  %694 = vst.msk [vmem:[%s693] sm:$0xff] %vm692, %v691
  %s695 = scalar_lea.vmem %s0, 2823
  %v696 = vld [vmem:[%s695] ss:$8 sm:$0xf]
  %s697 = scalar_lea.vmem %s0, 2823
  %v698 = vld [vmem:[%s697] ss:$8 sm:$0xf0]
  %vm699 = vcmask 1047556
  %v700 = vsel %vm699, %v698, %v696
  %701 = vrot.lane.b32.xlu0 %v700, 112
  %v702 = vpop.permute.xlu0 %701
  %vm703 = vcmask 1048448
  %s704 = scalar_lea.vmem %s1, 352
  %705 = vst.msk [vmem:[%s704] sm:$0xff] %vm703, %v702
  %s706 = scalar_lea.vmem %s0, 3079
  %v707 = vld [vmem:[%s706] ss:$8 sm:$0xf]
  %s708 = scalar_lea.vmem %s0, 3079
  %v709 = vld [vmem:[%s708] ss:$8 sm:$0xf0]
  %vm710 = vcmask 1047556
  %v711 = vsel %vm710, %v709, %v707
  %712 = vrot.lane.b32.xlu0 %v711, 112
  %v713 = vpop.permute.xlu0 %712
  %vm714 = vcmask 1048448
  %s715 = scalar_lea.vmem %s1, 384
  %716 = vst.msk [vmem:[%s715] sm:$0xff] %vm714, %v713
  %s717 = scalar_lea.vmem %s0, 3335
  %v718 = vld [vmem:[%s717] ss:$8 sm:$0xf]
  %s719 = scalar_lea.vmem %s0, 3335
  %v720 = vld [vmem:[%s719] ss:$8 sm:$0xf0]
  %vm721 = vcmask 1047556
  %v722 = vsel %vm721, %v720, %v718
  %723 = vrot.lane.b32.xlu0 %v722, 112
  %v724 = vpop.permute.xlu0 %723
  %vm725 = vcmask 1048448
  %s726 = scalar_lea.vmem %s1, 416
  %727 = vst.msk [vmem:[%s726] sm:$0xff] %vm725, %v724
  %s728 = scalar_lea.vmem %s0, 3591
  %v729 = vld [vmem:[%s728] ss:$8 sm:$0xf]
  %s730 = scalar_lea.vmem %s0, 3591
  %v731 = vld [vmem:[%s730] ss:$8 sm:$0xf0]
  %vm732 = vcmask 1047556
  %v733 = vsel %vm732, %v731, %v729
  %734 = vrot.lane.b32.xlu0 %v733, 112
  %v735 = vpop.permute.xlu0 %734
  %vm736 = vcmask 1048448
  %s737 = scalar_lea.vmem %s1, 448
  %738 = vst.msk [vmem:[%s737] sm:$0xff] %vm736, %v735
  %s739 = scalar_lea.vmem %s0, 3847
  %v740 = vld [vmem:[%s739] ss:$8 sm:$0xf]
  %s741 = scalar_lea.vmem %s0, 3847
  %v742 = vld [vmem:[%s741] ss:$8 sm:$0xf0]
  %vm743 = vcmask 1047556
  %v744 = vsel %vm743, %v742, %v740
  %745 = vrot.lane.b32.xlu0 %v744, 112
  %v746 = vpop.permute.xlu0 %745
  %vm747 = vcmask 1048448
  %s748 = scalar_lea.vmem %s1, 480
  %749 = vst.msk [vmem:[%s748] sm:$0xff] %vm747, %v746
  %s750 = scalar_lea.vmem %s0, 71
  %v751 = vld [vmem:[%s750] ss:$8 sm:$0xf]
  %s752 = scalar_lea.vmem %s0, 71
  %v753 = vld [vmem:[%s752] ss:$8 sm:$0xf0]
  %vm754 = vcmask 1047556
  %v755 = vsel %vm754, %v753, %v751
  %756 = vrot.lane.b32.xlu0 %v755, 112
  %v757 = vpop.permute.xlu0 %756
  %vm758 = vcmask 1048448
  %s759 = scalar_lea.vmem %s1, 8
  %760 = vst.msk [vmem:[%s759] sm:$0xff] %vm758, %v757
  %s761 = scalar_lea.vmem %s0, 327
  %v762 = vld [vmem:[%s761] ss:$8 sm:$0xf]
  %s763 = scalar_lea.vmem %s0, 327
  %v764 = vld [vmem:[%s763] ss:$8 sm:$0xf0]
  %vm765 = vcmask 1047556
  %v766 = vsel %vm765, %v764, %v762
  %767 = vrot.lane.b32.xlu0 %v766, 112
  %v768 = vpop.permute.xlu0 %767
  %vm769 = vcmask 1048448
  %s770 = scalar_lea.vmem %s1, 40
  %771 = vst.msk [vmem:[%s770] sm:$0xff] %vm769, %v768
  %s772 = scalar_lea.vmem %s0, 583
  %v773 = vld [vmem:[%s772] ss:$8 sm:$0xf]
  %s774 = scalar_lea.vmem %s0, 583
  %v775 = vld [vmem:[%s774] ss:$8 sm:$0xf0]
  %vm776 = vcmask 1047556
  %v777 = vsel %vm776, %v775, %v773
  %778 = vrot.lane.b32.xlu0 %v777, 112
  %v779 = vpop.permute.xlu0 %778
  %vm780 = vcmask 1048448
  %s781 = scalar_lea.vmem %s1, 72
  %782 = vst.msk [vmem:[%s781] sm:$0xff] %vm780, %v779
  %s783 = scalar_lea.vmem %s0, 839
  %v784 = vld [vmem:[%s783] ss:$8 sm:$0xf]
  %s785 = scalar_lea.vmem %s0, 839
  %v786 = vld [vmem:[%s785] ss:$8 sm:$0xf0]
  %vm787 = vcmask 1047556
  %v788 = vsel %vm787, %v786, %v784
  %789 = vrot.lane.b32.xlu0 %v788, 112
  %v790 = vpop.permute.xlu0 %789
  %vm791 = vcmask 1048448
  %s792 = scalar_lea.vmem %s1, 104
  %793 = vst.msk [vmem:[%s792] sm:$0xff] %vm791, %v790
  %s794 = scalar_lea.vmem %s0, 1095
  %v795 = vld [vmem:[%s794] ss:$8 sm:$0xf]
  %s796 = scalar_lea.vmem %s0, 1095
  %v797 = vld [vmem:[%s796] ss:$8 sm:$0xf0]
  %vm798 = vcmask 1047556
  %v799 = vsel %vm798, %v797, %v795
  %800 = vrot.lane.b32.xlu0 %v799, 112
  %v801 = vpop.permute.xlu0 %800
  %vm802 = vcmask 1048448
  %s803 = scalar_lea.vmem %s1, 136
  %804 = vst.msk [vmem:[%s803] sm:$0xff] %vm802, %v801
  %s805 = scalar_lea.vmem %s0, 1351
  %v806 = vld [vmem:[%s805] ss:$8 sm:$0xf]
  %s807 = scalar_lea.vmem %s0, 1351
  %v808 = vld [vmem:[%s807] ss:$8 sm:$0xf0]
  %vm809 = vcmask 1047556
  %v810 = vsel %vm809, %v808, %v806
  %811 = vrot.lane.b32.xlu0 %v810, 112
  %v812 = vpop.permute.xlu0 %811
  %vm813 = vcmask 1048448
  %s814 = scalar_lea.vmem %s1, 168
  %815 = vst.msk [vmem:[%s814] sm:$0xff] %vm813, %v812
  %s816 = scalar_lea.vmem %s0, 1607
  %v817 = vld [vmem:[%s816] ss:$8 sm:$0xf]
  %s818 = scalar_lea.vmem %s0, 1607
  %v819 = vld [vmem:[%s818] ss:$8 sm:$0xf0]
  %vm820 = vcmask 1047556
  %v821 = vsel %vm820, %v819, %v817
  %822 = vrot.lane.b32.xlu0 %v821, 112
  %v823 = vpop.permute.xlu0 %822
  %vm824 = vcmask 1048448
  %s825 = scalar_lea.vmem %s1, 200
  %826 = vst.msk [vmem:[%s825] sm:$0xff] %vm824, %v823
  %s827 = scalar_lea.vmem %s0, 1863
  %v828 = vld [vmem:[%s827] ss:$8 sm:$0xf]
  %s829 = scalar_lea.vmem %s0, 1863
  %v830 = vld [vmem:[%s829] ss:$8 sm:$0xf0]
  %vm831 = vcmask 1047556
  %v832 = vsel %vm831, %v830, %v828
  %833 = vrot.lane.b32.xlu0 %v832, 112
  %v834 = vpop.permute.xlu0 %833
  %vm835 = vcmask 1048448
  %s836 = scalar_lea.vmem %s1, 232
  %837 = vst.msk [vmem:[%s836] sm:$0xff] %vm835, %v834
  %s838 = scalar_lea.vmem %s0, 2119
  %v839 = vld [vmem:[%s838] ss:$8 sm:$0xf]
  %s840 = scalar_lea.vmem %s0, 2119
  %v841 = vld [vmem:[%s840] ss:$8 sm:$0xf0]
  %vm842 = vcmask 1047556
  %v843 = vsel %vm842, %v841, %v839
  %844 = vrot.lane.b32.xlu0 %v843, 112
  %v845 = vpop.permute.xlu0 %844
  %vm846 = vcmask 1048448
  %s847 = scalar_lea.vmem %s1, 264
  %848 = vst.msk [vmem:[%s847] sm:$0xff] %vm846, %v845
  %s849 = scalar_lea.vmem %s0, 2375
  %v850 = vld [vmem:[%s849] ss:$8 sm:$0xf]
  %s851 = scalar_lea.vmem %s0, 2375
  %v852 = vld [vmem:[%s851] ss:$8 sm:$0xf0]
  %vm853 = vcmask 1047556
  %v854 = vsel %vm853, %v852, %v850
  %855 = vrot.lane.b32.xlu0 %v854, 112
  %v856 = vpop.permute.xlu0 %855
  %vm857 = vcmask 1048448
  %s858 = scalar_lea.vmem %s1, 296
  %859 = vst.msk [vmem:[%s858] sm:$0xff] %vm857, %v856
  %s860 = scalar_lea.vmem %s0, 2631
  %v861 = vld [vmem:[%s860] ss:$8 sm:$0xf]
  %s862 = scalar_lea.vmem %s0, 2631
  %v863 = vld [vmem:[%s862] ss:$8 sm:$0xf0]
  %vm864 = vcmask 1047556
  %v865 = vsel %vm864, %v863, %v861
  %866 = vrot.lane.b32.xlu0 %v865, 112
  %v867 = vpop.permute.xlu0 %866
  %vm868 = vcmask 1048448
  %s869 = scalar_lea.vmem %s1, 328
  %870 = vst.msk [vmem:[%s869] sm:$0xff] %vm868, %v867
  %s871 = scalar_lea.vmem %s0, 2887
  %v872 = vld [vmem:[%s871] ss:$8 sm:$0xf]
  %s873 = scalar_lea.vmem %s0, 2887
  %v874 = vld [vmem:[%s873] ss:$8 sm:$0xf0]
  %vm875 = vcmask 1047556
  %v876 = vsel %vm875, %v874, %v872
  %877 = vrot.lane.b32.xlu0 %v876, 112
  %v878 = vpop.permute.xlu0 %877
  %vm879 = vcmask 1048448
  %s880 = scalar_lea.vmem %s1, 360
  %881 = vst.msk [vmem:[%s880] sm:$0xff] %vm879, %v878
  %s882 = scalar_lea.vmem %s0, 3143
  %v883 = vld [vmem:[%s882] ss:$8 sm:$0xf]
  %s884 = scalar_lea.vmem %s0, 3143
  %v885 = vld [vmem:[%s884] ss:$8 sm:$0xf0]
  %vm886 = vcmask 1047556
  %v887 = vsel %vm886, %v885, %v883
  %888 = vrot.lane.b32.xlu0 %v887, 112
  %v889 = vpop.permute.xlu0 %888
  %vm890 = vcmask 1048448
  %s891 = scalar_lea.vmem %s1, 392
  %892 = vst.msk [vmem:[%s891] sm:$0xff] %vm890, %v889
  %s893 = scalar_lea.vmem %s0, 3399
  %v894 = vld [vmem:[%s893] ss:$8 sm:$0xf]
  %s895 = scalar_lea.vmem %s0, 3399
  %v896 = vld [vmem:[%s895] ss:$8 sm:$0xf0]
  %vm897 = vcmask 1047556
  %v898 = vsel %vm897, %v896, %v894
  %899 = vrot.lane.b32.xlu0 %v898, 112
  %v900 = vpop.permute.xlu0 %899
  %vm901 = vcmask 1048448
  %s902 = scalar_lea.vmem %s1, 424
  %903 = vst.msk [vmem:[%s902] sm:$0xff] %vm901, %v900
  %s904 = scalar_lea.vmem %s0, 3655
  %v905 = vld [vmem:[%s904] ss:$8 sm:$0xf]
  %s906 = scalar_lea.vmem %s0, 3655
  %v907 = vld [vmem:[%s906] ss:$8 sm:$0xf0]
  %vm908 = vcmask 1047556
  %v909 = vsel %vm908, %v907, %v905
  %910 = vrot.lane.b32.xlu0 %v909, 112
  %v911 = vpop.permute.xlu0 %910
  %vm912 = vcmask 1048448
  %s913 = scalar_lea.vmem %s1, 456
  %914 = vst.msk [vmem:[%s913] sm:$0xff] %vm912, %v911
  %s915 = scalar_lea.vmem %s0, 3911
  %v916 = vld [vmem:[%s915] ss:$8 sm:$0xf]
  %s917 = scalar_lea.vmem %s0, 3911
  %v918 = vld [vmem:[%s917] ss:$8 sm:$0xf0]
  %vm919 = vcmask 1047556
  %v920 = vsel %vm919, %v918, %v916
  %921 = vrot.lane.b32.xlu0 %v920, 112
  %v922 = vpop.permute.xlu0 %921
  %vm923 = vcmask 1048448
  %s924 = scalar_lea.vmem %s1, 488
  %925 = vst.msk [vmem:[%s924] sm:$0xff] %vm923, %v922
  %s926 = scalar_lea.vmem %s0, 135
  %v927 = vld [vmem:[%s926] ss:$8 sm:$0xf]
  %s928 = scalar_lea.vmem %s0, 135
  %v929 = vld [vmem:[%s928] ss:$8 sm:$0xf0]
  %vm930 = vcmask 1047556
  %v931 = vsel %vm930, %v929, %v927
  %932 = vrot.lane.b32.xlu0 %v931, 112
  %v933 = vpop.permute.xlu0 %932
  %vm934 = vcmask 1048448
  %s935 = scalar_lea.vmem %s1, 16
  %936 = vst.msk [vmem:[%s935] sm:$0xff] %vm934, %v933
  %s937 = scalar_lea.vmem %s0, 391
  %v938 = vld [vmem:[%s937] ss:$8 sm:$0xf]
  %s939 = scalar_lea.vmem %s0, 391
  %v940 = vld [vmem:[%s939] ss:$8 sm:$0xf0]
  %vm941 = vcmask 1047556
  %v942 = vsel %vm941, %v940, %v938
  %943 = vrot.lane.b32.xlu0 %v942, 112
  %v944 = vpop.permute.xlu0 %943
  %vm945 = vcmask 1048448
  %s946 = scalar_lea.vmem %s1, 48
  %947 = vst.msk [vmem:[%s946] sm:$0xff] %vm945, %v944
  %s948 = scalar_lea.vmem %s0, 647
  %v949 = vld [vmem:[%s948] ss:$8 sm:$0xf]
  %s950 = scalar_lea.vmem %s0, 647
  %v951 = vld [vmem:[%s950] ss:$8 sm:$0xf0]
  %vm952 = vcmask 1047556
  %v953 = vsel %vm952, %v951, %v949
  %954 = vrot.lane.b32.xlu0 %v953, 112
  %v955 = vpop.permute.xlu0 %954
  %vm956 = vcmask 1048448
  %s957 = scalar_lea.vmem %s1, 80
  %958 = vst.msk [vmem:[%s957] sm:$0xff] %vm956, %v955
  %s959 = scalar_lea.vmem %s0, 903
  %v960 = vld [vmem:[%s959] ss:$8 sm:$0xf]
  %s961 = scalar_lea.vmem %s0, 903
  %v962 = vld [vmem:[%s961] ss:$8 sm:$0xf0]
  %vm963 = vcmask 1047556
  %v964 = vsel %vm963, %v962, %v960
  %965 = vrot.lane.b32.xlu0 %v964, 112
  %v966 = vpop.permute.xlu0 %965
  %vm967 = vcmask 1048448
  %s968 = scalar_lea.vmem %s1, 112
  %969 = vst.msk [vmem:[%s968] sm:$0xff] %vm967, %v966
  %s970 = scalar_lea.vmem %s0, 1159
  %v971 = vld [vmem:[%s970] ss:$8 sm:$0xf]
  %s972 = scalar_lea.vmem %s0, 1159
  %v973 = vld [vmem:[%s972] ss:$8 sm:$0xf0]
  %vm974 = vcmask 1047556
  %v975 = vsel %vm974, %v973, %v971
  %976 = vrot.lane.b32.xlu0 %v975, 112
  %v977 = vpop.permute.xlu0 %976
  %vm978 = vcmask 1048448
  %s979 = scalar_lea.vmem %s1, 144
  %980 = vst.msk [vmem:[%s979] sm:$0xff] %vm978, %v977
  %s981 = scalar_lea.vmem %s0, 1415
  %v982 = vld [vmem:[%s981] ss:$8 sm:$0xf]
  %s983 = scalar_lea.vmem %s0, 1415
  %v984 = vld [vmem:[%s983] ss:$8 sm:$0xf0]
  %vm985 = vcmask 1047556
  %v986 = vsel %vm985, %v984, %v982
  %987 = vrot.lane.b32.xlu0 %v986, 112
  %v988 = vpop.permute.xlu0 %987
  %vm989 = vcmask 1048448
  %s990 = scalar_lea.vmem %s1, 176
  %991 = vst.msk [vmem:[%s990] sm:$0xff] %vm989, %v988
  %s992 = scalar_lea.vmem %s0, 1671
  %v993 = vld [vmem:[%s992] ss:$8 sm:$0xf]
  %s994 = scalar_lea.vmem %s0, 1671
  %v995 = vld [vmem:[%s994] ss:$8 sm:$0xf0]
  %vm996 = vcmask 1047556
  %v997 = vsel %vm996, %v995, %v993
  %998 = vrot.lane.b32.xlu0 %v997, 112
  %v999 = vpop.permute.xlu0 %998
  %vm1000 = vcmask 1048448
  %s1001 = scalar_lea.vmem %s1, 208
  %1002 = vst.msk [vmem:[%s1001] sm:$0xff] %vm1000, %v999
  %s1003 = scalar_lea.vmem %s0, 1927
  %v1004 = vld [vmem:[%s1003] ss:$8 sm:$0xf]
  %s1005 = scalar_lea.vmem %s0, 1927
  %v1006 = vld [vmem:[%s1005] ss:$8 sm:$0xf0]
  %vm1007 = vcmask 1047556
  %v1008 = vsel %vm1007, %v1006, %v1004
  %1009 = vrot.lane.b32.xlu0 %v1008, 112
  %v1010 = vpop.permute.xlu0 %1009
  %vm1011 = vcmask 1048448
  %s1012 = scalar_lea.vmem %s1, 240
  %1013 = vst.msk [vmem:[%s1012] sm:$0xff] %vm1011, %v1010
  %s1014 = scalar_lea.vmem %s0, 2183
  %v1015 = vld [vmem:[%s1014] ss:$8 sm:$0xf]
  %s1016 = scalar_lea.vmem %s0, 2183
  %v1017 = vld [vmem:[%s1016] ss:$8 sm:$0xf0]
  %vm1018 = vcmask 1047556
  %v1019 = vsel %vm1018, %v1017, %v1015
  %1020 = vrot.lane.b32.xlu0 %v1019, 112
  %v1021 = vpop.permute.xlu0 %1020
  %vm1022 = vcmask 1048448
  %s1023 = scalar_lea.vmem %s1, 272
  %1024 = vst.msk [vmem:[%s1023] sm:$0xff] %vm1022, %v1021
  %s1025 = scalar_lea.vmem %s0, 2439
  %v1026 = vld [vmem:[%s1025] ss:$8 sm:$0xf]
  %s1027 = scalar_lea.vmem %s0, 2439
  %v1028 = vld [vmem:[%s1027] ss:$8 sm:$0xf0]
  %vm1029 = vcmask 1047556
  %v1030 = vsel %vm1029, %v1028, %v1026
  %1031 = vrot.lane.b32.xlu0 %v1030, 112
  %v1032 = vpop.permute.xlu0 %1031
  %vm1033 = vcmask 1048448
  %s1034 = scalar_lea.vmem %s1, 304
  %1035 = vst.msk [vmem:[%s1034] sm:$0xff] %vm1033, %v1032
  %s1036 = scalar_lea.vmem %s0, 2695
  %v1037 = vld [vmem:[%s1036] ss:$8 sm:$0xf]
  %s1038 = scalar_lea.vmem %s0, 2695
  %v1039 = vld [vmem:[%s1038] ss:$8 sm:$0xf0]
  %vm1040 = vcmask 1047556
  %v1041 = vsel %vm1040, %v1039, %v1037
  %1042 = vrot.lane.b32.xlu0 %v1041, 112
  %v1043 = vpop.permute.xlu0 %1042
  %vm1044 = vcmask 1048448
  %s1045 = scalar_lea.vmem %s1, 336
  %1046 = vst.msk [vmem:[%s1045] sm:$0xff] %vm1044, %v1043
  %s1047 = scalar_lea.vmem %s0, 2951
  %v1048 = vld [vmem:[%s1047] ss:$8 sm:$0xf]
  %s1049 = scalar_lea.vmem %s0, 2951
  %v1050 = vld [vmem:[%s1049] ss:$8 sm:$0xf0]
  %vm1051 = vcmask 1047556
  %v1052 = vsel %vm1051, %v1050, %v1048
  %1053 = vrot.lane.b32.xlu0 %v1052, 112
  %v1054 = vpop.permute.xlu0 %1053
  %vm1055 = vcmask 1048448
  %s1056 = scalar_lea.vmem %s1, 368
  %1057 = vst.msk [vmem:[%s1056] sm:$0xff] %vm1055, %v1054
  %s1058 = scalar_lea.vmem %s0, 3207
  %v1059 = vld [vmem:[%s1058] ss:$8 sm:$0xf]
  %s1060 = scalar_lea.vmem %s0, 3207
  %v1061 = vld [vmem:[%s1060] ss:$8 sm:$0xf0]
  %vm1062 = vcmask 1047556
  %v1063 = vsel %vm1062, %v1061, %v1059
  %1064 = vrot.lane.b32.xlu0 %v1063, 112
  %v1065 = vpop.permute.xlu0 %1064
  %vm1066 = vcmask 1048448
  %s1067 = scalar_lea.vmem %s1, 400
  %1068 = vst.msk [vmem:[%s1067] sm:$0xff] %vm1066, %v1065
  %s1069 = scalar_lea.vmem %s0, 3463
  %v1070 = vld [vmem:[%s1069] ss:$8 sm:$0xf]
  %s1071 = scalar_lea.vmem %s0, 3463
  %v1072 = vld [vmem:[%s1071] ss:$8 sm:$0xf0]
  %vm1073 = vcmask 1047556
  %v1074 = vsel %vm1073, %v1072, %v1070
  %1075 = vrot.lane.b32.xlu0 %v1074, 112
  %v1076 = vpop.permute.xlu0 %1075
  %vm1077 = vcmask 1048448
  %s1078 = scalar_lea.vmem %s1, 432
  %1079 = vst.msk [vmem:[%s1078] sm:$0xff] %vm1077, %v1076
  %s1080 = scalar_lea.vmem %s0, 3719
  %v1081 = vld [vmem:[%s1080] ss:$8 sm:$0xf]
  %s1082 = scalar_lea.vmem %s0, 3719
  %v1083 = vld [vmem:[%s1082] ss:$8 sm:$0xf0]
  %vm1084 = vcmask 1047556
  %v1085 = vsel %vm1084, %v1083, %v1081
  %1086 = vrot.lane.b32.xlu0 %v1085, 112
  %v1087 = vpop.permute.xlu0 %1086
  %vm1088 = vcmask 1048448
  %s1089 = scalar_lea.vmem %s1, 464
  %1090 = vst.msk [vmem:[%s1089] sm:$0xff] %vm1088, %v1087
  %s1091 = scalar_lea.vmem %s0, 3975
  %v1092 = vld [vmem:[%s1091] ss:$8 sm:$0xf]
  %s1093 = scalar_lea.vmem %s0, 3975
  %v1094 = vld [vmem:[%s1093] ss:$8 sm:$0xf0]
  %vm1095 = vcmask 1047556
  %v1096 = vsel %vm1095, %v1094, %v1092
  %1097 = vrot.lane.b32.xlu0 %v1096, 112
  %v1098 = vpop.permute.xlu0 %1097
  %vm1099 = vcmask 1048448
  %s1100 = scalar_lea.vmem %s1, 496
  %1101 = vst.msk [vmem:[%s1100] sm:$0xff] %vm1099, %v1098
  %s1102 = scalar_lea.vmem %s0, 199
  %v1103 = vld [vmem:[%s1102] ss:$8 sm:$0xf]
  %s1104 = scalar_lea.vmem %s0, 199
  %v1105 = vld [vmem:[%s1104] ss:$8 sm:$0xf0]
  %vm1106 = vcmask 1047556
  %v1107 = vsel %vm1106, %v1105, %v1103
  %1108 = vrot.lane.b32.xlu0 %v1107, 112
  %v1109 = vpop.permute.xlu0 %1108
  %vm1110 = vcmask 1048448
  %s1111 = scalar_lea.vmem %s1, 24
  %1112 = vst.msk [vmem:[%s1111] sm:$0xff] %vm1110, %v1109
  %s1113 = scalar_lea.vmem %s0, 455
  %v1114 = vld [vmem:[%s1113] ss:$8 sm:$0xf]
  %s1115 = scalar_lea.vmem %s0, 455
  %v1116 = vld [vmem:[%s1115] ss:$8 sm:$0xf0]
  %vm1117 = vcmask 1047556
  %v1118 = vsel %vm1117, %v1116, %v1114
  %1119 = vrot.lane.b32.xlu0 %v1118, 112
  %v1120 = vpop.permute.xlu0 %1119
  %vm1121 = vcmask 1048448
  %s1122 = scalar_lea.vmem %s1, 56
  %1123 = vst.msk [vmem:[%s1122] sm:$0xff] %vm1121, %v1120
  %s1124 = scalar_lea.vmem %s0, 711
  %v1125 = vld [vmem:[%s1124] ss:$8 sm:$0xf]
  %s1126 = scalar_lea.vmem %s0, 711
  %v1127 = vld [vmem:[%s1126] ss:$8 sm:$0xf0]
  %vm1128 = vcmask 1047556
  %v1129 = vsel %vm1128, %v1127, %v1125
  %1130 = vrot.lane.b32.xlu0 %v1129, 112
  %v1131 = vpop.permute.xlu0 %1130
  %vm1132 = vcmask 1048448
  %s1133 = scalar_lea.vmem %s1, 88
  %1134 = vst.msk [vmem:[%s1133] sm:$0xff] %vm1132, %v1131
  %s1135 = scalar_lea.vmem %s0, 967
  %v1136 = vld [vmem:[%s1135] ss:$8 sm:$0xf]
  %s1137 = scalar_lea.vmem %s0, 967
  %v1138 = vld [vmem:[%s1137] ss:$8 sm:$0xf0]
  %vm1139 = vcmask 1047556
  %v1140 = vsel %vm1139, %v1138, %v1136
  %1141 = vrot.lane.b32.xlu0 %v1140, 112
  %v1142 = vpop.permute.xlu0 %1141
  %vm1143 = vcmask 1048448
  %s1144 = scalar_lea.vmem %s1, 120
  %1145 = vst.msk [vmem:[%s1144] sm:$0xff] %vm1143, %v1142
  %s1146 = scalar_lea.vmem %s0, 1223
  %v1147 = vld [vmem:[%s1146] ss:$8 sm:$0xf]
  %s1148 = scalar_lea.vmem %s0, 1223
  %v1149 = vld [vmem:[%s1148] ss:$8 sm:$0xf0]
  %vm1150 = vcmask 1047556
  %v1151 = vsel %vm1150, %v1149, %v1147
  %1152 = vrot.lane.b32.xlu0 %v1151, 112
  %v1153 = vpop.permute.xlu0 %1152
  %vm1154 = vcmask 1048448
  %s1155 = scalar_lea.vmem %s1, 152
  %1156 = vst.msk [vmem:[%s1155] sm:$0xff] %vm1154, %v1153
  %s1157 = scalar_lea.vmem %s0, 1479
  %v1158 = vld [vmem:[%s1157] ss:$8 sm:$0xf]
  %s1159 = scalar_lea.vmem %s0, 1479
  %v1160 = vld [vmem:[%s1159] ss:$8 sm:$0xf0]
  %vm1161 = vcmask 1047556
  %v1162 = vsel %vm1161, %v1160, %v1158
  %1163 = vrot.lane.b32.xlu0 %v1162, 112
  %v1164 = vpop.permute.xlu0 %1163
  %vm1165 = vcmask 1048448
  %s1166 = scalar_lea.vmem %s1, 184
  %1167 = vst.msk [vmem:[%s1166] sm:$0xff] %vm1165, %v1164
  %s1168 = scalar_lea.vmem %s0, 1735
  %v1169 = vld [vmem:[%s1168] ss:$8 sm:$0xf]
  %s1170 = scalar_lea.vmem %s0, 1735
  %v1171 = vld [vmem:[%s1170] ss:$8 sm:$0xf0]
  %vm1172 = vcmask 1047556
  %v1173 = vsel %vm1172, %v1171, %v1169
  %1174 = vrot.lane.b32.xlu0 %v1173, 112
  %v1175 = vpop.permute.xlu0 %1174
  %vm1176 = vcmask 1048448
  %s1177 = scalar_lea.vmem %s1, 216
  %1178 = vst.msk [vmem:[%s1177] sm:$0xff] %vm1176, %v1175
  %s1179 = scalar_lea.vmem %s0, 1991
  %v1180 = vld [vmem:[%s1179] ss:$8 sm:$0xf]
  %s1181 = scalar_lea.vmem %s0, 1991
  %v1182 = vld [vmem:[%s1181] ss:$8 sm:$0xf0]
  %vm1183 = vcmask 1047556
  %v1184 = vsel %vm1183, %v1182, %v1180
  %1185 = vrot.lane.b32.xlu0 %v1184, 112
  %v1186 = vpop.permute.xlu0 %1185
  %vm1187 = vcmask 1048448
  %s1188 = scalar_lea.vmem %s1, 248
  %1189 = vst.msk [vmem:[%s1188] sm:$0xff] %vm1187, %v1186
  %s1190 = scalar_lea.vmem %s0, 2247
  %v1191 = vld [vmem:[%s1190] ss:$8 sm:$0xf]
  %s1192 = scalar_lea.vmem %s0, 2247
  %v1193 = vld [vmem:[%s1192] ss:$8 sm:$0xf0]
  %vm1194 = vcmask 1047556
  %v1195 = vsel %vm1194, %v1193, %v1191
  %1196 = vrot.lane.b32.xlu0 %v1195, 112
  %v1197 = vpop.permute.xlu0 %1196
  %vm1198 = vcmask 1048448
  %s1199 = scalar_lea.vmem %s1, 280
  %1200 = vst.msk [vmem:[%s1199] sm:$0xff] %vm1198, %v1197
  %s1201 = scalar_lea.vmem %s0, 2503
  %v1202 = vld [vmem:[%s1201] ss:$8 sm:$0xf]
  %s1203 = scalar_lea.vmem %s0, 2503
  %v1204 = vld [vmem:[%s1203] ss:$8 sm:$0xf0]
  %vm1205 = vcmask 1047556
  %v1206 = vsel %vm1205, %v1204, %v1202
  %1207 = vrot.lane.b32.xlu0 %v1206, 112
  %v1208 = vpop.permute.xlu0 %1207
  %vm1209 = vcmask 1048448
  %s1210 = scalar_lea.vmem %s1, 312
  %1211 = vst.msk [vmem:[%s1210] sm:$0xff] %vm1209, %v1208
  %s1212 = scalar_lea.vmem %s0, 2759
  %v1213 = vld [vmem:[%s1212] ss:$8 sm:$0xf]
  %s1214 = scalar_lea.vmem %s0, 2759
  %v1215 = vld [vmem:[%s1214] ss:$8 sm:$0xf0]
  %vm1216 = vcmask 1047556
  %v1217 = vsel %vm1216, %v1215, %v1213
  %1218 = vrot.lane.b32.xlu0 %v1217, 112
  %v1219 = vpop.permute.xlu0 %1218
  %vm1220 = vcmask 1048448
  %s1221 = scalar_lea.vmem %s1, 344
  %1222 = vst.msk [vmem:[%s1221] sm:$0xff] %vm1220, %v1219
  %s1223 = scalar_lea.vmem %s0, 3015
  %v1224 = vld [vmem:[%s1223] ss:$8 sm:$0xf]
  %s1225 = scalar_lea.vmem %s0, 3015
  %v1226 = vld [vmem:[%s1225] ss:$8 sm:$0xf0]
  %vm1227 = vcmask 1047556
  %v1228 = vsel %vm1227, %v1226, %v1224
  %1229 = vrot.lane.b32.xlu0 %v1228, 112
  %v1230 = vpop.permute.xlu0 %1229
  %vm1231 = vcmask 1048448
  %s1232 = scalar_lea.vmem %s1, 376
  %1233 = vst.msk [vmem:[%s1232] sm:$0xff] %vm1231, %v1230
  %s1234 = scalar_lea.vmem %s0, 3271
  %v1235 = vld [vmem:[%s1234] ss:$8 sm:$0xf]
  %s1236 = scalar_lea.vmem %s0, 3271
  %v1237 = vld [vmem:[%s1236] ss:$8 sm:$0xf0]
  %vm1238 = vcmask 1047556
  %v1239 = vsel %vm1238, %v1237, %v1235
  %1240 = vrot.lane.b32.xlu0 %v1239, 112
  %v1241 = vpop.permute.xlu0 %1240
  %vm1242 = vcmask 1048448
  %s1243 = scalar_lea.vmem %s1, 408
  %1244 = vst.msk [vmem:[%s1243] sm:$0xff] %vm1242, %v1241
  %s1245 = scalar_lea.vmem %s0, 3527
  %v1246 = vld [vmem:[%s1245] ss:$8 sm:$0xf]
  %s1247 = scalar_lea.vmem %s0, 3527
  %v1248 = vld [vmem:[%s1247] ss:$8 sm:$0xf0]
  %vm1249 = vcmask 1047556
  %v1250 = vsel %vm1249, %v1248, %v1246
  %1251 = vrot.lane.b32.xlu0 %v1250, 112
  %v1252 = vpop.permute.xlu0 %1251
  %vm1253 = vcmask 1048448
  %s1254 = scalar_lea.vmem %s1, 440
  %1255 = vst.msk [vmem:[%s1254] sm:$0xff] %vm1253, %v1252
  %s1256 = scalar_lea.vmem %s0, 3783
  %v1257 = vld [vmem:[%s1256] ss:$8 sm:$0xf]
  %s1258 = scalar_lea.vmem %s0, 3783
  %v1259 = vld [vmem:[%s1258] ss:$8 sm:$0xf0]
  %vm1260 = vcmask 1047556
  %v1261 = vsel %vm1260, %v1259, %v1257
  %1262 = vrot.lane.b32.xlu0 %v1261, 112
  %v1263 = vpop.permute.xlu0 %1262
  %vm1264 = vcmask 1048448
  %s1265 = scalar_lea.vmem %s1, 472
  %1266 = vst.msk [vmem:[%s1265] sm:$0xff] %vm1264, %v1263
  %s1267 = scalar_lea.vmem %s0, 4039
  %v1268 = vld [vmem:[%s1267] ss:$8 sm:$0xf]
  %s1269 = scalar_lea.vmem %s0, 4039
  %v1270 = vld [vmem:[%s1269] ss:$8 sm:$0xf0]
  %vm1271 = vcmask 1047556
  %v1272 = vsel %vm1271, %v1270, %v1268
  %1273 = vrot.lane.b32.xlu0 %v1272, 112
  %v1274 = vpop.permute.xlu0 %1273
  %vm1275 = vcmask 1048448
  %s1276 = scalar_lea.vmem %s1, 504
  %1277 = vst.msk [vmem:[%s1276] sm:$0xff] %vm1275, %v1274
  %s1278 = scalar_lea.vmem %s0, 6
  %v1279 = vld [vmem:[%s1278] ss:$8 sm:$0xf]
  %s1280 = scalar_lea.vmem %s0, 6
  %v1281 = vld [vmem:[%s1280] ss:$8 sm:$0xf0]
  %vm1282 = vcmask 1047556
  %v1283 = vsel %vm1282, %v1281, %v1279
  %1284 = vrot.lane.b32.xlu0 %v1283, 96
  %v1285 = vpop.permute.xlu0 %1284
  %vm1286 = vcmask 917248
  %1287 = vst.msk [vmem:[%s1] sm:$0xff] %vm1286, %v1285
  %s1288 = scalar_lea.vmem %s0, 262
  %v1289 = vld [vmem:[%s1288] ss:$8 sm:$0xf]
  %s1290 = scalar_lea.vmem %s0, 262
  %v1291 = vld [vmem:[%s1290] ss:$8 sm:$0xf0]
  %vm1292 = vcmask 1047556
  %v1293 = vsel %vm1292, %v1291, %v1289
  %1294 = vrot.lane.b32.xlu0 %v1293, 96
  %v1295 = vpop.permute.xlu0 %1294
  %vm1296 = vcmask 917248
  %s1297 = scalar_lea.vmem %s1, 32
  %1298 = vst.msk [vmem:[%s1297] sm:$0xff] %vm1296, %v1295
  %s1299 = scalar_lea.vmem %s0, 518
  %v1300 = vld [vmem:[%s1299] ss:$8 sm:$0xf]
  %s1301 = scalar_lea.vmem %s0, 518
  %v1302 = vld [vmem:[%s1301] ss:$8 sm:$0xf0]
  %vm1303 = vcmask 1047556
  %v1304 = vsel %vm1303, %v1302, %v1300
  %1305 = vrot.lane.b32.xlu0 %v1304, 96
  %v1306 = vpop.permute.xlu0 %1305
  %vm1307 = vcmask 917248
  %s1308 = scalar_lea.vmem %s1, 64
  %1309 = vst.msk [vmem:[%s1308] sm:$0xff] %vm1307, %v1306
  %s1310 = scalar_lea.vmem %s0, 774
  %v1311 = vld [vmem:[%s1310] ss:$8 sm:$0xf]
  %s1312 = scalar_lea.vmem %s0, 774
  %v1313 = vld [vmem:[%s1312] ss:$8 sm:$0xf0]
  %vm1314 = vcmask 1047556
  %v1315 = vsel %vm1314, %v1313, %v1311
  %1316 = vrot.lane.b32.xlu0 %v1315, 96
  %v1317 = vpop.permute.xlu0 %1316
  %vm1318 = vcmask 917248
  %s1319 = scalar_lea.vmem %s1, 96
  %1320 = vst.msk [vmem:[%s1319] sm:$0xff] %vm1318, %v1317
  %s1321 = scalar_lea.vmem %s0, 1030
  %v1322 = vld [vmem:[%s1321] ss:$8 sm:$0xf]
  %s1323 = scalar_lea.vmem %s0, 1030
  %v1324 = vld [vmem:[%s1323] ss:$8 sm:$0xf0]
  %vm1325 = vcmask 1047556
  %v1326 = vsel %vm1325, %v1324, %v1322
  %1327 = vrot.lane.b32.xlu0 %v1326, 96
  %v1328 = vpop.permute.xlu0 %1327
  %vm1329 = vcmask 917248
  %s1330 = scalar_lea.vmem %s1, 128
  %1331 = vst.msk [vmem:[%s1330] sm:$0xff] %vm1329, %v1328
  %s1332 = scalar_lea.vmem %s0, 1286
  %v1333 = vld [vmem:[%s1332] ss:$8 sm:$0xf]
  %s1334 = scalar_lea.vmem %s0, 1286
  %v1335 = vld [vmem:[%s1334] ss:$8 sm:$0xf0]
  %vm1336 = vcmask 1047556
  %v1337 = vsel %vm1336, %v1335, %v1333
  %1338 = vrot.lane.b32.xlu0 %v1337, 96
  %v1339 = vpop.permute.xlu0 %1338
  %vm1340 = vcmask 917248
  %s1341 = scalar_lea.vmem %s1, 160
  %1342 = vst.msk [vmem:[%s1341] sm:$0xff] %vm1340, %v1339
  %s1343 = scalar_lea.vmem %s0, 1542
  %v1344 = vld [vmem:[%s1343] ss:$8 sm:$0xf]
  %s1345 = scalar_lea.vmem %s0, 1542
  %v1346 = vld [vmem:[%s1345] ss:$8 sm:$0xf0]
  %vm1347 = vcmask 1047556
  %v1348 = vsel %vm1347, %v1346, %v1344
  %1349 = vrot.lane.b32.xlu0 %v1348, 96
  %v1350 = vpop.permute.xlu0 %1349
  %vm1351 = vcmask 917248
  %s1352 = scalar_lea.vmem %s1, 192
  %1353 = vst.msk [vmem:[%s1352] sm:$0xff] %vm1351, %v1350
  %s1354 = scalar_lea.vmem %s0, 1798
  %v1355 = vld [vmem:[%s1354] ss:$8 sm:$0xf]
  %s1356 = scalar_lea.vmem %s0, 1798
  %v1357 = vld [vmem:[%s1356] ss:$8 sm:$0xf0]
  %vm1358 = vcmask 1047556
  %v1359 = vsel %vm1358, %v1357, %v1355
  %1360 = vrot.lane.b32.xlu0 %v1359, 96
  %v1361 = vpop.permute.xlu0 %1360
  %vm1362 = vcmask 917248
  %s1363 = scalar_lea.vmem %s1, 224
  %1364 = vst.msk [vmem:[%s1363] sm:$0xff] %vm1362, %v1361
  %s1365 = scalar_lea.vmem %s0, 2054
  %v1366 = vld [vmem:[%s1365] ss:$8 sm:$0xf]
  %s1367 = scalar_lea.vmem %s0, 2054
  %v1368 = vld [vmem:[%s1367] ss:$8 sm:$0xf0]
  %vm1369 = vcmask 1047556
  %v1370 = vsel %vm1369, %v1368, %v1366
  %1371 = vrot.lane.b32.xlu0 %v1370, 96
  %v1372 = vpop.permute.xlu0 %1371
  %vm1373 = vcmask 917248
  %s1374 = scalar_lea.vmem %s1, 256
  %1375 = vst.msk [vmem:[%s1374] sm:$0xff] %vm1373, %v1372
  %s1376 = scalar_lea.vmem %s0, 2310
  %v1377 = vld [vmem:[%s1376] ss:$8 sm:$0xf]
  %s1378 = scalar_lea.vmem %s0, 2310
  %v1379 = vld [vmem:[%s1378] ss:$8 sm:$0xf0]
  %vm1380 = vcmask 1047556
  %v1381 = vsel %vm1380, %v1379, %v1377
  %1382 = vrot.lane.b32.xlu0 %v1381, 96
  %v1383 = vpop.permute.xlu0 %1382
  %vm1384 = vcmask 917248
  %s1385 = scalar_lea.vmem %s1, 288
  %1386 = vst.msk [vmem:[%s1385] sm:$0xff] %vm1384, %v1383
  %s1387 = scalar_lea.vmem %s0, 2566
  %v1388 = vld [vmem:[%s1387] ss:$8 sm:$0xf]
  %s1389 = scalar_lea.vmem %s0, 2566
  %v1390 = vld [vmem:[%s1389] ss:$8 sm:$0xf0]
  %vm1391 = vcmask 1047556
  %v1392 = vsel %vm1391, %v1390, %v1388
  %1393 = vrot.lane.b32.xlu0 %v1392, 96
  %v1394 = vpop.permute.xlu0 %1393
  %vm1395 = vcmask 917248
  %s1396 = scalar_lea.vmem %s1, 320
  %1397 = vst.msk [vmem:[%s1396] sm:$0xff] %vm1395, %v1394
  %s1398 = scalar_lea.vmem %s0, 2822
  %v1399 = vld [vmem:[%s1398] ss:$8 sm:$0xf]
  %s1400 = scalar_lea.vmem %s0, 2822
  %v1401 = vld [vmem:[%s1400] ss:$8 sm:$0xf0]
  %vm1402 = vcmask 1047556
  %v1403 = vsel %vm1402, %v1401, %v1399
  %1404 = vrot.lane.b32.xlu0 %v1403, 96
  %v1405 = vpop.permute.xlu0 %1404
  %vm1406 = vcmask 917248
  %s1407 = scalar_lea.vmem %s1, 352
  %1408 = vst.msk [vmem:[%s1407] sm:$0xff] %vm1406, %v1405
  %s1409 = scalar_lea.vmem %s0, 3078
  %v1410 = vld [vmem:[%s1409] ss:$8 sm:$0xf]
  %s1411 = scalar_lea.vmem %s0, 3078
  %v1412 = vld [vmem:[%s1411] ss:$8 sm:$0xf0]
  %vm1413 = vcmask 1047556
  %v1414 = vsel %vm1413, %v1412, %v1410
  %1415 = vrot.lane.b32.xlu0 %v1414, 96
  %v1416 = vpop.permute.xlu0 %1415
  %vm1417 = vcmask 917248
  %s1418 = scalar_lea.vmem %s1, 384
  %1419 = vst.msk [vmem:[%s1418] sm:$0xff] %vm1417, %v1416
  %s1420 = scalar_lea.vmem %s0, 3334
  %v1421 = vld [vmem:[%s1420] ss:$8 sm:$0xf]
  %s1422 = scalar_lea.vmem %s0, 3334
  %v1423 = vld [vmem:[%s1422] ss:$8 sm:$0xf0]
  %vm1424 = vcmask 1047556
  %v1425 = vsel %vm1424, %v1423, %v1421
  %1426 = vrot.lane.b32.xlu0 %v1425, 96
  %v1427 = vpop.permute.xlu0 %1426
  %vm1428 = vcmask 917248
  %s1429 = scalar_lea.vmem %s1, 416
  %1430 = vst.msk [vmem:[%s1429] sm:$0xff] %vm1428, %v1427
  %s1431 = scalar_lea.vmem %s0, 3590
  %v1432 = vld [vmem:[%s1431] ss:$8 sm:$0xf]
  %s1433 = scalar_lea.vmem %s0, 3590
  %v1434 = vld [vmem:[%s1433] ss:$8 sm:$0xf0]
  %vm1435 = vcmask 1047556
  %v1436 = vsel %vm1435, %v1434, %v1432
  %1437 = vrot.lane.b32.xlu0 %v1436, 96
  %v1438 = vpop.permute.xlu0 %1437
  %vm1439 = vcmask 917248
  %s1440 = scalar_lea.vmem %s1, 448
  %1441 = vst.msk [vmem:[%s1440] sm:$0xff] %vm1439, %v1438
  %s1442 = scalar_lea.vmem %s0, 3846
  %v1443 = vld [vmem:[%s1442] ss:$8 sm:$0xf]
  %s1444 = scalar_lea.vmem %s0, 3846
  %v1445 = vld [vmem:[%s1444] ss:$8 sm:$0xf0]
  %vm1446 = vcmask 1047556
  %v1447 = vsel %vm1446, %v1445, %v1443
  %1448 = vrot.lane.b32.xlu0 %v1447, 96
  %v1449 = vpop.permute.xlu0 %1448
  %vm1450 = vcmask 917248
  %s1451 = scalar_lea.vmem %s1, 480
  %1452 = vst.msk [vmem:[%s1451] sm:$0xff] %vm1450, %v1449
  %s1453 = scalar_lea.vmem %s0, 70
  %v1454 = vld [vmem:[%s1453] ss:$8 sm:$0xf]
  %s1455 = scalar_lea.vmem %s0, 70
  %v1456 = vld [vmem:[%s1455] ss:$8 sm:$0xf0]
  %vm1457 = vcmask 1047556
  %v1458 = vsel %vm1457, %v1456, %v1454
  %1459 = vrot.lane.b32.xlu0 %v1458, 96
  %v1460 = vpop.permute.xlu0 %1459
  %vm1461 = vcmask 917248
  %s1462 = scalar_lea.vmem %s1, 8
  %1463 = vst.msk [vmem:[%s1462] sm:$0xff] %vm1461, %v1460
  %s1464 = scalar_lea.vmem %s0, 326
  %v1465 = vld [vmem:[%s1464] ss:$8 sm:$0xf]
  %s1466 = scalar_lea.vmem %s0, 326
  %v1467 = vld [vmem:[%s1466] ss:$8 sm:$0xf0]
  %vm1468 = vcmask 1047556
  %v1469 = vsel %vm1468, %v1467, %v1465
  %1470 = vrot.lane.b32.xlu0 %v1469, 96
  %v1471 = vpop.permute.xlu0 %1470
  %vm1472 = vcmask 917248
  %s1473 = scalar_lea.vmem %s1, 40
  %1474 = vst.msk [vmem:[%s1473] sm:$0xff] %vm1472, %v1471
  %s1475 = scalar_lea.vmem %s0, 582
  %v1476 = vld [vmem:[%s1475] ss:$8 sm:$0xf]
  %s1477 = scalar_lea.vmem %s0, 582
  %v1478 = vld [vmem:[%s1477] ss:$8 sm:$0xf0]
  %vm1479 = vcmask 1047556
  %v1480 = vsel %vm1479, %v1478, %v1476
  %1481 = vrot.lane.b32.xlu0 %v1480, 96
  %v1482 = vpop.permute.xlu0 %1481
  %vm1483 = vcmask 917248
  %s1484 = scalar_lea.vmem %s1, 72
  %1485 = vst.msk [vmem:[%s1484] sm:$0xff] %vm1483, %v1482
  %s1486 = scalar_lea.vmem %s0, 838
  %v1487 = vld [vmem:[%s1486] ss:$8 sm:$0xf]
  %s1488 = scalar_lea.vmem %s0, 838
  %v1489 = vld [vmem:[%s1488] ss:$8 sm:$0xf0]
  %vm1490 = vcmask 1047556
  %v1491 = vsel %vm1490, %v1489, %v1487
  %1492 = vrot.lane.b32.xlu0 %v1491, 96
  %v1493 = vpop.permute.xlu0 %1492
  %vm1494 = vcmask 917248
  %s1495 = scalar_lea.vmem %s1, 104
  %1496 = vst.msk [vmem:[%s1495] sm:$0xff] %vm1494, %v1493
  %s1497 = scalar_lea.vmem %s0, 1094
  %v1498 = vld [vmem:[%s1497] ss:$8 sm:$0xf]
  %s1499 = scalar_lea.vmem %s0, 1094
  %v1500 = vld [vmem:[%s1499] ss:$8 sm:$0xf0]
  %vm1501 = vcmask 1047556
  %v1502 = vsel %vm1501, %v1500, %v1498
  %1503 = vrot.lane.b32.xlu0 %v1502, 96
  %v1504 = vpop.permute.xlu0 %1503
  %vm1505 = vcmask 917248
  %s1506 = scalar_lea.vmem %s1, 136
  %1507 = vst.msk [vmem:[%s1506] sm:$0xff] %vm1505, %v1504
  %s1508 = scalar_lea.vmem %s0, 1350
  %v1509 = vld [vmem:[%s1508] ss:$8 sm:$0xf]
  %s1510 = scalar_lea.vmem %s0, 1350
  %v1511 = vld [vmem:[%s1510] ss:$8 sm:$0xf0]
  %vm1512 = vcmask 1047556
  %v1513 = vsel %vm1512, %v1511, %v1509
  %1514 = vrot.lane.b32.xlu0 %v1513, 96
  %v1515 = vpop.permute.xlu0 %1514
  %vm1516 = vcmask 917248
  %s1517 = scalar_lea.vmem %s1, 168
  %1518 = vst.msk [vmem:[%s1517] sm:$0xff] %vm1516, %v1515
  %s1519 = scalar_lea.vmem %s0, 1606
  %v1520 = vld [vmem:[%s1519] ss:$8 sm:$0xf]
  %s1521 = scalar_lea.vmem %s0, 1606
  %v1522 = vld [vmem:[%s1521] ss:$8 sm:$0xf0]
  %vm1523 = vcmask 1047556
  %v1524 = vsel %vm1523, %v1522, %v1520
  %1525 = vrot.lane.b32.xlu0 %v1524, 96
  %v1526 = vpop.permute.xlu0 %1525
  %vm1527 = vcmask 917248
  %s1528 = scalar_lea.vmem %s1, 200
  %1529 = vst.msk [vmem:[%s1528] sm:$0xff] %vm1527, %v1526
  %s1530 = scalar_lea.vmem %s0, 1862
  %v1531 = vld [vmem:[%s1530] ss:$8 sm:$0xf]
  %s1532 = scalar_lea.vmem %s0, 1862
  %v1533 = vld [vmem:[%s1532] ss:$8 sm:$0xf0]
  %vm1534 = vcmask 1047556
  %v1535 = vsel %vm1534, %v1533, %v1531
  %1536 = vrot.lane.b32.xlu0 %v1535, 96
  %v1537 = vpop.permute.xlu0 %1536
  %vm1538 = vcmask 917248
  %s1539 = scalar_lea.vmem %s1, 232
  %1540 = vst.msk [vmem:[%s1539] sm:$0xff] %vm1538, %v1537
  %s1541 = scalar_lea.vmem %s0, 2118
  %v1542 = vld [vmem:[%s1541] ss:$8 sm:$0xf]
  %s1543 = scalar_lea.vmem %s0, 2118
  %v1544 = vld [vmem:[%s1543] ss:$8 sm:$0xf0]
  %vm1545 = vcmask 1047556
  %v1546 = vsel %vm1545, %v1544, %v1542
  %1547 = vrot.lane.b32.xlu0 %v1546, 96
  %v1548 = vpop.permute.xlu0 %1547
  %vm1549 = vcmask 917248
  %s1550 = scalar_lea.vmem %s1, 264
  %1551 = vst.msk [vmem:[%s1550] sm:$0xff] %vm1549, %v1548
  %s1552 = scalar_lea.vmem %s0, 2374
  %v1553 = vld [vmem:[%s1552] ss:$8 sm:$0xf]
  %s1554 = scalar_lea.vmem %s0, 2374
  %v1555 = vld [vmem:[%s1554] ss:$8 sm:$0xf0]
  %vm1556 = vcmask 1047556
  %v1557 = vsel %vm1556, %v1555, %v1553
  %1558 = vrot.lane.b32.xlu0 %v1557, 96
  %v1559 = vpop.permute.xlu0 %1558
  %vm1560 = vcmask 917248
  %s1561 = scalar_lea.vmem %s1, 296
  %1562 = vst.msk [vmem:[%s1561] sm:$0xff] %vm1560, %v1559
  %s1563 = scalar_lea.vmem %s0, 2630
  %v1564 = vld [vmem:[%s1563] ss:$8 sm:$0xf]
  %s1565 = scalar_lea.vmem %s0, 2630
  %v1566 = vld [vmem:[%s1565] ss:$8 sm:$0xf0]
  %vm1567 = vcmask 1047556
  %v1568 = vsel %vm1567, %v1566, %v1564
  %1569 = vrot.lane.b32.xlu0 %v1568, 96
  %v1570 = vpop.permute.xlu0 %1569
  %vm1571 = vcmask 917248
  %s1572 = scalar_lea.vmem %s1, 328
  %1573 = vst.msk [vmem:[%s1572] sm:$0xff] %vm1571, %v1570
  %s1574 = scalar_lea.vmem %s0, 2886
  %v1575 = vld [vmem:[%s1574] ss:$8 sm:$0xf]
  %s1576 = scalar_lea.vmem %s0, 2886
  %v1577 = vld [vmem:[%s1576] ss:$8 sm:$0xf0]
  %vm1578 = vcmask 1047556
  %v1579 = vsel %vm1578, %v1577, %v1575
  %1580 = vrot.lane.b32.xlu0 %v1579, 96
  %v1581 = vpop.permute.xlu0 %1580
  %vm1582 = vcmask 917248
  %s1583 = scalar_lea.vmem %s1, 360
  %1584 = vst.msk [vmem:[%s1583] sm:$0xff] %vm1582, %v1581
  %s1585 = scalar_lea.vmem %s0, 3142
  %v1586 = vld [vmem:[%s1585] ss:$8 sm:$0xf]
  %s1587 = scalar_lea.vmem %s0, 3142
  %v1588 = vld [vmem:[%s1587] ss:$8 sm:$0xf0]
  %vm1589 = vcmask 1047556
  %v1590 = vsel %vm1589, %v1588, %v1586
  %1591 = vrot.lane.b32.xlu0 %v1590, 96
  %v1592 = vpop.permute.xlu0 %1591
  %vm1593 = vcmask 917248
  %s1594 = scalar_lea.vmem %s1, 392
  %1595 = vst.msk [vmem:[%s1594] sm:$0xff] %vm1593, %v1592
  %s1596 = scalar_lea.vmem %s0, 3398
  %v1597 = vld [vmem:[%s1596] ss:$8 sm:$0xf]
  %s1598 = scalar_lea.vmem %s0, 3398
  %v1599 = vld [vmem:[%s1598] ss:$8 sm:$0xf0]
  %vm1600 = vcmask 1047556
  %v1601 = vsel %vm1600, %v1599, %v1597
  %1602 = vrot.lane.b32.xlu0 %v1601, 96
  %v1603 = vpop.permute.xlu0 %1602
  %vm1604 = vcmask 917248
  %s1605 = scalar_lea.vmem %s1, 424
  %1606 = vst.msk [vmem:[%s1605] sm:$0xff] %vm1604, %v1603
  %s1607 = scalar_lea.vmem %s0, 3654
  %v1608 = vld [vmem:[%s1607] ss:$8 sm:$0xf]
  %s1609 = scalar_lea.vmem %s0, 3654
  %v1610 = vld [vmem:[%s1609] ss:$8 sm:$0xf0]
  %vm1611 = vcmask 1047556
  %v1612 = vsel %vm1611, %v1610, %v1608
  %1613 = vrot.lane.b32.xlu0 %v1612, 96
  %v1614 = vpop.permute.xlu0 %1613
  %vm1615 = vcmask 917248
  %s1616 = scalar_lea.vmem %s1, 456
  %1617 = vst.msk [vmem:[%s1616] sm:$0xff] %vm1615, %v1614
  %s1618 = scalar_lea.vmem %s0, 3910
  %v1619 = vld [vmem:[%s1618] ss:$8 sm:$0xf]
  %s1620 = scalar_lea.vmem %s0, 3910
  %v1621 = vld [vmem:[%s1620] ss:$8 sm:$0xf0]
  %vm1622 = vcmask 1047556
  %v1623 = vsel %vm1622, %v1621, %v1619
  %1624 = vrot.lane.b32.xlu0 %v1623, 96
  %v1625 = vpop.permute.xlu0 %1624
  %vm1626 = vcmask 917248
  %s1627 = scalar_lea.vmem %s1, 488
  %1628 = vst.msk [vmem:[%s1627] sm:$0xff] %vm1626, %v1625
  %s1629 = scalar_lea.vmem %s0, 134
  %v1630 = vld [vmem:[%s1629] ss:$8 sm:$0xf]
  %s1631 = scalar_lea.vmem %s0, 134
  %v1632 = vld [vmem:[%s1631] ss:$8 sm:$0xf0]
  %vm1633 = vcmask 1047556
  %v1634 = vsel %vm1633, %v1632, %v1630
  %1635 = vrot.lane.b32.xlu0 %v1634, 96
  %v1636 = vpop.permute.xlu0 %1635
  %vm1637 = vcmask 917248
  %s1638 = scalar_lea.vmem %s1, 16
  %1639 = vst.msk [vmem:[%s1638] sm:$0xff] %vm1637, %v1636
  %s1640 = scalar_lea.vmem %s0, 390
  %v1641 = vld [vmem:[%s1640] ss:$8 sm:$0xf]
  %s1642 = scalar_lea.vmem %s0, 390
  %v1643 = vld [vmem:[%s1642] ss:$8 sm:$0xf0]
  %vm1644 = vcmask 1047556
  %v1645 = vsel %vm1644, %v1643, %v1641
  %1646 = vrot.lane.b32.xlu0 %v1645, 96
  %v1647 = vpop.permute.xlu0 %1646
  %vm1648 = vcmask 917248
  %s1649 = scalar_lea.vmem %s1, 48
  %1650 = vst.msk [vmem:[%s1649] sm:$0xff] %vm1648, %v1647
  %s1651 = scalar_lea.vmem %s0, 646
  %v1652 = vld [vmem:[%s1651] ss:$8 sm:$0xf]
  %s1653 = scalar_lea.vmem %s0, 646
  %v1654 = vld [vmem:[%s1653] ss:$8 sm:$0xf0]
  %vm1655 = vcmask 1047556
  %v1656 = vsel %vm1655, %v1654, %v1652
  %1657 = vrot.lane.b32.xlu0 %v1656, 96
  %v1658 = vpop.permute.xlu0 %1657
  %vm1659 = vcmask 917248
  %s1660 = scalar_lea.vmem %s1, 80
  %1661 = vst.msk [vmem:[%s1660] sm:$0xff] %vm1659, %v1658
  %s1662 = scalar_lea.vmem %s0, 902
  %v1663 = vld [vmem:[%s1662] ss:$8 sm:$0xf]
  %s1664 = scalar_lea.vmem %s0, 902
  %v1665 = vld [vmem:[%s1664] ss:$8 sm:$0xf0]
  %vm1666 = vcmask 1047556
  %v1667 = vsel %vm1666, %v1665, %v1663
  %1668 = vrot.lane.b32.xlu0 %v1667, 96
  %v1669 = vpop.permute.xlu0 %1668
  %vm1670 = vcmask 917248
  %s1671 = scalar_lea.vmem %s1, 112
  %1672 = vst.msk [vmem:[%s1671] sm:$0xff] %vm1670, %v1669
  %s1673 = scalar_lea.vmem %s0, 1158
  %v1674 = vld [vmem:[%s1673] ss:$8 sm:$0xf]
  %s1675 = scalar_lea.vmem %s0, 1158
  %v1676 = vld [vmem:[%s1675] ss:$8 sm:$0xf0]
  %vm1677 = vcmask 1047556
  %v1678 = vsel %vm1677, %v1676, %v1674
  %1679 = vrot.lane.b32.xlu0 %v1678, 96
  %v1680 = vpop.permute.xlu0 %1679
  %vm1681 = vcmask 917248
  %s1682 = scalar_lea.vmem %s1, 144
  %1683 = vst.msk [vmem:[%s1682] sm:$0xff] %vm1681, %v1680
  %s1684 = scalar_lea.vmem %s0, 1414
  %v1685 = vld [vmem:[%s1684] ss:$8 sm:$0xf]
  %s1686 = scalar_lea.vmem %s0, 1414
  %v1687 = vld [vmem:[%s1686] ss:$8 sm:$0xf0]
  %vm1688 = vcmask 1047556
  %v1689 = vsel %vm1688, %v1687, %v1685
  %1690 = vrot.lane.b32.xlu0 %v1689, 96
  %v1691 = vpop.permute.xlu0 %1690
  %vm1692 = vcmask 917248
  %s1693 = scalar_lea.vmem %s1, 176
  %1694 = vst.msk [vmem:[%s1693] sm:$0xff] %vm1692, %v1691
  %s1695 = scalar_lea.vmem %s0, 1670
  %v1696 = vld [vmem:[%s1695] ss:$8 sm:$0xf]
  %s1697 = scalar_lea.vmem %s0, 1670
  %v1698 = vld [vmem:[%s1697] ss:$8 sm:$0xf0]
  %vm1699 = vcmask 1047556
  %v1700 = vsel %vm1699, %v1698, %v1696
  %1701 = vrot.lane.b32.xlu0 %v1700, 96
  %v1702 = vpop.permute.xlu0 %1701
  %vm1703 = vcmask 917248
  %s1704 = scalar_lea.vmem %s1, 208
  %1705 = vst.msk [vmem:[%s1704] sm:$0xff] %vm1703, %v1702
  %s1706 = scalar_lea.vmem %s0, 1926
  %v1707 = vld [vmem:[%s1706] ss:$8 sm:$0xf]
  %s1708 = scalar_lea.vmem %s0, 1926
  %v1709 = vld [vmem:[%s1708] ss:$8 sm:$0xf0]
  %vm1710 = vcmask 1047556
  %v1711 = vsel %vm1710, %v1709, %v1707
  %1712 = vrot.lane.b32.xlu0 %v1711, 96
  %v1713 = vpop.permute.xlu0 %1712
  %vm1714 = vcmask 917248
  %s1715 = scalar_lea.vmem %s1, 240
  %1716 = vst.msk [vmem:[%s1715] sm:$0xff] %vm1714, %v1713
  %s1717 = scalar_lea.vmem %s0, 2182
  %v1718 = vld [vmem:[%s1717] ss:$8 sm:$0xf]
  %s1719 = scalar_lea.vmem %s0, 2182
  %v1720 = vld [vmem:[%s1719] ss:$8 sm:$0xf0]
  %vm1721 = vcmask 1047556
  %v1722 = vsel %vm1721, %v1720, %v1718
  %1723 = vrot.lane.b32.xlu0 %v1722, 96
  %v1724 = vpop.permute.xlu0 %1723
  %vm1725 = vcmask 917248
  %s1726 = scalar_lea.vmem %s1, 272
  %1727 = vst.msk [vmem:[%s1726] sm:$0xff] %vm1725, %v1724
  %s1728 = scalar_lea.vmem %s0, 2438
  %v1729 = vld [vmem:[%s1728] ss:$8 sm:$0xf]
  %s1730 = scalar_lea.vmem %s0, 2438
  %v1731 = vld [vmem:[%s1730] ss:$8 sm:$0xf0]
  %vm1732 = vcmask 1047556
  %v1733 = vsel %vm1732, %v1731, %v1729
  %1734 = vrot.lane.b32.xlu0 %v1733, 96
  %v1735 = vpop.permute.xlu0 %1734
  %vm1736 = vcmask 917248
  %s1737 = scalar_lea.vmem %s1, 304
  %1738 = vst.msk [vmem:[%s1737] sm:$0xff] %vm1736, %v1735
  %s1739 = scalar_lea.vmem %s0, 2694
  %v1740 = vld [vmem:[%s1739] ss:$8 sm:$0xf]
  %s1741 = scalar_lea.vmem %s0, 2694
  %v1742 = vld [vmem:[%s1741] ss:$8 sm:$0xf0]
  %vm1743 = vcmask 1047556
  %v1744 = vsel %vm1743, %v1742, %v1740
  %1745 = vrot.lane.b32.xlu0 %v1744, 96
  %v1746 = vpop.permute.xlu0 %1745
  %vm1747 = vcmask 917248
  %s1748 = scalar_lea.vmem %s1, 336
  %1749 = vst.msk [vmem:[%s1748] sm:$0xff] %vm1747, %v1746
  %s1750 = scalar_lea.vmem %s0, 2950
  %v1751 = vld [vmem:[%s1750] ss:$8 sm:$0xf]
  %s1752 = scalar_lea.vmem %s0, 2950
  %v1753 = vld [vmem:[%s1752] ss:$8 sm:$0xf0]
  %vm1754 = vcmask 1047556
  %v1755 = vsel %vm1754, %v1753, %v1751
  %1756 = vrot.lane.b32.xlu0 %v1755, 96
  %v1757 = vpop.permute.xlu0 %1756
  %vm1758 = vcmask 917248
  %s1759 = scalar_lea.vmem %s1, 368
  %1760 = vst.msk [vmem:[%s1759] sm:$0xff] %vm1758, %v1757
  %s1761 = scalar_lea.vmem %s0, 3206
  %v1762 = vld [vmem:[%s1761] ss:$8 sm:$0xf]
  %s1763 = scalar_lea.vmem %s0, 3206
  %v1764 = vld [vmem:[%s1763] ss:$8 sm:$0xf0]
  %vm1765 = vcmask 1047556
  %v1766 = vsel %vm1765, %v1764, %v1762
  %1767 = vrot.lane.b32.xlu0 %v1766, 96
  %v1768 = vpop.permute.xlu0 %1767
  %vm1769 = vcmask 917248
  %s1770 = scalar_lea.vmem %s1, 400
  %1771 = vst.msk [vmem:[%s1770] sm:$0xff] %vm1769, %v1768
  %s1772 = scalar_lea.vmem %s0, 3462
  %v1773 = vld [vmem:[%s1772] ss:$8 sm:$0xf]
  %s1774 = scalar_lea.vmem %s0, 3462
  %v1775 = vld [vmem:[%s1774] ss:$8 sm:$0xf0]
  %vm1776 = vcmask 1047556
  %v1777 = vsel %vm1776, %v1775, %v1773
  %1778 = vrot.lane.b32.xlu0 %v1777, 96
  %v1779 = vpop.permute.xlu0 %1778
  %vm1780 = vcmask 917248
  %s1781 = scalar_lea.vmem %s1, 432
  %1782 = vst.msk [vmem:[%s1781] sm:$0xff] %vm1780, %v1779
  %s1783 = scalar_lea.vmem %s0, 3718
  %v1784 = vld [vmem:[%s1783] ss:$8 sm:$0xf]
  %s1785 = scalar_lea.vmem %s0, 3718
  %v1786 = vld [vmem:[%s1785] ss:$8 sm:$0xf0]
  %vm1787 = vcmask 1047556
  %v1788 = vsel %vm1787, %v1786, %v1784
  %1789 = vrot.lane.b32.xlu0 %v1788, 96
  %v1790 = vpop.permute.xlu0 %1789
  %vm1791 = vcmask 917248
  %s1792 = scalar_lea.vmem %s1, 464
  %1793 = vst.msk [vmem:[%s1792] sm:$0xff] %vm1791, %v1790
  %s1794 = scalar_lea.vmem %s0, 3974
  %v1795 = vld [vmem:[%s1794] ss:$8 sm:$0xf]
  %s1796 = scalar_lea.vmem %s0, 3974
  %v1797 = vld [vmem:[%s1796] ss:$8 sm:$0xf0]
  %vm1798 = vcmask 1047556
  %v1799 = vsel %vm1798, %v1797, %v1795
  %1800 = vrot.lane.b32.xlu0 %v1799, 96
  %v1801 = vpop.permute.xlu0 %1800
  %vm1802 = vcmask 917248
  %s1803 = scalar_lea.vmem %s1, 496
  %1804 = vst.msk [vmem:[%s1803] sm:$0xff] %vm1802, %v1801
  %s1805 = scalar_lea.vmem %s0, 198
  %v1806 = vld [vmem:[%s1805] ss:$8 sm:$0xf]
  %s1807 = scalar_lea.vmem %s0, 198
  %v1808 = vld [vmem:[%s1807] ss:$8 sm:$0xf0]
  %vm1809 = vcmask 1047556
  %v1810 = vsel %vm1809, %v1808, %v1806
  %1811 = vrot.lane.b32.xlu0 %v1810, 96
  %v1812 = vpop.permute.xlu0 %1811
  %vm1813 = vcmask 917248
  %s1814 = scalar_lea.vmem %s1, 24
  %1815 = vst.msk [vmem:[%s1814] sm:$0xff] %vm1813, %v1812
  %s1816 = scalar_lea.vmem %s0, 454
  %v1817 = vld [vmem:[%s1816] ss:$8 sm:$0xf]
  %s1818 = scalar_lea.vmem %s0, 454
  %v1819 = vld [vmem:[%s1818] ss:$8 sm:$0xf0]
  %vm1820 = vcmask 1047556
  %v1821 = vsel %vm1820, %v1819, %v1817
  %1822 = vrot.lane.b32.xlu0 %v1821, 96
  %v1823 = vpop.permute.xlu0 %1822
  %vm1824 = vcmask 917248
  %s1825 = scalar_lea.vmem %s1, 56
  %1826 = vst.msk [vmem:[%s1825] sm:$0xff] %vm1824, %v1823
  %s1827 = scalar_lea.vmem %s0, 710
  %v1828 = vld [vmem:[%s1827] ss:$8 sm:$0xf]
  %s1829 = scalar_lea.vmem %s0, 710
  %v1830 = vld [vmem:[%s1829] ss:$8 sm:$0xf0]
  %vm1831 = vcmask 1047556
  %v1832 = vsel %vm1831, %v1830, %v1828
  %1833 = vrot.lane.b32.xlu0 %v1832, 96
  %v1834 = vpop.permute.xlu0 %1833
  %vm1835 = vcmask 917248
  %s1836 = scalar_lea.vmem %s1, 88
  %1837 = vst.msk [vmem:[%s1836] sm:$0xff] %vm1835, %v1834
  %s1838 = scalar_lea.vmem %s0, 966
  %v1839 = vld [vmem:[%s1838] ss:$8 sm:$0xf]
  %s1840 = scalar_lea.vmem %s0, 966
  %v1841 = vld [vmem:[%s1840] ss:$8 sm:$0xf0]
  %vm1842 = vcmask 1047556
  %v1843 = vsel %vm1842, %v1841, %v1839
  %1844 = vrot.lane.b32.xlu0 %v1843, 96
  %v1845 = vpop.permute.xlu0 %1844
  %vm1846 = vcmask 917248
  %s1847 = scalar_lea.vmem %s1, 120
  %1848 = vst.msk [vmem:[%s1847] sm:$0xff] %vm1846, %v1845
  %s1849 = scalar_lea.vmem %s0, 1222
  %v1850 = vld [vmem:[%s1849] ss:$8 sm:$0xf]
  %s1851 = scalar_lea.vmem %s0, 1222
  %v1852 = vld [vmem:[%s1851] ss:$8 sm:$0xf0]
  %vm1853 = vcmask 1047556
  %v1854 = vsel %vm1853, %v1852, %v1850
  %1855 = vrot.lane.b32.xlu0 %v1854, 96
  %v1856 = vpop.permute.xlu0 %1855
  %vm1857 = vcmask 917248
  %s1858 = scalar_lea.vmem %s1, 152
  %1859 = vst.msk [vmem:[%s1858] sm:$0xff] %vm1857, %v1856
  %s1860 = scalar_lea.vmem %s0, 1478
  %v1861 = vld [vmem:[%s1860] ss:$8 sm:$0xf]
  %s1862 = scalar_lea.vmem %s0, 1478
  %v1863 = vld [vmem:[%s1862] ss:$8 sm:$0xf0]
  %vm1864 = vcmask 1047556
  %v1865 = vsel %vm1864, %v1863, %v1861
  %1866 = vrot.lane.b32.xlu0 %v1865, 96
  %v1867 = vpop.permute.xlu0 %1866
  %vm1868 = vcmask 917248
  %s1869 = scalar_lea.vmem %s1, 184
  %1870 = vst.msk [vmem:[%s1869] sm:$0xff] %vm1868, %v1867
  %s1871 = scalar_lea.vmem %s0, 1734
  %v1872 = vld [vmem:[%s1871] ss:$8 sm:$0xf]
  %s1873 = scalar_lea.vmem %s0, 1734
  %v1874 = vld [vmem:[%s1873] ss:$8 sm:$0xf0]
  %vm1875 = vcmask 1047556
  %v1876 = vsel %vm1875, %v1874, %v1872
  %1877 = vrot.lane.b32.xlu0 %v1876, 96
  %v1878 = vpop.permute.xlu0 %1877
  %vm1879 = vcmask 917248
  %s1880 = scalar_lea.vmem %s1, 216
  %1881 = vst.msk [vmem:[%s1880] sm:$0xff] %vm1879, %v1878
  %s1882 = scalar_lea.vmem %s0, 1990
  %v1883 = vld [vmem:[%s1882] ss:$8 sm:$0xf]
  %s1884 = scalar_lea.vmem %s0, 1990
  %v1885 = vld [vmem:[%s1884] ss:$8 sm:$0xf0]
  %vm1886 = vcmask 1047556
  %v1887 = vsel %vm1886, %v1885, %v1883
  %1888 = vrot.lane.b32.xlu0 %v1887, 96
  %v1889 = vpop.permute.xlu0 %1888
  %vm1890 = vcmask 917248
  %s1891 = scalar_lea.vmem %s1, 248
  %1892 = vst.msk [vmem:[%s1891] sm:$0xff] %vm1890, %v1889
  %s1893 = scalar_lea.vmem %s0, 2246
  %v1894 = vld [vmem:[%s1893] ss:$8 sm:$0xf]
  %s1895 = scalar_lea.vmem %s0, 2246
  %v1896 = vld [vmem:[%s1895] ss:$8 sm:$0xf0]
  %vm1897 = vcmask 1047556
  %v1898 = vsel %vm1897, %v1896, %v1894
  %1899 = vrot.lane.b32.xlu0 %v1898, 96
  %v1900 = vpop.permute.xlu0 %1899
  %vm1901 = vcmask 917248
  %s1902 = scalar_lea.vmem %s1, 280
  %1903 = vst.msk [vmem:[%s1902] sm:$0xff] %vm1901, %v1900
  %s1904 = scalar_lea.vmem %s0, 2502
  %v1905 = vld [vmem:[%s1904] ss:$8 sm:$0xf]
  %s1906 = scalar_lea.vmem %s0, 2502
  %v1907 = vld [vmem:[%s1906] ss:$8 sm:$0xf0]
  %vm1908 = vcmask 1047556
  %v1909 = vsel %vm1908, %v1907, %v1905
  %1910 = vrot.lane.b32.xlu0 %v1909, 96
  %v1911 = vpop.permute.xlu0 %1910
  %vm1912 = vcmask 917248
  %s1913 = scalar_lea.vmem %s1, 312
  %1914 = vst.msk [vmem:[%s1913] sm:$0xff] %vm1912, %v1911
  %s1915 = scalar_lea.vmem %s0, 2758
  %v1916 = vld [vmem:[%s1915] ss:$8 sm:$0xf]
  %s1917 = scalar_lea.vmem %s0, 2758
  %v1918 = vld [vmem:[%s1917] ss:$8 sm:$0xf0]
  %vm1919 = vcmask 1047556
  %v1920 = vsel %vm1919, %v1918, %v1916
  %1921 = vrot.lane.b32.xlu0 %v1920, 96
  %v1922 = vpop.permute.xlu0 %1921
  %vm1923 = vcmask 917248
  %s1924 = scalar_lea.vmem %s1, 344
  %1925 = vst.msk [vmem:[%s1924] sm:$0xff] %vm1923, %v1922
  %s1926 = scalar_lea.vmem %s0, 3014
  %v1927 = vld [vmem:[%s1926] ss:$8 sm:$0xf]
  %s1928 = scalar_lea.vmem %s0, 3014
  %v1929 = vld [vmem:[%s1928] ss:$8 sm:$0xf0]
  %vm1930 = vcmask 1047556
  %v1931 = vsel %vm1930, %v1929, %v1927
  %1932 = vrot.lane.b32.xlu0 %v1931, 96
  %v1933 = vpop.permute.xlu0 %1932
  %vm1934 = vcmask 917248
  %s1935 = scalar_lea.vmem %s1, 376
  %1936 = vst.msk [vmem:[%s1935] sm:$0xff] %vm1934, %v1933
  %s1937 = scalar_lea.vmem %s0, 3270
  %v1938 = vld [vmem:[%s1937] ss:$8 sm:$0xf]
  %s1939 = scalar_lea.vmem %s0, 3270
  %v1940 = vld [vmem:[%s1939] ss:$8 sm:$0xf0]
  %vm1941 = vcmask 1047556
  %v1942 = vsel %vm1941, %v1940, %v1938
  %1943 = vrot.lane.b32.xlu0 %v1942, 96
  %v1944 = vpop.permute.xlu0 %1943
  %vm1945 = vcmask 917248
  %s1946 = scalar_lea.vmem %s1, 408
  %1947 = vst.msk [vmem:[%s1946] sm:$0xff] %vm1945, %v1944
  %s1948 = scalar_lea.vmem %s0, 3526
  %v1949 = vld [vmem:[%s1948] ss:$8 sm:$0xf]
  %s1950 = scalar_lea.vmem %s0, 3526
  %v1951 = vld [vmem:[%s1950] ss:$8 sm:$0xf0]
  %vm1952 = vcmask 1047556
  %v1953 = vsel %vm1952, %v1951, %v1949
  %1954 = vrot.lane.b32.xlu0 %v1953, 96
  %v1955 = vpop.permute.xlu0 %1954
  %vm1956 = vcmask 917248
  %s1957 = scalar_lea.vmem %s1, 440
  %1958 = vst.msk [vmem:[%s1957] sm:$0xff] %vm1956, %v1955
  %s1959 = scalar_lea.vmem %s0, 3782
  %v1960 = vld [vmem:[%s1959] ss:$8 sm:$0xf]
  %s1961 = scalar_lea.vmem %s0, 3782
  %v1962 = vld [vmem:[%s1961] ss:$8 sm:$0xf0]
  %vm1963 = vcmask 1047556
  %v1964 = vsel %vm1963, %v1962, %v1960
  %1965 = vrot.lane.b32.xlu0 %v1964, 96
  %v1966 = vpop.permute.xlu0 %1965
  %vm1967 = vcmask 917248
  %s1968 = scalar_lea.vmem %s1, 472
  %1969 = vst.msk [vmem:[%s1968] sm:$0xff] %vm1967, %v1966
  %s1970 = scalar_lea.vmem %s0, 4038
  %v1971 = vld [vmem:[%s1970] ss:$8 sm:$0xf]
  %s1972 = scalar_lea.vmem %s0, 4038
  %v1973 = vld [vmem:[%s1972] ss:$8 sm:$0xf0]
  %vm1974 = vcmask 1047556
  %v1975 = vsel %vm1974, %v1973, %v1971
  %1976 = vrot.lane.b32.xlu0 %v1975, 96
  %v1977 = vpop.permute.xlu0 %1976
  %vm1978 = vcmask 917248
  %s1979 = scalar_lea.vmem %s1, 504
  %1980 = vst.msk [vmem:[%s1979] sm:$0xff] %vm1978, %v1977
  %s1981 = scalar_lea.vmem %s0, 5
  %v1982 = vld [vmem:[%s1981] ss:$8 sm:$0xf]
  %s1983 = scalar_lea.vmem %s0, 5
  %v1984 = vld [vmem:[%s1983] ss:$8 sm:$0xf0]
  %vm1985 = vcmask 1047556
  %v1986 = vsel %vm1985, %v1984, %v1982
  %1987 = vrot.lane.b32.xlu0 %v1986, 80
  %v1988 = vpop.permute.xlu0 %1987
  %vm1989 = vcmask 786048
  %1990 = vst.msk [vmem:[%s1] sm:$0xff] %vm1989, %v1988
  %s1991 = scalar_lea.vmem %s0, 261
  %v1992 = vld [vmem:[%s1991] ss:$8 sm:$0xf]
  %s1993 = scalar_lea.vmem %s0, 261
  %v1994 = vld [vmem:[%s1993] ss:$8 sm:$0xf0]
  %vm1995 = vcmask 1047556
  %v1996 = vsel %vm1995, %v1994, %v1992
  %1997 = vrot.lane.b32.xlu0 %v1996, 80
  %v1998 = vpop.permute.xlu0 %1997
  %vm1999 = vcmask 786048
  %s2000 = scalar_lea.vmem %s1, 32
  %2001 = vst.msk [vmem:[%s2000] sm:$0xff] %vm1999, %v1998
  %s2002 = scalar_lea.vmem %s0, 517
  %v2003 = vld [vmem:[%s2002] ss:$8 sm:$0xf]
  %s2004 = scalar_lea.vmem %s0, 517
  %v2005 = vld [vmem:[%s2004] ss:$8 sm:$0xf0]
  %vm2006 = vcmask 1047556
  %v2007 = vsel %vm2006, %v2005, %v2003
  %2008 = vrot.lane.b32.xlu0 %v2007, 80
  %v2009 = vpop.permute.xlu0 %2008
  %vm2010 = vcmask 786048
  %s2011 = scalar_lea.vmem %s1, 64
  %2012 = vst.msk [vmem:[%s2011] sm:$0xff] %vm2010, %v2009
  %s2013 = scalar_lea.vmem %s0, 773
  %v2014 = vld [vmem:[%s2013] ss:$8 sm:$0xf]
  %s2015 = scalar_lea.vmem %s0, 773
  %v2016 = vld [vmem:[%s2015] ss:$8 sm:$0xf0]
  %vm2017 = vcmask 1047556
  %v2018 = vsel %vm2017, %v2016, %v2014
  %2019 = vrot.lane.b32.xlu0 %v2018, 80
  %v2020 = vpop.permute.xlu0 %2019
  %vm2021 = vcmask 786048
  %s2022 = scalar_lea.vmem %s1, 96
  %2023 = vst.msk [vmem:[%s2022] sm:$0xff] %vm2021, %v2020
  %s2024 = scalar_lea.vmem %s0, 1029
  %v2025 = vld [vmem:[%s2024] ss:$8 sm:$0xf]
  %s2026 = scalar_lea.vmem %s0, 1029
  %v2027 = vld [vmem:[%s2026] ss:$8 sm:$0xf0]
  %vm2028 = vcmask 1047556
  %v2029 = vsel %vm2028, %v2027, %v2025
  %2030 = vrot.lane.b32.xlu0 %v2029, 80
  %v2031 = vpop.permute.xlu0 %2030
  %vm2032 = vcmask 786048
  %s2033 = scalar_lea.vmem %s1, 128
  %2034 = vst.msk [vmem:[%s2033] sm:$0xff] %vm2032, %v2031
  %s2035 = scalar_lea.vmem %s0, 1285
  %v2036 = vld [vmem:[%s2035] ss:$8 sm:$0xf]
  %s2037 = scalar_lea.vmem %s0, 1285
  %v2038 = vld [vmem:[%s2037] ss:$8 sm:$0xf0]
  %vm2039 = vcmask 1047556
  %v2040 = vsel %vm2039, %v2038, %v2036
  %2041 = vrot.lane.b32.xlu0 %v2040, 80
  %v2042 = vpop.permute.xlu0 %2041
  %vm2043 = vcmask 786048
  %s2044 = scalar_lea.vmem %s1, 160
  %2045 = vst.msk [vmem:[%s2044] sm:$0xff] %vm2043, %v2042
  %s2046 = scalar_lea.vmem %s0, 1541
  %v2047 = vld [vmem:[%s2046] ss:$8 sm:$0xf]
  %s2048 = scalar_lea.vmem %s0, 1541
  %v2049 = vld [vmem:[%s2048] ss:$8 sm:$0xf0]
  %vm2050 = vcmask 1047556
  %v2051 = vsel %vm2050, %v2049, %v2047
  %2052 = vrot.lane.b32.xlu0 %v2051, 80
  %v2053 = vpop.permute.xlu0 %2052
  %vm2054 = vcmask 786048
  %s2055 = scalar_lea.vmem %s1, 192
  %2056 = vst.msk [vmem:[%s2055] sm:$0xff] %vm2054, %v2053
  %s2057 = scalar_lea.vmem %s0, 1797
  %v2058 = vld [vmem:[%s2057] ss:$8 sm:$0xf]
  %s2059 = scalar_lea.vmem %s0, 1797
  %v2060 = vld [vmem:[%s2059] ss:$8 sm:$0xf0]
  %vm2061 = vcmask 1047556
  %v2062 = vsel %vm2061, %v2060, %v2058
  %2063 = vrot.lane.b32.xlu0 %v2062, 80
  %v2064 = vpop.permute.xlu0 %2063
  %vm2065 = vcmask 786048
  %s2066 = scalar_lea.vmem %s1, 224
  %2067 = vst.msk [vmem:[%s2066] sm:$0xff] %vm2065, %v2064
  %s2068 = scalar_lea.vmem %s0, 2053
  %v2069 = vld [vmem:[%s2068] ss:$8 sm:$0xf]
  %s2070 = scalar_lea.vmem %s0, 2053
  %v2071 = vld [vmem:[%s2070] ss:$8 sm:$0xf0]
  %vm2072 = vcmask 1047556
  %v2073 = vsel %vm2072, %v2071, %v2069
  %2074 = vrot.lane.b32.xlu0 %v2073, 80
  %v2075 = vpop.permute.xlu0 %2074
  %vm2076 = vcmask 786048
  %s2077 = scalar_lea.vmem %s1, 256
  %2078 = vst.msk [vmem:[%s2077] sm:$0xff] %vm2076, %v2075
  %s2079 = scalar_lea.vmem %s0, 2309
  %v2080 = vld [vmem:[%s2079] ss:$8 sm:$0xf]
  %s2081 = scalar_lea.vmem %s0, 2309
  %v2082 = vld [vmem:[%s2081] ss:$8 sm:$0xf0]
  %vm2083 = vcmask 1047556
  %v2084 = vsel %vm2083, %v2082, %v2080
  %2085 = vrot.lane.b32.xlu0 %v2084, 80
  %v2086 = vpop.permute.xlu0 %2085
  %vm2087 = vcmask 786048
  %s2088 = scalar_lea.vmem %s1, 288
  %2089 = vst.msk [vmem:[%s2088] sm:$0xff] %vm2087, %v2086
  %s2090 = scalar_lea.vmem %s0, 2565
  %v2091 = vld [vmem:[%s2090] ss:$8 sm:$0xf]
  %s2092 = scalar_lea.vmem %s0, 2565
  %v2093 = vld [vmem:[%s2092] ss:$8 sm:$0xf0]
  %vm2094 = vcmask 1047556
  %v2095 = vsel %vm2094, %v2093, %v2091
  %2096 = vrot.lane.b32.xlu0 %v2095, 80
  %v2097 = vpop.permute.xlu0 %2096
  %vm2098 = vcmask 786048
  %s2099 = scalar_lea.vmem %s1, 320
  %2100 = vst.msk [vmem:[%s2099] sm:$0xff] %vm2098, %v2097
  %s2101 = scalar_lea.vmem %s0, 2821
  %v2102 = vld [vmem:[%s2101] ss:$8 sm:$0xf]
  %s2103 = scalar_lea.vmem %s0, 2821
  %v2104 = vld [vmem:[%s2103] ss:$8 sm:$0xf0]
  %vm2105 = vcmask 1047556
  %v2106 = vsel %vm2105, %v2104, %v2102
  %2107 = vrot.lane.b32.xlu0 %v2106, 80
  %v2108 = vpop.permute.xlu0 %2107
  %vm2109 = vcmask 786048
  %s2110 = scalar_lea.vmem %s1, 352
  %2111 = vst.msk [vmem:[%s2110] sm:$0xff] %vm2109, %v2108
  %s2112 = scalar_lea.vmem %s0, 3077
  %v2113 = vld [vmem:[%s2112] ss:$8 sm:$0xf]
  %s2114 = scalar_lea.vmem %s0, 3077
  %v2115 = vld [vmem:[%s2114] ss:$8 sm:$0xf0]
  %vm2116 = vcmask 1047556
  %v2117 = vsel %vm2116, %v2115, %v2113
  %2118 = vrot.lane.b32.xlu0 %v2117, 80
  %v2119 = vpop.permute.xlu0 %2118
  %vm2120 = vcmask 786048
  %s2121 = scalar_lea.vmem %s1, 384
  %2122 = vst.msk [vmem:[%s2121] sm:$0xff] %vm2120, %v2119
  %s2123 = scalar_lea.vmem %s0, 3333
  %v2124 = vld [vmem:[%s2123] ss:$8 sm:$0xf]
  %s2125 = scalar_lea.vmem %s0, 3333
  %v2126 = vld [vmem:[%s2125] ss:$8 sm:$0xf0]
  %vm2127 = vcmask 1047556
  %v2128 = vsel %vm2127, %v2126, %v2124
  %2129 = vrot.lane.b32.xlu0 %v2128, 80
  %v2130 = vpop.permute.xlu0 %2129
  %vm2131 = vcmask 786048
  %s2132 = scalar_lea.vmem %s1, 416
  %2133 = vst.msk [vmem:[%s2132] sm:$0xff] %vm2131, %v2130
  %s2134 = scalar_lea.vmem %s0, 3589
  %v2135 = vld [vmem:[%s2134] ss:$8 sm:$0xf]
  %s2136 = scalar_lea.vmem %s0, 3589
  %v2137 = vld [vmem:[%s2136] ss:$8 sm:$0xf0]
  %vm2138 = vcmask 1047556
  %v2139 = vsel %vm2138, %v2137, %v2135
  %2140 = vrot.lane.b32.xlu0 %v2139, 80
  %v2141 = vpop.permute.xlu0 %2140
  %vm2142 = vcmask 786048
  %s2143 = scalar_lea.vmem %s1, 448
  %2144 = vst.msk [vmem:[%s2143] sm:$0xff] %vm2142, %v2141
  %s2145 = scalar_lea.vmem %s0, 3845
  %v2146 = vld [vmem:[%s2145] ss:$8 sm:$0xf]
  %s2147 = scalar_lea.vmem %s0, 3845
  %v2148 = vld [vmem:[%s2147] ss:$8 sm:$0xf0]
  %vm2149 = vcmask 1047556
  %v2150 = vsel %vm2149, %v2148, %v2146
  %2151 = vrot.lane.b32.xlu0 %v2150, 80
  %v2152 = vpop.permute.xlu0 %2151
  %vm2153 = vcmask 786048
  %s2154 = scalar_lea.vmem %s1, 480
  %2155 = vst.msk [vmem:[%s2154] sm:$0xff] %vm2153, %v2152
  %s2156 = scalar_lea.vmem %s0, 69
  %v2157 = vld [vmem:[%s2156] ss:$8 sm:$0xf]
  %s2158 = scalar_lea.vmem %s0, 69
  %v2159 = vld [vmem:[%s2158] ss:$8 sm:$0xf0]
  %vm2160 = vcmask 1047556
  %v2161 = vsel %vm2160, %v2159, %v2157
  %2162 = vrot.lane.b32.xlu0 %v2161, 80
  %v2163 = vpop.permute.xlu0 %2162
  %vm2164 = vcmask 786048
  %s2165 = scalar_lea.vmem %s1, 8
  %2166 = vst.msk [vmem:[%s2165] sm:$0xff] %vm2164, %v2163
  %s2167 = scalar_lea.vmem %s0, 325
  %v2168 = vld [vmem:[%s2167] ss:$8 sm:$0xf]
  %s2169 = scalar_lea.vmem %s0, 325
  %v2170 = vld [vmem:[%s2169] ss:$8 sm:$0xf0]
  %vm2171 = vcmask 1047556
  %v2172 = vsel %vm2171, %v2170, %v2168
  %2173 = vrot.lane.b32.xlu0 %v2172, 80
  %v2174 = vpop.permute.xlu0 %2173
  %vm2175 = vcmask 786048
  %s2176 = scalar_lea.vmem %s1, 40
  %2177 = vst.msk [vmem:[%s2176] sm:$0xff] %vm2175, %v2174
  %s2178 = scalar_lea.vmem %s0, 581
  %v2179 = vld [vmem:[%s2178] ss:$8 sm:$0xf]
  %s2180 = scalar_lea.vmem %s0, 581
  %v2181 = vld [vmem:[%s2180] ss:$8 sm:$0xf0]
  %vm2182 = vcmask 1047556
  %v2183 = vsel %vm2182, %v2181, %v2179
  %2184 = vrot.lane.b32.xlu0 %v2183, 80
  %v2185 = vpop.permute.xlu0 %2184
  %vm2186 = vcmask 786048
  %s2187 = scalar_lea.vmem %s1, 72
  %2188 = vst.msk [vmem:[%s2187] sm:$0xff] %vm2186, %v2185
  %s2189 = scalar_lea.vmem %s0, 837
  %v2190 = vld [vmem:[%s2189] ss:$8 sm:$0xf]
  %s2191 = scalar_lea.vmem %s0, 837
  %v2192 = vld [vmem:[%s2191] ss:$8 sm:$0xf0]
  %vm2193 = vcmask 1047556
  %v2194 = vsel %vm2193, %v2192, %v2190
  %2195 = vrot.lane.b32.xlu0 %v2194, 80
  %v2196 = vpop.permute.xlu0 %2195
  %vm2197 = vcmask 786048
  %s2198 = scalar_lea.vmem %s1, 104
  %2199 = vst.msk [vmem:[%s2198] sm:$0xff] %vm2197, %v2196
  %s2200 = scalar_lea.vmem %s0, 1093
  %v2201 = vld [vmem:[%s2200] ss:$8 sm:$0xf]
  %s2202 = scalar_lea.vmem %s0, 1093
  %v2203 = vld [vmem:[%s2202] ss:$8 sm:$0xf0]
  %vm2204 = vcmask 1047556
  %v2205 = vsel %vm2204, %v2203, %v2201
  %2206 = vrot.lane.b32.xlu0 %v2205, 80
  %v2207 = vpop.permute.xlu0 %2206
  %vm2208 = vcmask 786048
  %s2209 = scalar_lea.vmem %s1, 136
  %2210 = vst.msk [vmem:[%s2209] sm:$0xff] %vm2208, %v2207
  %s2211 = scalar_lea.vmem %s0, 1349
  %v2212 = vld [vmem:[%s2211] ss:$8 sm:$0xf]
  %s2213 = scalar_lea.vmem %s0, 1349
  %v2214 = vld [vmem:[%s2213] ss:$8 sm:$0xf0]
  %vm2215 = vcmask 1047556
  %v2216 = vsel %vm2215, %v2214, %v2212
  %2217 = vrot.lane.b32.xlu0 %v2216, 80
  %v2218 = vpop.permute.xlu0 %2217
  %vm2219 = vcmask 786048
  %s2220 = scalar_lea.vmem %s1, 168
  %2221 = vst.msk [vmem:[%s2220] sm:$0xff] %vm2219, %v2218
  %s2222 = scalar_lea.vmem %s0, 1605
  %v2223 = vld [vmem:[%s2222] ss:$8 sm:$0xf]
  %s2224 = scalar_lea.vmem %s0, 1605
  %v2225 = vld [vmem:[%s2224] ss:$8 sm:$0xf0]
  %vm2226 = vcmask 1047556
  %v2227 = vsel %vm2226, %v2225, %v2223
  %2228 = vrot.lane.b32.xlu0 %v2227, 80
  %v2229 = vpop.permute.xlu0 %2228
  %vm2230 = vcmask 786048
  %s2231 = scalar_lea.vmem %s1, 200
  %2232 = vst.msk [vmem:[%s2231] sm:$0xff] %vm2230, %v2229
  %s2233 = scalar_lea.vmem %s0, 1861
  %v2234 = vld [vmem:[%s2233] ss:$8 sm:$0xf]
  %s2235 = scalar_lea.vmem %s0, 1861
  %v2236 = vld [vmem:[%s2235] ss:$8 sm:$0xf0]
  %vm2237 = vcmask 1047556
  %v2238 = vsel %vm2237, %v2236, %v2234
  %2239 = vrot.lane.b32.xlu0 %v2238, 80
  %v2240 = vpop.permute.xlu0 %2239
  %vm2241 = vcmask 786048
  %s2242 = scalar_lea.vmem %s1, 232
  %2243 = vst.msk [vmem:[%s2242] sm:$0xff] %vm2241, %v2240
  %s2244 = scalar_lea.vmem %s0, 2117
  %v2245 = vld [vmem:[%s2244] ss:$8 sm:$0xf]
  %s2246 = scalar_lea.vmem %s0, 2117
  %v2247 = vld [vmem:[%s2246] ss:$8 sm:$0xf0]
  %vm2248 = vcmask 1047556
  %v2249 = vsel %vm2248, %v2247, %v2245
  %2250 = vrot.lane.b32.xlu0 %v2249, 80
  %v2251 = vpop.permute.xlu0 %2250
  %vm2252 = vcmask 786048
  %s2253 = scalar_lea.vmem %s1, 264
  %2254 = vst.msk [vmem:[%s2253] sm:$0xff] %vm2252, %v2251
  %s2255 = scalar_lea.vmem %s0, 2373
  %v2256 = vld [vmem:[%s2255] ss:$8 sm:$0xf]
  %s2257 = scalar_lea.vmem %s0, 2373
  %v2258 = vld [vmem:[%s2257] ss:$8 sm:$0xf0]
  %vm2259 = vcmask 1047556
  %v2260 = vsel %vm2259, %v2258, %v2256
  %2261 = vrot.lane.b32.xlu0 %v2260, 80
  %v2262 = vpop.permute.xlu0 %2261
  %vm2263 = vcmask 786048
  %s2264 = scalar_lea.vmem %s1, 296
  %2265 = vst.msk [vmem:[%s2264] sm:$0xff] %vm2263, %v2262
  %s2266 = scalar_lea.vmem %s0, 2629
  %v2267 = vld [vmem:[%s2266] ss:$8 sm:$0xf]
  %s2268 = scalar_lea.vmem %s0, 2629
  %v2269 = vld [vmem:[%s2268] ss:$8 sm:$0xf0]
  %vm2270 = vcmask 1047556
  %v2271 = vsel %vm2270, %v2269, %v2267
  %2272 = vrot.lane.b32.xlu0 %v2271, 80
  %v2273 = vpop.permute.xlu0 %2272
  %vm2274 = vcmask 786048
  %s2275 = scalar_lea.vmem %s1, 328
  %2276 = vst.msk [vmem:[%s2275] sm:$0xff] %vm2274, %v2273
  %s2277 = scalar_lea.vmem %s0, 2885
  %v2278 = vld [vmem:[%s2277] ss:$8 sm:$0xf]
  %s2279 = scalar_lea.vmem %s0, 2885
  %v2280 = vld [vmem:[%s2279] ss:$8 sm:$0xf0]
  %vm2281 = vcmask 1047556
  %v2282 = vsel %vm2281, %v2280, %v2278
  %2283 = vrot.lane.b32.xlu0 %v2282, 80
  %v2284 = vpop.permute.xlu0 %2283
  %vm2285 = vcmask 786048
  %s2286 = scalar_lea.vmem %s1, 360
  %2287 = vst.msk [vmem:[%s2286] sm:$0xff] %vm2285, %v2284
  %s2288 = scalar_lea.vmem %s0, 3141
  %v2289 = vld [vmem:[%s2288] ss:$8 sm:$0xf]
  %s2290 = scalar_lea.vmem %s0, 3141
  %v2291 = vld [vmem:[%s2290] ss:$8 sm:$0xf0]
  %vm2292 = vcmask 1047556
  %v2293 = vsel %vm2292, %v2291, %v2289
  %2294 = vrot.lane.b32.xlu0 %v2293, 80
  %v2295 = vpop.permute.xlu0 %2294
  %vm2296 = vcmask 786048
  %s2297 = scalar_lea.vmem %s1, 392
  %2298 = vst.msk [vmem:[%s2297] sm:$0xff] %vm2296, %v2295
  %s2299 = scalar_lea.vmem %s0, 3397
  %v2300 = vld [vmem:[%s2299] ss:$8 sm:$0xf]
  %s2301 = scalar_lea.vmem %s0, 3397
  %v2302 = vld [vmem:[%s2301] ss:$8 sm:$0xf0]
  %vm2303 = vcmask 1047556
  %v2304 = vsel %vm2303, %v2302, %v2300
  %2305 = vrot.lane.b32.xlu0 %v2304, 80
  %v2306 = vpop.permute.xlu0 %2305
  %vm2307 = vcmask 786048
  %s2308 = scalar_lea.vmem %s1, 424
  %2309 = vst.msk [vmem:[%s2308] sm:$0xff] %vm2307, %v2306
  %s2310 = scalar_lea.vmem %s0, 3653
  %v2311 = vld [vmem:[%s2310] ss:$8 sm:$0xf]
  %s2312 = scalar_lea.vmem %s0, 3653
  %v2313 = vld [vmem:[%s2312] ss:$8 sm:$0xf0]
  %vm2314 = vcmask 1047556
  %v2315 = vsel %vm2314, %v2313, %v2311
  %2316 = vrot.lane.b32.xlu0 %v2315, 80
  %v2317 = vpop.permute.xlu0 %2316
  %vm2318 = vcmask 786048
  %s2319 = scalar_lea.vmem %s1, 456
  %2320 = vst.msk [vmem:[%s2319] sm:$0xff] %vm2318, %v2317
  %s2321 = scalar_lea.vmem %s0, 3909
  %v2322 = vld [vmem:[%s2321] ss:$8 sm:$0xf]
  %s2323 = scalar_lea.vmem %s0, 3909
  %v2324 = vld [vmem:[%s2323] ss:$8 sm:$0xf0]
  %vm2325 = vcmask 1047556
  %v2326 = vsel %vm2325, %v2324, %v2322
  %2327 = vrot.lane.b32.xlu0 %v2326, 80
  %v2328 = vpop.permute.xlu0 %2327
  %vm2329 = vcmask 786048
  %s2330 = scalar_lea.vmem %s1, 488
  %2331 = vst.msk [vmem:[%s2330] sm:$0xff] %vm2329, %v2328
  %s2332 = scalar_lea.vmem %s0, 133
  %v2333 = vld [vmem:[%s2332] ss:$8 sm:$0xf]
  %s2334 = scalar_lea.vmem %s0, 133
  %v2335 = vld [vmem:[%s2334] ss:$8 sm:$0xf0]
  %vm2336 = vcmask 1047556
  %v2337 = vsel %vm2336, %v2335, %v2333
  %2338 = vrot.lane.b32.xlu0 %v2337, 80
  %v2339 = vpop.permute.xlu0 %2338
  %vm2340 = vcmask 786048
  %s2341 = scalar_lea.vmem %s1, 16
  %2342 = vst.msk [vmem:[%s2341] sm:$0xff] %vm2340, %v2339
  %s2343 = scalar_lea.vmem %s0, 389
  %v2344 = vld [vmem:[%s2343] ss:$8 sm:$0xf]
  %s2345 = scalar_lea.vmem %s0, 389
  %v2346 = vld [vmem:[%s2345] ss:$8 sm:$0xf0]
  %vm2347 = vcmask 1047556
  %v2348 = vsel %vm2347, %v2346, %v2344
  %2349 = vrot.lane.b32.xlu0 %v2348, 80
  %v2350 = vpop.permute.xlu0 %2349
  %vm2351 = vcmask 786048
  %s2352 = scalar_lea.vmem %s1, 48
  %2353 = vst.msk [vmem:[%s2352] sm:$0xff] %vm2351, %v2350
  %s2354 = scalar_lea.vmem %s0, 645
  %v2355 = vld [vmem:[%s2354] ss:$8 sm:$0xf]
  %s2356 = scalar_lea.vmem %s0, 645
  %v2357 = vld [vmem:[%s2356] ss:$8 sm:$0xf0]
  %vm2358 = vcmask 1047556
  %v2359 = vsel %vm2358, %v2357, %v2355
  %2360 = vrot.lane.b32.xlu0 %v2359, 80
  %v2361 = vpop.permute.xlu0 %2360
  %vm2362 = vcmask 786048
  %s2363 = scalar_lea.vmem %s1, 80
  %2364 = vst.msk [vmem:[%s2363] sm:$0xff] %vm2362, %v2361
  %s2365 = scalar_lea.vmem %s0, 901
  %v2366 = vld [vmem:[%s2365] ss:$8 sm:$0xf]
  %s2367 = scalar_lea.vmem %s0, 901
  %v2368 = vld [vmem:[%s2367] ss:$8 sm:$0xf0]
  %vm2369 = vcmask 1047556
  %v2370 = vsel %vm2369, %v2368, %v2366
  %2371 = vrot.lane.b32.xlu0 %v2370, 80
  %v2372 = vpop.permute.xlu0 %2371
  %vm2373 = vcmask 786048
  %s2374 = scalar_lea.vmem %s1, 112
  %2375 = vst.msk [vmem:[%s2374] sm:$0xff] %vm2373, %v2372
  %s2376 = scalar_lea.vmem %s0, 1157
  %v2377 = vld [vmem:[%s2376] ss:$8 sm:$0xf]
  %s2378 = scalar_lea.vmem %s0, 1157
  %v2379 = vld [vmem:[%s2378] ss:$8 sm:$0xf0]
  %vm2380 = vcmask 1047556
  %v2381 = vsel %vm2380, %v2379, %v2377
  %2382 = vrot.lane.b32.xlu0 %v2381, 80
  %v2383 = vpop.permute.xlu0 %2382
  %vm2384 = vcmask 786048
  %s2385 = scalar_lea.vmem %s1, 144
  %2386 = vst.msk [vmem:[%s2385] sm:$0xff] %vm2384, %v2383
  %s2387 = scalar_lea.vmem %s0, 1413
  %v2388 = vld [vmem:[%s2387] ss:$8 sm:$0xf]
  %s2389 = scalar_lea.vmem %s0, 1413
  %v2390 = vld [vmem:[%s2389] ss:$8 sm:$0xf0]
  %vm2391 = vcmask 1047556
  %v2392 = vsel %vm2391, %v2390, %v2388
  %2393 = vrot.lane.b32.xlu0 %v2392, 80
  %v2394 = vpop.permute.xlu0 %2393
  %vm2395 = vcmask 786048
  %s2396 = scalar_lea.vmem %s1, 176
  %2397 = vst.msk [vmem:[%s2396] sm:$0xff] %vm2395, %v2394
  %s2398 = scalar_lea.vmem %s0, 1669
  %v2399 = vld [vmem:[%s2398] ss:$8 sm:$0xf]
  %s2400 = scalar_lea.vmem %s0, 1669
  %v2401 = vld [vmem:[%s2400] ss:$8 sm:$0xf0]
  %vm2402 = vcmask 1047556
  %v2403 = vsel %vm2402, %v2401, %v2399
  %2404 = vrot.lane.b32.xlu0 %v2403, 80
  %v2405 = vpop.permute.xlu0 %2404
  %vm2406 = vcmask 786048
  %s2407 = scalar_lea.vmem %s1, 208
  %2408 = vst.msk [vmem:[%s2407] sm:$0xff] %vm2406, %v2405
  %s2409 = scalar_lea.vmem %s0, 1925
  %v2410 = vld [vmem:[%s2409] ss:$8 sm:$0xf]
  %s2411 = scalar_lea.vmem %s0, 1925
  %v2412 = vld [vmem:[%s2411] ss:$8 sm:$0xf0]
  %vm2413 = vcmask 1047556
  %v2414 = vsel %vm2413, %v2412, %v2410
  %2415 = vrot.lane.b32.xlu0 %v2414, 80
  %v2416 = vpop.permute.xlu0 %2415
  %vm2417 = vcmask 786048
  %s2418 = scalar_lea.vmem %s1, 240
  %2419 = vst.msk [vmem:[%s2418] sm:$0xff] %vm2417, %v2416
  %s2420 = scalar_lea.vmem %s0, 2181
  %v2421 = vld [vmem:[%s2420] ss:$8 sm:$0xf]
  %s2422 = scalar_lea.vmem %s0, 2181
  %v2423 = vld [vmem:[%s2422] ss:$8 sm:$0xf0]
  %vm2424 = vcmask 1047556
  %v2425 = vsel %vm2424, %v2423, %v2421
  %2426 = vrot.lane.b32.xlu0 %v2425, 80
  %v2427 = vpop.permute.xlu0 %2426
  %vm2428 = vcmask 786048
  %s2429 = scalar_lea.vmem %s1, 272
  %2430 = vst.msk [vmem:[%s2429] sm:$0xff] %vm2428, %v2427
  %s2431 = scalar_lea.vmem %s0, 2437
  %v2432 = vld [vmem:[%s2431] ss:$8 sm:$0xf]
  %s2433 = scalar_lea.vmem %s0, 2437
  %v2434 = vld [vmem:[%s2433] ss:$8 sm:$0xf0]
  %vm2435 = vcmask 1047556
  %v2436 = vsel %vm2435, %v2434, %v2432
  %2437 = vrot.lane.b32.xlu0 %v2436, 80
  %v2438 = vpop.permute.xlu0 %2437
  %vm2439 = vcmask 786048
  %s2440 = scalar_lea.vmem %s1, 304
  %2441 = vst.msk [vmem:[%s2440] sm:$0xff] %vm2439, %v2438
  %s2442 = scalar_lea.vmem %s0, 2693
  %v2443 = vld [vmem:[%s2442] ss:$8 sm:$0xf]
  %s2444 = scalar_lea.vmem %s0, 2693
  %v2445 = vld [vmem:[%s2444] ss:$8 sm:$0xf0]
  %vm2446 = vcmask 1047556
  %v2447 = vsel %vm2446, %v2445, %v2443
  %2448 = vrot.lane.b32.xlu0 %v2447, 80
  %v2449 = vpop.permute.xlu0 %2448
  %vm2450 = vcmask 786048
  %s2451 = scalar_lea.vmem %s1, 336
  %2452 = vst.msk [vmem:[%s2451] sm:$0xff] %vm2450, %v2449
  %s2453 = scalar_lea.vmem %s0, 2949
  %v2454 = vld [vmem:[%s2453] ss:$8 sm:$0xf]
  %s2455 = scalar_lea.vmem %s0, 2949
  %v2456 = vld [vmem:[%s2455] ss:$8 sm:$0xf0]
  %vm2457 = vcmask 1047556
  %v2458 = vsel %vm2457, %v2456, %v2454
  %2459 = vrot.lane.b32.xlu0 %v2458, 80
  %v2460 = vpop.permute.xlu0 %2459
  %vm2461 = vcmask 786048
  %s2462 = scalar_lea.vmem %s1, 368
  %2463 = vst.msk [vmem:[%s2462] sm:$0xff] %vm2461, %v2460
  %s2464 = scalar_lea.vmem %s0, 3205
  %v2465 = vld [vmem:[%s2464] ss:$8 sm:$0xf]
  %s2466 = scalar_lea.vmem %s0, 3205
  %v2467 = vld [vmem:[%s2466] ss:$8 sm:$0xf0]
  %vm2468 = vcmask 1047556
  %v2469 = vsel %vm2468, %v2467, %v2465
  %2470 = vrot.lane.b32.xlu0 %v2469, 80
  %v2471 = vpop.permute.xlu0 %2470
  %vm2472 = vcmask 786048
  %s2473 = scalar_lea.vmem %s1, 400
  %2474 = vst.msk [vmem:[%s2473] sm:$0xff] %vm2472, %v2471
  %s2475 = scalar_lea.vmem %s0, 3461
  %v2476 = vld [vmem:[%s2475] ss:$8 sm:$0xf]
  %s2477 = scalar_lea.vmem %s0, 3461
  %v2478 = vld [vmem:[%s2477] ss:$8 sm:$0xf0]
  %vm2479 = vcmask 1047556
  %v2480 = vsel %vm2479, %v2478, %v2476
  %2481 = vrot.lane.b32.xlu0 %v2480, 80
  %v2482 = vpop.permute.xlu0 %2481
  %vm2483 = vcmask 786048
  %s2484 = scalar_lea.vmem %s1, 432
  %2485 = vst.msk [vmem:[%s2484] sm:$0xff] %vm2483, %v2482
  %s2486 = scalar_lea.vmem %s0, 3717
  %v2487 = vld [vmem:[%s2486] ss:$8 sm:$0xf]
  %s2488 = scalar_lea.vmem %s0, 3717
  %v2489 = vld [vmem:[%s2488] ss:$8 sm:$0xf0]
  %vm2490 = vcmask 1047556
  %v2491 = vsel %vm2490, %v2489, %v2487
  %2492 = vrot.lane.b32.xlu0 %v2491, 80
  %v2493 = vpop.permute.xlu0 %2492
  %vm2494 = vcmask 786048
  %s2495 = scalar_lea.vmem %s1, 464
  %2496 = vst.msk [vmem:[%s2495] sm:$0xff] %vm2494, %v2493
  %s2497 = scalar_lea.vmem %s0, 3973
  %v2498 = vld [vmem:[%s2497] ss:$8 sm:$0xf]
  %s2499 = scalar_lea.vmem %s0, 3973
  %v2500 = vld [vmem:[%s2499] ss:$8 sm:$0xf0]
  %vm2501 = vcmask 1047556
  %v2502 = vsel %vm2501, %v2500, %v2498
  %2503 = vrot.lane.b32.xlu0 %v2502, 80
  %v2504 = vpop.permute.xlu0 %2503
  %vm2505 = vcmask 786048
  %s2506 = scalar_lea.vmem %s1, 496
  %2507 = vst.msk [vmem:[%s2506] sm:$0xff] %vm2505, %v2504
  %s2508 = scalar_lea.vmem %s0, 197
  %v2509 = vld [vmem:[%s2508] ss:$8 sm:$0xf]
  %s2510 = scalar_lea.vmem %s0, 197
  %v2511 = vld [vmem:[%s2510] ss:$8 sm:$0xf0]
  %vm2512 = vcmask 1047556
  %v2513 = vsel %vm2512, %v2511, %v2509
  %2514 = vrot.lane.b32.xlu0 %v2513, 80
  %v2515 = vpop.permute.xlu0 %2514
  %vm2516 = vcmask 786048
  %s2517 = scalar_lea.vmem %s1, 24
  %2518 = vst.msk [vmem:[%s2517] sm:$0xff] %vm2516, %v2515
  %s2519 = scalar_lea.vmem %s0, 453
  %v2520 = vld [vmem:[%s2519] ss:$8 sm:$0xf]
  %s2521 = scalar_lea.vmem %s0, 453
  %v2522 = vld [vmem:[%s2521] ss:$8 sm:$0xf0]
  %vm2523 = vcmask 1047556
  %v2524 = vsel %vm2523, %v2522, %v2520
  %2525 = vrot.lane.b32.xlu0 %v2524, 80
  %v2526 = vpop.permute.xlu0 %2525
  %vm2527 = vcmask 786048
  %s2528 = scalar_lea.vmem %s1, 56
  %2529 = vst.msk [vmem:[%s2528] sm:$0xff] %vm2527, %v2526
  %s2530 = scalar_lea.vmem %s0, 709
  %v2531 = vld [vmem:[%s2530] ss:$8 sm:$0xf]
  %s2532 = scalar_lea.vmem %s0, 709
  %v2533 = vld [vmem:[%s2532] ss:$8 sm:$0xf0]
  %vm2534 = vcmask 1047556
  %v2535 = vsel %vm2534, %v2533, %v2531
  %2536 = vrot.lane.b32.xlu0 %v2535, 80
  %v2537 = vpop.permute.xlu0 %2536
  %vm2538 = vcmask 786048
  %s2539 = scalar_lea.vmem %s1, 88
  %2540 = vst.msk [vmem:[%s2539] sm:$0xff] %vm2538, %v2537
  %s2541 = scalar_lea.vmem %s0, 965
  %v2542 = vld [vmem:[%s2541] ss:$8 sm:$0xf]
  %s2543 = scalar_lea.vmem %s0, 965
  %v2544 = vld [vmem:[%s2543] ss:$8 sm:$0xf0]
  %vm2545 = vcmask 1047556
  %v2546 = vsel %vm2545, %v2544, %v2542
  %2547 = vrot.lane.b32.xlu0 %v2546, 80
  %v2548 = vpop.permute.xlu0 %2547
  %vm2549 = vcmask 786048
  %s2550 = scalar_lea.vmem %s1, 120
  %2551 = vst.msk [vmem:[%s2550] sm:$0xff] %vm2549, %v2548
  %s2552 = scalar_lea.vmem %s0, 1221
  %v2553 = vld [vmem:[%s2552] ss:$8 sm:$0xf]
  %s2554 = scalar_lea.vmem %s0, 1221
  %v2555 = vld [vmem:[%s2554] ss:$8 sm:$0xf0]
  %vm2556 = vcmask 1047556
  %v2557 = vsel %vm2556, %v2555, %v2553
  %2558 = vrot.lane.b32.xlu0 %v2557, 80
  %v2559 = vpop.permute.xlu0 %2558
  %vm2560 = vcmask 786048
  %s2561 = scalar_lea.vmem %s1, 152
  %2562 = vst.msk [vmem:[%s2561] sm:$0xff] %vm2560, %v2559
  %s2563 = scalar_lea.vmem %s0, 1477
  %v2564 = vld [vmem:[%s2563] ss:$8 sm:$0xf]
  %s2565 = scalar_lea.vmem %s0, 1477
  %v2566 = vld [vmem:[%s2565] ss:$8 sm:$0xf0]
  %vm2567 = vcmask 1047556
  %v2568 = vsel %vm2567, %v2566, %v2564
  %2569 = vrot.lane.b32.xlu0 %v2568, 80
  %v2570 = vpop.permute.xlu0 %2569
  %vm2571 = vcmask 786048
  %s2572 = scalar_lea.vmem %s1, 184
  %2573 = vst.msk [vmem:[%s2572] sm:$0xff] %vm2571, %v2570
  %s2574 = scalar_lea.vmem %s0, 1733
  %v2575 = vld [vmem:[%s2574] ss:$8 sm:$0xf]
  %s2576 = scalar_lea.vmem %s0, 1733
  %v2577 = vld [vmem:[%s2576] ss:$8 sm:$0xf0]
  %vm2578 = vcmask 1047556
  %v2579 = vsel %vm2578, %v2577, %v2575
  %2580 = vrot.lane.b32.xlu0 %v2579, 80
  %v2581 = vpop.permute.xlu0 %2580
  %vm2582 = vcmask 786048
  %s2583 = scalar_lea.vmem %s1, 216
  %2584 = vst.msk [vmem:[%s2583] sm:$0xff] %vm2582, %v2581
  %s2585 = scalar_lea.vmem %s0, 1989
  %v2586 = vld [vmem:[%s2585] ss:$8 sm:$0xf]
  %s2587 = scalar_lea.vmem %s0, 1989
  %v2588 = vld [vmem:[%s2587] ss:$8 sm:$0xf0]
  %vm2589 = vcmask 1047556
  %v2590 = vsel %vm2589, %v2588, %v2586
  %2591 = vrot.lane.b32.xlu0 %v2590, 80
  %v2592 = vpop.permute.xlu0 %2591
  %vm2593 = vcmask 786048
  %s2594 = scalar_lea.vmem %s1, 248
  %2595 = vst.msk [vmem:[%s2594] sm:$0xff] %vm2593, %v2592
  %s2596 = scalar_lea.vmem %s0, 2245
  %v2597 = vld [vmem:[%s2596] ss:$8 sm:$0xf]
  %s2598 = scalar_lea.vmem %s0, 2245
  %v2599 = vld [vmem:[%s2598] ss:$8 sm:$0xf0]
  %vm2600 = vcmask 1047556
  %v2601 = vsel %vm2600, %v2599, %v2597
  %2602 = vrot.lane.b32.xlu0 %v2601, 80
  %v2603 = vpop.permute.xlu0 %2602
  %vm2604 = vcmask 786048
  %s2605 = scalar_lea.vmem %s1, 280
  %2606 = vst.msk [vmem:[%s2605] sm:$0xff] %vm2604, %v2603
  %s2607 = scalar_lea.vmem %s0, 2501
  %v2608 = vld [vmem:[%s2607] ss:$8 sm:$0xf]
  %s2609 = scalar_lea.vmem %s0, 2501
  %v2610 = vld [vmem:[%s2609] ss:$8 sm:$0xf0]
  %vm2611 = vcmask 1047556
  %v2612 = vsel %vm2611, %v2610, %v2608
  %2613 = vrot.lane.b32.xlu0 %v2612, 80
  %v2614 = vpop.permute.xlu0 %2613
  %vm2615 = vcmask 786048
  %s2616 = scalar_lea.vmem %s1, 312
  %2617 = vst.msk [vmem:[%s2616] sm:$0xff] %vm2615, %v2614
  %s2618 = scalar_lea.vmem %s0, 2757
  %v2619 = vld [vmem:[%s2618] ss:$8 sm:$0xf]
  %s2620 = scalar_lea.vmem %s0, 2757
  %v2621 = vld [vmem:[%s2620] ss:$8 sm:$0xf0]
  %vm2622 = vcmask 1047556
  %v2623 = vsel %vm2622, %v2621, %v2619
  %2624 = vrot.lane.b32.xlu0 %v2623, 80
  %v2625 = vpop.permute.xlu0 %2624
  %vm2626 = vcmask 786048
  %s2627 = scalar_lea.vmem %s1, 344
  %2628 = vst.msk [vmem:[%s2627] sm:$0xff] %vm2626, %v2625
  %s2629 = scalar_lea.vmem %s0, 3013
  %v2630 = vld [vmem:[%s2629] ss:$8 sm:$0xf]
  %s2631 = scalar_lea.vmem %s0, 3013
  %v2632 = vld [vmem:[%s2631] ss:$8 sm:$0xf0]
  %vm2633 = vcmask 1047556
  %v2634 = vsel %vm2633, %v2632, %v2630
  %2635 = vrot.lane.b32.xlu0 %v2634, 80
  %v2636 = vpop.permute.xlu0 %2635
  %vm2637 = vcmask 786048
  %s2638 = scalar_lea.vmem %s1, 376
  %2639 = vst.msk [vmem:[%s2638] sm:$0xff] %vm2637, %v2636
  %s2640 = scalar_lea.vmem %s0, 3269
  %v2641 = vld [vmem:[%s2640] ss:$8 sm:$0xf]
  %s2642 = scalar_lea.vmem %s0, 3269
  %v2643 = vld [vmem:[%s2642] ss:$8 sm:$0xf0]
  %vm2644 = vcmask 1047556
  %v2645 = vsel %vm2644, %v2643, %v2641
  %2646 = vrot.lane.b32.xlu0 %v2645, 80
  %v2647 = vpop.permute.xlu0 %2646
  %vm2648 = vcmask 786048
  %s2649 = scalar_lea.vmem %s1, 408
  %2650 = vst.msk [vmem:[%s2649] sm:$0xff] %vm2648, %v2647
  %s2651 = scalar_lea.vmem %s0, 3525
  %v2652 = vld [vmem:[%s2651] ss:$8 sm:$0xf]
  %s2653 = scalar_lea.vmem %s0, 3525
  %v2654 = vld [vmem:[%s2653] ss:$8 sm:$0xf0]
  %vm2655 = vcmask 1047556
  %v2656 = vsel %vm2655, %v2654, %v2652
  %2657 = vrot.lane.b32.xlu0 %v2656, 80
  %v2658 = vpop.permute.xlu0 %2657
  %vm2659 = vcmask 786048
  %s2660 = scalar_lea.vmem %s1, 440
  %2661 = vst.msk [vmem:[%s2660] sm:$0xff] %vm2659, %v2658
  %s2662 = scalar_lea.vmem %s0, 3781
  %v2663 = vld [vmem:[%s2662] ss:$8 sm:$0xf]
  %s2664 = scalar_lea.vmem %s0, 3781
  %v2665 = vld [vmem:[%s2664] ss:$8 sm:$0xf0]
  %vm2666 = vcmask 1047556
  %v2667 = vsel %vm2666, %v2665, %v2663
  %2668 = vrot.lane.b32.xlu0 %v2667, 80
  %v2669 = vpop.permute.xlu0 %2668
  %vm2670 = vcmask 786048
  %s2671 = scalar_lea.vmem %s1, 472
  %2672 = vst.msk [vmem:[%s2671] sm:$0xff] %vm2670, %v2669
  %s2673 = scalar_lea.vmem %s0, 4037
  %v2674 = vld [vmem:[%s2673] ss:$8 sm:$0xf]
  %s2675 = scalar_lea.vmem %s0, 4037
  %v2676 = vld [vmem:[%s2675] ss:$8 sm:$0xf0]
  %vm2677 = vcmask 1047556
  %v2678 = vsel %vm2677, %v2676, %v2674
  %2679 = vrot.lane.b32.xlu0 %v2678, 80
  %v2680 = vpop.permute.xlu0 %2679
  %vm2681 = vcmask 786048
  %s2682 = scalar_lea.vmem %s1, 504
  %2683 = vst.msk [vmem:[%s2682] sm:$0xff] %vm2681, %v2680
  %s2684 = scalar_lea.vmem %s0, 4
  %v2685 = vld [vmem:[%s2684] ss:$8 sm:$0xf]
  %s2686 = scalar_lea.vmem %s0, 4
  %v2687 = vld [vmem:[%s2686] ss:$8 sm:$0xf0]
  %vm2688 = vcmask 1047556
  %v2689 = vsel %vm2688, %v2687, %v2685
  %2690 = vrot.lane.b32.xlu0 %v2689, 64
  %v2691 = vpop.permute.xlu0 %2690
  %vm2692 = vcmask 654848
  %2693 = vst.msk [vmem:[%s1] sm:$0xff] %vm2692, %v2691
  %s2694 = scalar_lea.vmem %s0, 260
  %v2695 = vld [vmem:[%s2694] ss:$8 sm:$0xf]
  %s2696 = scalar_lea.vmem %s0, 260
  %v2697 = vld [vmem:[%s2696] ss:$8 sm:$0xf0]
  %vm2698 = vcmask 1047556
  %v2699 = vsel %vm2698, %v2697, %v2695
  %2700 = vrot.lane.b32.xlu0 %v2699, 64
  %v2701 = vpop.permute.xlu0 %2700
  %vm2702 = vcmask 654848
  %s2703 = scalar_lea.vmem %s1, 32
  %2704 = vst.msk [vmem:[%s2703] sm:$0xff] %vm2702, %v2701
  %s2705 = scalar_lea.vmem %s0, 516
  %v2706 = vld [vmem:[%s2705] ss:$8 sm:$0xf]
  %s2707 = scalar_lea.vmem %s0, 516
  %v2708 = vld [vmem:[%s2707] ss:$8 sm:$0xf0]
  %vm2709 = vcmask 1047556
  %v2710 = vsel %vm2709, %v2708, %v2706
  %2711 = vrot.lane.b32.xlu0 %v2710, 64
  %v2712 = vpop.permute.xlu0 %2711
  %vm2713 = vcmask 654848
  %s2714 = scalar_lea.vmem %s1, 64
  %2715 = vst.msk [vmem:[%s2714] sm:$0xff] %vm2713, %v2712
  %s2716 = scalar_lea.vmem %s0, 772
  %v2717 = vld [vmem:[%s2716] ss:$8 sm:$0xf]
  %s2718 = scalar_lea.vmem %s0, 772
  %v2719 = vld [vmem:[%s2718] ss:$8 sm:$0xf0]
  %vm2720 = vcmask 1047556
  %v2721 = vsel %vm2720, %v2719, %v2717
  %2722 = vrot.lane.b32.xlu0 %v2721, 64
  %v2723 = vpop.permute.xlu0 %2722
  %vm2724 = vcmask 654848
  %s2725 = scalar_lea.vmem %s1, 96
  %2726 = vst.msk [vmem:[%s2725] sm:$0xff] %vm2724, %v2723
  %s2727 = scalar_lea.vmem %s0, 1028
  %v2728 = vld [vmem:[%s2727] ss:$8 sm:$0xf]
  %s2729 = scalar_lea.vmem %s0, 1028
  %v2730 = vld [vmem:[%s2729] ss:$8 sm:$0xf0]
  %vm2731 = vcmask 1047556
  %v2732 = vsel %vm2731, %v2730, %v2728
  %2733 = vrot.lane.b32.xlu0 %v2732, 64
  %v2734 = vpop.permute.xlu0 %2733
  %vm2735 = vcmask 654848
  %s2736 = scalar_lea.vmem %s1, 128
  %2737 = vst.msk [vmem:[%s2736] sm:$0xff] %vm2735, %v2734
  %s2738 = scalar_lea.vmem %s0, 1284
  %v2739 = vld [vmem:[%s2738] ss:$8 sm:$0xf]
  %s2740 = scalar_lea.vmem %s0, 1284
  %v2741 = vld [vmem:[%s2740] ss:$8 sm:$0xf0]
  %vm2742 = vcmask 1047556
  %v2743 = vsel %vm2742, %v2741, %v2739
  %2744 = vrot.lane.b32.xlu0 %v2743, 64
  %v2745 = vpop.permute.xlu0 %2744
  %vm2746 = vcmask 654848
  %s2747 = scalar_lea.vmem %s1, 160
  %2748 = vst.msk [vmem:[%s2747] sm:$0xff] %vm2746, %v2745
  %s2749 = scalar_lea.vmem %s0, 1540
  %v2750 = vld [vmem:[%s2749] ss:$8 sm:$0xf]
  %s2751 = scalar_lea.vmem %s0, 1540
  %v2752 = vld [vmem:[%s2751] ss:$8 sm:$0xf0]
  %vm2753 = vcmask 1047556
  %v2754 = vsel %vm2753, %v2752, %v2750
  %2755 = vrot.lane.b32.xlu0 %v2754, 64
  %v2756 = vpop.permute.xlu0 %2755
  %vm2757 = vcmask 654848
  %s2758 = scalar_lea.vmem %s1, 192
  %2759 = vst.msk [vmem:[%s2758] sm:$0xff] %vm2757, %v2756
  %s2760 = scalar_lea.vmem %s0, 1796
  %v2761 = vld [vmem:[%s2760] ss:$8 sm:$0xf]
  %s2762 = scalar_lea.vmem %s0, 1796
  %v2763 = vld [vmem:[%s2762] ss:$8 sm:$0xf0]
  %vm2764 = vcmask 1047556
  %v2765 = vsel %vm2764, %v2763, %v2761
  %2766 = vrot.lane.b32.xlu0 %v2765, 64
  %v2767 = vpop.permute.xlu0 %2766
  %vm2768 = vcmask 654848
  %s2769 = scalar_lea.vmem %s1, 224
  %2770 = vst.msk [vmem:[%s2769] sm:$0xff] %vm2768, %v2767
  %s2771 = scalar_lea.vmem %s0, 2052
  %v2772 = vld [vmem:[%s2771] ss:$8 sm:$0xf]
  %s2773 = scalar_lea.vmem %s0, 2052
  %v2774 = vld [vmem:[%s2773] ss:$8 sm:$0xf0]
  %vm2775 = vcmask 1047556
  %v2776 = vsel %vm2775, %v2774, %v2772
  %2777 = vrot.lane.b32.xlu0 %v2776, 64
  %v2778 = vpop.permute.xlu0 %2777
  %vm2779 = vcmask 654848
  %s2780 = scalar_lea.vmem %s1, 256
  %2781 = vst.msk [vmem:[%s2780] sm:$0xff] %vm2779, %v2778
  %s2782 = scalar_lea.vmem %s0, 2308
  %v2783 = vld [vmem:[%s2782] ss:$8 sm:$0xf]
  %s2784 = scalar_lea.vmem %s0, 2308
  %v2785 = vld [vmem:[%s2784] ss:$8 sm:$0xf0]
  %vm2786 = vcmask 1047556
  %v2787 = vsel %vm2786, %v2785, %v2783
  %2788 = vrot.lane.b32.xlu0 %v2787, 64
  %v2789 = vpop.permute.xlu0 %2788
  %vm2790 = vcmask 654848
  %s2791 = scalar_lea.vmem %s1, 288
  %2792 = vst.msk [vmem:[%s2791] sm:$0xff] %vm2790, %v2789
  %s2793 = scalar_lea.vmem %s0, 2564
  %v2794 = vld [vmem:[%s2793] ss:$8 sm:$0xf]
  %s2795 = scalar_lea.vmem %s0, 2564
  %v2796 = vld [vmem:[%s2795] ss:$8 sm:$0xf0]
  %vm2797 = vcmask 1047556
  %v2798 = vsel %vm2797, %v2796, %v2794
  %2799 = vrot.lane.b32.xlu0 %v2798, 64
  %v2800 = vpop.permute.xlu0 %2799
  %vm2801 = vcmask 654848
  %s2802 = scalar_lea.vmem %s1, 320
  %2803 = vst.msk [vmem:[%s2802] sm:$0xff] %vm2801, %v2800
  %s2804 = scalar_lea.vmem %s0, 2820
  %v2805 = vld [vmem:[%s2804] ss:$8 sm:$0xf]
  %s2806 = scalar_lea.vmem %s0, 2820
  %v2807 = vld [vmem:[%s2806] ss:$8 sm:$0xf0]
  %vm2808 = vcmask 1047556
  %v2809 = vsel %vm2808, %v2807, %v2805
  %2810 = vrot.lane.b32.xlu0 %v2809, 64
  %v2811 = vpop.permute.xlu0 %2810
  %vm2812 = vcmask 654848
  %s2813 = scalar_lea.vmem %s1, 352
  %2814 = vst.msk [vmem:[%s2813] sm:$0xff] %vm2812, %v2811
  %s2815 = scalar_lea.vmem %s0, 3076
  %v2816 = vld [vmem:[%s2815] ss:$8 sm:$0xf]
  %s2817 = scalar_lea.vmem %s0, 3076
  %v2818 = vld [vmem:[%s2817] ss:$8 sm:$0xf0]
  %vm2819 = vcmask 1047556
  %v2820 = vsel %vm2819, %v2818, %v2816
  %2821 = vrot.lane.b32.xlu0 %v2820, 64
  %v2822 = vpop.permute.xlu0 %2821
  %vm2823 = vcmask 654848
  %s2824 = scalar_lea.vmem %s1, 384
  %2825 = vst.msk [vmem:[%s2824] sm:$0xff] %vm2823, %v2822
  %s2826 = scalar_lea.vmem %s0, 3332
  %v2827 = vld [vmem:[%s2826] ss:$8 sm:$0xf]
  %s2828 = scalar_lea.vmem %s0, 3332
  %v2829 = vld [vmem:[%s2828] ss:$8 sm:$0xf0]
  %vm2830 = vcmask 1047556
  %v2831 = vsel %vm2830, %v2829, %v2827
  %2832 = vrot.lane.b32.xlu0 %v2831, 64
  %v2833 = vpop.permute.xlu0 %2832
  %vm2834 = vcmask 654848
  %s2835 = scalar_lea.vmem %s1, 416
  %2836 = vst.msk [vmem:[%s2835] sm:$0xff] %vm2834, %v2833
  %s2837 = scalar_lea.vmem %s0, 3588
  %v2838 = vld [vmem:[%s2837] ss:$8 sm:$0xf]
  %s2839 = scalar_lea.vmem %s0, 3588
  %v2840 = vld [vmem:[%s2839] ss:$8 sm:$0xf0]
  %vm2841 = vcmask 1047556
  %v2842 = vsel %vm2841, %v2840, %v2838
  %2843 = vrot.lane.b32.xlu0 %v2842, 64
  %v2844 = vpop.permute.xlu0 %2843
  %vm2845 = vcmask 654848
  %s2846 = scalar_lea.vmem %s1, 448
  %2847 = vst.msk [vmem:[%s2846] sm:$0xff] %vm2845, %v2844
  %s2848 = scalar_lea.vmem %s0, 3844
  %v2849 = vld [vmem:[%s2848] ss:$8 sm:$0xf]
  %s2850 = scalar_lea.vmem %s0, 3844
  %v2851 = vld [vmem:[%s2850] ss:$8 sm:$0xf0]
  %vm2852 = vcmask 1047556
  %v2853 = vsel %vm2852, %v2851, %v2849
  %2854 = vrot.lane.b32.xlu0 %v2853, 64
  %v2855 = vpop.permute.xlu0 %2854
  %vm2856 = vcmask 654848
  %s2857 = scalar_lea.vmem %s1, 480
  %2858 = vst.msk [vmem:[%s2857] sm:$0xff] %vm2856, %v2855
  %s2859 = scalar_lea.vmem %s0, 68
  %v2860 = vld [vmem:[%s2859] ss:$8 sm:$0xf]
  %s2861 = scalar_lea.vmem %s0, 68
  %v2862 = vld [vmem:[%s2861] ss:$8 sm:$0xf0]
  %vm2863 = vcmask 1047556
  %v2864 = vsel %vm2863, %v2862, %v2860
  %2865 = vrot.lane.b32.xlu0 %v2864, 64
  %v2866 = vpop.permute.xlu0 %2865
  %vm2867 = vcmask 654848
  %s2868 = scalar_lea.vmem %s1, 8
  %2869 = vst.msk [vmem:[%s2868] sm:$0xff] %vm2867, %v2866
  %s2870 = scalar_lea.vmem %s0, 324
  %v2871 = vld [vmem:[%s2870] ss:$8 sm:$0xf]
  %s2872 = scalar_lea.vmem %s0, 324
  %v2873 = vld [vmem:[%s2872] ss:$8 sm:$0xf0]
  %vm2874 = vcmask 1047556
  %v2875 = vsel %vm2874, %v2873, %v2871
  %2876 = vrot.lane.b32.xlu0 %v2875, 64
  %v2877 = vpop.permute.xlu0 %2876
  %vm2878 = vcmask 654848
  %s2879 = scalar_lea.vmem %s1, 40
  %2880 = vst.msk [vmem:[%s2879] sm:$0xff] %vm2878, %v2877
  %s2881 = scalar_lea.vmem %s0, 580
  %v2882 = vld [vmem:[%s2881] ss:$8 sm:$0xf]
  %s2883 = scalar_lea.vmem %s0, 580
  %v2884 = vld [vmem:[%s2883] ss:$8 sm:$0xf0]
  %vm2885 = vcmask 1047556
  %v2886 = vsel %vm2885, %v2884, %v2882
  %2887 = vrot.lane.b32.xlu0 %v2886, 64
  %v2888 = vpop.permute.xlu0 %2887
  %vm2889 = vcmask 654848
  %s2890 = scalar_lea.vmem %s1, 72
  %2891 = vst.msk [vmem:[%s2890] sm:$0xff] %vm2889, %v2888
  %s2892 = scalar_lea.vmem %s0, 836
  %v2893 = vld [vmem:[%s2892] ss:$8 sm:$0xf]
  %s2894 = scalar_lea.vmem %s0, 836
  %v2895 = vld [vmem:[%s2894] ss:$8 sm:$0xf0]
  %vm2896 = vcmask 1047556
  %v2897 = vsel %vm2896, %v2895, %v2893
  %2898 = vrot.lane.b32.xlu0 %v2897, 64
  %v2899 = vpop.permute.xlu0 %2898
  %vm2900 = vcmask 654848
  %s2901 = scalar_lea.vmem %s1, 104
  %2902 = vst.msk [vmem:[%s2901] sm:$0xff] %vm2900, %v2899
  %s2903 = scalar_lea.vmem %s0, 1092
  %v2904 = vld [vmem:[%s2903] ss:$8 sm:$0xf]
  %s2905 = scalar_lea.vmem %s0, 1092
  %v2906 = vld [vmem:[%s2905] ss:$8 sm:$0xf0]
  %vm2907 = vcmask 1047556
  %v2908 = vsel %vm2907, %v2906, %v2904
  %2909 = vrot.lane.b32.xlu0 %v2908, 64
  %v2910 = vpop.permute.xlu0 %2909
  %vm2911 = vcmask 654848
  %s2912 = scalar_lea.vmem %s1, 136
  %2913 = vst.msk [vmem:[%s2912] sm:$0xff] %vm2911, %v2910
  %s2914 = scalar_lea.vmem %s0, 1348
  %v2915 = vld [vmem:[%s2914] ss:$8 sm:$0xf]
  %s2916 = scalar_lea.vmem %s0, 1348
  %v2917 = vld [vmem:[%s2916] ss:$8 sm:$0xf0]
  %vm2918 = vcmask 1047556
  %v2919 = vsel %vm2918, %v2917, %v2915
  %2920 = vrot.lane.b32.xlu0 %v2919, 64
  %v2921 = vpop.permute.xlu0 %2920
  %vm2922 = vcmask 654848
  %s2923 = scalar_lea.vmem %s1, 168
  %2924 = vst.msk [vmem:[%s2923] sm:$0xff] %vm2922, %v2921
  %s2925 = scalar_lea.vmem %s0, 1604
  %v2926 = vld [vmem:[%s2925] ss:$8 sm:$0xf]
  %s2927 = scalar_lea.vmem %s0, 1604
  %v2928 = vld [vmem:[%s2927] ss:$8 sm:$0xf0]
  %vm2929 = vcmask 1047556
  %v2930 = vsel %vm2929, %v2928, %v2926
  %2931 = vrot.lane.b32.xlu0 %v2930, 64
  %v2932 = vpop.permute.xlu0 %2931
  %vm2933 = vcmask 654848
  %s2934 = scalar_lea.vmem %s1, 200
  %2935 = vst.msk [vmem:[%s2934] sm:$0xff] %vm2933, %v2932
  %s2936 = scalar_lea.vmem %s0, 1860
  %v2937 = vld [vmem:[%s2936] ss:$8 sm:$0xf]
  %s2938 = scalar_lea.vmem %s0, 1860
  %v2939 = vld [vmem:[%s2938] ss:$8 sm:$0xf0]
  %vm2940 = vcmask 1047556
  %v2941 = vsel %vm2940, %v2939, %v2937
  %2942 = vrot.lane.b32.xlu0 %v2941, 64
  %v2943 = vpop.permute.xlu0 %2942
  %vm2944 = vcmask 654848
  %s2945 = scalar_lea.vmem %s1, 232
  %2946 = vst.msk [vmem:[%s2945] sm:$0xff] %vm2944, %v2943
  %s2947 = scalar_lea.vmem %s0, 2116
  %v2948 = vld [vmem:[%s2947] ss:$8 sm:$0xf]
  %s2949 = scalar_lea.vmem %s0, 2116
  %v2950 = vld [vmem:[%s2949] ss:$8 sm:$0xf0]
  %vm2951 = vcmask 1047556
  %v2952 = vsel %vm2951, %v2950, %v2948
  %2953 = vrot.lane.b32.xlu0 %v2952, 64
  %v2954 = vpop.permute.xlu0 %2953
  %vm2955 = vcmask 654848
  %s2956 = scalar_lea.vmem %s1, 264
  %2957 = vst.msk [vmem:[%s2956] sm:$0xff] %vm2955, %v2954
  %s2958 = scalar_lea.vmem %s0, 2372
  %v2959 = vld [vmem:[%s2958] ss:$8 sm:$0xf]
  %s2960 = scalar_lea.vmem %s0, 2372
  %v2961 = vld [vmem:[%s2960] ss:$8 sm:$0xf0]
  %vm2962 = vcmask 1047556
  %v2963 = vsel %vm2962, %v2961, %v2959
  %2964 = vrot.lane.b32.xlu0 %v2963, 64
  %v2965 = vpop.permute.xlu0 %2964
  %vm2966 = vcmask 654848
  %s2967 = scalar_lea.vmem %s1, 296
  %2968 = vst.msk [vmem:[%s2967] sm:$0xff] %vm2966, %v2965
  %s2969 = scalar_lea.vmem %s0, 2628
  %v2970 = vld [vmem:[%s2969] ss:$8 sm:$0xf]
  %s2971 = scalar_lea.vmem %s0, 2628
  %v2972 = vld [vmem:[%s2971] ss:$8 sm:$0xf0]
  %vm2973 = vcmask 1047556
  %v2974 = vsel %vm2973, %v2972, %v2970
  %2975 = vrot.lane.b32.xlu0 %v2974, 64
  %v2976 = vpop.permute.xlu0 %2975
  %vm2977 = vcmask 654848
  %s2978 = scalar_lea.vmem %s1, 328
  %2979 = vst.msk [vmem:[%s2978] sm:$0xff] %vm2977, %v2976
  %s2980 = scalar_lea.vmem %s0, 2884
  %v2981 = vld [vmem:[%s2980] ss:$8 sm:$0xf]
  %s2982 = scalar_lea.vmem %s0, 2884
  %v2983 = vld [vmem:[%s2982] ss:$8 sm:$0xf0]
  %vm2984 = vcmask 1047556
  %v2985 = vsel %vm2984, %v2983, %v2981
  %2986 = vrot.lane.b32.xlu0 %v2985, 64
  %v2987 = vpop.permute.xlu0 %2986
  %vm2988 = vcmask 654848
  %s2989 = scalar_lea.vmem %s1, 360
  %2990 = vst.msk [vmem:[%s2989] sm:$0xff] %vm2988, %v2987
  %s2991 = scalar_lea.vmem %s0, 3140
  %v2992 = vld [vmem:[%s2991] ss:$8 sm:$0xf]
  %s2993 = scalar_lea.vmem %s0, 3140
  %v2994 = vld [vmem:[%s2993] ss:$8 sm:$0xf0]
  %vm2995 = vcmask 1047556
  %v2996 = vsel %vm2995, %v2994, %v2992
  %2997 = vrot.lane.b32.xlu0 %v2996, 64
  %v2998 = vpop.permute.xlu0 %2997
  %vm2999 = vcmask 654848
  %s3000 = scalar_lea.vmem %s1, 392
  %3001 = vst.msk [vmem:[%s3000] sm:$0xff] %vm2999, %v2998
  %s3002 = scalar_lea.vmem %s0, 3396
  %v3003 = vld [vmem:[%s3002] ss:$8 sm:$0xf]
  %s3004 = scalar_lea.vmem %s0, 3396
  %v3005 = vld [vmem:[%s3004] ss:$8 sm:$0xf0]
  %vm3006 = vcmask 1047556
  %v3007 = vsel %vm3006, %v3005, %v3003
  %3008 = vrot.lane.b32.xlu0 %v3007, 64
  %v3009 = vpop.permute.xlu0 %3008
  %vm3010 = vcmask 654848
  %s3011 = scalar_lea.vmem %s1, 424
  %3012 = vst.msk [vmem:[%s3011] sm:$0xff] %vm3010, %v3009
  %s3013 = scalar_lea.vmem %s0, 3652
  %v3014 = vld [vmem:[%s3013] ss:$8 sm:$0xf]
  %s3015 = scalar_lea.vmem %s0, 3652
  %v3016 = vld [vmem:[%s3015] ss:$8 sm:$0xf0]
  %vm3017 = vcmask 1047556
  %v3018 = vsel %vm3017, %v3016, %v3014
  %3019 = vrot.lane.b32.xlu0 %v3018, 64
  %v3020 = vpop.permute.xlu0 %3019
  %vm3021 = vcmask 654848
  %s3022 = scalar_lea.vmem %s1, 456
  %3023 = vst.msk [vmem:[%s3022] sm:$0xff] %vm3021, %v3020
  %s3024 = scalar_lea.vmem %s0, 3908
  %v3025 = vld [vmem:[%s3024] ss:$8 sm:$0xf]
  %s3026 = scalar_lea.vmem %s0, 3908
  %v3027 = vld [vmem:[%s3026] ss:$8 sm:$0xf0]
  %vm3028 = vcmask 1047556
  %v3029 = vsel %vm3028, %v3027, %v3025
  %3030 = vrot.lane.b32.xlu0 %v3029, 64
  %v3031 = vpop.permute.xlu0 %3030
  %vm3032 = vcmask 654848
  %s3033 = scalar_lea.vmem %s1, 488
  %3034 = vst.msk [vmem:[%s3033] sm:$0xff] %vm3032, %v3031
  %s3035 = scalar_lea.vmem %s0, 132
  %v3036 = vld [vmem:[%s3035] ss:$8 sm:$0xf]
  %s3037 = scalar_lea.vmem %s0, 132
  %v3038 = vld [vmem:[%s3037] ss:$8 sm:$0xf0]
  %vm3039 = vcmask 1047556
  %v3040 = vsel %vm3039, %v3038, %v3036
  %3041 = vrot.lane.b32.xlu0 %v3040, 64
  %v3042 = vpop.permute.xlu0 %3041
  %vm3043 = vcmask 654848
  %s3044 = scalar_lea.vmem %s1, 16
  %3045 = vst.msk [vmem:[%s3044] sm:$0xff] %vm3043, %v3042
  %s3046 = scalar_lea.vmem %s0, 388
  %v3047 = vld [vmem:[%s3046] ss:$8 sm:$0xf]
  %s3048 = scalar_lea.vmem %s0, 388
  %v3049 = vld [vmem:[%s3048] ss:$8 sm:$0xf0]
  %vm3050 = vcmask 1047556
  %v3051 = vsel %vm3050, %v3049, %v3047
  %3052 = vrot.lane.b32.xlu0 %v3051, 64
  %v3053 = vpop.permute.xlu0 %3052
  %vm3054 = vcmask 654848
  %s3055 = scalar_lea.vmem %s1, 48
  %3056 = vst.msk [vmem:[%s3055] sm:$0xff] %vm3054, %v3053
  %s3057 = scalar_lea.vmem %s0, 644
  %v3058 = vld [vmem:[%s3057] ss:$8 sm:$0xf]
  %s3059 = scalar_lea.vmem %s0, 644
  %v3060 = vld [vmem:[%s3059] ss:$8 sm:$0xf0]
  %vm3061 = vcmask 1047556
  %v3062 = vsel %vm3061, %v3060, %v3058
  %3063 = vrot.lane.b32.xlu0 %v3062, 64
  %v3064 = vpop.permute.xlu0 %3063
  %vm3065 = vcmask 654848
  %s3066 = scalar_lea.vmem %s1, 80
  %3067 = vst.msk [vmem:[%s3066] sm:$0xff] %vm3065, %v3064
  %s3068 = scalar_lea.vmem %s0, 900
  %v3069 = vld [vmem:[%s3068] ss:$8 sm:$0xf]
  %s3070 = scalar_lea.vmem %s0, 900
  %v3071 = vld [vmem:[%s3070] ss:$8 sm:$0xf0]
  %vm3072 = vcmask 1047556
  %v3073 = vsel %vm3072, %v3071, %v3069
  %3074 = vrot.lane.b32.xlu0 %v3073, 64
  %v3075 = vpop.permute.xlu0 %3074
  %vm3076 = vcmask 654848
  %s3077 = scalar_lea.vmem %s1, 112
  %3078 = vst.msk [vmem:[%s3077] sm:$0xff] %vm3076, %v3075
  %s3079 = scalar_lea.vmem %s0, 1156
  %v3080 = vld [vmem:[%s3079] ss:$8 sm:$0xf]
  %s3081 = scalar_lea.vmem %s0, 1156
  %v3082 = vld [vmem:[%s3081] ss:$8 sm:$0xf0]
  %vm3083 = vcmask 1047556
  %v3084 = vsel %vm3083, %v3082, %v3080
  %3085 = vrot.lane.b32.xlu0 %v3084, 64
  %v3086 = vpop.permute.xlu0 %3085
  %vm3087 = vcmask 654848
  %s3088 = scalar_lea.vmem %s1, 144
  %3089 = vst.msk [vmem:[%s3088] sm:$0xff] %vm3087, %v3086
  %s3090 = scalar_lea.vmem %s0, 1412
  %v3091 = vld [vmem:[%s3090] ss:$8 sm:$0xf]
  %s3092 = scalar_lea.vmem %s0, 1412
  %v3093 = vld [vmem:[%s3092] ss:$8 sm:$0xf0]
  %vm3094 = vcmask 1047556
  %v3095 = vsel %vm3094, %v3093, %v3091
  %3096 = vrot.lane.b32.xlu0 %v3095, 64
  %v3097 = vpop.permute.xlu0 %3096
  %vm3098 = vcmask 654848
  %s3099 = scalar_lea.vmem %s1, 176
  %3100 = vst.msk [vmem:[%s3099] sm:$0xff] %vm3098, %v3097
  %s3101 = scalar_lea.vmem %s0, 1668
  %v3102 = vld [vmem:[%s3101] ss:$8 sm:$0xf]
  %s3103 = scalar_lea.vmem %s0, 1668
  %v3104 = vld [vmem:[%s3103] ss:$8 sm:$0xf0]
  %vm3105 = vcmask 1047556
  %v3106 = vsel %vm3105, %v3104, %v3102
  %3107 = vrot.lane.b32.xlu0 %v3106, 64
  %v3108 = vpop.permute.xlu0 %3107
  %vm3109 = vcmask 654848
  %s3110 = scalar_lea.vmem %s1, 208
  %3111 = vst.msk [vmem:[%s3110] sm:$0xff] %vm3109, %v3108
  %s3112 = scalar_lea.vmem %s0, 1924
  %v3113 = vld [vmem:[%s3112] ss:$8 sm:$0xf]
  %s3114 = scalar_lea.vmem %s0, 1924
  %v3115 = vld [vmem:[%s3114] ss:$8 sm:$0xf0]
  %vm3116 = vcmask 1047556
  %v3117 = vsel %vm3116, %v3115, %v3113
  %3118 = vrot.lane.b32.xlu0 %v3117, 64
  %v3119 = vpop.permute.xlu0 %3118
  %vm3120 = vcmask 654848
  %s3121 = scalar_lea.vmem %s1, 240
  %3122 = vst.msk [vmem:[%s3121] sm:$0xff] %vm3120, %v3119
  %s3123 = scalar_lea.vmem %s0, 2180
  %v3124 = vld [vmem:[%s3123] ss:$8 sm:$0xf]
  %s3125 = scalar_lea.vmem %s0, 2180
  %v3126 = vld [vmem:[%s3125] ss:$8 sm:$0xf0]
  %vm3127 = vcmask 1047556
  %v3128 = vsel %vm3127, %v3126, %v3124
  %3129 = vrot.lane.b32.xlu0 %v3128, 64
  %v3130 = vpop.permute.xlu0 %3129
  %vm3131 = vcmask 654848
  %s3132 = scalar_lea.vmem %s1, 272
  %3133 = vst.msk [vmem:[%s3132] sm:$0xff] %vm3131, %v3130
  %s3134 = scalar_lea.vmem %s0, 2436
  %v3135 = vld [vmem:[%s3134] ss:$8 sm:$0xf]
  %s3136 = scalar_lea.vmem %s0, 2436
  %v3137 = vld [vmem:[%s3136] ss:$8 sm:$0xf0]
  %vm3138 = vcmask 1047556
  %v3139 = vsel %vm3138, %v3137, %v3135
  %3140 = vrot.lane.b32.xlu0 %v3139, 64
  %v3141 = vpop.permute.xlu0 %3140
  %vm3142 = vcmask 654848
  %s3143 = scalar_lea.vmem %s1, 304
  %3144 = vst.msk [vmem:[%s3143] sm:$0xff] %vm3142, %v3141
  %s3145 = scalar_lea.vmem %s0, 2692
  %v3146 = vld [vmem:[%s3145] ss:$8 sm:$0xf]
  %s3147 = scalar_lea.vmem %s0, 2692
  %v3148 = vld [vmem:[%s3147] ss:$8 sm:$0xf0]
  %vm3149 = vcmask 1047556
  %v3150 = vsel %vm3149, %v3148, %v3146
  %3151 = vrot.lane.b32.xlu0 %v3150, 64
  %v3152 = vpop.permute.xlu0 %3151
  %vm3153 = vcmask 654848
  %s3154 = scalar_lea.vmem %s1, 336
  %3155 = vst.msk [vmem:[%s3154] sm:$0xff] %vm3153, %v3152
  %s3156 = scalar_lea.vmem %s0, 2948
  %v3157 = vld [vmem:[%s3156] ss:$8 sm:$0xf]
  %s3158 = scalar_lea.vmem %s0, 2948
  %v3159 = vld [vmem:[%s3158] ss:$8 sm:$0xf0]
  %vm3160 = vcmask 1047556
  %v3161 = vsel %vm3160, %v3159, %v3157
  %3162 = vrot.lane.b32.xlu0 %v3161, 64
  %v3163 = vpop.permute.xlu0 %3162
  %vm3164 = vcmask 654848
  %s3165 = scalar_lea.vmem %s1, 368
  %3166 = vst.msk [vmem:[%s3165] sm:$0xff] %vm3164, %v3163
  %s3167 = scalar_lea.vmem %s0, 3204
  %v3168 = vld [vmem:[%s3167] ss:$8 sm:$0xf]
  %s3169 = scalar_lea.vmem %s0, 3204
  %v3170 = vld [vmem:[%s3169] ss:$8 sm:$0xf0]
  %vm3171 = vcmask 1047556
  %v3172 = vsel %vm3171, %v3170, %v3168
  %3173 = vrot.lane.b32.xlu0 %v3172, 64
  %v3174 = vpop.permute.xlu0 %3173
  %vm3175 = vcmask 654848
  %s3176 = scalar_lea.vmem %s1, 400
  %3177 = vst.msk [vmem:[%s3176] sm:$0xff] %vm3175, %v3174
  %s3178 = scalar_lea.vmem %s0, 3460
  %v3179 = vld [vmem:[%s3178] ss:$8 sm:$0xf]
  %s3180 = scalar_lea.vmem %s0, 3460
  %v3181 = vld [vmem:[%s3180] ss:$8 sm:$0xf0]
  %vm3182 = vcmask 1047556
  %v3183 = vsel %vm3182, %v3181, %v3179
  %3184 = vrot.lane.b32.xlu0 %v3183, 64
  %v3185 = vpop.permute.xlu0 %3184
  %vm3186 = vcmask 654848
  %s3187 = scalar_lea.vmem %s1, 432
  %3188 = vst.msk [vmem:[%s3187] sm:$0xff] %vm3186, %v3185
  %s3189 = scalar_lea.vmem %s0, 3716
  %v3190 = vld [vmem:[%s3189] ss:$8 sm:$0xf]
  %s3191 = scalar_lea.vmem %s0, 3716
  %v3192 = vld [vmem:[%s3191] ss:$8 sm:$0xf0]
  %vm3193 = vcmask 1047556
  %v3194 = vsel %vm3193, %v3192, %v3190
  %3195 = vrot.lane.b32.xlu0 %v3194, 64
  %v3196 = vpop.permute.xlu0 %3195
  %vm3197 = vcmask 654848
  %s3198 = scalar_lea.vmem %s1, 464
  %3199 = vst.msk [vmem:[%s3198] sm:$0xff] %vm3197, %v3196
  %s3200 = scalar_lea.vmem %s0, 3972
  %v3201 = vld [vmem:[%s3200] ss:$8 sm:$0xf]
  %s3202 = scalar_lea.vmem %s0, 3972
  %v3203 = vld [vmem:[%s3202] ss:$8 sm:$0xf0]
  %vm3204 = vcmask 1047556
  %v3205 = vsel %vm3204, %v3203, %v3201
  %3206 = vrot.lane.b32.xlu0 %v3205, 64
  %v3207 = vpop.permute.xlu0 %3206
  %vm3208 = vcmask 654848
  %s3209 = scalar_lea.vmem %s1, 496
  %3210 = vst.msk [vmem:[%s3209] sm:$0xff] %vm3208, %v3207
  %s3211 = scalar_lea.vmem %s0, 196
  %v3212 = vld [vmem:[%s3211] ss:$8 sm:$0xf]
  %s3213 = scalar_lea.vmem %s0, 196
  %v3214 = vld [vmem:[%s3213] ss:$8 sm:$0xf0]
  %vm3215 = vcmask 1047556
  %v3216 = vsel %vm3215, %v3214, %v3212
  %3217 = vrot.lane.b32.xlu0 %v3216, 64
  %v3218 = vpop.permute.xlu0 %3217
  %vm3219 = vcmask 654848
  %s3220 = scalar_lea.vmem %s1, 24
  %3221 = vst.msk [vmem:[%s3220] sm:$0xff] %vm3219, %v3218
  %s3222 = scalar_lea.vmem %s0, 452
  %v3223 = vld [vmem:[%s3222] ss:$8 sm:$0xf]
  %s3224 = scalar_lea.vmem %s0, 452
  %v3225 = vld [vmem:[%s3224] ss:$8 sm:$0xf0]
  %vm3226 = vcmask 1047556
  %v3227 = vsel %vm3226, %v3225, %v3223
  %3228 = vrot.lane.b32.xlu0 %v3227, 64
  %v3229 = vpop.permute.xlu0 %3228
  %vm3230 = vcmask 654848
  %s3231 = scalar_lea.vmem %s1, 56
  %3232 = vst.msk [vmem:[%s3231] sm:$0xff] %vm3230, %v3229
  %s3233 = scalar_lea.vmem %s0, 708
  %v3234 = vld [vmem:[%s3233] ss:$8 sm:$0xf]
  %s3235 = scalar_lea.vmem %s0, 708
  %v3236 = vld [vmem:[%s3235] ss:$8 sm:$0xf0]
  %vm3237 = vcmask 1047556
  %v3238 = vsel %vm3237, %v3236, %v3234
  %3239 = vrot.lane.b32.xlu0 %v3238, 64
  %v3240 = vpop.permute.xlu0 %3239
  %vm3241 = vcmask 654848
  %s3242 = scalar_lea.vmem %s1, 88
  %3243 = vst.msk [vmem:[%s3242] sm:$0xff] %vm3241, %v3240
  %s3244 = scalar_lea.vmem %s0, 964
  %v3245 = vld [vmem:[%s3244] ss:$8 sm:$0xf]
  %s3246 = scalar_lea.vmem %s0, 964
  %v3247 = vld [vmem:[%s3246] ss:$8 sm:$0xf0]
  %vm3248 = vcmask 1047556
  %v3249 = vsel %vm3248, %v3247, %v3245
  %3250 = vrot.lane.b32.xlu0 %v3249, 64
  %v3251 = vpop.permute.xlu0 %3250
  %vm3252 = vcmask 654848
  %s3253 = scalar_lea.vmem %s1, 120
  %3254 = vst.msk [vmem:[%s3253] sm:$0xff] %vm3252, %v3251
  %s3255 = scalar_lea.vmem %s0, 1220
  %v3256 = vld [vmem:[%s3255] ss:$8 sm:$0xf]
  %s3257 = scalar_lea.vmem %s0, 1220
  %v3258 = vld [vmem:[%s3257] ss:$8 sm:$0xf0]
  %vm3259 = vcmask 1047556
  %v3260 = vsel %vm3259, %v3258, %v3256
  %3261 = vrot.lane.b32.xlu0 %v3260, 64
  %v3262 = vpop.permute.xlu0 %3261
  %vm3263 = vcmask 654848
  %s3264 = scalar_lea.vmem %s1, 152
  %3265 = vst.msk [vmem:[%s3264] sm:$0xff] %vm3263, %v3262
  %s3266 = scalar_lea.vmem %s0, 1476
  %v3267 = vld [vmem:[%s3266] ss:$8 sm:$0xf]
  %s3268 = scalar_lea.vmem %s0, 1476
  %v3269 = vld [vmem:[%s3268] ss:$8 sm:$0xf0]
  %vm3270 = vcmask 1047556
  %v3271 = vsel %vm3270, %v3269, %v3267
  %3272 = vrot.lane.b32.xlu0 %v3271, 64
  %v3273 = vpop.permute.xlu0 %3272
  %vm3274 = vcmask 654848
  %s3275 = scalar_lea.vmem %s1, 184
  %3276 = vst.msk [vmem:[%s3275] sm:$0xff] %vm3274, %v3273
  %s3277 = scalar_lea.vmem %s0, 1732
  %v3278 = vld [vmem:[%s3277] ss:$8 sm:$0xf]
  %s3279 = scalar_lea.vmem %s0, 1732
  %v3280 = vld [vmem:[%s3279] ss:$8 sm:$0xf0]
  %vm3281 = vcmask 1047556
  %v3282 = vsel %vm3281, %v3280, %v3278
  %3283 = vrot.lane.b32.xlu0 %v3282, 64
  %v3284 = vpop.permute.xlu0 %3283
  %vm3285 = vcmask 654848
  %s3286 = scalar_lea.vmem %s1, 216
  %3287 = vst.msk [vmem:[%s3286] sm:$0xff] %vm3285, %v3284
  %s3288 = scalar_lea.vmem %s0, 1988
  %v3289 = vld [vmem:[%s3288] ss:$8 sm:$0xf]
  %s3290 = scalar_lea.vmem %s0, 1988
  %v3291 = vld [vmem:[%s3290] ss:$8 sm:$0xf0]
  %vm3292 = vcmask 1047556
  %v3293 = vsel %vm3292, %v3291, %v3289
  %3294 = vrot.lane.b32.xlu0 %v3293, 64
  %v3295 = vpop.permute.xlu0 %3294
  %vm3296 = vcmask 654848
  %s3297 = scalar_lea.vmem %s1, 248
  %3298 = vst.msk [vmem:[%s3297] sm:$0xff] %vm3296, %v3295
  %s3299 = scalar_lea.vmem %s0, 2244
  %v3300 = vld [vmem:[%s3299] ss:$8 sm:$0xf]
  %s3301 = scalar_lea.vmem %s0, 2244
  %v3302 = vld [vmem:[%s3301] ss:$8 sm:$0xf0]
  %vm3303 = vcmask 1047556
  %v3304 = vsel %vm3303, %v3302, %v3300
  %3305 = vrot.lane.b32.xlu0 %v3304, 64
  %v3306 = vpop.permute.xlu0 %3305
  %vm3307 = vcmask 654848
  %s3308 = scalar_lea.vmem %s1, 280
  %3309 = vst.msk [vmem:[%s3308] sm:$0xff] %vm3307, %v3306
  %s3310 = scalar_lea.vmem %s0, 2500
  %v3311 = vld [vmem:[%s3310] ss:$8 sm:$0xf]
  %s3312 = scalar_lea.vmem %s0, 2500
  %v3313 = vld [vmem:[%s3312] ss:$8 sm:$0xf0]
  %vm3314 = vcmask 1047556
  %v3315 = vsel %vm3314, %v3313, %v3311
  %3316 = vrot.lane.b32.xlu0 %v3315, 64
  %v3317 = vpop.permute.xlu0 %3316
  %vm3318 = vcmask 654848
  %s3319 = scalar_lea.vmem %s1, 312
  %3320 = vst.msk [vmem:[%s3319] sm:$0xff] %vm3318, %v3317
  %s3321 = scalar_lea.vmem %s0, 2756
  %v3322 = vld [vmem:[%s3321] ss:$8 sm:$0xf]
  %s3323 = scalar_lea.vmem %s0, 2756
  %v3324 = vld [vmem:[%s3323] ss:$8 sm:$0xf0]
  %vm3325 = vcmask 1047556
  %v3326 = vsel %vm3325, %v3324, %v3322
  %3327 = vrot.lane.b32.xlu0 %v3326, 64
  %v3328 = vpop.permute.xlu0 %3327
  %vm3329 = vcmask 654848
  %s3330 = scalar_lea.vmem %s1, 344
  %3331 = vst.msk [vmem:[%s3330] sm:$0xff] %vm3329, %v3328
  %s3332 = scalar_lea.vmem %s0, 3012
  %v3333 = vld [vmem:[%s3332] ss:$8 sm:$0xf]
  %s3334 = scalar_lea.vmem %s0, 3012
  %v3335 = vld [vmem:[%s3334] ss:$8 sm:$0xf0]
  %vm3336 = vcmask 1047556
  %v3337 = vsel %vm3336, %v3335, %v3333
  %3338 = vrot.lane.b32.xlu0 %v3337, 64
  %v3339 = vpop.permute.xlu0 %3338
  %vm3340 = vcmask 654848
  %s3341 = scalar_lea.vmem %s1, 376
  %3342 = vst.msk [vmem:[%s3341] sm:$0xff] %vm3340, %v3339
  %s3343 = scalar_lea.vmem %s0, 3268
  %v3344 = vld [vmem:[%s3343] ss:$8 sm:$0xf]
  %s3345 = scalar_lea.vmem %s0, 3268
  %v3346 = vld [vmem:[%s3345] ss:$8 sm:$0xf0]
  %vm3347 = vcmask 1047556
  %v3348 = vsel %vm3347, %v3346, %v3344
  %3349 = vrot.lane.b32.xlu0 %v3348, 64
  %v3350 = vpop.permute.xlu0 %3349
  %vm3351 = vcmask 654848
  %s3352 = scalar_lea.vmem %s1, 408
  %3353 = vst.msk [vmem:[%s3352] sm:$0xff] %vm3351, %v3350
  %s3354 = scalar_lea.vmem %s0, 3524
  %v3355 = vld [vmem:[%s3354] ss:$8 sm:$0xf]
  %s3356 = scalar_lea.vmem %s0, 3524
  %v3357 = vld [vmem:[%s3356] ss:$8 sm:$0xf0]
  %vm3358 = vcmask 1047556
  %v3359 = vsel %vm3358, %v3357, %v3355
  %3360 = vrot.lane.b32.xlu0 %v3359, 64
  %v3361 = vpop.permute.xlu0 %3360
  %vm3362 = vcmask 654848
  %s3363 = scalar_lea.vmem %s1, 440
  %3364 = vst.msk [vmem:[%s3363] sm:$0xff] %vm3362, %v3361
  %s3365 = scalar_lea.vmem %s0, 3780
  %v3366 = vld [vmem:[%s3365] ss:$8 sm:$0xf]
  %s3367 = scalar_lea.vmem %s0, 3780
  %v3368 = vld [vmem:[%s3367] ss:$8 sm:$0xf0]
  %vm3369 = vcmask 1047556
  %v3370 = vsel %vm3369, %v3368, %v3366
  %3371 = vrot.lane.b32.xlu0 %v3370, 64
  %v3372 = vpop.permute.xlu0 %3371
  %vm3373 = vcmask 654848
  %s3374 = scalar_lea.vmem %s1, 472
  %3375 = vst.msk [vmem:[%s3374] sm:$0xff] %vm3373, %v3372
  %s3376 = scalar_lea.vmem %s0, 4036
  %v3377 = vld [vmem:[%s3376] ss:$8 sm:$0xf]
  %s3378 = scalar_lea.vmem %s0, 4036
  %v3379 = vld [vmem:[%s3378] ss:$8 sm:$0xf0]
  %vm3380 = vcmask 1047556
  %v3381 = vsel %vm3380, %v3379, %v3377
  %3382 = vrot.lane.b32.xlu0 %v3381, 64
  %v3383 = vpop.permute.xlu0 %3382
  %vm3384 = vcmask 654848
  %s3385 = scalar_lea.vmem %s1, 504
  %3386 = vst.msk [vmem:[%s3385] sm:$0xff] %vm3384, %v3383
  %s3387 = scalar_lea.vmem %s0, 3
  %v3388 = vld [vmem:[%s3387] ss:$8 sm:$0xf]
  %s3389 = scalar_lea.vmem %s0, 3
  %v3390 = vld [vmem:[%s3389] ss:$8 sm:$0xf0]
  %vm3391 = vcmask 1047556
  %v3392 = vsel %vm3391, %v3390, %v3388
  %3393 = vrot.lane.b32.xlu0 %v3392, 48
  %v3394 = vpop.permute.xlu0 %3393
  %vm3395 = vcmask 523648
  %3396 = vst.msk [vmem:[%s1] sm:$0xff] %vm3395, %v3394
  %s3397 = scalar_lea.vmem %s0, 259
  %v3398 = vld [vmem:[%s3397] ss:$8 sm:$0xf]
  %s3399 = scalar_lea.vmem %s0, 259
  %v3400 = vld [vmem:[%s3399] ss:$8 sm:$0xf0]
  %vm3401 = vcmask 1047556
  %v3402 = vsel %vm3401, %v3400, %v3398
  %3403 = vrot.lane.b32.xlu0 %v3402, 48
  %v3404 = vpop.permute.xlu0 %3403
  %vm3405 = vcmask 523648
  %s3406 = scalar_lea.vmem %s1, 32
  %3407 = vst.msk [vmem:[%s3406] sm:$0xff] %vm3405, %v3404
  %s3408 = scalar_lea.vmem %s0, 515
  %v3409 = vld [vmem:[%s3408] ss:$8 sm:$0xf]
  %s3410 = scalar_lea.vmem %s0, 515
  %v3411 = vld [vmem:[%s3410] ss:$8 sm:$0xf0]
  %vm3412 = vcmask 1047556
  %v3413 = vsel %vm3412, %v3411, %v3409
  %3414 = vrot.lane.b32.xlu0 %v3413, 48
  %v3415 = vpop.permute.xlu0 %3414
  %vm3416 = vcmask 523648
  %s3417 = scalar_lea.vmem %s1, 64
  %3418 = vst.msk [vmem:[%s3417] sm:$0xff] %vm3416, %v3415
  %s3419 = scalar_lea.vmem %s0, 771
  %v3420 = vld [vmem:[%s3419] ss:$8 sm:$0xf]
  %s3421 = scalar_lea.vmem %s0, 771
  %v3422 = vld [vmem:[%s3421] ss:$8 sm:$0xf0]
  %vm3423 = vcmask 1047556
  %v3424 = vsel %vm3423, %v3422, %v3420
  %3425 = vrot.lane.b32.xlu0 %v3424, 48
  %v3426 = vpop.permute.xlu0 %3425
  %vm3427 = vcmask 523648
  %s3428 = scalar_lea.vmem %s1, 96
  %3429 = vst.msk [vmem:[%s3428] sm:$0xff] %vm3427, %v3426
  %s3430 = scalar_lea.vmem %s0, 1027
  %v3431 = vld [vmem:[%s3430] ss:$8 sm:$0xf]
  %s3432 = scalar_lea.vmem %s0, 1027
  %v3433 = vld [vmem:[%s3432] ss:$8 sm:$0xf0]
  %vm3434 = vcmask 1047556
  %v3435 = vsel %vm3434, %v3433, %v3431
  %3436 = vrot.lane.b32.xlu0 %v3435, 48
  %v3437 = vpop.permute.xlu0 %3436
  %vm3438 = vcmask 523648
  %s3439 = scalar_lea.vmem %s1, 128
  %3440 = vst.msk [vmem:[%s3439] sm:$0xff] %vm3438, %v3437
  %s3441 = scalar_lea.vmem %s0, 1283
  %v3442 = vld [vmem:[%s3441] ss:$8 sm:$0xf]
  %s3443 = scalar_lea.vmem %s0, 1283
  %v3444 = vld [vmem:[%s3443] ss:$8 sm:$0xf0]
  %vm3445 = vcmask 1047556
  %v3446 = vsel %vm3445, %v3444, %v3442
  %3447 = vrot.lane.b32.xlu0 %v3446, 48
  %v3448 = vpop.permute.xlu0 %3447
  %vm3449 = vcmask 523648
  %s3450 = scalar_lea.vmem %s1, 160
  %3451 = vst.msk [vmem:[%s3450] sm:$0xff] %vm3449, %v3448
  %s3452 = scalar_lea.vmem %s0, 1539
  %v3453 = vld [vmem:[%s3452] ss:$8 sm:$0xf]
  %s3454 = scalar_lea.vmem %s0, 1539
  %v3455 = vld [vmem:[%s3454] ss:$8 sm:$0xf0]
  %vm3456 = vcmask 1047556
  %v3457 = vsel %vm3456, %v3455, %v3453
  %3458 = vrot.lane.b32.xlu0 %v3457, 48
  %v3459 = vpop.permute.xlu0 %3458
  %vm3460 = vcmask 523648
  %s3461 = scalar_lea.vmem %s1, 192
  %3462 = vst.msk [vmem:[%s3461] sm:$0xff] %vm3460, %v3459
  %s3463 = scalar_lea.vmem %s0, 1795
  %v3464 = vld [vmem:[%s3463] ss:$8 sm:$0xf]
  %s3465 = scalar_lea.vmem %s0, 1795
  %v3466 = vld [vmem:[%s3465] ss:$8 sm:$0xf0]
  %vm3467 = vcmask 1047556
  %v3468 = vsel %vm3467, %v3466, %v3464
  %3469 = vrot.lane.b32.xlu0 %v3468, 48
  %v3470 = vpop.permute.xlu0 %3469
  %vm3471 = vcmask 523648
  %s3472 = scalar_lea.vmem %s1, 224
  %3473 = vst.msk [vmem:[%s3472] sm:$0xff] %vm3471, %v3470
  %s3474 = scalar_lea.vmem %s0, 2051
  %v3475 = vld [vmem:[%s3474] ss:$8 sm:$0xf]
  %s3476 = scalar_lea.vmem %s0, 2051
  %v3477 = vld [vmem:[%s3476] ss:$8 sm:$0xf0]
  %vm3478 = vcmask 1047556
  %v3479 = vsel %vm3478, %v3477, %v3475
  %3480 = vrot.lane.b32.xlu0 %v3479, 48
  %v3481 = vpop.permute.xlu0 %3480
  %vm3482 = vcmask 523648
  %s3483 = scalar_lea.vmem %s1, 256
  %3484 = vst.msk [vmem:[%s3483] sm:$0xff] %vm3482, %v3481
  %s3485 = scalar_lea.vmem %s0, 2307
  %v3486 = vld [vmem:[%s3485] ss:$8 sm:$0xf]
  %s3487 = scalar_lea.vmem %s0, 2307
  %v3488 = vld [vmem:[%s3487] ss:$8 sm:$0xf0]
  %vm3489 = vcmask 1047556
  %v3490 = vsel %vm3489, %v3488, %v3486
  %3491 = vrot.lane.b32.xlu0 %v3490, 48
  %v3492 = vpop.permute.xlu0 %3491
  %vm3493 = vcmask 523648
  %s3494 = scalar_lea.vmem %s1, 288
  %3495 = vst.msk [vmem:[%s3494] sm:$0xff] %vm3493, %v3492
  %s3496 = scalar_lea.vmem %s0, 2563
  %v3497 = vld [vmem:[%s3496] ss:$8 sm:$0xf]
  %s3498 = scalar_lea.vmem %s0, 2563
  %v3499 = vld [vmem:[%s3498] ss:$8 sm:$0xf0]
  %vm3500 = vcmask 1047556
  %v3501 = vsel %vm3500, %v3499, %v3497
  %3502 = vrot.lane.b32.xlu0 %v3501, 48
  %v3503 = vpop.permute.xlu0 %3502
  %vm3504 = vcmask 523648
  %s3505 = scalar_lea.vmem %s1, 320
  %3506 = vst.msk [vmem:[%s3505] sm:$0xff] %vm3504, %v3503
  %s3507 = scalar_lea.vmem %s0, 2819
  %v3508 = vld [vmem:[%s3507] ss:$8 sm:$0xf]
  %s3509 = scalar_lea.vmem %s0, 2819
  %v3510 = vld [vmem:[%s3509] ss:$8 sm:$0xf0]
  %vm3511 = vcmask 1047556
  %v3512 = vsel %vm3511, %v3510, %v3508
  %3513 = vrot.lane.b32.xlu0 %v3512, 48
  %v3514 = vpop.permute.xlu0 %3513
  %vm3515 = vcmask 523648
  %s3516 = scalar_lea.vmem %s1, 352
  %3517 = vst.msk [vmem:[%s3516] sm:$0xff] %vm3515, %v3514
  %s3518 = scalar_lea.vmem %s0, 3075
  %v3519 = vld [vmem:[%s3518] ss:$8 sm:$0xf]
  %s3520 = scalar_lea.vmem %s0, 3075
  %v3521 = vld [vmem:[%s3520] ss:$8 sm:$0xf0]
  %vm3522 = vcmask 1047556
  %v3523 = vsel %vm3522, %v3521, %v3519
  %3524 = vrot.lane.b32.xlu0 %v3523, 48
  %v3525 = vpop.permute.xlu0 %3524
  %vm3526 = vcmask 523648
  %s3527 = scalar_lea.vmem %s1, 384
  %3528 = vst.msk [vmem:[%s3527] sm:$0xff] %vm3526, %v3525
  %s3529 = scalar_lea.vmem %s0, 3331
  %v3530 = vld [vmem:[%s3529] ss:$8 sm:$0xf]
  %s3531 = scalar_lea.vmem %s0, 3331
  %v3532 = vld [vmem:[%s3531] ss:$8 sm:$0xf0]
  %vm3533 = vcmask 1047556
  %v3534 = vsel %vm3533, %v3532, %v3530
  %3535 = vrot.lane.b32.xlu0 %v3534, 48
  %v3536 = vpop.permute.xlu0 %3535
  %vm3537 = vcmask 523648
  %s3538 = scalar_lea.vmem %s1, 416
  %3539 = vst.msk [vmem:[%s3538] sm:$0xff] %vm3537, %v3536
  %s3540 = scalar_lea.vmem %s0, 3587
  %v3541 = vld [vmem:[%s3540] ss:$8 sm:$0xf]
  %s3542 = scalar_lea.vmem %s0, 3587
  %v3543 = vld [vmem:[%s3542] ss:$8 sm:$0xf0]
  %vm3544 = vcmask 1047556
  %v3545 = vsel %vm3544, %v3543, %v3541
  %3546 = vrot.lane.b32.xlu0 %v3545, 48
  %v3547 = vpop.permute.xlu0 %3546
  %vm3548 = vcmask 523648
  %s3549 = scalar_lea.vmem %s1, 448
  %3550 = vst.msk [vmem:[%s3549] sm:$0xff] %vm3548, %v3547
  %s3551 = scalar_lea.vmem %s0, 3843
  %v3552 = vld [vmem:[%s3551] ss:$8 sm:$0xf]
  %s3553 = scalar_lea.vmem %s0, 3843
  %v3554 = vld [vmem:[%s3553] ss:$8 sm:$0xf0]
  %vm3555 = vcmask 1047556
  %v3556 = vsel %vm3555, %v3554, %v3552
  %3557 = vrot.lane.b32.xlu0 %v3556, 48
  %v3558 = vpop.permute.xlu0 %3557
  %vm3559 = vcmask 523648
  %s3560 = scalar_lea.vmem %s1, 480
  %3561 = vst.msk [vmem:[%s3560] sm:$0xff] %vm3559, %v3558
  %s3562 = scalar_lea.vmem %s0, 67
  %v3563 = vld [vmem:[%s3562] ss:$8 sm:$0xf]
  %s3564 = scalar_lea.vmem %s0, 67
  %v3565 = vld [vmem:[%s3564] ss:$8 sm:$0xf0]
  %vm3566 = vcmask 1047556
  %v3567 = vsel %vm3566, %v3565, %v3563
  %3568 = vrot.lane.b32.xlu0 %v3567, 48
  %v3569 = vpop.permute.xlu0 %3568
  %vm3570 = vcmask 523648
  %s3571 = scalar_lea.vmem %s1, 8
  %3572 = vst.msk [vmem:[%s3571] sm:$0xff] %vm3570, %v3569
  %s3573 = scalar_lea.vmem %s0, 323
  %v3574 = vld [vmem:[%s3573] ss:$8 sm:$0xf]
  %s3575 = scalar_lea.vmem %s0, 323
  %v3576 = vld [vmem:[%s3575] ss:$8 sm:$0xf0]
  %vm3577 = vcmask 1047556
  %v3578 = vsel %vm3577, %v3576, %v3574
  %3579 = vrot.lane.b32.xlu0 %v3578, 48
  %v3580 = vpop.permute.xlu0 %3579
  %vm3581 = vcmask 523648
  %s3582 = scalar_lea.vmem %s1, 40
  %3583 = vst.msk [vmem:[%s3582] sm:$0xff] %vm3581, %v3580
  %s3584 = scalar_lea.vmem %s0, 579
  %v3585 = vld [vmem:[%s3584] ss:$8 sm:$0xf]
  %s3586 = scalar_lea.vmem %s0, 579
  %v3587 = vld [vmem:[%s3586] ss:$8 sm:$0xf0]
  %vm3588 = vcmask 1047556
  %v3589 = vsel %vm3588, %v3587, %v3585
  %3590 = vrot.lane.b32.xlu0 %v3589, 48
  %v3591 = vpop.permute.xlu0 %3590
  %vm3592 = vcmask 523648
  %s3593 = scalar_lea.vmem %s1, 72
  %3594 = vst.msk [vmem:[%s3593] sm:$0xff] %vm3592, %v3591
  %s3595 = scalar_lea.vmem %s0, 835
  %v3596 = vld [vmem:[%s3595] ss:$8 sm:$0xf]
  %s3597 = scalar_lea.vmem %s0, 835
  %v3598 = vld [vmem:[%s3597] ss:$8 sm:$0xf0]
  %vm3599 = vcmask 1047556
  %v3600 = vsel %vm3599, %v3598, %v3596
  %3601 = vrot.lane.b32.xlu0 %v3600, 48
  %v3602 = vpop.permute.xlu0 %3601
  %vm3603 = vcmask 523648
  %s3604 = scalar_lea.vmem %s1, 104
  %3605 = vst.msk [vmem:[%s3604] sm:$0xff] %vm3603, %v3602
  %s3606 = scalar_lea.vmem %s0, 1091
  %v3607 = vld [vmem:[%s3606] ss:$8 sm:$0xf]
  %s3608 = scalar_lea.vmem %s0, 1091
  %v3609 = vld [vmem:[%s3608] ss:$8 sm:$0xf0]
  %vm3610 = vcmask 1047556
  %v3611 = vsel %vm3610, %v3609, %v3607
  %3612 = vrot.lane.b32.xlu0 %v3611, 48
  %v3613 = vpop.permute.xlu0 %3612
  %vm3614 = vcmask 523648
  %s3615 = scalar_lea.vmem %s1, 136
  %3616 = vst.msk [vmem:[%s3615] sm:$0xff] %vm3614, %v3613
  %s3617 = scalar_lea.vmem %s0, 1347
  %v3618 = vld [vmem:[%s3617] ss:$8 sm:$0xf]
  %s3619 = scalar_lea.vmem %s0, 1347
  %v3620 = vld [vmem:[%s3619] ss:$8 sm:$0xf0]
  %vm3621 = vcmask 1047556
  %v3622 = vsel %vm3621, %v3620, %v3618
  %3623 = vrot.lane.b32.xlu0 %v3622, 48
  %v3624 = vpop.permute.xlu0 %3623
  %vm3625 = vcmask 523648
  %s3626 = scalar_lea.vmem %s1, 168
  %3627 = vst.msk [vmem:[%s3626] sm:$0xff] %vm3625, %v3624
  %s3628 = scalar_lea.vmem %s0, 1603
  %v3629 = vld [vmem:[%s3628] ss:$8 sm:$0xf]
  %s3630 = scalar_lea.vmem %s0, 1603
  %v3631 = vld [vmem:[%s3630] ss:$8 sm:$0xf0]
  %vm3632 = vcmask 1047556
  %v3633 = vsel %vm3632, %v3631, %v3629
  %3634 = vrot.lane.b32.xlu0 %v3633, 48
  %v3635 = vpop.permute.xlu0 %3634
  %vm3636 = vcmask 523648
  %s3637 = scalar_lea.vmem %s1, 200
  %3638 = vst.msk [vmem:[%s3637] sm:$0xff] %vm3636, %v3635
  %s3639 = scalar_lea.vmem %s0, 1859
  %v3640 = vld [vmem:[%s3639] ss:$8 sm:$0xf]
  %s3641 = scalar_lea.vmem %s0, 1859
  %v3642 = vld [vmem:[%s3641] ss:$8 sm:$0xf0]
  %vm3643 = vcmask 1047556
  %v3644 = vsel %vm3643, %v3642, %v3640
  %3645 = vrot.lane.b32.xlu0 %v3644, 48
  %v3646 = vpop.permute.xlu0 %3645
  %vm3647 = vcmask 523648
  %s3648 = scalar_lea.vmem %s1, 232
  %3649 = vst.msk [vmem:[%s3648] sm:$0xff] %vm3647, %v3646
  %s3650 = scalar_lea.vmem %s0, 2115
  %v3651 = vld [vmem:[%s3650] ss:$8 sm:$0xf]
  %s3652 = scalar_lea.vmem %s0, 2115
  %v3653 = vld [vmem:[%s3652] ss:$8 sm:$0xf0]
  %vm3654 = vcmask 1047556
  %v3655 = vsel %vm3654, %v3653, %v3651
  %3656 = vrot.lane.b32.xlu0 %v3655, 48
  %v3657 = vpop.permute.xlu0 %3656
  %vm3658 = vcmask 523648
  %s3659 = scalar_lea.vmem %s1, 264
  %3660 = vst.msk [vmem:[%s3659] sm:$0xff] %vm3658, %v3657
  %s3661 = scalar_lea.vmem %s0, 2371
  %v3662 = vld [vmem:[%s3661] ss:$8 sm:$0xf]
  %s3663 = scalar_lea.vmem %s0, 2371
  %v3664 = vld [vmem:[%s3663] ss:$8 sm:$0xf0]
  %vm3665 = vcmask 1047556
  %v3666 = vsel %vm3665, %v3664, %v3662
  %3667 = vrot.lane.b32.xlu0 %v3666, 48
  %v3668 = vpop.permute.xlu0 %3667
  %vm3669 = vcmask 523648
  %s3670 = scalar_lea.vmem %s1, 296
  %3671 = vst.msk [vmem:[%s3670] sm:$0xff] %vm3669, %v3668
  %s3672 = scalar_lea.vmem %s0, 2627
  %v3673 = vld [vmem:[%s3672] ss:$8 sm:$0xf]
  %s3674 = scalar_lea.vmem %s0, 2627
  %v3675 = vld [vmem:[%s3674] ss:$8 sm:$0xf0]
  %vm3676 = vcmask 1047556
  %v3677 = vsel %vm3676, %v3675, %v3673
  %3678 = vrot.lane.b32.xlu0 %v3677, 48
  %v3679 = vpop.permute.xlu0 %3678
  %vm3680 = vcmask 523648
  %s3681 = scalar_lea.vmem %s1, 328
  %3682 = vst.msk [vmem:[%s3681] sm:$0xff] %vm3680, %v3679
  %s3683 = scalar_lea.vmem %s0, 2883
  %v3684 = vld [vmem:[%s3683] ss:$8 sm:$0xf]
  %s3685 = scalar_lea.vmem %s0, 2883
  %v3686 = vld [vmem:[%s3685] ss:$8 sm:$0xf0]
  %vm3687 = vcmask 1047556
  %v3688 = vsel %vm3687, %v3686, %v3684
  %3689 = vrot.lane.b32.xlu0 %v3688, 48
  %v3690 = vpop.permute.xlu0 %3689
  %vm3691 = vcmask 523648
  %s3692 = scalar_lea.vmem %s1, 360
  %3693 = vst.msk [vmem:[%s3692] sm:$0xff] %vm3691, %v3690
  %s3694 = scalar_lea.vmem %s0, 3139
  %v3695 = vld [vmem:[%s3694] ss:$8 sm:$0xf]
  %s3696 = scalar_lea.vmem %s0, 3139
  %v3697 = vld [vmem:[%s3696] ss:$8 sm:$0xf0]
  %vm3698 = vcmask 1047556
  %v3699 = vsel %vm3698, %v3697, %v3695
  %3700 = vrot.lane.b32.xlu0 %v3699, 48
  %v3701 = vpop.permute.xlu0 %3700
  %vm3702 = vcmask 523648
  %s3703 = scalar_lea.vmem %s1, 392
  %3704 = vst.msk [vmem:[%s3703] sm:$0xff] %vm3702, %v3701
  %s3705 = scalar_lea.vmem %s0, 3395
  %v3706 = vld [vmem:[%s3705] ss:$8 sm:$0xf]
  %s3707 = scalar_lea.vmem %s0, 3395
  %v3708 = vld [vmem:[%s3707] ss:$8 sm:$0xf0]
  %vm3709 = vcmask 1047556
  %v3710 = vsel %vm3709, %v3708, %v3706
  %3711 = vrot.lane.b32.xlu0 %v3710, 48
  %v3712 = vpop.permute.xlu0 %3711
  %vm3713 = vcmask 523648
  %s3714 = scalar_lea.vmem %s1, 424
  %3715 = vst.msk [vmem:[%s3714] sm:$0xff] %vm3713, %v3712
  %s3716 = scalar_lea.vmem %s0, 3651
  %v3717 = vld [vmem:[%s3716] ss:$8 sm:$0xf]
  %s3718 = scalar_lea.vmem %s0, 3651
  %v3719 = vld [vmem:[%s3718] ss:$8 sm:$0xf0]
  %vm3720 = vcmask 1047556
  %v3721 = vsel %vm3720, %v3719, %v3717
  %3722 = vrot.lane.b32.xlu0 %v3721, 48
  %v3723 = vpop.permute.xlu0 %3722
  %vm3724 = vcmask 523648
  %s3725 = scalar_lea.vmem %s1, 456
  %3726 = vst.msk [vmem:[%s3725] sm:$0xff] %vm3724, %v3723
  %s3727 = scalar_lea.vmem %s0, 3907
  %v3728 = vld [vmem:[%s3727] ss:$8 sm:$0xf]
  %s3729 = scalar_lea.vmem %s0, 3907
  %v3730 = vld [vmem:[%s3729] ss:$8 sm:$0xf0]
  %vm3731 = vcmask 1047556
  %v3732 = vsel %vm3731, %v3730, %v3728
  %3733 = vrot.lane.b32.xlu0 %v3732, 48
  %v3734 = vpop.permute.xlu0 %3733
  %vm3735 = vcmask 523648
  %s3736 = scalar_lea.vmem %s1, 488
  %3737 = vst.msk [vmem:[%s3736] sm:$0xff] %vm3735, %v3734
  %s3738 = scalar_lea.vmem %s0, 131
  %v3739 = vld [vmem:[%s3738] ss:$8 sm:$0xf]
  %s3740 = scalar_lea.vmem %s0, 131
  %v3741 = vld [vmem:[%s3740] ss:$8 sm:$0xf0]
  %vm3742 = vcmask 1047556
  %v3743 = vsel %vm3742, %v3741, %v3739
  %3744 = vrot.lane.b32.xlu0 %v3743, 48
  %v3745 = vpop.permute.xlu0 %3744
  %vm3746 = vcmask 523648
  %s3747 = scalar_lea.vmem %s1, 16
  %3748 = vst.msk [vmem:[%s3747] sm:$0xff] %vm3746, %v3745
  %s3749 = scalar_lea.vmem %s0, 387
  %v3750 = vld [vmem:[%s3749] ss:$8 sm:$0xf]
  %s3751 = scalar_lea.vmem %s0, 387
  %v3752 = vld [vmem:[%s3751] ss:$8 sm:$0xf0]
  %vm3753 = vcmask 1047556
  %v3754 = vsel %vm3753, %v3752, %v3750
  %3755 = vrot.lane.b32.xlu0 %v3754, 48
  %v3756 = vpop.permute.xlu0 %3755
  %vm3757 = vcmask 523648
  %s3758 = scalar_lea.vmem %s1, 48
  %3759 = vst.msk [vmem:[%s3758] sm:$0xff] %vm3757, %v3756
  %s3760 = scalar_lea.vmem %s0, 643
  %v3761 = vld [vmem:[%s3760] ss:$8 sm:$0xf]
  %s3762 = scalar_lea.vmem %s0, 643
  %v3763 = vld [vmem:[%s3762] ss:$8 sm:$0xf0]
  %vm3764 = vcmask 1047556
  %v3765 = vsel %vm3764, %v3763, %v3761
  %3766 = vrot.lane.b32.xlu0 %v3765, 48
  %v3767 = vpop.permute.xlu0 %3766
  %vm3768 = vcmask 523648
  %s3769 = scalar_lea.vmem %s1, 80
  %3770 = vst.msk [vmem:[%s3769] sm:$0xff] %vm3768, %v3767
  %s3771 = scalar_lea.vmem %s0, 899
  %v3772 = vld [vmem:[%s3771] ss:$8 sm:$0xf]
  %s3773 = scalar_lea.vmem %s0, 899
  %v3774 = vld [vmem:[%s3773] ss:$8 sm:$0xf0]
  %vm3775 = vcmask 1047556
  %v3776 = vsel %vm3775, %v3774, %v3772
  %3777 = vrot.lane.b32.xlu0 %v3776, 48
  %v3778 = vpop.permute.xlu0 %3777
  %vm3779 = vcmask 523648
  %s3780 = scalar_lea.vmem %s1, 112
  %3781 = vst.msk [vmem:[%s3780] sm:$0xff] %vm3779, %v3778
  %s3782 = scalar_lea.vmem %s0, 1155
  %v3783 = vld [vmem:[%s3782] ss:$8 sm:$0xf]
  %s3784 = scalar_lea.vmem %s0, 1155
  %v3785 = vld [vmem:[%s3784] ss:$8 sm:$0xf0]
  %vm3786 = vcmask 1047556
  %v3787 = vsel %vm3786, %v3785, %v3783
  %3788 = vrot.lane.b32.xlu0 %v3787, 48
  %v3789 = vpop.permute.xlu0 %3788
  %vm3790 = vcmask 523648
  %s3791 = scalar_lea.vmem %s1, 144
  %3792 = vst.msk [vmem:[%s3791] sm:$0xff] %vm3790, %v3789
  %s3793 = scalar_lea.vmem %s0, 1411
  %v3794 = vld [vmem:[%s3793] ss:$8 sm:$0xf]
  %s3795 = scalar_lea.vmem %s0, 1411
  %v3796 = vld [vmem:[%s3795] ss:$8 sm:$0xf0]
  %vm3797 = vcmask 1047556
  %v3798 = vsel %vm3797, %v3796, %v3794
  %3799 = vrot.lane.b32.xlu0 %v3798, 48
  %v3800 = vpop.permute.xlu0 %3799
  %vm3801 = vcmask 523648
  %s3802 = scalar_lea.vmem %s1, 176
  %3803 = vst.msk [vmem:[%s3802] sm:$0xff] %vm3801, %v3800
  %s3804 = scalar_lea.vmem %s0, 1667
  %v3805 = vld [vmem:[%s3804] ss:$8 sm:$0xf]
  %s3806 = scalar_lea.vmem %s0, 1667
  %v3807 = vld [vmem:[%s3806] ss:$8 sm:$0xf0]
  %vm3808 = vcmask 1047556
  %v3809 = vsel %vm3808, %v3807, %v3805
  %3810 = vrot.lane.b32.xlu0 %v3809, 48
  %v3811 = vpop.permute.xlu0 %3810
  %vm3812 = vcmask 523648
  %s3813 = scalar_lea.vmem %s1, 208
  %3814 = vst.msk [vmem:[%s3813] sm:$0xff] %vm3812, %v3811
  %s3815 = scalar_lea.vmem %s0, 1923
  %v3816 = vld [vmem:[%s3815] ss:$8 sm:$0xf]
  %s3817 = scalar_lea.vmem %s0, 1923
  %v3818 = vld [vmem:[%s3817] ss:$8 sm:$0xf0]
  %vm3819 = vcmask 1047556
  %v3820 = vsel %vm3819, %v3818, %v3816
  %3821 = vrot.lane.b32.xlu0 %v3820, 48
  %v3822 = vpop.permute.xlu0 %3821
  %vm3823 = vcmask 523648
  %s3824 = scalar_lea.vmem %s1, 240
  %3825 = vst.msk [vmem:[%s3824] sm:$0xff] %vm3823, %v3822
  %s3826 = scalar_lea.vmem %s0, 2179
  %v3827 = vld [vmem:[%s3826] ss:$8 sm:$0xf]
  %s3828 = scalar_lea.vmem %s0, 2179
  %v3829 = vld [vmem:[%s3828] ss:$8 sm:$0xf0]
  %vm3830 = vcmask 1047556
  %v3831 = vsel %vm3830, %v3829, %v3827
  %3832 = vrot.lane.b32.xlu0 %v3831, 48
  %v3833 = vpop.permute.xlu0 %3832
  %vm3834 = vcmask 523648
  %s3835 = scalar_lea.vmem %s1, 272
  %3836 = vst.msk [vmem:[%s3835] sm:$0xff] %vm3834, %v3833
  %s3837 = scalar_lea.vmem %s0, 2435
  %v3838 = vld [vmem:[%s3837] ss:$8 sm:$0xf]
  %s3839 = scalar_lea.vmem %s0, 2435
  %v3840 = vld [vmem:[%s3839] ss:$8 sm:$0xf0]
  %vm3841 = vcmask 1047556
  %v3842 = vsel %vm3841, %v3840, %v3838
  %3843 = vrot.lane.b32.xlu0 %v3842, 48
  %v3844 = vpop.permute.xlu0 %3843
  %vm3845 = vcmask 523648
  %s3846 = scalar_lea.vmem %s1, 304
  %3847 = vst.msk [vmem:[%s3846] sm:$0xff] %vm3845, %v3844
  %s3848 = scalar_lea.vmem %s0, 2691
  %v3849 = vld [vmem:[%s3848] ss:$8 sm:$0xf]
  %s3850 = scalar_lea.vmem %s0, 2691
  %v3851 = vld [vmem:[%s3850] ss:$8 sm:$0xf0]
  %vm3852 = vcmask 1047556
  %v3853 = vsel %vm3852, %v3851, %v3849
  %3854 = vrot.lane.b32.xlu0 %v3853, 48
  %v3855 = vpop.permute.xlu0 %3854
  %vm3856 = vcmask 523648
  %s3857 = scalar_lea.vmem %s1, 336
  %3858 = vst.msk [vmem:[%s3857] sm:$0xff] %vm3856, %v3855
  %s3859 = scalar_lea.vmem %s0, 2947
  %v3860 = vld [vmem:[%s3859] ss:$8 sm:$0xf]
  %s3861 = scalar_lea.vmem %s0, 2947
  %v3862 = vld [vmem:[%s3861] ss:$8 sm:$0xf0]
  %vm3863 = vcmask 1047556
  %v3864 = vsel %vm3863, %v3862, %v3860
  %3865 = vrot.lane.b32.xlu0 %v3864, 48
  %v3866 = vpop.permute.xlu0 %3865
  %vm3867 = vcmask 523648
  %s3868 = scalar_lea.vmem %s1, 368
  %3869 = vst.msk [vmem:[%s3868] sm:$0xff] %vm3867, %v3866
  %s3870 = scalar_lea.vmem %s0, 3203
  %v3871 = vld [vmem:[%s3870] ss:$8 sm:$0xf]
  %s3872 = scalar_lea.vmem %s0, 3203
  %v3873 = vld [vmem:[%s3872] ss:$8 sm:$0xf0]
  %vm3874 = vcmask 1047556
  %v3875 = vsel %vm3874, %v3873, %v3871
  %3876 = vrot.lane.b32.xlu0 %v3875, 48
  %v3877 = vpop.permute.xlu0 %3876
  %vm3878 = vcmask 523648
  %s3879 = scalar_lea.vmem %s1, 400
  %3880 = vst.msk [vmem:[%s3879] sm:$0xff] %vm3878, %v3877
  %s3881 = scalar_lea.vmem %s0, 3459
  %v3882 = vld [vmem:[%s3881] ss:$8 sm:$0xf]
  %s3883 = scalar_lea.vmem %s0, 3459
  %v3884 = vld [vmem:[%s3883] ss:$8 sm:$0xf0]
  %vm3885 = vcmask 1047556
  %v3886 = vsel %vm3885, %v3884, %v3882
  %3887 = vrot.lane.b32.xlu0 %v3886, 48
  %v3888 = vpop.permute.xlu0 %3887
  %vm3889 = vcmask 523648
  %s3890 = scalar_lea.vmem %s1, 432
  %3891 = vst.msk [vmem:[%s3890] sm:$0xff] %vm3889, %v3888
  %s3892 = scalar_lea.vmem %s0, 3715
  %v3893 = vld [vmem:[%s3892] ss:$8 sm:$0xf]
  %s3894 = scalar_lea.vmem %s0, 3715
  %v3895 = vld [vmem:[%s3894] ss:$8 sm:$0xf0]
  %vm3896 = vcmask 1047556
  %v3897 = vsel %vm3896, %v3895, %v3893
  %3898 = vrot.lane.b32.xlu0 %v3897, 48
  %v3899 = vpop.permute.xlu0 %3898
  %vm3900 = vcmask 523648
  %s3901 = scalar_lea.vmem %s1, 464
  %3902 = vst.msk [vmem:[%s3901] sm:$0xff] %vm3900, %v3899
  %s3903 = scalar_lea.vmem %s0, 3971
  %v3904 = vld [vmem:[%s3903] ss:$8 sm:$0xf]
  %s3905 = scalar_lea.vmem %s0, 3971
  %v3906 = vld [vmem:[%s3905] ss:$8 sm:$0xf0]
  %vm3907 = vcmask 1047556
  %v3908 = vsel %vm3907, %v3906, %v3904
  %3909 = vrot.lane.b32.xlu0 %v3908, 48
  %v3910 = vpop.permute.xlu0 %3909
  %vm3911 = vcmask 523648
  %s3912 = scalar_lea.vmem %s1, 496
  %3913 = vst.msk [vmem:[%s3912] sm:$0xff] %vm3911, %v3910
  %s3914 = scalar_lea.vmem %s0, 195
  %v3915 = vld [vmem:[%s3914] ss:$8 sm:$0xf]
  %s3916 = scalar_lea.vmem %s0, 195
  %v3917 = vld [vmem:[%s3916] ss:$8 sm:$0xf0]
  %vm3918 = vcmask 1047556
  %v3919 = vsel %vm3918, %v3917, %v3915
  %3920 = vrot.lane.b32.xlu0 %v3919, 48
  %v3921 = vpop.permute.xlu0 %3920
  %vm3922 = vcmask 523648
  %s3923 = scalar_lea.vmem %s1, 24
  %3924 = vst.msk [vmem:[%s3923] sm:$0xff] %vm3922, %v3921
  %s3925 = scalar_lea.vmem %s0, 451
  %v3926 = vld [vmem:[%s3925] ss:$8 sm:$0xf]
  %s3927 = scalar_lea.vmem %s0, 451
  %v3928 = vld [vmem:[%s3927] ss:$8 sm:$0xf0]
  %vm3929 = vcmask 1047556
  %v3930 = vsel %vm3929, %v3928, %v3926
  %3931 = vrot.lane.b32.xlu0 %v3930, 48
  %v3932 = vpop.permute.xlu0 %3931
  %vm3933 = vcmask 523648
  %s3934 = scalar_lea.vmem %s1, 56
  %3935 = vst.msk [vmem:[%s3934] sm:$0xff] %vm3933, %v3932
  %s3936 = scalar_lea.vmem %s0, 707
  %v3937 = vld [vmem:[%s3936] ss:$8 sm:$0xf]
  %s3938 = scalar_lea.vmem %s0, 707
  %v3939 = vld [vmem:[%s3938] ss:$8 sm:$0xf0]
  %vm3940 = vcmask 1047556
  %v3941 = vsel %vm3940, %v3939, %v3937
  %3942 = vrot.lane.b32.xlu0 %v3941, 48
  %v3943 = vpop.permute.xlu0 %3942
  %vm3944 = vcmask 523648
  %s3945 = scalar_lea.vmem %s1, 88
  %3946 = vst.msk [vmem:[%s3945] sm:$0xff] %vm3944, %v3943
  %s3947 = scalar_lea.vmem %s0, 963
  %v3948 = vld [vmem:[%s3947] ss:$8 sm:$0xf]
  %s3949 = scalar_lea.vmem %s0, 963
  %v3950 = vld [vmem:[%s3949] ss:$8 sm:$0xf0]
  %vm3951 = vcmask 1047556
  %v3952 = vsel %vm3951, %v3950, %v3948
  %3953 = vrot.lane.b32.xlu0 %v3952, 48
  %v3954 = vpop.permute.xlu0 %3953
  %vm3955 = vcmask 523648
  %s3956 = scalar_lea.vmem %s1, 120
  %3957 = vst.msk [vmem:[%s3956] sm:$0xff] %vm3955, %v3954
  %s3958 = scalar_lea.vmem %s0, 1219
  %v3959 = vld [vmem:[%s3958] ss:$8 sm:$0xf]
  %s3960 = scalar_lea.vmem %s0, 1219
  %v3961 = vld [vmem:[%s3960] ss:$8 sm:$0xf0]
  %vm3962 = vcmask 1047556
  %v3963 = vsel %vm3962, %v3961, %v3959
  %3964 = vrot.lane.b32.xlu0 %v3963, 48
  %v3965 = vpop.permute.xlu0 %3964
  %vm3966 = vcmask 523648
  %s3967 = scalar_lea.vmem %s1, 152
  %3968 = vst.msk [vmem:[%s3967] sm:$0xff] %vm3966, %v3965
  %s3969 = scalar_lea.vmem %s0, 1475
  %v3970 = vld [vmem:[%s3969] ss:$8 sm:$0xf]
  %s3971 = scalar_lea.vmem %s0, 1475
  %v3972 = vld [vmem:[%s3971] ss:$8 sm:$0xf0]
  %vm3973 = vcmask 1047556
  %v3974 = vsel %vm3973, %v3972, %v3970
  %3975 = vrot.lane.b32.xlu0 %v3974, 48
  %v3976 = vpop.permute.xlu0 %3975
  %vm3977 = vcmask 523648
  %s3978 = scalar_lea.vmem %s1, 184
  %3979 = vst.msk [vmem:[%s3978] sm:$0xff] %vm3977, %v3976
  %s3980 = scalar_lea.vmem %s0, 1731
  %v3981 = vld [vmem:[%s3980] ss:$8 sm:$0xf]
  %s3982 = scalar_lea.vmem %s0, 1731
  %v3983 = vld [vmem:[%s3982] ss:$8 sm:$0xf0]
  %vm3984 = vcmask 1047556
  %v3985 = vsel %vm3984, %v3983, %v3981
  %3986 = vrot.lane.b32.xlu0 %v3985, 48
  %v3987 = vpop.permute.xlu0 %3986
  %vm3988 = vcmask 523648
  %s3989 = scalar_lea.vmem %s1, 216
  %3990 = vst.msk [vmem:[%s3989] sm:$0xff] %vm3988, %v3987
  %s3991 = scalar_lea.vmem %s0, 1987
  %v3992 = vld [vmem:[%s3991] ss:$8 sm:$0xf]
  %s3993 = scalar_lea.vmem %s0, 1987
  %v3994 = vld [vmem:[%s3993] ss:$8 sm:$0xf0]
  %vm3995 = vcmask 1047556
  %v3996 = vsel %vm3995, %v3994, %v3992
  %3997 = vrot.lane.b32.xlu0 %v3996, 48
  %v3998 = vpop.permute.xlu0 %3997
  %vm3999 = vcmask 523648
  %s4000 = scalar_lea.vmem %s1, 248
  %4001 = vst.msk [vmem:[%s4000] sm:$0xff] %vm3999, %v3998
  %s4002 = scalar_lea.vmem %s0, 2243
  %v4003 = vld [vmem:[%s4002] ss:$8 sm:$0xf]
  %s4004 = scalar_lea.vmem %s0, 2243
  %v4005 = vld [vmem:[%s4004] ss:$8 sm:$0xf0]
  %vm4006 = vcmask 1047556
  %v4007 = vsel %vm4006, %v4005, %v4003
  %4008 = vrot.lane.b32.xlu0 %v4007, 48
  %v4009 = vpop.permute.xlu0 %4008
  %vm4010 = vcmask 523648
  %s4011 = scalar_lea.vmem %s1, 280
  %4012 = vst.msk [vmem:[%s4011] sm:$0xff] %vm4010, %v4009
  %s4013 = scalar_lea.vmem %s0, 2499
  %v4014 = vld [vmem:[%s4013] ss:$8 sm:$0xf]
  %s4015 = scalar_lea.vmem %s0, 2499
  %v4016 = vld [vmem:[%s4015] ss:$8 sm:$0xf0]
  %vm4017 = vcmask 1047556
  %v4018 = vsel %vm4017, %v4016, %v4014
  %4019 = vrot.lane.b32.xlu0 %v4018, 48
  %v4020 = vpop.permute.xlu0 %4019
  %vm4021 = vcmask 523648
  %s4022 = scalar_lea.vmem %s1, 312
  %4023 = vst.msk [vmem:[%s4022] sm:$0xff] %vm4021, %v4020
  %s4024 = scalar_lea.vmem %s0, 2755
  %v4025 = vld [vmem:[%s4024] ss:$8 sm:$0xf]
  %s4026 = scalar_lea.vmem %s0, 2755
  %v4027 = vld [vmem:[%s4026] ss:$8 sm:$0xf0]
  %vm4028 = vcmask 1047556
  %v4029 = vsel %vm4028, %v4027, %v4025
  %4030 = vrot.lane.b32.xlu0 %v4029, 48
  %v4031 = vpop.permute.xlu0 %4030
  %vm4032 = vcmask 523648
  %s4033 = scalar_lea.vmem %s1, 344
  %4034 = vst.msk [vmem:[%s4033] sm:$0xff] %vm4032, %v4031
  %s4035 = scalar_lea.vmem %s0, 3011
  %v4036 = vld [vmem:[%s4035] ss:$8 sm:$0xf]
  %s4037 = scalar_lea.vmem %s0, 3011
  %v4038 = vld [vmem:[%s4037] ss:$8 sm:$0xf0]
  %vm4039 = vcmask 1047556
  %v4040 = vsel %vm4039, %v4038, %v4036
  %4041 = vrot.lane.b32.xlu0 %v4040, 48
  %v4042 = vpop.permute.xlu0 %4041
  %vm4043 = vcmask 523648
  %s4044 = scalar_lea.vmem %s1, 376
  %4045 = vst.msk [vmem:[%s4044] sm:$0xff] %vm4043, %v4042
  %s4046 = scalar_lea.vmem %s0, 3267
  %v4047 = vld [vmem:[%s4046] ss:$8 sm:$0xf]
  %s4048 = scalar_lea.vmem %s0, 3267
  %v4049 = vld [vmem:[%s4048] ss:$8 sm:$0xf0]
  %vm4050 = vcmask 1047556
  %v4051 = vsel %vm4050, %v4049, %v4047
  %4052 = vrot.lane.b32.xlu0 %v4051, 48
  %v4053 = vpop.permute.xlu0 %4052
  %vm4054 = vcmask 523648
  %s4055 = scalar_lea.vmem %s1, 408
  %4056 = vst.msk [vmem:[%s4055] sm:$0xff] %vm4054, %v4053
  %s4057 = scalar_lea.vmem %s0, 3523
  %v4058 = vld [vmem:[%s4057] ss:$8 sm:$0xf]
  %s4059 = scalar_lea.vmem %s0, 3523
  %v4060 = vld [vmem:[%s4059] ss:$8 sm:$0xf0]
  %vm4061 = vcmask 1047556
  %v4062 = vsel %vm4061, %v4060, %v4058
  %4063 = vrot.lane.b32.xlu0 %v4062, 48
  %v4064 = vpop.permute.xlu0 %4063
  %vm4065 = vcmask 523648
  %s4066 = scalar_lea.vmem %s1, 440
  %4067 = vst.msk [vmem:[%s4066] sm:$0xff] %vm4065, %v4064
  %s4068 = scalar_lea.vmem %s0, 3779
  %v4069 = vld [vmem:[%s4068] ss:$8 sm:$0xf]
  %s4070 = scalar_lea.vmem %s0, 3779
  %v4071 = vld [vmem:[%s4070] ss:$8 sm:$0xf0]
  %vm4072 = vcmask 1047556
  %v4073 = vsel %vm4072, %v4071, %v4069
  %4074 = vrot.lane.b32.xlu0 %v4073, 48
  %v4075 = vpop.permute.xlu0 %4074
  %vm4076 = vcmask 523648
  %s4077 = scalar_lea.vmem %s1, 472
  %4078 = vst.msk [vmem:[%s4077] sm:$0xff] %vm4076, %v4075
  %s4079 = scalar_lea.vmem %s0, 4035
  %v4080 = vld [vmem:[%s4079] ss:$8 sm:$0xf]
  %s4081 = scalar_lea.vmem %s0, 4035
  %v4082 = vld [vmem:[%s4081] ss:$8 sm:$0xf0]
  %vm4083 = vcmask 1047556
  %v4084 = vsel %vm4083, %v4082, %v4080
  %4085 = vrot.lane.b32.xlu0 %v4084, 48
  %v4086 = vpop.permute.xlu0 %4085
  %vm4087 = vcmask 523648
  %s4088 = scalar_lea.vmem %s1, 504
  %4089 = vst.msk [vmem:[%s4088] sm:$0xff] %vm4087, %v4086
  %s4090 = scalar_lea.vmem %s0, 2
  %v4091 = vld [vmem:[%s4090] ss:$8 sm:$0xf]
  %s4092 = scalar_lea.vmem %s0, 2
  %v4093 = vld [vmem:[%s4092] ss:$8 sm:$0xf0]
  %vm4094 = vcmask 1047556
  %v4095 = vsel %vm4094, %v4093, %v4091
  %4096 = vrot.lane.b32.xlu0 %v4095, 32
  %v4097 = vpop.permute.xlu0 %4096
  %vm4098 = vcmask 392448
  %4099 = vst.msk [vmem:[%s1] sm:$0xff] %vm4098, %v4097
  %s4100 = scalar_lea.vmem %s0, 258
  %v4101 = vld [vmem:[%s4100] ss:$8 sm:$0xf]
  %s4102 = scalar_lea.vmem %s0, 258
  %v4103 = vld [vmem:[%s4102] ss:$8 sm:$0xf0]
  %vm4104 = vcmask 1047556
  %v4105 = vsel %vm4104, %v4103, %v4101
  %4106 = vrot.lane.b32.xlu0 %v4105, 32
  %v4107 = vpop.permute.xlu0 %4106
  %vm4108 = vcmask 392448
  %s4109 = scalar_lea.vmem %s1, 32
  %4110 = vst.msk [vmem:[%s4109] sm:$0xff] %vm4108, %v4107
  %s4111 = scalar_lea.vmem %s0, 514
  %v4112 = vld [vmem:[%s4111] ss:$8 sm:$0xf]
  %s4113 = scalar_lea.vmem %s0, 514
  %v4114 = vld [vmem:[%s4113] ss:$8 sm:$0xf0]
  %vm4115 = vcmask 1047556
  %v4116 = vsel %vm4115, %v4114, %v4112
  %4117 = vrot.lane.b32.xlu0 %v4116, 32
  %v4118 = vpop.permute.xlu0 %4117
  %vm4119 = vcmask 392448
  %s4120 = scalar_lea.vmem %s1, 64
  %4121 = vst.msk [vmem:[%s4120] sm:$0xff] %vm4119, %v4118
  %s4122 = scalar_lea.vmem %s0, 770
  %v4123 = vld [vmem:[%s4122] ss:$8 sm:$0xf]
  %s4124 = scalar_lea.vmem %s0, 770
  %v4125 = vld [vmem:[%s4124] ss:$8 sm:$0xf0]
  %vm4126 = vcmask 1047556
  %v4127 = vsel %vm4126, %v4125, %v4123
  %4128 = vrot.lane.b32.xlu0 %v4127, 32
  %v4129 = vpop.permute.xlu0 %4128
  %vm4130 = vcmask 392448
  %s4131 = scalar_lea.vmem %s1, 96
  %4132 = vst.msk [vmem:[%s4131] sm:$0xff] %vm4130, %v4129
  %s4133 = scalar_lea.vmem %s0, 1026
  %v4134 = vld [vmem:[%s4133] ss:$8 sm:$0xf]
  %s4135 = scalar_lea.vmem %s0, 1026
  %v4136 = vld [vmem:[%s4135] ss:$8 sm:$0xf0]
  %vm4137 = vcmask 1047556
  %v4138 = vsel %vm4137, %v4136, %v4134
  %4139 = vrot.lane.b32.xlu0 %v4138, 32
  %v4140 = vpop.permute.xlu0 %4139
  %vm4141 = vcmask 392448
  %s4142 = scalar_lea.vmem %s1, 128
  %4143 = vst.msk [vmem:[%s4142] sm:$0xff] %vm4141, %v4140
  %s4144 = scalar_lea.vmem %s0, 1282
  %v4145 = vld [vmem:[%s4144] ss:$8 sm:$0xf]
  %s4146 = scalar_lea.vmem %s0, 1282
  %v4147 = vld [vmem:[%s4146] ss:$8 sm:$0xf0]
  %vm4148 = vcmask 1047556
  %v4149 = vsel %vm4148, %v4147, %v4145
  %4150 = vrot.lane.b32.xlu0 %v4149, 32
  %v4151 = vpop.permute.xlu0 %4150
  %vm4152 = vcmask 392448
  %s4153 = scalar_lea.vmem %s1, 160
  %4154 = vst.msk [vmem:[%s4153] sm:$0xff] %vm4152, %v4151
  %s4155 = scalar_lea.vmem %s0, 1538
  %v4156 = vld [vmem:[%s4155] ss:$8 sm:$0xf]
  %s4157 = scalar_lea.vmem %s0, 1538
  %v4158 = vld [vmem:[%s4157] ss:$8 sm:$0xf0]
  %vm4159 = vcmask 1047556
  %v4160 = vsel %vm4159, %v4158, %v4156
  %4161 = vrot.lane.b32.xlu0 %v4160, 32
  %v4162 = vpop.permute.xlu0 %4161
  %vm4163 = vcmask 392448
  %s4164 = scalar_lea.vmem %s1, 192
  %4165 = vst.msk [vmem:[%s4164] sm:$0xff] %vm4163, %v4162
  %s4166 = scalar_lea.vmem %s0, 1794
  %v4167 = vld [vmem:[%s4166] ss:$8 sm:$0xf]
  %s4168 = scalar_lea.vmem %s0, 1794
  %v4169 = vld [vmem:[%s4168] ss:$8 sm:$0xf0]
  %vm4170 = vcmask 1047556
  %v4171 = vsel %vm4170, %v4169, %v4167
  %4172 = vrot.lane.b32.xlu0 %v4171, 32
  %v4173 = vpop.permute.xlu0 %4172
  %vm4174 = vcmask 392448
  %s4175 = scalar_lea.vmem %s1, 224
  %4176 = vst.msk [vmem:[%s4175] sm:$0xff] %vm4174, %v4173
  %s4177 = scalar_lea.vmem %s0, 2050
  %v4178 = vld [vmem:[%s4177] ss:$8 sm:$0xf]
  %s4179 = scalar_lea.vmem %s0, 2050
  %v4180 = vld [vmem:[%s4179] ss:$8 sm:$0xf0]
  %vm4181 = vcmask 1047556
  %v4182 = vsel %vm4181, %v4180, %v4178
  %4183 = vrot.lane.b32.xlu0 %v4182, 32
  %v4184 = vpop.permute.xlu0 %4183
  %vm4185 = vcmask 392448
  %s4186 = scalar_lea.vmem %s1, 256
  %4187 = vst.msk [vmem:[%s4186] sm:$0xff] %vm4185, %v4184
  %s4188 = scalar_lea.vmem %s0, 2306
  %v4189 = vld [vmem:[%s4188] ss:$8 sm:$0xf]
  %s4190 = scalar_lea.vmem %s0, 2306
  %v4191 = vld [vmem:[%s4190] ss:$8 sm:$0xf0]
  %vm4192 = vcmask 1047556
  %v4193 = vsel %vm4192, %v4191, %v4189
  %4194 = vrot.lane.b32.xlu0 %v4193, 32
  %v4195 = vpop.permute.xlu0 %4194
  %vm4196 = vcmask 392448
  %s4197 = scalar_lea.vmem %s1, 288
  %4198 = vst.msk [vmem:[%s4197] sm:$0xff] %vm4196, %v4195
  %s4199 = scalar_lea.vmem %s0, 2562
  %v4200 = vld [vmem:[%s4199] ss:$8 sm:$0xf]
  %s4201 = scalar_lea.vmem %s0, 2562
  %v4202 = vld [vmem:[%s4201] ss:$8 sm:$0xf0]
  %vm4203 = vcmask 1047556
  %v4204 = vsel %vm4203, %v4202, %v4200
  %4205 = vrot.lane.b32.xlu0 %v4204, 32
  %v4206 = vpop.permute.xlu0 %4205
  %vm4207 = vcmask 392448
  %s4208 = scalar_lea.vmem %s1, 320
  %4209 = vst.msk [vmem:[%s4208] sm:$0xff] %vm4207, %v4206
  %s4210 = scalar_lea.vmem %s0, 2818
  %v4211 = vld [vmem:[%s4210] ss:$8 sm:$0xf]
  %s4212 = scalar_lea.vmem %s0, 2818
  %v4213 = vld [vmem:[%s4212] ss:$8 sm:$0xf0]
  %vm4214 = vcmask 1047556
  %v4215 = vsel %vm4214, %v4213, %v4211
  %4216 = vrot.lane.b32.xlu0 %v4215, 32
  %v4217 = vpop.permute.xlu0 %4216
  %vm4218 = vcmask 392448
  %s4219 = scalar_lea.vmem %s1, 352
  %4220 = vst.msk [vmem:[%s4219] sm:$0xff] %vm4218, %v4217
  %s4221 = scalar_lea.vmem %s0, 3074
  %v4222 = vld [vmem:[%s4221] ss:$8 sm:$0xf]
  %s4223 = scalar_lea.vmem %s0, 3074
  %v4224 = vld [vmem:[%s4223] ss:$8 sm:$0xf0]
  %vm4225 = vcmask 1047556
  %v4226 = vsel %vm4225, %v4224, %v4222
  %4227 = vrot.lane.b32.xlu0 %v4226, 32
  %v4228 = vpop.permute.xlu0 %4227
  %vm4229 = vcmask 392448
  %s4230 = scalar_lea.vmem %s1, 384
  %4231 = vst.msk [vmem:[%s4230] sm:$0xff] %vm4229, %v4228
  %s4232 = scalar_lea.vmem %s0, 3330
  %v4233 = vld [vmem:[%s4232] ss:$8 sm:$0xf]
  %s4234 = scalar_lea.vmem %s0, 3330
  %v4235 = vld [vmem:[%s4234] ss:$8 sm:$0xf0]
  %vm4236 = vcmask 1047556
  %v4237 = vsel %vm4236, %v4235, %v4233
  %4238 = vrot.lane.b32.xlu0 %v4237, 32
  %v4239 = vpop.permute.xlu0 %4238
  %vm4240 = vcmask 392448
  %s4241 = scalar_lea.vmem %s1, 416
  %4242 = vst.msk [vmem:[%s4241] sm:$0xff] %vm4240, %v4239
  %s4243 = scalar_lea.vmem %s0, 3586
  %v4244 = vld [vmem:[%s4243] ss:$8 sm:$0xf]
  %s4245 = scalar_lea.vmem %s0, 3586
  %v4246 = vld [vmem:[%s4245] ss:$8 sm:$0xf0]
  %vm4247 = vcmask 1047556
  %v4248 = vsel %vm4247, %v4246, %v4244
  %4249 = vrot.lane.b32.xlu0 %v4248, 32
  %v4250 = vpop.permute.xlu0 %4249
  %vm4251 = vcmask 392448
  %s4252 = scalar_lea.vmem %s1, 448
  %4253 = vst.msk [vmem:[%s4252] sm:$0xff] %vm4251, %v4250
  %s4254 = scalar_lea.vmem %s0, 3842
  %v4255 = vld [vmem:[%s4254] ss:$8 sm:$0xf]
  %s4256 = scalar_lea.vmem %s0, 3842
  %v4257 = vld [vmem:[%s4256] ss:$8 sm:$0xf0]
  %vm4258 = vcmask 1047556
  %v4259 = vsel %vm4258, %v4257, %v4255
  %4260 = vrot.lane.b32.xlu0 %v4259, 32
  %v4261 = vpop.permute.xlu0 %4260
  %vm4262 = vcmask 392448
  %s4263 = scalar_lea.vmem %s1, 480
  %4264 = vst.msk [vmem:[%s4263] sm:$0xff] %vm4262, %v4261
  %s4265 = scalar_lea.vmem %s0, 66
  %v4266 = vld [vmem:[%s4265] ss:$8 sm:$0xf]
  %s4267 = scalar_lea.vmem %s0, 66
  %v4268 = vld [vmem:[%s4267] ss:$8 sm:$0xf0]
  %vm4269 = vcmask 1047556
  %v4270 = vsel %vm4269, %v4268, %v4266
  %4271 = vrot.lane.b32.xlu0 %v4270, 32
  %v4272 = vpop.permute.xlu0 %4271
  %vm4273 = vcmask 392448
  %s4274 = scalar_lea.vmem %s1, 8
  %4275 = vst.msk [vmem:[%s4274] sm:$0xff] %vm4273, %v4272
  %s4276 = scalar_lea.vmem %s0, 322
  %v4277 = vld [vmem:[%s4276] ss:$8 sm:$0xf]
  %s4278 = scalar_lea.vmem %s0, 322
  %v4279 = vld [vmem:[%s4278] ss:$8 sm:$0xf0]
  %vm4280 = vcmask 1047556
  %v4281 = vsel %vm4280, %v4279, %v4277
  %4282 = vrot.lane.b32.xlu0 %v4281, 32
  %v4283 = vpop.permute.xlu0 %4282
  %vm4284 = vcmask 392448
  %s4285 = scalar_lea.vmem %s1, 40
  %4286 = vst.msk [vmem:[%s4285] sm:$0xff] %vm4284, %v4283
  %s4287 = scalar_lea.vmem %s0, 578
  %v4288 = vld [vmem:[%s4287] ss:$8 sm:$0xf]
  %s4289 = scalar_lea.vmem %s0, 578
  %v4290 = vld [vmem:[%s4289] ss:$8 sm:$0xf0]
  %vm4291 = vcmask 1047556
  %v4292 = vsel %vm4291, %v4290, %v4288
  %4293 = vrot.lane.b32.xlu0 %v4292, 32
  %v4294 = vpop.permute.xlu0 %4293
  %vm4295 = vcmask 392448
  %s4296 = scalar_lea.vmem %s1, 72
  %4297 = vst.msk [vmem:[%s4296] sm:$0xff] %vm4295, %v4294
  %s4298 = scalar_lea.vmem %s0, 834
  %v4299 = vld [vmem:[%s4298] ss:$8 sm:$0xf]
  %s4300 = scalar_lea.vmem %s0, 834
  %v4301 = vld [vmem:[%s4300] ss:$8 sm:$0xf0]
  %vm4302 = vcmask 1047556
  %v4303 = vsel %vm4302, %v4301, %v4299
  %4304 = vrot.lane.b32.xlu0 %v4303, 32
  %v4305 = vpop.permute.xlu0 %4304
  %vm4306 = vcmask 392448
  %s4307 = scalar_lea.vmem %s1, 104
  %4308 = vst.msk [vmem:[%s4307] sm:$0xff] %vm4306, %v4305
  %s4309 = scalar_lea.vmem %s0, 1090
  %v4310 = vld [vmem:[%s4309] ss:$8 sm:$0xf]
  %s4311 = scalar_lea.vmem %s0, 1090
  %v4312 = vld [vmem:[%s4311] ss:$8 sm:$0xf0]
  %vm4313 = vcmask 1047556
  %v4314 = vsel %vm4313, %v4312, %v4310
  %4315 = vrot.lane.b32.xlu0 %v4314, 32
  %v4316 = vpop.permute.xlu0 %4315
  %vm4317 = vcmask 392448
  %s4318 = scalar_lea.vmem %s1, 136
  %4319 = vst.msk [vmem:[%s4318] sm:$0xff] %vm4317, %v4316
  %s4320 = scalar_lea.vmem %s0, 1346
  %v4321 = vld [vmem:[%s4320] ss:$8 sm:$0xf]
  %s4322 = scalar_lea.vmem %s0, 1346
  %v4323 = vld [vmem:[%s4322] ss:$8 sm:$0xf0]
  %vm4324 = vcmask 1047556
  %v4325 = vsel %vm4324, %v4323, %v4321
  %4326 = vrot.lane.b32.xlu0 %v4325, 32
  %v4327 = vpop.permute.xlu0 %4326
  %vm4328 = vcmask 392448
  %s4329 = scalar_lea.vmem %s1, 168
  %4330 = vst.msk [vmem:[%s4329] sm:$0xff] %vm4328, %v4327
  %s4331 = scalar_lea.vmem %s0, 1602
  %v4332 = vld [vmem:[%s4331] ss:$8 sm:$0xf]
  %s4333 = scalar_lea.vmem %s0, 1602
  %v4334 = vld [vmem:[%s4333] ss:$8 sm:$0xf0]
  %vm4335 = vcmask 1047556
  %v4336 = vsel %vm4335, %v4334, %v4332
  %4337 = vrot.lane.b32.xlu0 %v4336, 32
  %v4338 = vpop.permute.xlu0 %4337
  %vm4339 = vcmask 392448
  %s4340 = scalar_lea.vmem %s1, 200
  %4341 = vst.msk [vmem:[%s4340] sm:$0xff] %vm4339, %v4338
  %s4342 = scalar_lea.vmem %s0, 1858
  %v4343 = vld [vmem:[%s4342] ss:$8 sm:$0xf]
  %s4344 = scalar_lea.vmem %s0, 1858
  %v4345 = vld [vmem:[%s4344] ss:$8 sm:$0xf0]
  %vm4346 = vcmask 1047556
  %v4347 = vsel %vm4346, %v4345, %v4343
  %4348 = vrot.lane.b32.xlu0 %v4347, 32
  %v4349 = vpop.permute.xlu0 %4348
  %vm4350 = vcmask 392448
  %s4351 = scalar_lea.vmem %s1, 232
  %4352 = vst.msk [vmem:[%s4351] sm:$0xff] %vm4350, %v4349
  %s4353 = scalar_lea.vmem %s0, 2114
  %v4354 = vld [vmem:[%s4353] ss:$8 sm:$0xf]
  %s4355 = scalar_lea.vmem %s0, 2114
  %v4356 = vld [vmem:[%s4355] ss:$8 sm:$0xf0]
  %vm4357 = vcmask 1047556
  %v4358 = vsel %vm4357, %v4356, %v4354
  %4359 = vrot.lane.b32.xlu0 %v4358, 32
  %v4360 = vpop.permute.xlu0 %4359
  %vm4361 = vcmask 392448
  %s4362 = scalar_lea.vmem %s1, 264
  %4363 = vst.msk [vmem:[%s4362] sm:$0xff] %vm4361, %v4360
  %s4364 = scalar_lea.vmem %s0, 2370
  %v4365 = vld [vmem:[%s4364] ss:$8 sm:$0xf]
  %s4366 = scalar_lea.vmem %s0, 2370
  %v4367 = vld [vmem:[%s4366] ss:$8 sm:$0xf0]
  %vm4368 = vcmask 1047556
  %v4369 = vsel %vm4368, %v4367, %v4365
  %4370 = vrot.lane.b32.xlu0 %v4369, 32
  %v4371 = vpop.permute.xlu0 %4370
  %vm4372 = vcmask 392448
  %s4373 = scalar_lea.vmem %s1, 296
  %4374 = vst.msk [vmem:[%s4373] sm:$0xff] %vm4372, %v4371
  %s4375 = scalar_lea.vmem %s0, 2626
  %v4376 = vld [vmem:[%s4375] ss:$8 sm:$0xf]
  %s4377 = scalar_lea.vmem %s0, 2626
  %v4378 = vld [vmem:[%s4377] ss:$8 sm:$0xf0]
  %vm4379 = vcmask 1047556
  %v4380 = vsel %vm4379, %v4378, %v4376
  %4381 = vrot.lane.b32.xlu0 %v4380, 32
  %v4382 = vpop.permute.xlu0 %4381
  %vm4383 = vcmask 392448
  %s4384 = scalar_lea.vmem %s1, 328
  %4385 = vst.msk [vmem:[%s4384] sm:$0xff] %vm4383, %v4382
  %s4386 = scalar_lea.vmem %s0, 2882
  %v4387 = vld [vmem:[%s4386] ss:$8 sm:$0xf]
  %s4388 = scalar_lea.vmem %s0, 2882
  %v4389 = vld [vmem:[%s4388] ss:$8 sm:$0xf0]
  %vm4390 = vcmask 1047556
  %v4391 = vsel %vm4390, %v4389, %v4387
  %4392 = vrot.lane.b32.xlu0 %v4391, 32
  %v4393 = vpop.permute.xlu0 %4392
  %vm4394 = vcmask 392448
  %s4395 = scalar_lea.vmem %s1, 360
  %4396 = vst.msk [vmem:[%s4395] sm:$0xff] %vm4394, %v4393
  %s4397 = scalar_lea.vmem %s0, 3138
  %v4398 = vld [vmem:[%s4397] ss:$8 sm:$0xf]
  %s4399 = scalar_lea.vmem %s0, 3138
  %v4400 = vld [vmem:[%s4399] ss:$8 sm:$0xf0]
  %vm4401 = vcmask 1047556
  %v4402 = vsel %vm4401, %v4400, %v4398
  %4403 = vrot.lane.b32.xlu0 %v4402, 32
  %v4404 = vpop.permute.xlu0 %4403
  %vm4405 = vcmask 392448
  %s4406 = scalar_lea.vmem %s1, 392
  %4407 = vst.msk [vmem:[%s4406] sm:$0xff] %vm4405, %v4404
  %s4408 = scalar_lea.vmem %s0, 3394
  %v4409 = vld [vmem:[%s4408] ss:$8 sm:$0xf]
  %s4410 = scalar_lea.vmem %s0, 3394
  %v4411 = vld [vmem:[%s4410] ss:$8 sm:$0xf0]
  %vm4412 = vcmask 1047556
  %v4413 = vsel %vm4412, %v4411, %v4409
  %4414 = vrot.lane.b32.xlu0 %v4413, 32
  %v4415 = vpop.permute.xlu0 %4414
  %vm4416 = vcmask 392448
  %s4417 = scalar_lea.vmem %s1, 424
  %4418 = vst.msk [vmem:[%s4417] sm:$0xff] %vm4416, %v4415
  %s4419 = scalar_lea.vmem %s0, 3650
  %v4420 = vld [vmem:[%s4419] ss:$8 sm:$0xf]
  %s4421 = scalar_lea.vmem %s0, 3650
  %v4422 = vld [vmem:[%s4421] ss:$8 sm:$0xf0]
  %vm4423 = vcmask 1047556
  %v4424 = vsel %vm4423, %v4422, %v4420
  %4425 = vrot.lane.b32.xlu0 %v4424, 32
  %v4426 = vpop.permute.xlu0 %4425
  %vm4427 = vcmask 392448
  %s4428 = scalar_lea.vmem %s1, 456
  %4429 = vst.msk [vmem:[%s4428] sm:$0xff] %vm4427, %v4426
  %s4430 = scalar_lea.vmem %s0, 3906
  %v4431 = vld [vmem:[%s4430] ss:$8 sm:$0xf]
  %s4432 = scalar_lea.vmem %s0, 3906
  %v4433 = vld [vmem:[%s4432] ss:$8 sm:$0xf0]
  %vm4434 = vcmask 1047556
  %v4435 = vsel %vm4434, %v4433, %v4431
  %4436 = vrot.lane.b32.xlu0 %v4435, 32
  %v4437 = vpop.permute.xlu0 %4436
  %vm4438 = vcmask 392448
  %s4439 = scalar_lea.vmem %s1, 488
  %4440 = vst.msk [vmem:[%s4439] sm:$0xff] %vm4438, %v4437
  %s4441 = scalar_lea.vmem %s0, 130
  %v4442 = vld [vmem:[%s4441] ss:$8 sm:$0xf]
  %s4443 = scalar_lea.vmem %s0, 130
  %v4444 = vld [vmem:[%s4443] ss:$8 sm:$0xf0]
  %vm4445 = vcmask 1047556
  %v4446 = vsel %vm4445, %v4444, %v4442
  %4447 = vrot.lane.b32.xlu0 %v4446, 32
  %v4448 = vpop.permute.xlu0 %4447
  %vm4449 = vcmask 392448
  %s4450 = scalar_lea.vmem %s1, 16
  %4451 = vst.msk [vmem:[%s4450] sm:$0xff] %vm4449, %v4448
  %s4452 = scalar_lea.vmem %s0, 386
  %v4453 = vld [vmem:[%s4452] ss:$8 sm:$0xf]
  %s4454 = scalar_lea.vmem %s0, 386
  %v4455 = vld [vmem:[%s4454] ss:$8 sm:$0xf0]
  %vm4456 = vcmask 1047556
  %v4457 = vsel %vm4456, %v4455, %v4453
  %4458 = vrot.lane.b32.xlu0 %v4457, 32
  %v4459 = vpop.permute.xlu0 %4458
  %vm4460 = vcmask 392448
  %s4461 = scalar_lea.vmem %s1, 48
  %4462 = vst.msk [vmem:[%s4461] sm:$0xff] %vm4460, %v4459
  %s4463 = scalar_lea.vmem %s0, 642
  %v4464 = vld [vmem:[%s4463] ss:$8 sm:$0xf]
  %s4465 = scalar_lea.vmem %s0, 642
  %v4466 = vld [vmem:[%s4465] ss:$8 sm:$0xf0]
  %vm4467 = vcmask 1047556
  %v4468 = vsel %vm4467, %v4466, %v4464
  %4469 = vrot.lane.b32.xlu0 %v4468, 32
  %v4470 = vpop.permute.xlu0 %4469
  %vm4471 = vcmask 392448
  %s4472 = scalar_lea.vmem %s1, 80
  %4473 = vst.msk [vmem:[%s4472] sm:$0xff] %vm4471, %v4470
  %s4474 = scalar_lea.vmem %s0, 898
  %v4475 = vld [vmem:[%s4474] ss:$8 sm:$0xf]
  %s4476 = scalar_lea.vmem %s0, 898
  %v4477 = vld [vmem:[%s4476] ss:$8 sm:$0xf0]
  %vm4478 = vcmask 1047556
  %v4479 = vsel %vm4478, %v4477, %v4475
  %4480 = vrot.lane.b32.xlu0 %v4479, 32
  %v4481 = vpop.permute.xlu0 %4480
  %vm4482 = vcmask 392448
  %s4483 = scalar_lea.vmem %s1, 112
  %4484 = vst.msk [vmem:[%s4483] sm:$0xff] %vm4482, %v4481
  %s4485 = scalar_lea.vmem %s0, 1154
  %v4486 = vld [vmem:[%s4485] ss:$8 sm:$0xf]
  %s4487 = scalar_lea.vmem %s0, 1154
  %v4488 = vld [vmem:[%s4487] ss:$8 sm:$0xf0]
  %vm4489 = vcmask 1047556
  %v4490 = vsel %vm4489, %v4488, %v4486
  %4491 = vrot.lane.b32.xlu0 %v4490, 32
  %v4492 = vpop.permute.xlu0 %4491
  %vm4493 = vcmask 392448
  %s4494 = scalar_lea.vmem %s1, 144
  %4495 = vst.msk [vmem:[%s4494] sm:$0xff] %vm4493, %v4492
  %s4496 = scalar_lea.vmem %s0, 1410
  %v4497 = vld [vmem:[%s4496] ss:$8 sm:$0xf]
  %s4498 = scalar_lea.vmem %s0, 1410
  %v4499 = vld [vmem:[%s4498] ss:$8 sm:$0xf0]
  %vm4500 = vcmask 1047556
  %v4501 = vsel %vm4500, %v4499, %v4497
  %4502 = vrot.lane.b32.xlu0 %v4501, 32
  %v4503 = vpop.permute.xlu0 %4502
  %vm4504 = vcmask 392448
  %s4505 = scalar_lea.vmem %s1, 176
  %4506 = vst.msk [vmem:[%s4505] sm:$0xff] %vm4504, %v4503
  %s4507 = scalar_lea.vmem %s0, 1666
  %v4508 = vld [vmem:[%s4507] ss:$8 sm:$0xf]
  %s4509 = scalar_lea.vmem %s0, 1666
  %v4510 = vld [vmem:[%s4509] ss:$8 sm:$0xf0]
  %vm4511 = vcmask 1047556
  %v4512 = vsel %vm4511, %v4510, %v4508
  %4513 = vrot.lane.b32.xlu0 %v4512, 32
  %v4514 = vpop.permute.xlu0 %4513
  %vm4515 = vcmask 392448
  %s4516 = scalar_lea.vmem %s1, 208
  %4517 = vst.msk [vmem:[%s4516] sm:$0xff] %vm4515, %v4514
  %s4518 = scalar_lea.vmem %s0, 1922
  %v4519 = vld [vmem:[%s4518] ss:$8 sm:$0xf]
  %s4520 = scalar_lea.vmem %s0, 1922
  %v4521 = vld [vmem:[%s4520] ss:$8 sm:$0xf0]
  %vm4522 = vcmask 1047556
  %v4523 = vsel %vm4522, %v4521, %v4519
  %4524 = vrot.lane.b32.xlu0 %v4523, 32
  %v4525 = vpop.permute.xlu0 %4524
  %vm4526 = vcmask 392448
  %s4527 = scalar_lea.vmem %s1, 240
  %4528 = vst.msk [vmem:[%s4527] sm:$0xff] %vm4526, %v4525
  %s4529 = scalar_lea.vmem %s0, 2178
  %v4530 = vld [vmem:[%s4529] ss:$8 sm:$0xf]
  %s4531 = scalar_lea.vmem %s0, 2178
  %v4532 = vld [vmem:[%s4531] ss:$8 sm:$0xf0]
  %vm4533 = vcmask 1047556
  %v4534 = vsel %vm4533, %v4532, %v4530
  %4535 = vrot.lane.b32.xlu0 %v4534, 32
  %v4536 = vpop.permute.xlu0 %4535
  %vm4537 = vcmask 392448
  %s4538 = scalar_lea.vmem %s1, 272
  %4539 = vst.msk [vmem:[%s4538] sm:$0xff] %vm4537, %v4536
  %s4540 = scalar_lea.vmem %s0, 2434
  %v4541 = vld [vmem:[%s4540] ss:$8 sm:$0xf]
  %s4542 = scalar_lea.vmem %s0, 2434
  %v4543 = vld [vmem:[%s4542] ss:$8 sm:$0xf0]
  %vm4544 = vcmask 1047556
  %v4545 = vsel %vm4544, %v4543, %v4541
  %4546 = vrot.lane.b32.xlu0 %v4545, 32
  %v4547 = vpop.permute.xlu0 %4546
  %vm4548 = vcmask 392448
  %s4549 = scalar_lea.vmem %s1, 304
  %4550 = vst.msk [vmem:[%s4549] sm:$0xff] %vm4548, %v4547
  %s4551 = scalar_lea.vmem %s0, 2690
  %v4552 = vld [vmem:[%s4551] ss:$8 sm:$0xf]
  %s4553 = scalar_lea.vmem %s0, 2690
  %v4554 = vld [vmem:[%s4553] ss:$8 sm:$0xf0]
  %vm4555 = vcmask 1047556
  %v4556 = vsel %vm4555, %v4554, %v4552
  %4557 = vrot.lane.b32.xlu0 %v4556, 32
  %v4558 = vpop.permute.xlu0 %4557
  %vm4559 = vcmask 392448
  %s4560 = scalar_lea.vmem %s1, 336
  %4561 = vst.msk [vmem:[%s4560] sm:$0xff] %vm4559, %v4558
  %s4562 = scalar_lea.vmem %s0, 2946
  %v4563 = vld [vmem:[%s4562] ss:$8 sm:$0xf]
  %s4564 = scalar_lea.vmem %s0, 2946
  %v4565 = vld [vmem:[%s4564] ss:$8 sm:$0xf0]
  %vm4566 = vcmask 1047556
  %v4567 = vsel %vm4566, %v4565, %v4563
  %4568 = vrot.lane.b32.xlu0 %v4567, 32
  %v4569 = vpop.permute.xlu0 %4568
  %vm4570 = vcmask 392448
  %s4571 = scalar_lea.vmem %s1, 368
  %4572 = vst.msk [vmem:[%s4571] sm:$0xff] %vm4570, %v4569
  %s4573 = scalar_lea.vmem %s0, 3202
  %v4574 = vld [vmem:[%s4573] ss:$8 sm:$0xf]
  %s4575 = scalar_lea.vmem %s0, 3202
  %v4576 = vld [vmem:[%s4575] ss:$8 sm:$0xf0]
  %vm4577 = vcmask 1047556
  %v4578 = vsel %vm4577, %v4576, %v4574
  %4579 = vrot.lane.b32.xlu0 %v4578, 32
  %v4580 = vpop.permute.xlu0 %4579
  %vm4581 = vcmask 392448
  %s4582 = scalar_lea.vmem %s1, 400
  %4583 = vst.msk [vmem:[%s4582] sm:$0xff] %vm4581, %v4580
  %s4584 = scalar_lea.vmem %s0, 3458
  %v4585 = vld [vmem:[%s4584] ss:$8 sm:$0xf]
  %s4586 = scalar_lea.vmem %s0, 3458
  %v4587 = vld [vmem:[%s4586] ss:$8 sm:$0xf0]
  %vm4588 = vcmask 1047556
  %v4589 = vsel %vm4588, %v4587, %v4585
  %4590 = vrot.lane.b32.xlu0 %v4589, 32
  %v4591 = vpop.permute.xlu0 %4590
  %vm4592 = vcmask 392448
  %s4593 = scalar_lea.vmem %s1, 432
  %4594 = vst.msk [vmem:[%s4593] sm:$0xff] %vm4592, %v4591
  %s4595 = scalar_lea.vmem %s0, 3714
  %v4596 = vld [vmem:[%s4595] ss:$8 sm:$0xf]
  %s4597 = scalar_lea.vmem %s0, 3714
  %v4598 = vld [vmem:[%s4597] ss:$8 sm:$0xf0]
  %vm4599 = vcmask 1047556
  %v4600 = vsel %vm4599, %v4598, %v4596
  %4601 = vrot.lane.b32.xlu0 %v4600, 32
  %v4602 = vpop.permute.xlu0 %4601
  %vm4603 = vcmask 392448
  %s4604 = scalar_lea.vmem %s1, 464
  %4605 = vst.msk [vmem:[%s4604] sm:$0xff] %vm4603, %v4602
  %s4606 = scalar_lea.vmem %s0, 3970
  %v4607 = vld [vmem:[%s4606] ss:$8 sm:$0xf]
  %s4608 = scalar_lea.vmem %s0, 3970
  %v4609 = vld [vmem:[%s4608] ss:$8 sm:$0xf0]
  %vm4610 = vcmask 1047556
  %v4611 = vsel %vm4610, %v4609, %v4607
  %4612 = vrot.lane.b32.xlu0 %v4611, 32
  %v4613 = vpop.permute.xlu0 %4612
  %vm4614 = vcmask 392448
  %s4615 = scalar_lea.vmem %s1, 496
  %4616 = vst.msk [vmem:[%s4615] sm:$0xff] %vm4614, %v4613
  %s4617 = scalar_lea.vmem %s0, 194
  %v4618 = vld [vmem:[%s4617] ss:$8 sm:$0xf]
  %s4619 = scalar_lea.vmem %s0, 194
  %v4620 = vld [vmem:[%s4619] ss:$8 sm:$0xf0]
  %vm4621 = vcmask 1047556
  %v4622 = vsel %vm4621, %v4620, %v4618
  %4623 = vrot.lane.b32.xlu0 %v4622, 32
  %v4624 = vpop.permute.xlu0 %4623
  %vm4625 = vcmask 392448
  %s4626 = scalar_lea.vmem %s1, 24
  %4627 = vst.msk [vmem:[%s4626] sm:$0xff] %vm4625, %v4624
  %s4628 = scalar_lea.vmem %s0, 450
  %v4629 = vld [vmem:[%s4628] ss:$8 sm:$0xf]
  %s4630 = scalar_lea.vmem %s0, 450
  %v4631 = vld [vmem:[%s4630] ss:$8 sm:$0xf0]
  %vm4632 = vcmask 1047556
  %v4633 = vsel %vm4632, %v4631, %v4629
  %4634 = vrot.lane.b32.xlu0 %v4633, 32
  %v4635 = vpop.permute.xlu0 %4634
  %vm4636 = vcmask 392448
  %s4637 = scalar_lea.vmem %s1, 56
  %4638 = vst.msk [vmem:[%s4637] sm:$0xff] %vm4636, %v4635
  %s4639 = scalar_lea.vmem %s0, 706
  %v4640 = vld [vmem:[%s4639] ss:$8 sm:$0xf]
  %s4641 = scalar_lea.vmem %s0, 706
  %v4642 = vld [vmem:[%s4641] ss:$8 sm:$0xf0]
  %vm4643 = vcmask 1047556
  %v4644 = vsel %vm4643, %v4642, %v4640
  %4645 = vrot.lane.b32.xlu0 %v4644, 32
  %v4646 = vpop.permute.xlu0 %4645
  %vm4647 = vcmask 392448
  %s4648 = scalar_lea.vmem %s1, 88
  %4649 = vst.msk [vmem:[%s4648] sm:$0xff] %vm4647, %v4646
  %s4650 = scalar_lea.vmem %s0, 962
  %v4651 = vld [vmem:[%s4650] ss:$8 sm:$0xf]
  %s4652 = scalar_lea.vmem %s0, 962
  %v4653 = vld [vmem:[%s4652] ss:$8 sm:$0xf0]
  %vm4654 = vcmask 1047556
  %v4655 = vsel %vm4654, %v4653, %v4651
  %4656 = vrot.lane.b32.xlu0 %v4655, 32
  %v4657 = vpop.permute.xlu0 %4656
  %vm4658 = vcmask 392448
  %s4659 = scalar_lea.vmem %s1, 120
  %4660 = vst.msk [vmem:[%s4659] sm:$0xff] %vm4658, %v4657
  %s4661 = scalar_lea.vmem %s0, 1218
  %v4662 = vld [vmem:[%s4661] ss:$8 sm:$0xf]
  %s4663 = scalar_lea.vmem %s0, 1218
  %v4664 = vld [vmem:[%s4663] ss:$8 sm:$0xf0]
  %vm4665 = vcmask 1047556
  %v4666 = vsel %vm4665, %v4664, %v4662
  %4667 = vrot.lane.b32.xlu0 %v4666, 32
  %v4668 = vpop.permute.xlu0 %4667
  %vm4669 = vcmask 392448
  %s4670 = scalar_lea.vmem %s1, 152
  %4671 = vst.msk [vmem:[%s4670] sm:$0xff] %vm4669, %v4668
  %s4672 = scalar_lea.vmem %s0, 1474
  %v4673 = vld [vmem:[%s4672] ss:$8 sm:$0xf]
  %s4674 = scalar_lea.vmem %s0, 1474
  %v4675 = vld [vmem:[%s4674] ss:$8 sm:$0xf0]
  %vm4676 = vcmask 1047556
  %v4677 = vsel %vm4676, %v4675, %v4673
  %4678 = vrot.lane.b32.xlu0 %v4677, 32
  %v4679 = vpop.permute.xlu0 %4678
  %vm4680 = vcmask 392448
  %s4681 = scalar_lea.vmem %s1, 184
  %4682 = vst.msk [vmem:[%s4681] sm:$0xff] %vm4680, %v4679
  %s4683 = scalar_lea.vmem %s0, 1730
  %v4684 = vld [vmem:[%s4683] ss:$8 sm:$0xf]
  %s4685 = scalar_lea.vmem %s0, 1730
  %v4686 = vld [vmem:[%s4685] ss:$8 sm:$0xf0]
  %vm4687 = vcmask 1047556
  %v4688 = vsel %vm4687, %v4686, %v4684
  %4689 = vrot.lane.b32.xlu0 %v4688, 32
  %v4690 = vpop.permute.xlu0 %4689
  %vm4691 = vcmask 392448
  %s4692 = scalar_lea.vmem %s1, 216
  %4693 = vst.msk [vmem:[%s4692] sm:$0xff] %vm4691, %v4690
  %s4694 = scalar_lea.vmem %s0, 1986
  %v4695 = vld [vmem:[%s4694] ss:$8 sm:$0xf]
  %s4696 = scalar_lea.vmem %s0, 1986
  %v4697 = vld [vmem:[%s4696] ss:$8 sm:$0xf0]
  %vm4698 = vcmask 1047556
  %v4699 = vsel %vm4698, %v4697, %v4695
  %4700 = vrot.lane.b32.xlu0 %v4699, 32
  %v4701 = vpop.permute.xlu0 %4700
  %vm4702 = vcmask 392448
  %s4703 = scalar_lea.vmem %s1, 248
  %4704 = vst.msk [vmem:[%s4703] sm:$0xff] %vm4702, %v4701
  %s4705 = scalar_lea.vmem %s0, 2242
  %v4706 = vld [vmem:[%s4705] ss:$8 sm:$0xf]
  %s4707 = scalar_lea.vmem %s0, 2242
  %v4708 = vld [vmem:[%s4707] ss:$8 sm:$0xf0]
  %vm4709 = vcmask 1047556
  %v4710 = vsel %vm4709, %v4708, %v4706
  %4711 = vrot.lane.b32.xlu0 %v4710, 32
  %v4712 = vpop.permute.xlu0 %4711
  %vm4713 = vcmask 392448
  %s4714 = scalar_lea.vmem %s1, 280
  %4715 = vst.msk [vmem:[%s4714] sm:$0xff] %vm4713, %v4712
  %s4716 = scalar_lea.vmem %s0, 2498
  %v4717 = vld [vmem:[%s4716] ss:$8 sm:$0xf]
  %s4718 = scalar_lea.vmem %s0, 2498
  %v4719 = vld [vmem:[%s4718] ss:$8 sm:$0xf0]
  %vm4720 = vcmask 1047556
  %v4721 = vsel %vm4720, %v4719, %v4717
  %4722 = vrot.lane.b32.xlu0 %v4721, 32
  %v4723 = vpop.permute.xlu0 %4722
  %vm4724 = vcmask 392448
  %s4725 = scalar_lea.vmem %s1, 312
  %4726 = vst.msk [vmem:[%s4725] sm:$0xff] %vm4724, %v4723
  %s4727 = scalar_lea.vmem %s0, 2754
  %v4728 = vld [vmem:[%s4727] ss:$8 sm:$0xf]
  %s4729 = scalar_lea.vmem %s0, 2754
  %v4730 = vld [vmem:[%s4729] ss:$8 sm:$0xf0]
  %vm4731 = vcmask 1047556
  %v4732 = vsel %vm4731, %v4730, %v4728
  %4733 = vrot.lane.b32.xlu0 %v4732, 32
  %v4734 = vpop.permute.xlu0 %4733
  %vm4735 = vcmask 392448
  %s4736 = scalar_lea.vmem %s1, 344
  %4737 = vst.msk [vmem:[%s4736] sm:$0xff] %vm4735, %v4734
  %s4738 = scalar_lea.vmem %s0, 3010
  %v4739 = vld [vmem:[%s4738] ss:$8 sm:$0xf]
  %s4740 = scalar_lea.vmem %s0, 3010
  %v4741 = vld [vmem:[%s4740] ss:$8 sm:$0xf0]
  %vm4742 = vcmask 1047556
  %v4743 = vsel %vm4742, %v4741, %v4739
  %4744 = vrot.lane.b32.xlu0 %v4743, 32
  %v4745 = vpop.permute.xlu0 %4744
  %vm4746 = vcmask 392448
  %s4747 = scalar_lea.vmem %s1, 376
  %4748 = vst.msk [vmem:[%s4747] sm:$0xff] %vm4746, %v4745
  %s4749 = scalar_lea.vmem %s0, 3266
  %v4750 = vld [vmem:[%s4749] ss:$8 sm:$0xf]
  %s4751 = scalar_lea.vmem %s0, 3266
  %v4752 = vld [vmem:[%s4751] ss:$8 sm:$0xf0]
  %vm4753 = vcmask 1047556
  %v4754 = vsel %vm4753, %v4752, %v4750
  %4755 = vrot.lane.b32.xlu0 %v4754, 32
  %v4756 = vpop.permute.xlu0 %4755
  %vm4757 = vcmask 392448
  %s4758 = scalar_lea.vmem %s1, 408
  %4759 = vst.msk [vmem:[%s4758] sm:$0xff] %vm4757, %v4756
  %s4760 = scalar_lea.vmem %s0, 3522
  %v4761 = vld [vmem:[%s4760] ss:$8 sm:$0xf]
  %s4762 = scalar_lea.vmem %s0, 3522
  %v4763 = vld [vmem:[%s4762] ss:$8 sm:$0xf0]
  %vm4764 = vcmask 1047556
  %v4765 = vsel %vm4764, %v4763, %v4761
  %4766 = vrot.lane.b32.xlu0 %v4765, 32
  %v4767 = vpop.permute.xlu0 %4766
  %vm4768 = vcmask 392448
  %s4769 = scalar_lea.vmem %s1, 440
  %4770 = vst.msk [vmem:[%s4769] sm:$0xff] %vm4768, %v4767
  %s4771 = scalar_lea.vmem %s0, 3778
  %v4772 = vld [vmem:[%s4771] ss:$8 sm:$0xf]
  %s4773 = scalar_lea.vmem %s0, 3778
  %v4774 = vld [vmem:[%s4773] ss:$8 sm:$0xf0]
  %vm4775 = vcmask 1047556
  %v4776 = vsel %vm4775, %v4774, %v4772
  %4777 = vrot.lane.b32.xlu0 %v4776, 32
  %v4778 = vpop.permute.xlu0 %4777
  %vm4779 = vcmask 392448
  %s4780 = scalar_lea.vmem %s1, 472
  %4781 = vst.msk [vmem:[%s4780] sm:$0xff] %vm4779, %v4778
  %s4782 = scalar_lea.vmem %s0, 4034
  %v4783 = vld [vmem:[%s4782] ss:$8 sm:$0xf]
  %s4784 = scalar_lea.vmem %s0, 4034
  %v4785 = vld [vmem:[%s4784] ss:$8 sm:$0xf0]
  %vm4786 = vcmask 1047556
  %v4787 = vsel %vm4786, %v4785, %v4783
  %4788 = vrot.lane.b32.xlu0 %v4787, 32
  %v4789 = vpop.permute.xlu0 %4788
  %vm4790 = vcmask 392448
  %s4791 = scalar_lea.vmem %s1, 504
  %4792 = vst.msk [vmem:[%s4791] sm:$0xff] %vm4790, %v4789
  %s4793 = scalar_lea.vmem %s0, 1
  %v4794 = vld [vmem:[%s4793] ss:$8 sm:$0xf]
  %s4795 = scalar_lea.vmem %s0, 1
  %v4796 = vld [vmem:[%s4795] ss:$8 sm:$0xf0]
  %vm4797 = vcmask 1047556
  %v4798 = vsel %vm4797, %v4796, %v4794
  %4799 = vrot.lane.b32.xlu0 %v4798, 16
  %v4800 = vpop.permute.xlu0 %4799
  %vm4801 = vcmask 261248
  %4802 = vst.msk [vmem:[%s1] sm:$0xff] %vm4801, %v4800
  %s4803 = scalar_lea.vmem %s0, 257
  %v4804 = vld [vmem:[%s4803] ss:$8 sm:$0xf]
  %s4805 = scalar_lea.vmem %s0, 257
  %v4806 = vld [vmem:[%s4805] ss:$8 sm:$0xf0]
  %vm4807 = vcmask 1047556
  %v4808 = vsel %vm4807, %v4806, %v4804
  %4809 = vrot.lane.b32.xlu0 %v4808, 16
  %v4810 = vpop.permute.xlu0 %4809
  %vm4811 = vcmask 261248
  %s4812 = scalar_lea.vmem %s1, 32
  %4813 = vst.msk [vmem:[%s4812] sm:$0xff] %vm4811, %v4810
  %s4814 = scalar_lea.vmem %s0, 513
  %v4815 = vld [vmem:[%s4814] ss:$8 sm:$0xf]
  %s4816 = scalar_lea.vmem %s0, 513
  %v4817 = vld [vmem:[%s4816] ss:$8 sm:$0xf0]
  %vm4818 = vcmask 1047556
  %v4819 = vsel %vm4818, %v4817, %v4815
  %4820 = vrot.lane.b32.xlu0 %v4819, 16
  %v4821 = vpop.permute.xlu0 %4820
  %vm4822 = vcmask 261248
  %s4823 = scalar_lea.vmem %s1, 64
  %4824 = vst.msk [vmem:[%s4823] sm:$0xff] %vm4822, %v4821
  %s4825 = scalar_lea.vmem %s0, 769
  %v4826 = vld [vmem:[%s4825] ss:$8 sm:$0xf]
  %s4827 = scalar_lea.vmem %s0, 769
  %v4828 = vld [vmem:[%s4827] ss:$8 sm:$0xf0]
  %vm4829 = vcmask 1047556
  %v4830 = vsel %vm4829, %v4828, %v4826
  %4831 = vrot.lane.b32.xlu0 %v4830, 16
  %v4832 = vpop.permute.xlu0 %4831
  %vm4833 = vcmask 261248
  %s4834 = scalar_lea.vmem %s1, 96
  %4835 = vst.msk [vmem:[%s4834] sm:$0xff] %vm4833, %v4832
  %s4836 = scalar_lea.vmem %s0, 1025
  %v4837 = vld [vmem:[%s4836] ss:$8 sm:$0xf]
  %s4838 = scalar_lea.vmem %s0, 1025
  %v4839 = vld [vmem:[%s4838] ss:$8 sm:$0xf0]
  %vm4840 = vcmask 1047556
  %v4841 = vsel %vm4840, %v4839, %v4837
  %4842 = vrot.lane.b32.xlu0 %v4841, 16
  %v4843 = vpop.permute.xlu0 %4842
  %vm4844 = vcmask 261248
  %s4845 = scalar_lea.vmem %s1, 128
  %4846 = vst.msk [vmem:[%s4845] sm:$0xff] %vm4844, %v4843
  %s4847 = scalar_lea.vmem %s0, 1281
  %v4848 = vld [vmem:[%s4847] ss:$8 sm:$0xf]
  %s4849 = scalar_lea.vmem %s0, 1281
  %v4850 = vld [vmem:[%s4849] ss:$8 sm:$0xf0]
  %vm4851 = vcmask 1047556
  %v4852 = vsel %vm4851, %v4850, %v4848
  %4853 = vrot.lane.b32.xlu0 %v4852, 16
  %v4854 = vpop.permute.xlu0 %4853
  %vm4855 = vcmask 261248
  %s4856 = scalar_lea.vmem %s1, 160
  %4857 = vst.msk [vmem:[%s4856] sm:$0xff] %vm4855, %v4854
  %s4858 = scalar_lea.vmem %s0, 1537
  %v4859 = vld [vmem:[%s4858] ss:$8 sm:$0xf]
  %s4860 = scalar_lea.vmem %s0, 1537
  %v4861 = vld [vmem:[%s4860] ss:$8 sm:$0xf0]
  %vm4862 = vcmask 1047556
  %v4863 = vsel %vm4862, %v4861, %v4859
  %4864 = vrot.lane.b32.xlu0 %v4863, 16
  %v4865 = vpop.permute.xlu0 %4864
  %vm4866 = vcmask 261248
  %s4867 = scalar_lea.vmem %s1, 192
  %4868 = vst.msk [vmem:[%s4867] sm:$0xff] %vm4866, %v4865
  %s4869 = scalar_lea.vmem %s0, 1793
  %v4870 = vld [vmem:[%s4869] ss:$8 sm:$0xf]
  %s4871 = scalar_lea.vmem %s0, 1793
  %v4872 = vld [vmem:[%s4871] ss:$8 sm:$0xf0]
  %vm4873 = vcmask 1047556
  %v4874 = vsel %vm4873, %v4872, %v4870
  %4875 = vrot.lane.b32.xlu0 %v4874, 16
  %v4876 = vpop.permute.xlu0 %4875
  %vm4877 = vcmask 261248
  %s4878 = scalar_lea.vmem %s1, 224
  %4879 = vst.msk [vmem:[%s4878] sm:$0xff] %vm4877, %v4876
  %s4880 = scalar_lea.vmem %s0, 2049
  %v4881 = vld [vmem:[%s4880] ss:$8 sm:$0xf]
  %s4882 = scalar_lea.vmem %s0, 2049
  %v4883 = vld [vmem:[%s4882] ss:$8 sm:$0xf0]
  %vm4884 = vcmask 1047556
  %v4885 = vsel %vm4884, %v4883, %v4881
  %4886 = vrot.lane.b32.xlu0 %v4885, 16
  %v4887 = vpop.permute.xlu0 %4886
  %vm4888 = vcmask 261248
  %s4889 = scalar_lea.vmem %s1, 256
  %4890 = vst.msk [vmem:[%s4889] sm:$0xff] %vm4888, %v4887
  %s4891 = scalar_lea.vmem %s0, 2305
  %v4892 = vld [vmem:[%s4891] ss:$8 sm:$0xf]
  %s4893 = scalar_lea.vmem %s0, 2305
  %v4894 = vld [vmem:[%s4893] ss:$8 sm:$0xf0]
  %vm4895 = vcmask 1047556
  %v4896 = vsel %vm4895, %v4894, %v4892
  %4897 = vrot.lane.b32.xlu0 %v4896, 16
  %v4898 = vpop.permute.xlu0 %4897
  %vm4899 = vcmask 261248
  %s4900 = scalar_lea.vmem %s1, 288
  %4901 = vst.msk [vmem:[%s4900] sm:$0xff] %vm4899, %v4898
  %s4902 = scalar_lea.vmem %s0, 2561
  %v4903 = vld [vmem:[%s4902] ss:$8 sm:$0xf]
  %s4904 = scalar_lea.vmem %s0, 2561
  %v4905 = vld [vmem:[%s4904] ss:$8 sm:$0xf0]
  %vm4906 = vcmask 1047556
  %v4907 = vsel %vm4906, %v4905, %v4903
  %4908 = vrot.lane.b32.xlu0 %v4907, 16
  %v4909 = vpop.permute.xlu0 %4908
  %vm4910 = vcmask 261248
  %s4911 = scalar_lea.vmem %s1, 320
  %4912 = vst.msk [vmem:[%s4911] sm:$0xff] %vm4910, %v4909
  %s4913 = scalar_lea.vmem %s0, 2817
  %v4914 = vld [vmem:[%s4913] ss:$8 sm:$0xf]
  %s4915 = scalar_lea.vmem %s0, 2817
  %v4916 = vld [vmem:[%s4915] ss:$8 sm:$0xf0]
  %vm4917 = vcmask 1047556
  %v4918 = vsel %vm4917, %v4916, %v4914
  %4919 = vrot.lane.b32.xlu0 %v4918, 16
  %v4920 = vpop.permute.xlu0 %4919
  %vm4921 = vcmask 261248
  %s4922 = scalar_lea.vmem %s1, 352
  %4923 = vst.msk [vmem:[%s4922] sm:$0xff] %vm4921, %v4920
  %s4924 = scalar_lea.vmem %s0, 3073
  %v4925 = vld [vmem:[%s4924] ss:$8 sm:$0xf]
  %s4926 = scalar_lea.vmem %s0, 3073
  %v4927 = vld [vmem:[%s4926] ss:$8 sm:$0xf0]
  %vm4928 = vcmask 1047556
  %v4929 = vsel %vm4928, %v4927, %v4925
  %4930 = vrot.lane.b32.xlu0 %v4929, 16
  %v4931 = vpop.permute.xlu0 %4930
  %vm4932 = vcmask 261248
  %s4933 = scalar_lea.vmem %s1, 384
  %4934 = vst.msk [vmem:[%s4933] sm:$0xff] %vm4932, %v4931
  %s4935 = scalar_lea.vmem %s0, 3329
  %v4936 = vld [vmem:[%s4935] ss:$8 sm:$0xf]
  %s4937 = scalar_lea.vmem %s0, 3329
  %v4938 = vld [vmem:[%s4937] ss:$8 sm:$0xf0]
  %vm4939 = vcmask 1047556
  %v4940 = vsel %vm4939, %v4938, %v4936
  %4941 = vrot.lane.b32.xlu0 %v4940, 16
  %v4942 = vpop.permute.xlu0 %4941
  %vm4943 = vcmask 261248
  %s4944 = scalar_lea.vmem %s1, 416
  %4945 = vst.msk [vmem:[%s4944] sm:$0xff] %vm4943, %v4942
  %s4946 = scalar_lea.vmem %s0, 3585
  %v4947 = vld [vmem:[%s4946] ss:$8 sm:$0xf]
  %s4948 = scalar_lea.vmem %s0, 3585
  %v4949 = vld [vmem:[%s4948] ss:$8 sm:$0xf0]
  %vm4950 = vcmask 1047556
  %v4951 = vsel %vm4950, %v4949, %v4947
  %4952 = vrot.lane.b32.xlu0 %v4951, 16
  %v4953 = vpop.permute.xlu0 %4952
  %vm4954 = vcmask 261248
  %s4955 = scalar_lea.vmem %s1, 448
  %4956 = vst.msk [vmem:[%s4955] sm:$0xff] %vm4954, %v4953
  %s4957 = scalar_lea.vmem %s0, 3841
  %v4958 = vld [vmem:[%s4957] ss:$8 sm:$0xf]
  %s4959 = scalar_lea.vmem %s0, 3841
  %v4960 = vld [vmem:[%s4959] ss:$8 sm:$0xf0]
  %vm4961 = vcmask 1047556
  %v4962 = vsel %vm4961, %v4960, %v4958
  %4963 = vrot.lane.b32.xlu0 %v4962, 16
  %v4964 = vpop.permute.xlu0 %4963
  %vm4965 = vcmask 261248
  %s4966 = scalar_lea.vmem %s1, 480
  %4967 = vst.msk [vmem:[%s4966] sm:$0xff] %vm4965, %v4964
  %s4968 = scalar_lea.vmem %s0, 65
  %v4969 = vld [vmem:[%s4968] ss:$8 sm:$0xf]
  %s4970 = scalar_lea.vmem %s0, 65
  %v4971 = vld [vmem:[%s4970] ss:$8 sm:$0xf0]
  %vm4972 = vcmask 1047556
  %v4973 = vsel %vm4972, %v4971, %v4969
  %4974 = vrot.lane.b32.xlu0 %v4973, 16
  %v4975 = vpop.permute.xlu0 %4974
  %vm4976 = vcmask 261248
  %s4977 = scalar_lea.vmem %s1, 8
  %4978 = vst.msk [vmem:[%s4977] sm:$0xff] %vm4976, %v4975
  %s4979 = scalar_lea.vmem %s0, 321
  %v4980 = vld [vmem:[%s4979] ss:$8 sm:$0xf]
  %s4981 = scalar_lea.vmem %s0, 321
  %v4982 = vld [vmem:[%s4981] ss:$8 sm:$0xf0]
  %vm4983 = vcmask 1047556
  %v4984 = vsel %vm4983, %v4982, %v4980
  %4985 = vrot.lane.b32.xlu0 %v4984, 16
  %v4986 = vpop.permute.xlu0 %4985
  %vm4987 = vcmask 261248
  %s4988 = scalar_lea.vmem %s1, 40
  %4989 = vst.msk [vmem:[%s4988] sm:$0xff] %vm4987, %v4986
  %s4990 = scalar_lea.vmem %s0, 577
  %v4991 = vld [vmem:[%s4990] ss:$8 sm:$0xf]
  %s4992 = scalar_lea.vmem %s0, 577
  %v4993 = vld [vmem:[%s4992] ss:$8 sm:$0xf0]
  %vm4994 = vcmask 1047556
  %v4995 = vsel %vm4994, %v4993, %v4991
  %4996 = vrot.lane.b32.xlu0 %v4995, 16
  %v4997 = vpop.permute.xlu0 %4996
  %vm4998 = vcmask 261248
  %s4999 = scalar_lea.vmem %s1, 72
  %5000 = vst.msk [vmem:[%s4999] sm:$0xff] %vm4998, %v4997
  %s5001 = scalar_lea.vmem %s0, 833
  %v5002 = vld [vmem:[%s5001] ss:$8 sm:$0xf]
  %s5003 = scalar_lea.vmem %s0, 833
  %v5004 = vld [vmem:[%s5003] ss:$8 sm:$0xf0]
  %vm5005 = vcmask 1047556
  %v5006 = vsel %vm5005, %v5004, %v5002
  %5007 = vrot.lane.b32.xlu0 %v5006, 16
  %v5008 = vpop.permute.xlu0 %5007
  %vm5009 = vcmask 261248
  %s5010 = scalar_lea.vmem %s1, 104
  %5011 = vst.msk [vmem:[%s5010] sm:$0xff] %vm5009, %v5008
  %s5012 = scalar_lea.vmem %s0, 1089
  %v5013 = vld [vmem:[%s5012] ss:$8 sm:$0xf]
  %s5014 = scalar_lea.vmem %s0, 1089
  %v5015 = vld [vmem:[%s5014] ss:$8 sm:$0xf0]
  %vm5016 = vcmask 1047556
  %v5017 = vsel %vm5016, %v5015, %v5013
  %5018 = vrot.lane.b32.xlu0 %v5017, 16
  %v5019 = vpop.permute.xlu0 %5018
  %vm5020 = vcmask 261248
  %s5021 = scalar_lea.vmem %s1, 136
  %5022 = vst.msk [vmem:[%s5021] sm:$0xff] %vm5020, %v5019
  %s5023 = scalar_lea.vmem %s0, 1345
  %v5024 = vld [vmem:[%s5023] ss:$8 sm:$0xf]
  %s5025 = scalar_lea.vmem %s0, 1345
  %v5026 = vld [vmem:[%s5025] ss:$8 sm:$0xf0]
  %vm5027 = vcmask 1047556
  %v5028 = vsel %vm5027, %v5026, %v5024
  %5029 = vrot.lane.b32.xlu0 %v5028, 16
  %v5030 = vpop.permute.xlu0 %5029
  %vm5031 = vcmask 261248
  %s5032 = scalar_lea.vmem %s1, 168
  %5033 = vst.msk [vmem:[%s5032] sm:$0xff] %vm5031, %v5030
  %s5034 = scalar_lea.vmem %s0, 1601
  %v5035 = vld [vmem:[%s5034] ss:$8 sm:$0xf]
  %s5036 = scalar_lea.vmem %s0, 1601
  %v5037 = vld [vmem:[%s5036] ss:$8 sm:$0xf0]
  %vm5038 = vcmask 1047556
  %v5039 = vsel %vm5038, %v5037, %v5035
  %5040 = vrot.lane.b32.xlu0 %v5039, 16
  %v5041 = vpop.permute.xlu0 %5040
  %vm5042 = vcmask 261248
  %s5043 = scalar_lea.vmem %s1, 200
  %5044 = vst.msk [vmem:[%s5043] sm:$0xff] %vm5042, %v5041
  %s5045 = scalar_lea.vmem %s0, 1857
  %v5046 = vld [vmem:[%s5045] ss:$8 sm:$0xf]
  %s5047 = scalar_lea.vmem %s0, 1857
  %v5048 = vld [vmem:[%s5047] ss:$8 sm:$0xf0]
  %vm5049 = vcmask 1047556
  %v5050 = vsel %vm5049, %v5048, %v5046
  %5051 = vrot.lane.b32.xlu0 %v5050, 16
  %v5052 = vpop.permute.xlu0 %5051
  %vm5053 = vcmask 261248
  %s5054 = scalar_lea.vmem %s1, 232
  %5055 = vst.msk [vmem:[%s5054] sm:$0xff] %vm5053, %v5052
  %s5056 = scalar_lea.vmem %s0, 2113
  %v5057 = vld [vmem:[%s5056] ss:$8 sm:$0xf]
  %s5058 = scalar_lea.vmem %s0, 2113
  %v5059 = vld [vmem:[%s5058] ss:$8 sm:$0xf0]
  %vm5060 = vcmask 1047556
  %v5061 = vsel %vm5060, %v5059, %v5057
  %5062 = vrot.lane.b32.xlu0 %v5061, 16
  %v5063 = vpop.permute.xlu0 %5062
  %vm5064 = vcmask 261248
  %s5065 = scalar_lea.vmem %s1, 264
  %5066 = vst.msk [vmem:[%s5065] sm:$0xff] %vm5064, %v5063
  %s5067 = scalar_lea.vmem %s0, 2369
  %v5068 = vld [vmem:[%s5067] ss:$8 sm:$0xf]
  %s5069 = scalar_lea.vmem %s0, 2369
  %v5070 = vld [vmem:[%s5069] ss:$8 sm:$0xf0]
  %vm5071 = vcmask 1047556
  %v5072 = vsel %vm5071, %v5070, %v5068
  %5073 = vrot.lane.b32.xlu0 %v5072, 16
  %v5074 = vpop.permute.xlu0 %5073
  %vm5075 = vcmask 261248
  %s5076 = scalar_lea.vmem %s1, 296
  %5077 = vst.msk [vmem:[%s5076] sm:$0xff] %vm5075, %v5074
  %s5078 = scalar_lea.vmem %s0, 2625
  %v5079 = vld [vmem:[%s5078] ss:$8 sm:$0xf]
  %s5080 = scalar_lea.vmem %s0, 2625
  %v5081 = vld [vmem:[%s5080] ss:$8 sm:$0xf0]
  %vm5082 = vcmask 1047556
  %v5083 = vsel %vm5082, %v5081, %v5079
  %5084 = vrot.lane.b32.xlu0 %v5083, 16
  %v5085 = vpop.permute.xlu0 %5084
  %vm5086 = vcmask 261248
  %s5087 = scalar_lea.vmem %s1, 328
  %5088 = vst.msk [vmem:[%s5087] sm:$0xff] %vm5086, %v5085
  %s5089 = scalar_lea.vmem %s0, 2881
  %v5090 = vld [vmem:[%s5089] ss:$8 sm:$0xf]
  %s5091 = scalar_lea.vmem %s0, 2881
  %v5092 = vld [vmem:[%s5091] ss:$8 sm:$0xf0]
  %vm5093 = vcmask 1047556
  %v5094 = vsel %vm5093, %v5092, %v5090
  %5095 = vrot.lane.b32.xlu0 %v5094, 16
  %v5096 = vpop.permute.xlu0 %5095
  %vm5097 = vcmask 261248
  %s5098 = scalar_lea.vmem %s1, 360
  %5099 = vst.msk [vmem:[%s5098] sm:$0xff] %vm5097, %v5096
  %s5100 = scalar_lea.vmem %s0, 3137
  %v5101 = vld [vmem:[%s5100] ss:$8 sm:$0xf]
  %s5102 = scalar_lea.vmem %s0, 3137
  %v5103 = vld [vmem:[%s5102] ss:$8 sm:$0xf0]
  %vm5104 = vcmask 1047556
  %v5105 = vsel %vm5104, %v5103, %v5101
  %5106 = vrot.lane.b32.xlu0 %v5105, 16
  %v5107 = vpop.permute.xlu0 %5106
  %vm5108 = vcmask 261248
  %s5109 = scalar_lea.vmem %s1, 392
  %5110 = vst.msk [vmem:[%s5109] sm:$0xff] %vm5108, %v5107
  %s5111 = scalar_lea.vmem %s0, 3393
  %v5112 = vld [vmem:[%s5111] ss:$8 sm:$0xf]
  %s5113 = scalar_lea.vmem %s0, 3393
  %v5114 = vld [vmem:[%s5113] ss:$8 sm:$0xf0]
  %vm5115 = vcmask 1047556
  %v5116 = vsel %vm5115, %v5114, %v5112
  %5117 = vrot.lane.b32.xlu0 %v5116, 16
  %v5118 = vpop.permute.xlu0 %5117
  %vm5119 = vcmask 261248
  %s5120 = scalar_lea.vmem %s1, 424
  %5121 = vst.msk [vmem:[%s5120] sm:$0xff] %vm5119, %v5118
  %s5122 = scalar_lea.vmem %s0, 3649
  %v5123 = vld [vmem:[%s5122] ss:$8 sm:$0xf]
  %s5124 = scalar_lea.vmem %s0, 3649
  %v5125 = vld [vmem:[%s5124] ss:$8 sm:$0xf0]
  %vm5126 = vcmask 1047556
  %v5127 = vsel %vm5126, %v5125, %v5123
  %5128 = vrot.lane.b32.xlu0 %v5127, 16
  %v5129 = vpop.permute.xlu0 %5128
  %vm5130 = vcmask 261248
  %s5131 = scalar_lea.vmem %s1, 456
  %5132 = vst.msk [vmem:[%s5131] sm:$0xff] %vm5130, %v5129
  %s5133 = scalar_lea.vmem %s0, 3905
  %v5134 = vld [vmem:[%s5133] ss:$8 sm:$0xf]
  %s5135 = scalar_lea.vmem %s0, 3905
  %v5136 = vld [vmem:[%s5135] ss:$8 sm:$0xf0]
  %vm5137 = vcmask 1047556
  %v5138 = vsel %vm5137, %v5136, %v5134
  %5139 = vrot.lane.b32.xlu0 %v5138, 16
  %v5140 = vpop.permute.xlu0 %5139
  %vm5141 = vcmask 261248
  %s5142 = scalar_lea.vmem %s1, 488
  %5143 = vst.msk [vmem:[%s5142] sm:$0xff] %vm5141, %v5140
  %s5144 = scalar_lea.vmem %s0, 129
  %v5145 = vld [vmem:[%s5144] ss:$8 sm:$0xf]
  %s5146 = scalar_lea.vmem %s0, 129
  %v5147 = vld [vmem:[%s5146] ss:$8 sm:$0xf0]
  %vm5148 = vcmask 1047556
  %v5149 = vsel %vm5148, %v5147, %v5145
  %5150 = vrot.lane.b32.xlu0 %v5149, 16
  %v5151 = vpop.permute.xlu0 %5150
  %vm5152 = vcmask 261248
  %s5153 = scalar_lea.vmem %s1, 16
  %5154 = vst.msk [vmem:[%s5153] sm:$0xff] %vm5152, %v5151
  %s5155 = scalar_lea.vmem %s0, 385
  %v5156 = vld [vmem:[%s5155] ss:$8 sm:$0xf]
  %s5157 = scalar_lea.vmem %s0, 385
  %v5158 = vld [vmem:[%s5157] ss:$8 sm:$0xf0]
  %vm5159 = vcmask 1047556
  %v5160 = vsel %vm5159, %v5158, %v5156
  %5161 = vrot.lane.b32.xlu0 %v5160, 16
  %v5162 = vpop.permute.xlu0 %5161
  %vm5163 = vcmask 261248
  %s5164 = scalar_lea.vmem %s1, 48
  %5165 = vst.msk [vmem:[%s5164] sm:$0xff] %vm5163, %v5162
  %s5166 = scalar_lea.vmem %s0, 641
  %v5167 = vld [vmem:[%s5166] ss:$8 sm:$0xf]
  %s5168 = scalar_lea.vmem %s0, 641
  %v5169 = vld [vmem:[%s5168] ss:$8 sm:$0xf0]
  %vm5170 = vcmask 1047556
  %v5171 = vsel %vm5170, %v5169, %v5167
  %5172 = vrot.lane.b32.xlu0 %v5171, 16
  %v5173 = vpop.permute.xlu0 %5172
  %vm5174 = vcmask 261248
  %s5175 = scalar_lea.vmem %s1, 80
  %5176 = vst.msk [vmem:[%s5175] sm:$0xff] %vm5174, %v5173
  %s5177 = scalar_lea.vmem %s0, 897
  %v5178 = vld [vmem:[%s5177] ss:$8 sm:$0xf]
  %s5179 = scalar_lea.vmem %s0, 897
  %v5180 = vld [vmem:[%s5179] ss:$8 sm:$0xf0]
  %vm5181 = vcmask 1047556
  %v5182 = vsel %vm5181, %v5180, %v5178
  %5183 = vrot.lane.b32.xlu0 %v5182, 16
  %v5184 = vpop.permute.xlu0 %5183
  %vm5185 = vcmask 261248
  %s5186 = scalar_lea.vmem %s1, 112
  %5187 = vst.msk [vmem:[%s5186] sm:$0xff] %vm5185, %v5184
  %s5188 = scalar_lea.vmem %s0, 1153
  %v5189 = vld [vmem:[%s5188] ss:$8 sm:$0xf]
  %s5190 = scalar_lea.vmem %s0, 1153
  %v5191 = vld [vmem:[%s5190] ss:$8 sm:$0xf0]
  %vm5192 = vcmask 1047556
  %v5193 = vsel %vm5192, %v5191, %v5189
  %5194 = vrot.lane.b32.xlu0 %v5193, 16
  %v5195 = vpop.permute.xlu0 %5194
  %vm5196 = vcmask 261248
  %s5197 = scalar_lea.vmem %s1, 144
  %5198 = vst.msk [vmem:[%s5197] sm:$0xff] %vm5196, %v5195
  %s5199 = scalar_lea.vmem %s0, 1409
  %v5200 = vld [vmem:[%s5199] ss:$8 sm:$0xf]
  %s5201 = scalar_lea.vmem %s0, 1409
  %v5202 = vld [vmem:[%s5201] ss:$8 sm:$0xf0]
  %vm5203 = vcmask 1047556
  %v5204 = vsel %vm5203, %v5202, %v5200
  %5205 = vrot.lane.b32.xlu0 %v5204, 16
  %v5206 = vpop.permute.xlu0 %5205
  %vm5207 = vcmask 261248
  %s5208 = scalar_lea.vmem %s1, 176
  %5209 = vst.msk [vmem:[%s5208] sm:$0xff] %vm5207, %v5206
  %s5210 = scalar_lea.vmem %s0, 1665
  %v5211 = vld [vmem:[%s5210] ss:$8 sm:$0xf]
  %s5212 = scalar_lea.vmem %s0, 1665
  %v5213 = vld [vmem:[%s5212] ss:$8 sm:$0xf0]
  %vm5214 = vcmask 1047556
  %v5215 = vsel %vm5214, %v5213, %v5211
  %5216 = vrot.lane.b32.xlu0 %v5215, 16
  %v5217 = vpop.permute.xlu0 %5216
  %vm5218 = vcmask 261248
  %s5219 = scalar_lea.vmem %s1, 208
  %5220 = vst.msk [vmem:[%s5219] sm:$0xff] %vm5218, %v5217
  %s5221 = scalar_lea.vmem %s0, 1921
  %v5222 = vld [vmem:[%s5221] ss:$8 sm:$0xf]
  %s5223 = scalar_lea.vmem %s0, 1921
  %v5224 = vld [vmem:[%s5223] ss:$8 sm:$0xf0]
  %vm5225 = vcmask 1047556
  %v5226 = vsel %vm5225, %v5224, %v5222
  %5227 = vrot.lane.b32.xlu0 %v5226, 16
  %v5228 = vpop.permute.xlu0 %5227
  %vm5229 = vcmask 261248
  %s5230 = scalar_lea.vmem %s1, 240
  %5231 = vst.msk [vmem:[%s5230] sm:$0xff] %vm5229, %v5228
  %s5232 = scalar_lea.vmem %s0, 2177
  %v5233 = vld [vmem:[%s5232] ss:$8 sm:$0xf]
  %s5234 = scalar_lea.vmem %s0, 2177
  %v5235 = vld [vmem:[%s5234] ss:$8 sm:$0xf0]
  %vm5236 = vcmask 1047556
  %v5237 = vsel %vm5236, %v5235, %v5233
  %5238 = vrot.lane.b32.xlu0 %v5237, 16
  %v5239 = vpop.permute.xlu0 %5238
  %vm5240 = vcmask 261248
  %s5241 = scalar_lea.vmem %s1, 272
  %5242 = vst.msk [vmem:[%s5241] sm:$0xff] %vm5240, %v5239
  %s5243 = scalar_lea.vmem %s0, 2433
  %v5244 = vld [vmem:[%s5243] ss:$8 sm:$0xf]
  %s5245 = scalar_lea.vmem %s0, 2433
  %v5246 = vld [vmem:[%s5245] ss:$8 sm:$0xf0]
  %vm5247 = vcmask 1047556
  %v5248 = vsel %vm5247, %v5246, %v5244
  %5249 = vrot.lane.b32.xlu0 %v5248, 16
  %v5250 = vpop.permute.xlu0 %5249
  %vm5251 = vcmask 261248
  %s5252 = scalar_lea.vmem %s1, 304
  %5253 = vst.msk [vmem:[%s5252] sm:$0xff] %vm5251, %v5250
  %s5254 = scalar_lea.vmem %s0, 2689
  %v5255 = vld [vmem:[%s5254] ss:$8 sm:$0xf]
  %s5256 = scalar_lea.vmem %s0, 2689
  %v5257 = vld [vmem:[%s5256] ss:$8 sm:$0xf0]
  %vm5258 = vcmask 1047556
  %v5259 = vsel %vm5258, %v5257, %v5255
  %5260 = vrot.lane.b32.xlu0 %v5259, 16
  %v5261 = vpop.permute.xlu0 %5260
  %vm5262 = vcmask 261248
  %s5263 = scalar_lea.vmem %s1, 336
  %5264 = vst.msk [vmem:[%s5263] sm:$0xff] %vm5262, %v5261
  %s5265 = scalar_lea.vmem %s0, 2945
  %v5266 = vld [vmem:[%s5265] ss:$8 sm:$0xf]
  %s5267 = scalar_lea.vmem %s0, 2945
  %v5268 = vld [vmem:[%s5267] ss:$8 sm:$0xf0]
  %vm5269 = vcmask 1047556
  %v5270 = vsel %vm5269, %v5268, %v5266
  %5271 = vrot.lane.b32.xlu0 %v5270, 16
  %v5272 = vpop.permute.xlu0 %5271
  %vm5273 = vcmask 261248
  %s5274 = scalar_lea.vmem %s1, 368
  %5275 = vst.msk [vmem:[%s5274] sm:$0xff] %vm5273, %v5272
  %s5276 = scalar_lea.vmem %s0, 3201
  %v5277 = vld [vmem:[%s5276] ss:$8 sm:$0xf]
  %s5278 = scalar_lea.vmem %s0, 3201
  %v5279 = vld [vmem:[%s5278] ss:$8 sm:$0xf0]
  %vm5280 = vcmask 1047556
  %v5281 = vsel %vm5280, %v5279, %v5277
  %5282 = vrot.lane.b32.xlu0 %v5281, 16
  %v5283 = vpop.permute.xlu0 %5282
  %vm5284 = vcmask 261248
  %s5285 = scalar_lea.vmem %s1, 400
  %5286 = vst.msk [vmem:[%s5285] sm:$0xff] %vm5284, %v5283
  %s5287 = scalar_lea.vmem %s0, 3457
  %v5288 = vld [vmem:[%s5287] ss:$8 sm:$0xf]
  %s5289 = scalar_lea.vmem %s0, 3457
  %v5290 = vld [vmem:[%s5289] ss:$8 sm:$0xf0]
  %vm5291 = vcmask 1047556
  %v5292 = vsel %vm5291, %v5290, %v5288
  %5293 = vrot.lane.b32.xlu0 %v5292, 16
  %v5294 = vpop.permute.xlu0 %5293
  %vm5295 = vcmask 261248
  %s5296 = scalar_lea.vmem %s1, 432
  %5297 = vst.msk [vmem:[%s5296] sm:$0xff] %vm5295, %v5294
  %s5298 = scalar_lea.vmem %s0, 3713
  %v5299 = vld [vmem:[%s5298] ss:$8 sm:$0xf]
  %s5300 = scalar_lea.vmem %s0, 3713
  %v5301 = vld [vmem:[%s5300] ss:$8 sm:$0xf0]
  %vm5302 = vcmask 1047556
  %v5303 = vsel %vm5302, %v5301, %v5299
  %5304 = vrot.lane.b32.xlu0 %v5303, 16
  %v5305 = vpop.permute.xlu0 %5304
  %vm5306 = vcmask 261248
  %s5307 = scalar_lea.vmem %s1, 464
  %5308 = vst.msk [vmem:[%s5307] sm:$0xff] %vm5306, %v5305
  %s5309 = scalar_lea.vmem %s0, 3969
  %v5310 = vld [vmem:[%s5309] ss:$8 sm:$0xf]
  %s5311 = scalar_lea.vmem %s0, 3969
  %v5312 = vld [vmem:[%s5311] ss:$8 sm:$0xf0]
  %vm5313 = vcmask 1047556
  %v5314 = vsel %vm5313, %v5312, %v5310
  %5315 = vrot.lane.b32.xlu0 %v5314, 16
  %v5316 = vpop.permute.xlu0 %5315
  %vm5317 = vcmask 261248
  %s5318 = scalar_lea.vmem %s1, 496
  %5319 = vst.msk [vmem:[%s5318] sm:$0xff] %vm5317, %v5316
  %s5320 = scalar_lea.vmem %s0, 193
  %v5321 = vld [vmem:[%s5320] ss:$8 sm:$0xf]
  %s5322 = scalar_lea.vmem %s0, 193
  %v5323 = vld [vmem:[%s5322] ss:$8 sm:$0xf0]
  %vm5324 = vcmask 1047556
  %v5325 = vsel %vm5324, %v5323, %v5321
  %5326 = vrot.lane.b32.xlu0 %v5325, 16
  %v5327 = vpop.permute.xlu0 %5326
  %vm5328 = vcmask 261248
  %s5329 = scalar_lea.vmem %s1, 24
  %5330 = vst.msk [vmem:[%s5329] sm:$0xff] %vm5328, %v5327
  %s5331 = scalar_lea.vmem %s0, 449
  %v5332 = vld [vmem:[%s5331] ss:$8 sm:$0xf]
  %s5333 = scalar_lea.vmem %s0, 449
  %v5334 = vld [vmem:[%s5333] ss:$8 sm:$0xf0]
  %vm5335 = vcmask 1047556
  %v5336 = vsel %vm5335, %v5334, %v5332
  %5337 = vrot.lane.b32.xlu0 %v5336, 16
  %v5338 = vpop.permute.xlu0 %5337
  %vm5339 = vcmask 261248
  %s5340 = scalar_lea.vmem %s1, 56
  %5341 = vst.msk [vmem:[%s5340] sm:$0xff] %vm5339, %v5338
  %s5342 = scalar_lea.vmem %s0, 705
  %v5343 = vld [vmem:[%s5342] ss:$8 sm:$0xf]
  %s5344 = scalar_lea.vmem %s0, 705
  %v5345 = vld [vmem:[%s5344] ss:$8 sm:$0xf0]
  %vm5346 = vcmask 1047556
  %v5347 = vsel %vm5346, %v5345, %v5343
  %5348 = vrot.lane.b32.xlu0 %v5347, 16
  %v5349 = vpop.permute.xlu0 %5348
  %vm5350 = vcmask 261248
  %s5351 = scalar_lea.vmem %s1, 88
  %5352 = vst.msk [vmem:[%s5351] sm:$0xff] %vm5350, %v5349
  %s5353 = scalar_lea.vmem %s0, 961
  %v5354 = vld [vmem:[%s5353] ss:$8 sm:$0xf]
  %s5355 = scalar_lea.vmem %s0, 961
  %v5356 = vld [vmem:[%s5355] ss:$8 sm:$0xf0]
  %vm5357 = vcmask 1047556
  %v5358 = vsel %vm5357, %v5356, %v5354
  %5359 = vrot.lane.b32.xlu0 %v5358, 16
  %v5360 = vpop.permute.xlu0 %5359
  %vm5361 = vcmask 261248
  %s5362 = scalar_lea.vmem %s1, 120
  %5363 = vst.msk [vmem:[%s5362] sm:$0xff] %vm5361, %v5360
  %s5364 = scalar_lea.vmem %s0, 1217
  %v5365 = vld [vmem:[%s5364] ss:$8 sm:$0xf]
  %s5366 = scalar_lea.vmem %s0, 1217
  %v5367 = vld [vmem:[%s5366] ss:$8 sm:$0xf0]
  %vm5368 = vcmask 1047556
  %v5369 = vsel %vm5368, %v5367, %v5365
  %5370 = vrot.lane.b32.xlu0 %v5369, 16
  %v5371 = vpop.permute.xlu0 %5370
  %vm5372 = vcmask 261248
  %s5373 = scalar_lea.vmem %s1, 152
  %5374 = vst.msk [vmem:[%s5373] sm:$0xff] %vm5372, %v5371
  %s5375 = scalar_lea.vmem %s0, 1473
  %v5376 = vld [vmem:[%s5375] ss:$8 sm:$0xf]
  %s5377 = scalar_lea.vmem %s0, 1473
  %v5378 = vld [vmem:[%s5377] ss:$8 sm:$0xf0]
  %vm5379 = vcmask 1047556
  %v5380 = vsel %vm5379, %v5378, %v5376
  %5381 = vrot.lane.b32.xlu0 %v5380, 16
  %v5382 = vpop.permute.xlu0 %5381
  %vm5383 = vcmask 261248
  %s5384 = scalar_lea.vmem %s1, 184
  %5385 = vst.msk [vmem:[%s5384] sm:$0xff] %vm5383, %v5382
  %s5386 = scalar_lea.vmem %s0, 1729
  %v5387 = vld [vmem:[%s5386] ss:$8 sm:$0xf]
  %s5388 = scalar_lea.vmem %s0, 1729
  %v5389 = vld [vmem:[%s5388] ss:$8 sm:$0xf0]
  %vm5390 = vcmask 1047556
  %v5391 = vsel %vm5390, %v5389, %v5387
  %5392 = vrot.lane.b32.xlu0 %v5391, 16
  %v5393 = vpop.permute.xlu0 %5392
  %vm5394 = vcmask 261248
  %s5395 = scalar_lea.vmem %s1, 216
  %5396 = vst.msk [vmem:[%s5395] sm:$0xff] %vm5394, %v5393
  %s5397 = scalar_lea.vmem %s0, 1985
  %v5398 = vld [vmem:[%s5397] ss:$8 sm:$0xf]
  %s5399 = scalar_lea.vmem %s0, 1985
  %v5400 = vld [vmem:[%s5399] ss:$8 sm:$0xf0]
  %vm5401 = vcmask 1047556
  %v5402 = vsel %vm5401, %v5400, %v5398
  %5403 = vrot.lane.b32.xlu0 %v5402, 16
  %v5404 = vpop.permute.xlu0 %5403
  %vm5405 = vcmask 261248
  %s5406 = scalar_lea.vmem %s1, 248
  %5407 = vst.msk [vmem:[%s5406] sm:$0xff] %vm5405, %v5404
  %s5408 = scalar_lea.vmem %s0, 2241
  %v5409 = vld [vmem:[%s5408] ss:$8 sm:$0xf]
  %s5410 = scalar_lea.vmem %s0, 2241
  %v5411 = vld [vmem:[%s5410] ss:$8 sm:$0xf0]
  %vm5412 = vcmask 1047556
  %v5413 = vsel %vm5412, %v5411, %v5409
  %5414 = vrot.lane.b32.xlu0 %v5413, 16
  %v5415 = vpop.permute.xlu0 %5414
  %vm5416 = vcmask 261248
  %s5417 = scalar_lea.vmem %s1, 280
  %5418 = vst.msk [vmem:[%s5417] sm:$0xff] %vm5416, %v5415
  %s5419 = scalar_lea.vmem %s0, 2497
  %v5420 = vld [vmem:[%s5419] ss:$8 sm:$0xf]
  %s5421 = scalar_lea.vmem %s0, 2497
  %v5422 = vld [vmem:[%s5421] ss:$8 sm:$0xf0]
  %vm5423 = vcmask 1047556
  %v5424 = vsel %vm5423, %v5422, %v5420
  %5425 = vrot.lane.b32.xlu0 %v5424, 16
  %v5426 = vpop.permute.xlu0 %5425
  %vm5427 = vcmask 261248
  %s5428 = scalar_lea.vmem %s1, 312
  %5429 = vst.msk [vmem:[%s5428] sm:$0xff] %vm5427, %v5426
  %s5430 = scalar_lea.vmem %s0, 2753
  %v5431 = vld [vmem:[%s5430] ss:$8 sm:$0xf]
  %s5432 = scalar_lea.vmem %s0, 2753
  %v5433 = vld [vmem:[%s5432] ss:$8 sm:$0xf0]
  %vm5434 = vcmask 1047556
  %v5435 = vsel %vm5434, %v5433, %v5431
  %5436 = vrot.lane.b32.xlu0 %v5435, 16
  %v5437 = vpop.permute.xlu0 %5436
  %vm5438 = vcmask 261248
  %s5439 = scalar_lea.vmem %s1, 344
  %5440 = vst.msk [vmem:[%s5439] sm:$0xff] %vm5438, %v5437
  %s5441 = scalar_lea.vmem %s0, 3009
  %v5442 = vld [vmem:[%s5441] ss:$8 sm:$0xf]
  %s5443 = scalar_lea.vmem %s0, 3009
  %v5444 = vld [vmem:[%s5443] ss:$8 sm:$0xf0]
  %vm5445 = vcmask 1047556
  %v5446 = vsel %vm5445, %v5444, %v5442
  %5447 = vrot.lane.b32.xlu0 %v5446, 16
  %v5448 = vpop.permute.xlu0 %5447
  %vm5449 = vcmask 261248
  %s5450 = scalar_lea.vmem %s1, 376
  %5451 = vst.msk [vmem:[%s5450] sm:$0xff] %vm5449, %v5448
  %s5452 = scalar_lea.vmem %s0, 3265
  %v5453 = vld [vmem:[%s5452] ss:$8 sm:$0xf]
  %s5454 = scalar_lea.vmem %s0, 3265
  %v5455 = vld [vmem:[%s5454] ss:$8 sm:$0xf0]
  %vm5456 = vcmask 1047556
  %v5457 = vsel %vm5456, %v5455, %v5453
  %5458 = vrot.lane.b32.xlu0 %v5457, 16
  %v5459 = vpop.permute.xlu0 %5458
  %vm5460 = vcmask 261248
  %s5461 = scalar_lea.vmem %s1, 408
  %5462 = vst.msk [vmem:[%s5461] sm:$0xff] %vm5460, %v5459
  %s5463 = scalar_lea.vmem %s0, 3521
  %v5464 = vld [vmem:[%s5463] ss:$8 sm:$0xf]
  %s5465 = scalar_lea.vmem %s0, 3521
  %v5466 = vld [vmem:[%s5465] ss:$8 sm:$0xf0]
  %vm5467 = vcmask 1047556
  %v5468 = vsel %vm5467, %v5466, %v5464
  %5469 = vrot.lane.b32.xlu0 %v5468, 16
  %v5470 = vpop.permute.xlu0 %5469
  %vm5471 = vcmask 261248
  %s5472 = scalar_lea.vmem %s1, 440
  %5473 = vst.msk [vmem:[%s5472] sm:$0xff] %vm5471, %v5470
  %s5474 = scalar_lea.vmem %s0, 3777
  %v5475 = vld [vmem:[%s5474] ss:$8 sm:$0xf]
  %s5476 = scalar_lea.vmem %s0, 3777
  %v5477 = vld [vmem:[%s5476] ss:$8 sm:$0xf0]
  %vm5478 = vcmask 1047556
  %v5479 = vsel %vm5478, %v5477, %v5475
  %5480 = vrot.lane.b32.xlu0 %v5479, 16
  %v5481 = vpop.permute.xlu0 %5480
  %vm5482 = vcmask 261248
  %s5483 = scalar_lea.vmem %s1, 472
  %5484 = vst.msk [vmem:[%s5483] sm:$0xff] %vm5482, %v5481
  %s5485 = scalar_lea.vmem %s0, 4033
  %v5486 = vld [vmem:[%s5485] ss:$8 sm:$0xf]
  %s5487 = scalar_lea.vmem %s0, 4033
  %v5488 = vld [vmem:[%s5487] ss:$8 sm:$0xf0]
  %vm5489 = vcmask 1047556
  %v5490 = vsel %vm5489, %v5488, %v5486
  %5491 = vrot.lane.b32.xlu0 %v5490, 16
  %v5492 = vpop.permute.xlu0 %5491
  %vm5493 = vcmask 261248
  %s5494 = scalar_lea.vmem %s1, 504
  %5495 = vst.msk [vmem:[%s5494] sm:$0xff] %vm5493, %v5492

// kernel: so3_conv_forward.1
$region0: #{so3_conv_forward.1}
  #allocation0 [shape = 'u32[]', space=smem, size = 0x4, offset = 0x4, fixed_abs, tag = 'smem constant byte address 0x4 - core index']
  #allocation1 [shape = 'u32[144,128]{1,0:T(1,128)}', space=vmem, size = 0x12000, scoped, tag = 'internal scratch']
  %s0 = inlined_call_operand.vmem [shape: f32[32,512], index: 0, kind: input, shape index: {}]
  %s1 = inlined_call_operand.vmem [shape: f32[512,1024], index: 1, kind: input, shape index: {}]
  %s2 = inlined_call_operand.vmem [shape: f32[32,1024], index: 2, kind: output, shape index: {}]
  %s3 = sld [smem:[#allocation0]]
  $region18: #{so3_conv_forward.1} parent=0
    _
  %s5 = ssub.s32 1, %s3
  %s6 = scalar_select 0, %s5, %s3
  // Predicated region
  $region2: #{so3_conv_forward.1} parent=0 // pred_check
    _
  $region3: #{so3_conv_forward.1} parent=0 // pred_check_branch
    %8 = sbr.rel (0) target = $region5
  $region4: #{so3_conv_forward.1} parent=0 // pred_region
    _
  $region5: #{so3_conv_forward.1} parent=0 // pred_fallthru
    _
  // Predicated region
  $region6: #{so3_conv_forward.1} parent=0 // pred_check
    _
  $region7: #{so3_conv_forward.1} parent=0 // pred_check_branch
    %10 = sbr.rel (0) target = $region9
  $region8: #{so3_conv_forward.1} parent=0 // pred_region
    _
  $region9: #{so3_conv_forward.1} parent=0 // pred_fallthru
    _
  %v11 = vld [vmem:[%s0] sm:$0xff]
  %v12 = vld [vmem:[%s0 + $0x8] sm:$0xff]
  %v13 = vld [vmem:[%s0 + $0x10] sm:$0xff]
  %v14 = vld [vmem:[%s0 + $0x18] sm:$0xff]
  %v15 = vld [vmem:[%s0 + $0x20] sm:$0xff]
  %v16 = vld [vmem:[%s0 + $0x28] sm:$0xff]
  %v17 = vld [vmem:[%s0 + $0x30] sm:$0xff]
  %v18 = vld [vmem:[%s0 + $0x38] sm:$0xff]
  %v19 = vld [vmem:[%s0 + $0x40] sm:$0xff]
  %v20 = vld [vmem:[%s0 + $0x48] sm:$0xff]
  %v21 = vld [vmem:[%s0 + $0x50] sm:$0xff]
  %v22 = vld [vmem:[%s0 + $0x58] sm:$0xff]
  %v23 = vld [vmem:[%s0 + $0x60] sm:$0xff]
  %v24 = vld [vmem:[%s0 + $0x68] sm:$0xff]
  %v25 = vld [vmem:[%s0 + $0x70] sm:$0xff]
  %v26 = vld [vmem:[%s0 + $0x78] sm:$0xff]
  %v27 = vld [vmem:[%s1] sm:$0xff]
  %v28 = vld [vmem:[%s1 + $0x8] sm:$0xff]
  %v29 = vld [vmem:[%s1 + $0x10] sm:$0xff]
  %v30 = vld [vmem:[%s1 + $0x18] sm:$0xff]
  %v31 = vld [vmem:[%s1 + $0x20] sm:$0xff]
  %v32 = vld [vmem:[%s1 + $0x28] sm:$0xff]
  %v33 = vld [vmem:[%s1 + $0x30] sm:$0xff]
  %v34 = vld [vmem:[%s1 + $0x38] sm:$0xff]
  %v35 = vld [vmem:[%s1 + $0x40] sm:$0xff]
  %v36 = vld [vmem:[%s1 + $0x48] sm:$0xff]
  %v37 = vld [vmem:[%s1 + $0x50] sm:$0xff]
  %v38 = vld [vmem:[%s1 + $0x58] sm:$0xff]
  %v39 = vld [vmem:[%s1 + $0x60] sm:$0xff]
  %v40 = vld [vmem:[%s1 + $0x68] sm:$0xff]
  %v41 = vld [vmem:[%s1 + $0x70] sm:$0xff]
  %v42 = vld [vmem:[%s1 + $0x78] sm:$0xff]
  %v43 = vld [vmem:[%s1 + $0x80] sm:$0xff]
  %v44 = vld [vmem:[%s1 + $0x88] sm:$0xff]
  %v45 = vld [vmem:[%s1 + $0x90] sm:$0xff]
  %v46 = vld [vmem:[%s1 + $0x98] sm:$0xff]
  %v47 = vld [vmem:[%s1 + $0xa0] sm:$0xff]
  %v48 = vld [vmem:[%s1 + $0xa8] sm:$0xff]
  %v49 = vld [vmem:[%s1 + $0xb0] sm:$0xff]
  %v50 = vld [vmem:[%s1 + $0xb8] sm:$0xff]
  %v51 = vld [vmem:[%s1 + $0xc0] sm:$0xff]
  %v52 = vld [vmem:[%s1 + $0xc8] sm:$0xff]
  %v53 = vld [vmem:[%s1 + $0xd0] sm:$0xff]
  %v54 = vld [vmem:[%s1 + $0xd8] sm:$0xff]
  %v55 = vld [vmem:[%s1 + $0xe0] sm:$0xff]
  %v56 = vld [vmem:[%s1 + $0xe8] sm:$0xff]
  %v57 = vld [vmem:[%s1 + $0xf0] sm:$0xff]
  %v58 = vld [vmem:[%s1 + $0xf8] sm:$0xff]
  %v59 = vld [vmem:[%s1 + $0x100] sm:$0xff]
  %v60 = vld [vmem:[%s1 + $0x108] sm:$0xff]
  %v61 = vld [vmem:[%s1 + $0x110] sm:$0xff]
  %v62 = vld [vmem:[%s1 + $0x118] sm:$0xff]
  %v63 = vld [vmem:[%s1 + $0x120] sm:$0xff]
  %v64 = vld [vmem:[%s1 + $0x128] sm:$0xff]
  %v65 = vld [vmem:[%s1 + $0x130] sm:$0xff]
  %v66 = vld [vmem:[%s1 + $0x138] sm:$0xff]
  %v67 = vld [vmem:[%s1 + $0x140] sm:$0xff]
  %v68 = vld [vmem:[%s1 + $0x148] sm:$0xff]
  %v69 = vld [vmem:[%s1 + $0x150] sm:$0xff]
  %v70 = vld [vmem:[%s1 + $0x158] sm:$0xff]
  %v71 = vld [vmem:[%s1 + $0x160] sm:$0xff]
  %v72 = vld [vmem:[%s1 + $0x168] sm:$0xff]
  %v73 = vld [vmem:[%s1 + $0x170] sm:$0xff]
  %v74 = vld [vmem:[%s1 + $0x178] sm:$0xff]
  %v75 = vld [vmem:[%s1 + $0x180] sm:$0xff]
  %v76 = vld [vmem:[%s1 + $0x188] sm:$0xff]
  %v77 = vld [vmem:[%s1 + $0x190] sm:$0xff]
  %v78 = vld [vmem:[%s1 + $0x198] sm:$0xff]
  %v79 = vld [vmem:[%s1 + $0x1a0] sm:$0xff]
  %v80 = vld [vmem:[%s1 + $0x1a8] sm:$0xff]
  %v81 = vld [vmem:[%s1 + $0x1b0] sm:$0xff]
  %v82 = vld [vmem:[%s1 + $0x1b8] sm:$0xff]
  %v83 = vld [vmem:[%s1 + $0x1c0] sm:$0xff]
  %v84 = vld [vmem:[%s1 + $0x1c8] sm:$0xff]
  %v85 = vld [vmem:[%s1 + $0x1d0] sm:$0xff]
  %v86 = vld [vmem:[%s1 + $0x1d8] sm:$0xff]
  %v87 = vld [vmem:[%s1 + $0x1e0] sm:$0xff]
  %v88 = vld [vmem:[%s1 + $0x1e8] sm:$0xff]
  %v89 = vld [vmem:[%s1 + $0x1f0] sm:$0xff]
  %v90 = vld [vmem:[%s1 + $0x1f8] sm:$0xff]
  %v91 = vld [vmem:[%s1 + $0x200] sm:$0xff]
  %v92 = vld [vmem:[%s1 + $0x208] sm:$0xff]
  %v93 = vld [vmem:[%s1 + $0x210] sm:$0xff]
  %v94 = vld [vmem:[%s1 + $0x218] sm:$0xff]
  %v95 = vld [vmem:[%s1 + $0x220] sm:$0xff]
  %v96 = vld [vmem:[%s1 + $0x228] sm:$0xff]
  %v97 = vld [vmem:[%s1 + $0x230] sm:$0xff]
  %v98 = vld [vmem:[%s1 + $0x238] sm:$0xff]
  %v99 = vld [vmem:[%s1 + $0x240] sm:$0xff]
  %v100 = vld [vmem:[%s1 + $0x248] sm:$0xff]
  %v101 = vld [vmem:[%s1 + $0x250] sm:$0xff]
  %v102 = vld [vmem:[%s1 + $0x258] sm:$0xff]
  %v103 = vld [vmem:[%s1 + $0x260] sm:$0xff]
  %v104 = vld [vmem:[%s1 + $0x268] sm:$0xff]
  %v105 = vld [vmem:[%s1 + $0x270] sm:$0xff]
  %v106 = vld [vmem:[%s1 + $0x278] sm:$0xff]
  %v107 = vld [vmem:[%s1 + $0x280] sm:$0xff]
  %v108 = vld [vmem:[%s1 + $0x288] sm:$0xff]
  %v109 = vld [vmem:[%s1 + $0x290] sm:$0xff]
  %v110 = vld [vmem:[%s1 + $0x298] sm:$0xff]
  %v111 = vld [vmem:[%s1 + $0x2a0] sm:$0xff]
  %v112 = vld [vmem:[%s1 + $0x2a8] sm:$0xff]
  %v113 = vld [vmem:[%s1 + $0x2b0] sm:$0xff]
  %v114 = vld [vmem:[%s1 + $0x2b8] sm:$0xff]
  %v115 = vld [vmem:[%s1 + $0x2c0] sm:$0xff]
  %v116 = vld [vmem:[%s1 + $0x2c8] sm:$0xff]
  %v117 = vld [vmem:[%s1 + $0x2d0] sm:$0xff]
  %v118 = vld [vmem:[%s1 + $0x2d8] sm:$0xff]
  %v119 = vld [vmem:[%s1 + $0x2e0] sm:$0xff]
  %v120 = vld [vmem:[%s1 + $0x2e8] sm:$0xff]
  %v121 = vld [vmem:[%s1 + $0x2f0] sm:$0xff]
  %v122 = vld [vmem:[%s1 + $0x2f8] sm:$0xff]
  %v123 = vld [vmem:[%s1 + $0x300] sm:$0xff]
  %v124 = vld [vmem:[%s1 + $0x308] sm:$0xff]
  %v125 = vld [vmem:[%s1 + $0x310] sm:$0xff]
  %v126 = vld [vmem:[%s1 + $0x318] sm:$0xff]
  %v127 = vld [vmem:[%s1 + $0x320] sm:$0xff]
  %v128 = vld [vmem:[%s1 + $0x328] sm:$0xff]
  %v129 = vld [vmem:[%s1 + $0x330] sm:$0xff]
  %v130 = vld [vmem:[%s1 + $0x338] sm:$0xff]
  %v131 = vld [vmem:[%s1 + $0x340] sm:$0xff]
  %v132 = vld [vmem:[%s1 + $0x348] sm:$0xff]
  %v133 = vld [vmem:[%s1 + $0x350] sm:$0xff]
  %v134 = vld [vmem:[%s1 + $0x358] sm:$0xff]
  %v135 = vld [vmem:[%s1 + $0x360] sm:$0xff]
  %v136 = vld [vmem:[%s1 + $0x368] sm:$0xff]
  %v137 = vld [vmem:[%s1 + $0x370] sm:$0xff]
  %v138 = vld [vmem:[%s1 + $0x378] sm:$0xff]
  %v139 = vld [vmem:[%s1 + $0x380] sm:$0xff]
  %v140 = vld [vmem:[%s1 + $0x388] sm:$0xff]
  %v141 = vld [vmem:[%s1 + $0x390] sm:$0xff]
  %v142 = vld [vmem:[%s1 + $0x398] sm:$0xff]
  %v143 = vld [vmem:[%s1 + $0x3a0] sm:$0xff]
  %v144 = vld [vmem:[%s1 + $0x3a8] sm:$0xff]
  %v145 = vld [vmem:[%s1 + $0x3b0] sm:$0xff]
  %v146 = vld [vmem:[%s1 + $0x3b8] sm:$0xff]
  %v147 = vld [vmem:[%s1 + $0x3c0] sm:$0xff]
  %v148 = vld [vmem:[%s1 + $0x3c8] sm:$0xff]
  %v149 = vld [vmem:[%s1 + $0x3d0] sm:$0xff]
  %v150 = vld [vmem:[%s1 + $0x3d8] sm:$0xff]
  %v151 = vld [vmem:[%s1 + $0x3e0] sm:$0xff]
  %v152 = vld [vmem:[%s1 + $0x3e8] sm:$0xff]
  %v153 = vld [vmem:[%s1 + $0x3f0] sm:$0xff]
  %v154 = vld [vmem:[%s1 + $0x3f8] sm:$0xff]
  %v155 = vld [vmem:[%s1 + $0x400] sm:$0xff]
  %v156 = vld [vmem:[%s1 + $0x408] sm:$0xff]
  %v157 = vld [vmem:[%s1 + $0x410] sm:$0xff]
  %v158 = vld [vmem:[%s1 + $0x418] sm:$0xff]
  %v159 = vld [vmem:[%s1 + $0x420] sm:$0xff]
  %v160 = vld [vmem:[%s1 + $0x428] sm:$0xff]
  %v161 = vld [vmem:[%s1 + $0x430] sm:$0xff]
  %v162 = vld [vmem:[%s1 + $0x438] sm:$0xff]
  %v163 = vld [vmem:[%s1 + $0x440] sm:$0xff]
  %v164 = vld [vmem:[%s1 + $0x448] sm:$0xff]
  %v165 = vld [vmem:[%s1 + $0x450] sm:$0xff]
  %v166 = vld [vmem:[%s1 + $0x458] sm:$0xff]
  %v167 = vld [vmem:[%s1 + $0x460] sm:$0xff]
  %v168 = vld [vmem:[%s1 + $0x468] sm:$0xff]
  %v169 = vld [vmem:[%s1 + $0x470] sm:$0xff]
  %v170 = vld [vmem:[%s1 + $0x478] sm:$0xff]
  %v171 = vld [vmem:[%s1 + $0x480] sm:$0xff]
  %v172 = vld [vmem:[%s1 + $0x488] sm:$0xff]
  %v173 = vld [vmem:[%s1 + $0x490] sm:$0xff]
  %v174 = vld [vmem:[%s1 + $0x498] sm:$0xff]
  %v175 = vld [vmem:[%s1 + $0x4a0] sm:$0xff]
  %v176 = vld [vmem:[%s1 + $0x4a8] sm:$0xff]
  %v177 = vld [vmem:[%s1 + $0x4b0] sm:$0xff]
  %v178 = vld [vmem:[%s1 + $0x4b8] sm:$0xff]
  %v179 = vld [vmem:[%s1 + $0x4c0] sm:$0xff]
  %v180 = vld [vmem:[%s1 + $0x4c8] sm:$0xff]
  %v181 = vld [vmem:[%s1 + $0x4d0] sm:$0xff]
  %v182 = vld [vmem:[%s1 + $0x4d8] sm:$0xff]
  %v183 = vld [vmem:[%s1 + $0x4e0] sm:$0xff]
  %v184 = vld [vmem:[%s1 + $0x4e8] sm:$0xff]
  %v185 = vld [vmem:[%s1 + $0x4f0] sm:$0xff]
  %v186 = vld [vmem:[%s1 + $0x4f8] sm:$0xff]
  %v187 = vld [vmem:[%s1 + $0x500] sm:$0xff]
  %v188 = vld [vmem:[%s1 + $0x508] sm:$0xff]
  %v189 = vld [vmem:[%s1 + $0x510] sm:$0xff]
  %v190 = vld [vmem:[%s1 + $0x518] sm:$0xff]
  %v191 = vld [vmem:[%s1 + $0x520] sm:$0xff]
  %v192 = vld [vmem:[%s1 + $0x528] sm:$0xff]
  %v193 = vld [vmem:[%s1 + $0x530] sm:$0xff]
  %v194 = vld [vmem:[%s1 + $0x538] sm:$0xff]
  %v195 = vld [vmem:[%s1 + $0x540] sm:$0xff]
  %v196 = vld [vmem:[%s1 + $0x548] sm:$0xff]
  %v197 = vld [vmem:[%s1 + $0x550] sm:$0xff]
  %v198 = vld [vmem:[%s1 + $0x558] sm:$0xff]
  %v199 = vld [vmem:[%s1 + $0x560] sm:$0xff]
  %v200 = vld [vmem:[%s1 + $0x568] sm:$0xff]
  %v201 = vld [vmem:[%s1 + $0x570] sm:$0xff]
  %v202 = vld [vmem:[%s1 + $0x578] sm:$0xff]
  %v203 = vld [vmem:[%s1 + $0x580] sm:$0xff]
  %v204 = vld [vmem:[%s1 + $0x588] sm:$0xff]
  %v205 = vld [vmem:[%s1 + $0x590] sm:$0xff]
  %v206 = vld [vmem:[%s1 + $0x598] sm:$0xff]
  %v207 = vld [vmem:[%s1 + $0x5a0] sm:$0xff]
  %v208 = vld [vmem:[%s1 + $0x5a8] sm:$0xff]
  %v209 = vld [vmem:[%s1 + $0x5b0] sm:$0xff]
  %v210 = vld [vmem:[%s1 + $0x5b8] sm:$0xff]
  %v211 = vld [vmem:[%s1 + $0x5c0] sm:$0xff]
  %v212 = vld [vmem:[%s1 + $0x5c8] sm:$0xff]
  %v213 = vld [vmem:[%s1 + $0x5d0] sm:$0xff]
  %v214 = vld [vmem:[%s1 + $0x5d8] sm:$0xff]
  %v215 = vld [vmem:[%s1 + $0x5e0] sm:$0xff]
  %v216 = vld [vmem:[%s1 + $0x5e8] sm:$0xff]
  %v217 = vld [vmem:[%s1 + $0x5f0] sm:$0xff]
  %v218 = vld [vmem:[%s1 + $0x5f8] sm:$0xff]
  %v219 = vld [vmem:[%s1 + $0x600] sm:$0xff]
  %v220 = vld [vmem:[%s1 + $0x608] sm:$0xff]
  %v221 = vld [vmem:[%s1 + $0x610] sm:$0xff]
  %v222 = vld [vmem:[%s1 + $0x618] sm:$0xff]
  %v223 = vld [vmem:[%s1 + $0x620] sm:$0xff]
  %v224 = vld [vmem:[%s1 + $0x628] sm:$0xff]
  %v225 = vld [vmem:[%s1 + $0x630] sm:$0xff]
  %v226 = vld [vmem:[%s1 + $0x638] sm:$0xff]
  %v227 = vld [vmem:[%s1 + $0x640] sm:$0xff]
  %v228 = vld [vmem:[%s1 + $0x648] sm:$0xff]
  %v229 = vld [vmem:[%s1 + $0x650] sm:$0xff]
  %v230 = vld [vmem:[%s1 + $0x658] sm:$0xff]
  %v231 = vld [vmem:[%s1 + $0x660] sm:$0xff]
  %v232 = vld [vmem:[%s1 + $0x668] sm:$0xff]
  %v233 = vld [vmem:[%s1 + $0x670] sm:$0xff]
  %v234 = vld [vmem:[%s1 + $0x678] sm:$0xff]
  %v235 = vld [vmem:[%s1 + $0x680] sm:$0xff]
  %v236 = vld [vmem:[%s1 + $0x688] sm:$0xff]
  %v237 = vld [vmem:[%s1 + $0x690] sm:$0xff]
  %v238 = vld [vmem:[%s1 + $0x698] sm:$0xff]
  %v239 = vld [vmem:[%s1 + $0x6a0] sm:$0xff]
  %v240 = vld [vmem:[%s1 + $0x6a8] sm:$0xff]
  %v241 = vld [vmem:[%s1 + $0x6b0] sm:$0xff]
  %v242 = vld [vmem:[%s1 + $0x6b8] sm:$0xff]
  %v243 = vld [vmem:[%s1 + $0x6c0] sm:$0xff]
  %v244 = vld [vmem:[%s1 + $0x6c8] sm:$0xff]
  %v245 = vld [vmem:[%s1 + $0x6d0] sm:$0xff]
  %v246 = vld [vmem:[%s1 + $0x6d8] sm:$0xff]
  %v247 = vld [vmem:[%s1 + $0x6e0] sm:$0xff]
  %v248 = vld [vmem:[%s1 + $0x6e8] sm:$0xff]
  %v249 = vld [vmem:[%s1 + $0x6f0] sm:$0xff]
  %v250 = vld [vmem:[%s1 + $0x6f8] sm:$0xff]
  %v251 = vld [vmem:[%s1 + $0x700] sm:$0xff]
  %v252 = vld [vmem:[%s1 + $0x708] sm:$0xff]
  %v253 = vld [vmem:[%s1 + $0x710] sm:$0xff]
  %v254 = vld [vmem:[%s1 + $0x718] sm:$0xff]
  %v255 = vld [vmem:[%s1 + $0x720] sm:$0xff]
  %v256 = vld [vmem:[%s1 + $0x728] sm:$0xff]
  %v257 = vld [vmem:[%s1 + $0x730] sm:$0xff]
  %v258 = vld [vmem:[%s1 + $0x738] sm:$0xff]
  %v259 = vld [vmem:[%s1 + $0x740] sm:$0xff]
  %v260 = vld [vmem:[%s1 + $0x748] sm:$0xff]
  %v261 = vld [vmem:[%s1 + $0x750] sm:$0xff]
  %v262 = vld [vmem:[%s1 + $0x758] sm:$0xff]
  %v263 = vld [vmem:[%s1 + $0x760] sm:$0xff]
  %v264 = vld [vmem:[%s1 + $0x768] sm:$0xff]
  %v265 = vld [vmem:[%s1 + $0x770] sm:$0xff]
  %v266 = vld [vmem:[%s1 + $0x778] sm:$0xff]
  %v267 = vld [vmem:[%s1 + $0x780] sm:$0xff]
  %v268 = vld [vmem:[%s1 + $0x788] sm:$0xff]
  %v269 = vld [vmem:[%s1 + $0x790] sm:$0xff]
  %v270 = vld [vmem:[%s1 + $0x798] sm:$0xff]
  %v271 = vld [vmem:[%s1 + $0x7a0] sm:$0xff]
  %v272 = vld [vmem:[%s1 + $0x7a8] sm:$0xff]
  %v273 = vld [vmem:[%s1 + $0x7b0] sm:$0xff]
  %v274 = vld [vmem:[%s1 + $0x7b8] sm:$0xff]
  %v275 = vld [vmem:[%s1 + $0x7c0] sm:$0xff]
  %v276 = vld [vmem:[%s1 + $0x7c8] sm:$0xff]
  %v277 = vld [vmem:[%s1 + $0x7d0] sm:$0xff]
  %v278 = vld [vmem:[%s1 + $0x7d8] sm:$0xff]
  %v279 = vld [vmem:[%s1 + $0x7e0] sm:$0xff]
  %v280 = vld [vmem:[%s1 + $0x7e8] sm:$0xff]
  %v281 = vld [vmem:[%s1 + $0x7f0] sm:$0xff]
  %v282 = vld [vmem:[%s1 + $0x7f8] sm:$0xff]
  %v283 = vld [vmem:[%s1 + $0x800] sm:$0xff]
  %v284 = vld [vmem:[%s1 + $0x808] sm:$0xff]
  %v285 = vld [vmem:[%s1 + $0x810] sm:$0xff]
  %v286 = vld [vmem:[%s1 + $0x818] sm:$0xff]
  %v287 = vld [vmem:[%s1 + $0x820] sm:$0xff]
  %v288 = vld [vmem:[%s1 + $0x828] sm:$0xff]
  %v289 = vld [vmem:[%s1 + $0x830] sm:$0xff]
  %v290 = vld [vmem:[%s1 + $0x838] sm:$0xff]
  %v291 = vld [vmem:[%s1 + $0x840] sm:$0xff]
  %v292 = vld [vmem:[%s1 + $0x848] sm:$0xff]
  %v293 = vld [vmem:[%s1 + $0x850] sm:$0xff]
  %v294 = vld [vmem:[%s1 + $0x858] sm:$0xff]
  %v295 = vld [vmem:[%s1 + $0x860] sm:$0xff]
  %v296 = vld [vmem:[%s1 + $0x868] sm:$0xff]
  %v297 = vld [vmem:[%s1 + $0x870] sm:$0xff]
  %v298 = vld [vmem:[%s1 + $0x878] sm:$0xff]
  %v299 = vld [vmem:[%s1 + $0x880] sm:$0xff]
  %v300 = vld [vmem:[%s1 + $0x888] sm:$0xff]
  %v301 = vld [vmem:[%s1 + $0x890] sm:$0xff]
  %v302 = vld [vmem:[%s1 + $0x898] sm:$0xff]
  %v303 = vld [vmem:[%s1 + $0x8a0] sm:$0xff]
  %v304 = vld [vmem:[%s1 + $0x8a8] sm:$0xff]
  %v305 = vld [vmem:[%s1 + $0x8b0] sm:$0xff]
  %v306 = vld [vmem:[%s1 + $0x8b8] sm:$0xff]
  %v307 = vld [vmem:[%s1 + $0x8c0] sm:$0xff]
  %v308 = vld [vmem:[%s1 + $0x8c8] sm:$0xff]
  %v309 = vld [vmem:[%s1 + $0x8d0] sm:$0xff]
  %v310 = vld [vmem:[%s1 + $0x8d8] sm:$0xff]
  %v311 = vld [vmem:[%s1 + $0x8e0] sm:$0xff]
  %v312 = vld [vmem:[%s1 + $0x8e8] sm:$0xff]
  %v313 = vld [vmem:[%s1 + $0x8f0] sm:$0xff]
  %v314 = vld [vmem:[%s1 + $0x8f8] sm:$0xff]
  %v315 = vld [vmem:[%s1 + $0x900] sm:$0xff]
  %v316 = vld [vmem:[%s1 + $0x908] sm:$0xff]
  %v317 = vld [vmem:[%s1 + $0x910] sm:$0xff]
  %v318 = vld [vmem:[%s1 + $0x918] sm:$0xff]
  %v319 = vld [vmem:[%s1 + $0x920] sm:$0xff]
  %v320 = vld [vmem:[%s1 + $0x928] sm:$0xff]
  %v321 = vld [vmem:[%s1 + $0x930] sm:$0xff]
  %v322 = vld [vmem:[%s1 + $0x938] sm:$0xff]
  %v323 = vld [vmem:[%s1 + $0x940] sm:$0xff]
  %v324 = vld [vmem:[%s1 + $0x948] sm:$0xff]
  %v325 = vld [vmem:[%s1 + $0x950] sm:$0xff]
  %v326 = vld [vmem:[%s1 + $0x958] sm:$0xff]
  %v327 = vld [vmem:[%s1 + $0x960] sm:$0xff]
  %v328 = vld [vmem:[%s1 + $0x968] sm:$0xff]
  %v329 = vld [vmem:[%s1 + $0x970] sm:$0xff]
  %v330 = vld [vmem:[%s1 + $0x978] sm:$0xff]
  %v331 = vld [vmem:[%s1 + $0x980] sm:$0xff]
  %v332 = vld [vmem:[%s1 + $0x988] sm:$0xff]
  %v333 = vld [vmem:[%s1 + $0x990] sm:$0xff]
  %v334 = vld [vmem:[%s1 + $0x998] sm:$0xff]
  %v335 = vld [vmem:[%s1 + $0x9a0] sm:$0xff]
  %v336 = vld [vmem:[%s1 + $0x9a8] sm:$0xff]
  %v337 = vld [vmem:[%s1 + $0x9b0] sm:$0xff]
  %v338 = vld [vmem:[%s1 + $0x9b8] sm:$0xff]
  %v339 = vld [vmem:[%s1 + $0x9c0] sm:$0xff]
  %v340 = vld [vmem:[%s1 + $0x9c8] sm:$0xff]
  %v341 = vld [vmem:[%s1 + $0x9d0] sm:$0xff]
  %v342 = vld [vmem:[%s1 + $0x9d8] sm:$0xff]
  %v343 = vld [vmem:[%s1 + $0x9e0] sm:$0xff]
  %v344 = vld [vmem:[%s1 + $0x9e8] sm:$0xff]
  %v345 = vld [vmem:[%s1 + $0x9f0] sm:$0xff]
  %v346 = vld [vmem:[%s1 + $0x9f8] sm:$0xff]
  %v347 = vld [vmem:[%s1 + $0xa00] sm:$0xff]
  %v348 = vld [vmem:[%s1 + $0xa08] sm:$0xff]
  %v349 = vld [vmem:[%s1 + $0xa10] sm:$0xff]
  %v350 = vld [vmem:[%s1 + $0xa18] sm:$0xff]
  %v351 = vld [vmem:[%s1 + $0xa20] sm:$0xff]
  %v352 = vld [vmem:[%s1 + $0xa28] sm:$0xff]
  %v353 = vld [vmem:[%s1 + $0xa30] sm:$0xff]
  %v354 = vld [vmem:[%s1 + $0xa38] sm:$0xff]
  %v355 = vld [vmem:[%s1 + $0xa40] sm:$0xff]
  %v356 = vld [vmem:[%s1 + $0xa48] sm:$0xff]
  %v357 = vld [vmem:[%s1 + $0xa50] sm:$0xff]
  %v358 = vld [vmem:[%s1 + $0xa58] sm:$0xff]
  %v359 = vld [vmem:[%s1 + $0xa60] sm:$0xff]
  %v360 = vld [vmem:[%s1 + $0xa68] sm:$0xff]
  %v361 = vld [vmem:[%s1 + $0xa70] sm:$0xff]
  %v362 = vld [vmem:[%s1 + $0xa78] sm:$0xff]
  %v363 = vld [vmem:[%s1 + $0xa80] sm:$0xff]
  %v364 = vld [vmem:[%s1 + $0xa88] sm:$0xff]
  %v365 = vld [vmem:[%s1 + $0xa90] sm:$0xff]
  %v366 = vld [vmem:[%s1 + $0xa98] sm:$0xff]
  %v367 = vld [vmem:[%s1 + $0xaa0] sm:$0xff]
  %v368 = vld [vmem:[%s1 + $0xaa8] sm:$0xff]
  %v369 = vld [vmem:[%s1 + $0xab0] sm:$0xff]
  %v370 = vld [vmem:[%s1 + $0xab8] sm:$0xff]
  %v371 = vld [vmem:[%s1 + $0xac0] sm:$0xff]
  %v372 = vld [vmem:[%s1 + $0xac8] sm:$0xff]
  %v373 = vld [vmem:[%s1 + $0xad0] sm:$0xff]
  %v374 = vld [vmem:[%s1 + $0xad8] sm:$0xff]
  %v375 = vld [vmem:[%s1 + $0xae0] sm:$0xff]
  %v376 = vld [vmem:[%s1 + $0xae8] sm:$0xff]
  %v377 = vld [vmem:[%s1 + $0xaf0] sm:$0xff]
  %v378 = vld [vmem:[%s1 + $0xaf8] sm:$0xff]
  %v379 = vld [vmem:[%s1 + $0xb00] sm:$0xff]
  %v380 = vld [vmem:[%s1 + $0xb08] sm:$0xff]
  %v381 = vld [vmem:[%s1 + $0xb10] sm:$0xff]
  %v382 = vld [vmem:[%s1 + $0xb18] sm:$0xff]
  %v383 = vld [vmem:[%s1 + $0xb20] sm:$0xff]
  %v384 = vld [vmem:[%s1 + $0xb28] sm:$0xff]
  %v385 = vld [vmem:[%s1 + $0xb30] sm:$0xff]
  %v386 = vld [vmem:[%s1 + $0xb38] sm:$0xff]
  %v387 = vld [vmem:[%s1 + $0xb40] sm:$0xff]
  %v388 = vld [vmem:[%s1 + $0xb48] sm:$0xff]
  %v389 = vld [vmem:[%s1 + $0xb50] sm:$0xff]
  %v390 = vld [vmem:[%s1 + $0xb58] sm:$0xff]
  %v391 = vld [vmem:[%s1 + $0xb60] sm:$0xff]
  %v392 = vld [vmem:[%s1 + $0xb68] sm:$0xff]
  %v393 = vld [vmem:[%s1 + $0xb70] sm:$0xff]
  %v394 = vld [vmem:[%s1 + $0xb78] sm:$0xff]
  %v395 = vld [vmem:[%s1 + $0xb80] sm:$0xff]
  %v396 = vld [vmem:[%s1 + $0xb88] sm:$0xff]
  %v397 = vld [vmem:[%s1 + $0xb90] sm:$0xff]
  %v398 = vld [vmem:[%s1 + $0xb98] sm:$0xff]
  %v399 = vld [vmem:[%s1 + $0xba0] sm:$0xff]
  %v400 = vld [vmem:[%s1 + $0xba8] sm:$0xff]
  %v401 = vld [vmem:[%s1 + $0xbb0] sm:$0xff]
  %v402 = vld [vmem:[%s1 + $0xbb8] sm:$0xff]
  %v403 = vld [vmem:[%s1 + $0xbc0] sm:$0xff]
  %v404 = vld [vmem:[%s1 + $0xbc8] sm:$0xff]
  %v405 = vld [vmem:[%s1 + $0xbd0] sm:$0xff]
  %v406 = vld [vmem:[%s1 + $0xbd8] sm:$0xff]
  %v407 = vld [vmem:[%s1 + $0xbe0] sm:$0xff]
  %v408 = vld [vmem:[%s1 + $0xbe8] sm:$0xff]
  %v409 = vld [vmem:[%s1 + $0xbf0] sm:$0xff]
  %v410 = vld [vmem:[%s1 + $0xbf8] sm:$0xff]
  %v411 = vld [vmem:[%s1 + $0xc00] sm:$0xff]
  %v412 = vld [vmem:[%s1 + $0xc08] sm:$0xff]
  %v413 = vld [vmem:[%s1 + $0xc10] sm:$0xff]
  %v414 = vld [vmem:[%s1 + $0xc18] sm:$0xff]
  %v415 = vld [vmem:[%s1 + $0xc20] sm:$0xff]
  %v416 = vld [vmem:[%s1 + $0xc28] sm:$0xff]
  %v417 = vld [vmem:[%s1 + $0xc30] sm:$0xff]
  %v418 = vld [vmem:[%s1 + $0xc38] sm:$0xff]
  %v419 = vld [vmem:[%s1 + $0xc40] sm:$0xff]
  %v420 = vld [vmem:[%s1 + $0xc48] sm:$0xff]
  %v421 = vld [vmem:[%s1 + $0xc50] sm:$0xff]
  %v422 = vld [vmem:[%s1 + $0xc58] sm:$0xff]
  %v423 = vld [vmem:[%s1 + $0xc60] sm:$0xff]
  %v424 = vld [vmem:[%s1 + $0xc68] sm:$0xff]
  %v425 = vld [vmem:[%s1 + $0xc70] sm:$0xff]
  %v426 = vld [vmem:[%s1 + $0xc78] sm:$0xff]
  %v427 = vld [vmem:[%s1 + $0xc80] sm:$0xff]
  %v428 = vld [vmem:[%s1 + $0xc88] sm:$0xff]
  %v429 = vld [vmem:[%s1 + $0xc90] sm:$0xff]
  %v430 = vld [vmem:[%s1 + $0xc98] sm:$0xff]
  %v431 = vld [vmem:[%s1 + $0xca0] sm:$0xff]
  %v432 = vld [vmem:[%s1 + $0xca8] sm:$0xff]
  %v433 = vld [vmem:[%s1 + $0xcb0] sm:$0xff]
  %v434 = vld [vmem:[%s1 + $0xcb8] sm:$0xff]
  %v435 = vld [vmem:[%s1 + $0xcc0] sm:$0xff]
  %v436 = vld [vmem:[%s1 + $0xcc8] sm:$0xff]
  %v437 = vld [vmem:[%s1 + $0xcd0] sm:$0xff]
  %v438 = vld [vmem:[%s1 + $0xcd8] sm:$0xff]
  %v439 = vld [vmem:[%s1 + $0xce0] sm:$0xff]
  %v440 = vld [vmem:[%s1 + $0xce8] sm:$0xff]
  %v441 = vld [vmem:[%s1 + $0xcf0] sm:$0xff]
  %v442 = vld [vmem:[%s1 + $0xcf8] sm:$0xff]
  %v443 = vld [vmem:[%s1 + $0xd00] sm:$0xff]
  %v444 = vld [vmem:[%s1 + $0xd08] sm:$0xff]
  %v445 = vld [vmem:[%s1 + $0xd10] sm:$0xff]
  %v446 = vld [vmem:[%s1 + $0xd18] sm:$0xff]
  %v447 = vld [vmem:[%s1 + $0xd20] sm:$0xff]
  %v448 = vld [vmem:[%s1 + $0xd28] sm:$0xff]
  %v449 = vld [vmem:[%s1 + $0xd30] sm:$0xff]
  %v450 = vld [vmem:[%s1 + $0xd38] sm:$0xff]
  %v451 = vld [vmem:[%s1 + $0xd40] sm:$0xff]
  %v452 = vld [vmem:[%s1 + $0xd48] sm:$0xff]
  %v453 = vld [vmem:[%s1 + $0xd50] sm:$0xff]
  %v454 = vld [vmem:[%s1 + $0xd58] sm:$0xff]
  %v455 = vld [vmem:[%s1 + $0xd60] sm:$0xff]
  %v456 = vld [vmem:[%s1 + $0xd68] sm:$0xff]
  %v457 = vld [vmem:[%s1 + $0xd70] sm:$0xff]
  %v458 = vld [vmem:[%s1 + $0xd78] sm:$0xff]
  %v459 = vld [vmem:[%s1 + $0xd80] sm:$0xff]
  %v460 = vld [vmem:[%s1 + $0xd88] sm:$0xff]
  %v461 = vld [vmem:[%s1 + $0xd90] sm:$0xff]
  %v462 = vld [vmem:[%s1 + $0xd98] sm:$0xff]
  %v463 = vld [vmem:[%s1 + $0xda0] sm:$0xff]
  %v464 = vld [vmem:[%s1 + $0xda8] sm:$0xff]
  %v465 = vld [vmem:[%s1 + $0xdb0] sm:$0xff]
  %v466 = vld [vmem:[%s1 + $0xdb8] sm:$0xff]
  %v467 = vld [vmem:[%s1 + $0xdc0] sm:$0xff]
  %v468 = vld [vmem:[%s1 + $0xdc8] sm:$0xff]
  %v469 = vld [vmem:[%s1 + $0xdd0] sm:$0xff]
  %v470 = vld [vmem:[%s1 + $0xdd8] sm:$0xff]
  %v471 = vld [vmem:[%s1 + $0xde0] sm:$0xff]
  %v472 = vld [vmem:[%s1 + $0xde8] sm:$0xff]
  %v473 = vld [vmem:[%s1 + $0xdf0] sm:$0xff]
  %v474 = vld [vmem:[%s1 + $0xdf8] sm:$0xff]
  %v475 = vld [vmem:[%s1 + $0xe00] sm:$0xff]
  %v476 = vld [vmem:[%s1 + $0xe08] sm:$0xff]
  %v477 = vld [vmem:[%s1 + $0xe10] sm:$0xff]
  %v478 = vld [vmem:[%s1 + $0xe18] sm:$0xff]
  %v479 = vld [vmem:[%s1 + $0xe20] sm:$0xff]
  %v480 = vld [vmem:[%s1 + $0xe28] sm:$0xff]
  %v481 = vld [vmem:[%s1 + $0xe30] sm:$0xff]
  %v482 = vld [vmem:[%s1 + $0xe38] sm:$0xff]
  %v483 = vld [vmem:[%s1 + $0xe40] sm:$0xff]
  %v484 = vld [vmem:[%s1 + $0xe48] sm:$0xff]
  %v485 = vld [vmem:[%s1 + $0xe50] sm:$0xff]
  %v486 = vld [vmem:[%s1 + $0xe58] sm:$0xff]
  %v487 = vld [vmem:[%s1 + $0xe60] sm:$0xff]
  %v488 = vld [vmem:[%s1 + $0xe68] sm:$0xff]
  %v489 = vld [vmem:[%s1 + $0xe70] sm:$0xff]
  %v490 = vld [vmem:[%s1 + $0xe78] sm:$0xff]
  %v491 = vld [vmem:[%s1 + $0xe80] sm:$0xff]
  %v492 = vld [vmem:[%s1 + $0xe88] sm:$0xff]
  %v493 = vld [vmem:[%s1 + $0xe90] sm:$0xff]
  %v494 = vld [vmem:[%s1 + $0xe98] sm:$0xff]
  %v495 = vld [vmem:[%s1 + $0xea0] sm:$0xff]
  %v496 = vld [vmem:[%s1 + $0xea8] sm:$0xff]
  %v497 = vld [vmem:[%s1 + $0xeb0] sm:$0xff]
  %v498 = vld [vmem:[%s1 + $0xeb8] sm:$0xff]
  %v499 = vld [vmem:[%s1 + $0xec0] sm:$0xff]
  %v500 = vld [vmem:[%s1 + $0xec8] sm:$0xff]
  %v501 = vld [vmem:[%s1 + $0xed0] sm:$0xff]
  %v502 = vld [vmem:[%s1 + $0xed8] sm:$0xff]
  %v503 = vld [vmem:[%s1 + $0xee0] sm:$0xff]
  %v504 = vld [vmem:[%s1 + $0xee8] sm:$0xff]
  %v505 = vld [vmem:[%s1 + $0xef0] sm:$0xff]
  %v506 = vld [vmem:[%s1 + $0xef8] sm:$0xff]
  %v507 = vld [vmem:[%s1 + $0xf00] sm:$0xff]
  %v508 = vld [vmem:[%s1 + $0xf08] sm:$0xff]
  %v509 = vld [vmem:[%s1 + $0xf10] sm:$0xff]
  %v510 = vld [vmem:[%s1 + $0xf18] sm:$0xff]
  %v511 = vld [vmem:[%s1 + $0xf20] sm:$0xff]
  %v512 = vld [vmem:[%s1 + $0xf28] sm:$0xff]
  %v513 = vld [vmem:[%s1 + $0xf30] sm:$0xff]
  %v514 = vld [vmem:[%s1 + $0xf38] sm:$0xff]
  %v515 = vld [vmem:[%s1 + $0xf40] sm:$0xff]
  %v516 = vld [vmem:[%s1 + $0xf48] sm:$0xff]
  %v517 = vld [vmem:[%s1 + $0xf50] sm:$0xff]
  %v518 = vld [vmem:[%s1 + $0xf58] sm:$0xff]
  %v519 = vld [vmem:[%s1 + $0xf60] sm:$0xff]
  %v520 = vld [vmem:[%s1 + $0xf68] sm:$0xff]
  %v521 = vld [vmem:[%s1 + $0xf70] sm:$0xff]
  %v522 = vld [vmem:[%s1 + $0xf78] sm:$0xff]
  %v523 = vld [vmem:[%s1 + $0xf80] sm:$0xff]
  %v524 = vld [vmem:[%s1 + $0xf88] sm:$0xff]
  %v525 = vld [vmem:[%s1 + $0xf90] sm:$0xff]
  %v526 = vld [vmem:[%s1 + $0xf98] sm:$0xff]
  %v527 = vld [vmem:[%s1 + $0xfa0] sm:$0xff]
  %v528 = vld [vmem:[%s1 + $0xfa8] sm:$0xff]
  %v529 = vld [vmem:[%s1 + $0xfb0] sm:$0xff]
  %v530 = vld [vmem:[%s1 + $0xfb8] sm:$0xff]
  %v531 = vld [vmem:[%s1 + $0xfc0] sm:$0xff]
  %v532 = vld [vmem:[%s1 + $0xfc8] sm:$0xff]
  %v533 = vld [vmem:[%s1 + $0xfd0] sm:$0xff]
  %v534 = vld [vmem:[%s1 + $0xfd8] sm:$0xff]
  %v535 = vld [vmem:[%s1 + $0xfe0] sm:$0xff]
  %v536 = vld [vmem:[%s1 + $0xfe8] sm:$0xff]
  %v537 = vld [vmem:[%s1 + $0xff0] sm:$0xff]
  %v538 = vld [vmem:[%s1 + $0xff8] sm:$0xff]
  %539 = vmatprep.subr.mxu0 %v28
  %540 = vmatpush1.msra.mxu0 %v27
  %541 = vmatprep.subr.mxu0 %v36
  %542 = vmatpush1.msra.mxu0 %v35
  %543 = vmatprep.subr.mxu0 %v44
  %544 = vmatpush1.msra.mxu0 %v43
  %545 = vmatprep.subr.mxu0 %v52
  %546 = vmatpush1.msra.mxu0 %v51
  %547 = vmatprep.subr.mxu0 %v60
  %548 = vmatpush1.msra.mxu0 %v59
  %549 = vmatprep.subr.mxu0 %v68
  %550 = vmatpush1.msra.mxu0 %v67
  %551 = vmatprep.subr.mxu0 %v76
  %552 = vmatpush1.msra.mxu0 %v75
  %553 = vmatprep.subr.mxu0 %v84
  %554 = vmatpush1.msra.mxu0 %v83
  %555 = vmatprep.subr.mxu0 %v92
  %556 = vmatpush1.msra.mxu0 %v91
  %557 = vmatprep.subr.mxu0 %v100
  %558 = vmatpush1.msra.mxu0 %v99
  %559 = vmatprep.subr.mxu0 %v108
  %560 = vmatpush1.msra.mxu0 %v107
  %561 = vmatprep.subr.mxu0 %v116
  %562 = vmatpush1.msra.mxu0 %v115
  %563 = vmatprep.subr.mxu0 %v124
  %564 = vmatpush1.msra.mxu0 %v123
  %565 = vmatprep.subr.mxu0 %v132
  %566 = vmatpush1.msra.mxu0 %v131
  %567 = vmatprep.subr.mxu0 %v140
  %568 = vmatpush1.msra.mxu0 %v139
  %569 = vmatprep.subr.mxu0 %v148
  %570 = vmatpush1.msra.mxu0 %v147
  %571 = vmatprep.subr.mxu0 %v156
  %572 = vmatpush1.msra.mxu0 %v155
  %573 = vmatprep.subr.mxu0 %v164
  %574 = vmatpush1.msra.mxu0 %v163
  %575 = vmatprep.subr.mxu0 %v172
  %576 = vmatpush1.msra.mxu0 %v171
  %577 = vmatprep.subr.mxu0 %v180
  %578 = vmatpush1.msra.mxu0 %v179
  %579 = vmatprep.subr.mxu0 %v188
  %580 = vmatpush1.msra.mxu0 %v187
  %581 = vmatprep.subr.mxu0 %v196
  %582 = vmatpush1.msra.mxu0 %v195
  %583 = vmatprep.subr.mxu0 %v204
  %584 = vmatpush1.msra.mxu0 %v203
  %585 = vmatprep.subr.mxu0 %v212
  %586 = vmatpush1.msra.mxu0 %v211
  %587 = vmatprep.subr.mxu0 %v220
  %588 = vmatpush1.msra.mxu0 %v219
  %589 = vmatprep.subr.mxu0 %v228
  %590 = vmatpush1.msra.mxu0 %v227
  %591 = vmatprep.subr.mxu0 %v236
  %592 = vmatpush1.msra.mxu0 %v235
  %593 = vmatprep.subr.mxu0 %v244
  %594 = vmatpush1.msra.mxu0 %v243
  %595 = vmatprep.subr.mxu0 %v252
  %596 = vmatpush1.msra.mxu0 %v251
  %597 = vmatprep.subr.mxu0 %v260
  %598 = vmatpush1.msra.mxu0 %v259
  %599 = vmatprep.subr.mxu0 %v268
  %600 = vmatpush1.msra.mxu0 %v267
  %601 = vmatprep.subr.mxu0 %v276
  %602 = vmatpush1.msra.mxu0 %v275
  %603 = vmatprep.mubr.f32.mxu0 %v12
  %604 = vmatmul.mubr.f32.gmra.mrb[0].mxu0 %v11
  %v605 = vpop.f32.mrb[0].mxu0
  %v606 = vadd.f32 0.0, %v605
  %v607 = vpop.f32.mrb[0].mxu0
  %v608 = vadd.f32 0.0, %v607
  %609 = vmatprep.mubr.f32.mxu0 %v16
  %610 = vmatmul.mubr.f32.gmra.mrb[0].mxu0 %v15
  %v611 = vpop.f32.mrb[0].mxu0
  %v612 = vadd.f32 0.0, %v611
  %v613 = vpop.f32.mrb[0].mxu0
  %v614 = vadd.f32 0.0, %v613
  %615 = vmatprep.mubr.f32.mxu0 %v20
  %616 = vmatmul.mubr.f32.gmra.mrb[0].mxu0 %v19
  %v617 = vpop.f32.mrb[0].mxu0
  %v618 = vadd.f32 0.0, %v617
  %v619 = vpop.f32.mrb[0].mxu0
  %v620 = vadd.f32 0.0, %v619
  %621 = vmatprep.mubr.f32.mxu0 %v24
  %622 = vmatmul.mubr.f32.gmra.mrb[0].mxu0 %v23
  %v623 = vpop.f32.mrb[0].mxu0
  %v624 = vadd.f32 0.0, %v623
  %v625 = vpop.f32.mrb[0].mxu0
  %v626 = vadd.f32 0.0, %v625
  %627 = vdwg.mxu0
  %628 = vmatprep.subr.mxu0 %v284
  %629 = vmatpush1.msra.mxu0 %v283
  %630 = vmatprep.subr.mxu0 %v292
  %631 = vmatpush1.msra.mxu0 %v291
  %632 = vmatprep.subr.mxu0 %v300
  %633 = vmatpush1.msra.mxu0 %v299
  %634 = vmatprep.subr.mxu0 %v308
  %635 = vmatpush1.msra.mxu0 %v307
  %636 = vmatprep.subr.mxu0 %v316
  %637 = vmatpush1.msra.mxu0 %v315
  %638 = vmatprep.subr.mxu0 %v324
  %639 = vmatpush1.msra.mxu0 %v323
  %640 = vmatprep.subr.mxu0 %v332
  %641 = vmatpush1.msra.mxu0 %v331
  %642 = vmatprep.subr.mxu0 %v340
  %643 = vmatpush1.msra.mxu0 %v339
  %644 = vmatprep.subr.mxu0 %v348
  %645 = vmatpush1.msra.mxu0 %v347
  %646 = vmatprep.subr.mxu0 %v356
  %647 = vmatpush1.msra.mxu0 %v355
  %648 = vmatprep.subr.mxu0 %v364
  %649 = vmatpush1.msra.mxu0 %v363
  %650 = vmatprep.subr.mxu0 %v372
  %651 = vmatpush1.msra.mxu0 %v371
  %652 = vmatprep.subr.mxu0 %v380
  %653 = vmatpush1.msra.mxu0 %v379
  %654 = vmatprep.subr.mxu0 %v388
  %655 = vmatpush1.msra.mxu0 %v387
  %656 = vmatprep.subr.mxu0 %v396
  %657 = vmatpush1.msra.mxu0 %v395
  %658 = vmatprep.subr.mxu0 %v404
  %659 = vmatpush1.msra.mxu0 %v403
  %660 = vmatprep.subr.mxu0 %v412
  %661 = vmatpush1.msra.mxu0 %v411
  %662 = vmatprep.subr.mxu0 %v420
  %663 = vmatpush1.msra.mxu0 %v419
  %664 = vmatprep.subr.mxu0 %v428
  %665 = vmatpush1.msra.mxu0 %v427
  %666 = vmatprep.subr.mxu0 %v436
  %667 = vmatpush1.msra.mxu0 %v435
  %668 = vmatprep.subr.mxu0 %v444
  %669 = vmatpush1.msra.mxu0 %v443
  %670 = vmatprep.subr.mxu0 %v452
  %671 = vmatpush1.msra.mxu0 %v451
  %672 = vmatprep.subr.mxu0 %v460
  %673 = vmatpush1.msra.mxu0 %v459
  %674 = vmatprep.subr.mxu0 %v468
  %675 = vmatpush1.msra.mxu0 %v467
  %676 = vmatprep.subr.mxu0 %v476
  %677 = vmatpush1.msra.mxu0 %v475
  %678 = vmatprep.subr.mxu0 %v484
  %679 = vmatpush1.msra.mxu0 %v483
  %680 = vmatprep.subr.mxu0 %v492
  %681 = vmatpush1.msra.mxu0 %v491
  %682 = vmatprep.subr.mxu0 %v500
  %683 = vmatpush1.msra.mxu0 %v499
  %684 = vmatprep.subr.mxu0 %v508
  %685 = vmatpush1.msra.mxu0 %v507
  %686 = vmatprep.subr.mxu0 %v516
  %687 = vmatpush1.msra.mxu0 %v515
  %688 = vmatprep.subr.mxu0 %v524
  %689 = vmatpush1.msra.mxu0 %v523
  %690 = vmatprep.subr.mxu0 %v532
  %691 = vmatpush1.msra.mxu0 %v531
  %692 = vmatprep.mubr.f32.mxu0 %v14
  %693 = vmatmul.mubr.f32.gmra.mrb[0].mxu0 %v13
  %v694 = vpop.f32.mrb[0].mxu0
  %v695 = vadd.f32 %v606, %v694
  %v696 = vpop.f32.mrb[0].mxu0
  %v697 = vadd.f32 %v608, %v696
  %698 = vmatprep.mubr.f32.mxu0 %v18
  %699 = vmatmul.mubr.f32.gmra.mrb[0].mxu0 %v17
  %v700 = vpop.f32.mrb[0].mxu0
  %v701 = vadd.f32 %v612, %v700
  %v702 = vpop.f32.mrb[0].mxu0
  %v703 = vadd.f32 %v614, %v702
  %704 = vmatprep.mubr.f32.mxu0 %v22
  %705 = vmatmul.mubr.f32.gmra.mrb[0].mxu0 %v21
  %v706 = vpop.f32.mrb[0].mxu0
  %v707 = vadd.f32 %v618, %v706
  %v708 = vpop.f32.mrb[0].mxu0
  %v709 = vadd.f32 %v620, %v708
  %710 = vmatprep.mubr.f32.mxu0 %v26
  %711 = vmatmul.mubr.f32.gmra.mrb[0].mxu0 %v25
  %v712 = vpop.f32.mrb[0].mxu0
  %v713 = vadd.f32 %v624, %v712
  %v714 = vpop.f32.mrb[0].mxu0
  %v715 = vadd.f32 %v626, %v714
  %716 = vdwg.mxu0
  %717 = vmatprep.subr.mxu0 %v30
  %718 = vmatpush1.msra.mxu0 %v29
  %719 = vmatprep.subr.mxu0 %v38
  %720 = vmatpush1.msra.mxu0 %v37
  %721 = vmatprep.subr.mxu0 %v46
  %722 = vmatpush1.msra.mxu0 %v45
  %723 = vmatprep.subr.mxu0 %v54
  %724 = vmatpush1.msra.mxu0 %v53
  %725 = vmatprep.subr.mxu0 %v62
  %726 = vmatpush1.msra.mxu0 %v61
  %727 = vmatprep.subr.mxu0 %v70
  %728 = vmatpush1.msra.mxu0 %v69
  %729 = vmatprep.subr.mxu0 %v78
  %730 = vmatpush1.msra.mxu0 %v77
  %731 = vmatprep.subr.mxu0 %v86
  %732 = vmatpush1.msra.mxu0 %v85
  %733 = vmatprep.subr.mxu0 %v94
  %734 = vmatpush1.msra.mxu0 %v93
  %735 = vmatprep.subr.mxu0 %v102
  %736 = vmatpush1.msra.mxu0 %v101
  %737 = vmatprep.subr.mxu0 %v110
  %738 = vmatpush1.msra.mxu0 %v109
  %739 = vmatprep.subr.mxu0 %v118
  %740 = vmatpush1.msra.mxu0 %v117
  %741 = vmatprep.subr.mxu0 %v126
  %742 = vmatpush1.msra.mxu0 %v125
  %743 = vmatprep.subr.mxu0 %v134
  %744 = vmatpush1.msra.mxu0 %v133
  %745 = vmatprep.subr.mxu0 %v142
  %746 = vmatpush1.msra.mxu0 %v141
  %747 = vmatprep.subr.mxu0 %v150
  %748 = vmatpush1.msra.mxu0 %v149
  %749 = vmatprep.subr.mxu0 %v158
  %750 = vmatpush1.msra.mxu0 %v157
  %751 = vmatprep.subr.mxu0 %v166
  %752 = vmatpush1.msra.mxu0 %v165
  %753 = vmatprep.subr.mxu0 %v174
  %754 = vmatpush1.msra.mxu0 %v173
  %755 = vmatprep.subr.mxu0 %v182
  %756 = vmatpush1.msra.mxu0 %v181
  %757 = vmatprep.subr.mxu0 %v190
  %758 = vmatpush1.msra.mxu0 %v189
  %759 = vmatprep.subr.mxu0 %v198
  %760 = vmatpush1.msra.mxu0 %v197
  %761 = vmatprep.subr.mxu0 %v206
  %762 = vmatpush1.msra.mxu0 %v205
  %763 = vmatprep.subr.mxu0 %v214
  %764 = vmatpush1.msra.mxu0 %v213
  %765 = vmatprep.subr.mxu0 %v222
  %766 = vmatpush1.msra.mxu0 %v221
  %767 = vmatprep.subr.mxu0 %v230
  %768 = vmatpush1.msra.mxu0 %v229
  %769 = vmatprep.subr.mxu0 %v238
  %770 = vmatpush1.msra.mxu0 %v237
  %771 = vmatprep.subr.mxu0 %v246
  %772 = vmatpush1.msra.mxu0 %v245
  %773 = vmatprep.subr.mxu0 %v254
  %774 = vmatpush1.msra.mxu0 %v253
  %775 = vmatprep.subr.mxu0 %v262
  %776 = vmatpush1.msra.mxu0 %v261
  %777 = vmatprep.subr.mxu0 %v270
  %778 = vmatpush1.msra.mxu0 %v269
  %779 = vmatprep.subr.mxu0 %v278
  %780 = vmatpush1.msra.mxu0 %v277
  %781 = vmatprep.mubr.f32.mxu0 %v12
  %782 = vmatmul.mubr.f32.gmra.mrb[0].mxu0 %v11
  %v783 = vpop.f32.mrb[0].mxu0
  %v784 = vadd.f32 0.0, %v783
  %v785 = vpop.f32.mrb[0].mxu0
  %v786 = vadd.f32 0.0, %v785
  %787 = vmatprep.mubr.f32.mxu0 %v16
  %788 = vmatmul.mubr.f32.gmra.mrb[0].mxu0 %v15
  %v789 = vpop.f32.mrb[0].mxu0
  %v790 = vadd.f32 0.0, %v789
  %v791 = vpop.f32.mrb[0].mxu0
  %v792 = vadd.f32 0.0, %v791
  %793 = vmatprep.mubr.f32.mxu0 %v20
  %794 = vmatmul.mubr.f32.gmra.mrb[0].mxu0 %v19
  %v795 = vpop.f32.mrb[0].mxu0
  %v796 = vadd.f32 0.0, %v795
  %v797 = vpop.f32.mrb[0].mxu0
  %v798 = vadd.f32 0.0, %v797
  %799 = vmatprep.mubr.f32.mxu0 %v24
  %800 = vmatmul.mubr.f32.gmra.mrb[0].mxu0 %v23
  %v801 = vpop.f32.mrb[0].mxu0
  %v802 = vadd.f32 0.0, %v801
  %v803 = vpop.f32.mrb[0].mxu0
  %v804 = vadd.f32 0.0, %v803
  %805 = vdwg.mxu0
  %806 = vmatprep.subr.mxu0 %v286
  %807 = vmatpush1.msra.mxu0 %v285
  %808 = vmatprep.subr.mxu0 %v294
  %809 = vmatpush1.msra.mxu0 %v293
  %810 = vmatprep.subr.mxu0 %v302
  %811 = vmatpush1.msra.mxu0 %v301
  %812 = vmatprep.subr.mxu0 %v310
  %813 = vmatpush1.msra.mxu0 %v309
  %814 = vmatprep.subr.mxu0 %v318
  %815 = vmatpush1.msra.mxu0 %v317
  %816 = vmatprep.subr.mxu0 %v326
  %817 = vmatpush1.msra.mxu0 %v325
  %818 = vmatprep.subr.mxu0 %v334
  %819 = vmatpush1.msra.mxu0 %v333
  %820 = vmatprep.subr.mxu0 %v342
  %821 = vmatpush1.msra.mxu0 %v341
  %822 = vmatprep.subr.mxu0 %v350
  %823 = vmatpush1.msra.mxu0 %v349
  %824 = vmatprep.subr.mxu0 %v358
  %825 = vmatpush1.msra.mxu0 %v357
  %826 = vmatprep.subr.mxu0 %v366
  %827 = vmatpush1.msra.mxu0 %v365
  %828 = vmatprep.subr.mxu0 %v374
  %829 = vmatpush1.msra.mxu0 %v373
  %830 = vmatprep.subr.mxu0 %v382
  %831 = vmatpush1.msra.mxu0 %v381
  %832 = vmatprep.subr.mxu0 %v390
  %833 = vmatpush1.msra.mxu0 %v389
  %834 = vmatprep.subr.mxu0 %v398
  %835 = vmatpush1.msra.mxu0 %v397
  %836 = vmatprep.subr.mxu0 %v406
  %837 = vmatpush1.msra.mxu0 %v405
  %838 = vmatprep.subr.mxu0 %v414
  %839 = vmatpush1.msra.mxu0 %v413
  %840 = vmatprep.subr.mxu0 %v422
  %841 = vmatpush1.msra.mxu0 %v421
  %842 = vmatprep.subr.mxu0 %v430
  %843 = vmatpush1.msra.mxu0 %v429
  %844 = vmatprep.subr.mxu0 %v438
  %845 = vmatpush1.msra.mxu0 %v437
  %846 = vmatprep.subr.mxu0 %v446
  %847 = vmatpush1.msra.mxu0 %v445
  %848 = vmatprep.subr.mxu0 %v454
  %849 = vmatpush1.msra.mxu0 %v453
  %850 = vmatprep.subr.mxu0 %v462
  %851 = vmatpush1.msra.mxu0 %v461
  %852 = vmatprep.subr.mxu0 %v470
  %853 = vmatpush1.msra.mxu0 %v469
  %854 = vmatprep.subr.mxu0 %v478
  %855 = vmatpush1.msra.mxu0 %v477
  %856 = vmatprep.subr.mxu0 %v486
  %857 = vmatpush1.msra.mxu0 %v485
  %858 = vmatprep.subr.mxu0 %v494
  %859 = vmatpush1.msra.mxu0 %v493
  %860 = vmatprep.subr.mxu0 %v502
  %861 = vmatpush1.msra.mxu0 %v501
  %862 = vmatprep.subr.mxu0 %v510
  %863 = vmatpush1.msra.mxu0 %v509
  %864 = vmatprep.subr.mxu0 %v518
  %865 = vmatpush1.msra.mxu0 %v517
  %866 = vmatprep.subr.mxu0 %v526
  %867 = vmatpush1.msra.mxu0 %v525
  %868 = vmatprep.subr.mxu0 %v534
  %869 = vmatpush1.msra.mxu0 %v533
  %870 = vmatprep.mubr.f32.mxu0 %v14
  %871 = vmatmul.mubr.f32.gmra.mrb[0].mxu0 %v13
  %v872 = vpop.f32.mrb[0].mxu0
  %v873 = vadd.f32 %v784, %v872
  %v874 = vpop.f32.mrb[0].mxu0
  %v875 = vadd.f32 %v786, %v874
  %876 = vmatprep.mubr.f32.mxu0 %v18
  %877 = vmatmul.mubr.f32.gmra.mrb[0].mxu0 %v17
  %v878 = vpop.f32.mrb[0].mxu0
  %v879 = vadd.f32 %v790, %v878
  %v880 = vpop.f32.mrb[0].mxu0
  %v881 = vadd.f32 %v792, %v880
  %882 = vmatprep.mubr.f32.mxu0 %v22
  %883 = vmatmul.mubr.f32.gmra.mrb[0].mxu0 %v21
  %v884 = vpop.f32.mrb[0].mxu0
  %v885 = vadd.f32 %v796, %v884
  %v886 = vpop.f32.mrb[0].mxu0
  %v887 = vadd.f32 %v798, %v886
  %888 = vmatprep.mubr.f32.mxu0 %v26
  %889 = vmatmul.mubr.f32.gmra.mrb[0].mxu0 %v25
  %v890 = vpop.f32.mrb[0].mxu0
  %v891 = vadd.f32 %v802, %v890
  %v892 = vpop.f32.mrb[0].mxu0
  %v893 = vadd.f32 %v804, %v892
  %894 = vdwg.mxu0
  %895 = vmatprep.subr.mxu0 %v32
  %896 = vmatpush1.msra.mxu0 %v31
  %897 = vmatprep.subr.mxu0 %v40
  %898 = vmatpush1.msra.mxu0 %v39
  %899 = vmatprep.subr.mxu0 %v48
  %900 = vmatpush1.msra.mxu0 %v47
  %901 = vmatprep.subr.mxu0 %v56
  %902 = vmatpush1.msra.mxu0 %v55
  %903 = vmatprep.subr.mxu0 %v64
  %904 = vmatpush1.msra.mxu0 %v63
  %905 = vmatprep.subr.mxu0 %v72
  %906 = vmatpush1.msra.mxu0 %v71
  %907 = vmatprep.subr.mxu0 %v80
  %908 = vmatpush1.msra.mxu0 %v79
  %909 = vmatprep.subr.mxu0 %v88
  %910 = vmatpush1.msra.mxu0 %v87
  %911 = vmatprep.subr.mxu0 %v96
  %912 = vmatpush1.msra.mxu0 %v95
  %913 = vmatprep.subr.mxu0 %v104
  %914 = vmatpush1.msra.mxu0 %v103
  %915 = vmatprep.subr.mxu0 %v112
  %916 = vmatpush1.msra.mxu0 %v111
  %917 = vmatprep.subr.mxu0 %v120
  %918 = vmatpush1.msra.mxu0 %v119
  %919 = vmatprep.subr.mxu0 %v128
  %920 = vmatpush1.msra.mxu0 %v127
  %921 = vmatprep.subr.mxu0 %v136
  %922 = vmatpush1.msra.mxu0 %v135
  %923 = vmatprep.subr.mxu0 %v144
  %924 = vmatpush1.msra.mxu0 %v143
  %925 = vmatprep.subr.mxu0 %v152
  %926 = vmatpush1.msra.mxu0 %v151
  %927 = vmatprep.subr.mxu0 %v160
  %928 = vmatpush1.msra.mxu0 %v159
  %929 = vmatprep.subr.mxu0 %v168
  %930 = vmatpush1.msra.mxu0 %v167
  %931 = vmatprep.subr.mxu0 %v176
  %932 = vmatpush1.msra.mxu0 %v175
  %933 = vmatprep.subr.mxu0 %v184
  %934 = vmatpush1.msra.mxu0 %v183
  %935 = vmatprep.subr.mxu0 %v192
  %936 = vmatpush1.msra.mxu0 %v191
  %937 = vmatprep.subr.mxu0 %v200
  %938 = vmatpush1.msra.mxu0 %v199
  %939 = vmatprep.subr.mxu0 %v208
  %940 = vmatpush1.msra.mxu0 %v207
  %941 = vmatprep.subr.mxu0 %v216
  %942 = vmatpush1.msra.mxu0 %v215
  %943 = vmatprep.subr.mxu0 %v224
  %944 = vmatpush1.msra.mxu0 %v223
  %945 = vmatprep.subr.mxu0 %v232
  %946 = vmatpush1.msra.mxu0 %v231
  %947 = vmatprep.subr.mxu0 %v240
  %948 = vmatpush1.msra.mxu0 %v239
  %949 = vmatprep.subr.mxu0 %v248
  %950 = vmatpush1.msra.mxu0 %v247
  %951 = vmatprep.subr.mxu0 %v256
  %952 = vmatpush1.msra.mxu0 %v255
  %953 = vmatprep.subr.mxu0 %v264
  %954 = vmatpush1.msra.mxu0 %v263
  %955 = vmatprep.subr.mxu0 %v272
  %956 = vmatpush1.msra.mxu0 %v271
  %957 = vmatprep.subr.mxu0 %v280
  %958 = vmatpush1.msra.mxu0 %v279
  %959 = vmatprep.mubr.f32.mxu0 %v12
  %960 = vmatmul.mubr.f32.gmra.mrb[0].mxu0 %v11
  %v961 = vpop.f32.mrb[0].mxu0
  %v962 = vadd.f32 0.0, %v961
  %v963 = vpop.f32.mrb[0].mxu0
  %v964 = vadd.f32 0.0, %v963
  %965 = vmatprep.mubr.f32.mxu0 %v16
  %966 = vmatmul.mubr.f32.gmra.mrb[0].mxu0 %v15
  %v967 = vpop.f32.mrb[0].mxu0
  %v968 = vadd.f32 0.0, %v967
  %v969 = vpop.f32.mrb[0].mxu0
  %v970 = vadd.f32 0.0, %v969
  %971 = vmatprep.mubr.f32.mxu0 %v20
  %972 = vmatmul.mubr.f32.gmra.mrb[0].mxu0 %v19
  %v973 = vpop.f32.mrb[0].mxu0
  %v974 = vadd.f32 0.0, %v973
  %v975 = vpop.f32.mrb[0].mxu0
  %v976 = vadd.f32 0.0, %v975
  %977 = vmatprep.mubr.f32.mxu0 %v24
  %978 = vmatmul.mubr.f32.gmra.mrb[0].mxu0 %v23
  %v979 = vpop.f32.mrb[0].mxu0
  %v980 = vadd.f32 0.0, %v979
  %v981 = vpop.f32.mrb[0].mxu0
  %v982 = vadd.f32 0.0, %v981
  %983 = vdwg.mxu0
  %984 = vmatprep.subr.mxu0 %v288
  %985 = vmatpush1.msra.mxu0 %v287
  %986 = vmatprep.subr.mxu0 %v296
  %987 = vmatpush1.msra.mxu0 %v295
  %988 = vmatprep.subr.mxu0 %v304
  %989 = vmatpush1.msra.mxu0 %v303
  %990 = vmatprep.subr.mxu0 %v312
  %991 = vmatpush1.msra.mxu0 %v311
  %992 = vmatprep.subr.mxu0 %v320
  %993 = vmatpush1.msra.mxu0 %v319
  %994 = vmatprep.subr.mxu0 %v328
  %995 = vmatpush1.msra.mxu0 %v327
  %996 = vmatprep.subr.mxu0 %v336
  %997 = vmatpush1.msra.mxu0 %v335
  %998 = vmatprep.subr.mxu0 %v344
  %999 = vmatpush1.msra.mxu0 %v343
  %1000 = vmatprep.subr.mxu0 %v352
  %1001 = vmatpush1.msra.mxu0 %v351
  %1002 = vmatprep.subr.mxu0 %v360
  %1003 = vmatpush1.msra.mxu0 %v359
  %1004 = vmatprep.subr.mxu0 %v368
  %1005 = vmatpush1.msra.mxu0 %v367
  %1006 = vmatprep.subr.mxu0 %v376
  %1007 = vmatpush1.msra.mxu0 %v375
  %1008 = vmatprep.subr.mxu0 %v384
  %1009 = vmatpush1.msra.mxu0 %v383
  %1010 = vmatprep.subr.mxu0 %v392
  %1011 = vmatpush1.msra.mxu0 %v391
  %1012 = vmatprep.subr.mxu0 %v400
  %1013 = vmatpush1.msra.mxu0 %v399
  %1014 = vmatprep.subr.mxu0 %v408
  %1015 = vmatpush1.msra.mxu0 %v407
  %1016 = vmatprep.subr.mxu0 %v416
  %1017 = vmatpush1.msra.mxu0 %v415
  %1018 = vmatprep.subr.mxu0 %v424
  %1019 = vmatpush1.msra.mxu0 %v423
  %1020 = vmatprep.subr.mxu0 %v432
  %1021 = vmatpush1.msra.mxu0 %v431
  %1022 = vmatprep.subr.mxu0 %v440
  %1023 = vmatpush1.msra.mxu0 %v439
  %1024 = vmatprep.subr.mxu0 %v448
  %1025 = vmatpush1.msra.mxu0 %v447
  %1026 = vmatprep.subr.mxu0 %v456
  %1027 = vmatpush1.msra.mxu0 %v455
  %1028 = vmatprep.subr.mxu0 %v464
  %1029 = vmatpush1.msra.mxu0 %v463
  %1030 = vmatprep.subr.mxu0 %v472
  %1031 = vmatpush1.msra.mxu0 %v471
  %1032 = vmatprep.subr.mxu0 %v480
  %1033 = vmatpush1.msra.mxu0 %v479
  %1034 = vmatprep.subr.mxu0 %v488
  %1035 = vmatpush1.msra.mxu0 %v487
  %1036 = vmatprep.subr.mxu0 %v496
  %1037 = vmatpush1.msra.mxu0 %v495
  %1038 = vmatprep.subr.mxu0 %v504
  %1039 = vmatpush1.msra.mxu0 %v503
  %1040 = vmatprep.subr.mxu0 %v512
  %1041 = vmatpush1.msra.mxu0 %v511
  %1042 = vmatprep.subr.mxu0 %v520
  %1043 = vmatpush1.msra.mxu0 %v519
  %1044 = vmatprep.subr.mxu0 %v528
  %1045 = vmatpush1.msra.mxu0 %v527
  %1046 = vmatprep.subr.mxu0 %v536
  %1047 = vmatpush1.msra.mxu0 %v535
  %1048 = vmatprep.mubr.f32.mxu0 %v14
  %1049 = vmatmul.mubr.f32.gmra.mrb[0].mxu0 %v13
  %v1050 = vpop.f32.mrb[0].mxu0
  %v1051 = vadd.f32 %v962, %v1050
  %v1052 = vpop.f32.mrb[0].mxu0
  %v1053 = vadd.f32 %v964, %v1052
  %1054 = vmatprep.mubr.f32.mxu0 %v18
  %1055 = vmatmul.mubr.f32.gmra.mrb[0].mxu0 %v17
  %v1056 = vpop.f32.mrb[0].mxu0
  %v1057 = vadd.f32 %v968, %v1056
  %v1058 = vpop.f32.mrb[0].mxu0
  %v1059 = vadd.f32 %v970, %v1058
  %1060 = vmatprep.mubr.f32.mxu0 %v22
  %1061 = vmatmul.mubr.f32.gmra.mrb[0].mxu0 %v21
  %v1062 = vpop.f32.mrb[0].mxu0
  %v1063 = vadd.f32 %v974, %v1062
  %v1064 = vpop.f32.mrb[0].mxu0
  %v1065 = vadd.f32 %v976, %v1064
  %1066 = vmatprep.mubr.f32.mxu0 %v26
  %1067 = vmatmul.mubr.f32.gmra.mrb[0].mxu0 %v25
  %v1068 = vpop.f32.mrb[0].mxu0
  %v1069 = vadd.f32 %v980, %v1068
  %v1070 = vpop.f32.mrb[0].mxu0
  %v1071 = vadd.f32 %v982, %v1070
  %1072 = vdwg.mxu0
  %1073 = vmatprep.subr.mxu0 %v34
  %1074 = vmatpush1.msra.mxu0 %v33
  %1075 = vmatprep.subr.mxu0 %v42
  %1076 = vmatpush1.msra.mxu0 %v41
  %1077 = vmatprep.subr.mxu0 %v50
  %1078 = vmatpush1.msra.mxu0 %v49
  %1079 = vmatprep.subr.mxu0 %v58
  %1080 = vmatpush1.msra.mxu0 %v57
  %1081 = vmatprep.subr.mxu0 %v66
  %1082 = vmatpush1.msra.mxu0 %v65
  %1083 = vmatprep.subr.mxu0 %v74
  %1084 = vmatpush1.msra.mxu0 %v73
  %1085 = vmatprep.subr.mxu0 %v82
  %1086 = vmatpush1.msra.mxu0 %v81
  %1087 = vmatprep.subr.mxu0 %v90
  %1088 = vmatpush1.msra.mxu0 %v89
  %1089 = vmatprep.subr.mxu0 %v98
  %1090 = vmatpush1.msra.mxu0 %v97
  %1091 = vmatprep.subr.mxu0 %v106
  %1092 = vmatpush1.msra.mxu0 %v105
  %1093 = vmatprep.subr.mxu0 %v114
  %1094 = vmatpush1.msra.mxu0 %v113
  %1095 = vmatprep.subr.mxu0 %v122
  %1096 = vmatpush1.msra.mxu0 %v121
  %1097 = vmatprep.subr.mxu0 %v130
  %1098 = vmatpush1.msra.mxu0 %v129
  %1099 = vmatprep.subr.mxu0 %v138
  %1100 = vmatpush1.msra.mxu0 %v137
  %1101 = vmatprep.subr.mxu0 %v146
  %1102 = vmatpush1.msra.mxu0 %v145
  %1103 = vmatprep.subr.mxu0 %v154
  %1104 = vmatpush1.msra.mxu0 %v153
  %1105 = vmatprep.subr.mxu0 %v162
  %1106 = vmatpush1.msra.mxu0 %v161
  %1107 = vmatprep.subr.mxu0 %v170
  %1108 = vmatpush1.msra.mxu0 %v169
  %1109 = vmatprep.subr.mxu0 %v178
  %1110 = vmatpush1.msra.mxu0 %v177
  %1111 = vmatprep.subr.mxu0 %v186
  %1112 = vmatpush1.msra.mxu0 %v185
  %1113 = vmatprep.subr.mxu0 %v194
  %1114 = vmatpush1.msra.mxu0 %v193
  %1115 = vmatprep.subr.mxu0 %v202
  %1116 = vmatpush1.msra.mxu0 %v201
  %1117 = vmatprep.subr.mxu0 %v210
  %1118 = vmatpush1.msra.mxu0 %v209
  %1119 = vmatprep.subr.mxu0 %v218
  %1120 = vmatpush1.msra.mxu0 %v217
  %1121 = vmatprep.subr.mxu0 %v226
  %1122 = vmatpush1.msra.mxu0 %v225
  %1123 = vmatprep.subr.mxu0 %v234
  %1124 = vmatpush1.msra.mxu0 %v233
  %1125 = vmatprep.subr.mxu0 %v242
  %1126 = vmatpush1.msra.mxu0 %v241
  %1127 = vmatprep.subr.mxu0 %v250
  %1128 = vmatpush1.msra.mxu0 %v249
  %1129 = vmatprep.subr.mxu0 %v258
  %1130 = vmatpush1.msra.mxu0 %v257
  %1131 = vmatprep.subr.mxu0 %v266
  %1132 = vmatpush1.msra.mxu0 %v265
  %1133 = vmatprep.subr.mxu0 %v274
  %1134 = vmatpush1.msra.mxu0 %v273
  %1135 = vmatprep.subr.mxu0 %v282
  %1136 = vmatpush1.msra.mxu0 %v281
  %1137 = vmatprep.mubr.f32.mxu0 %v12
  %1138 = vmatmul.mubr.f32.gmra.mrb[0].mxu0 %v11
  %v1139 = vpop.f32.mrb[0].mxu0
  %v1140 = vadd.f32 0.0, %v1139
  %v1141 = vpop.f32.mrb[0].mxu0
  %v1142 = vadd.f32 0.0, %v1141
  %1143 = vmatprep.mubr.f32.mxu0 %v16
  %1144 = vmatmul.mubr.f32.gmra.mrb[0].mxu0 %v15
  %v1145 = vpop.f32.mrb[0].mxu0
  %v1146 = vadd.f32 0.0, %v1145
  %v1147 = vpop.f32.mrb[0].mxu0
  %v1148 = vadd.f32 0.0, %v1147
  %1149 = vmatprep.mubr.f32.mxu0 %v20
  %1150 = vmatmul.mubr.f32.gmra.mrb[0].mxu0 %v19
  %v1151 = vpop.f32.mrb[0].mxu0
  %v1152 = vadd.f32 0.0, %v1151
  %v1153 = vpop.f32.mrb[0].mxu0
  %v1154 = vadd.f32 0.0, %v1153
  %1155 = vmatprep.mubr.f32.mxu0 %v24
  %1156 = vmatmul.mubr.f32.gmra.mrb[0].mxu0 %v23
  %v1157 = vpop.f32.mrb[0].mxu0
  %v1158 = vadd.f32 0.0, %v1157
  %v1159 = vpop.f32.mrb[0].mxu0
  %v1160 = vadd.f32 0.0, %v1159
  %1161 = vdwg.mxu0
  %1162 = vmatprep.subr.mxu0 %v290
  %1163 = vmatpush1.msra.mxu0 %v289
  %1164 = vmatprep.subr.mxu0 %v298
  %1165 = vmatpush1.msra.mxu0 %v297
  %1166 = vmatprep.subr.mxu0 %v306
  %1167 = vmatpush1.msra.mxu0 %v305
  %1168 = vmatprep.subr.mxu0 %v314
  %1169 = vmatpush1.msra.mxu0 %v313
  %1170 = vmatprep.subr.mxu0 %v322
  %1171 = vmatpush1.msra.mxu0 %v321
  %1172 = vmatprep.subr.mxu0 %v330
  %1173 = vmatpush1.msra.mxu0 %v329
  %1174 = vmatprep.subr.mxu0 %v338
  %1175 = vmatpush1.msra.mxu0 %v337
  %1176 = vmatprep.subr.mxu0 %v346
  %1177 = vmatpush1.msra.mxu0 %v345
  %1178 = vmatprep.subr.mxu0 %v354
  %1179 = vmatpush1.msra.mxu0 %v353
  %1180 = vmatprep.subr.mxu0 %v362
  %1181 = vmatpush1.msra.mxu0 %v361
  %1182 = vmatprep.subr.mxu0 %v370
  %1183 = vmatpush1.msra.mxu0 %v369
  %1184 = vmatprep.subr.mxu0 %v378
  %1185 = vmatpush1.msra.mxu0 %v377
  %1186 = vmatprep.subr.mxu0 %v386
  %1187 = vmatpush1.msra.mxu0 %v385
  %1188 = vmatprep.subr.mxu0 %v394
  %1189 = vmatpush1.msra.mxu0 %v393
  %1190 = vmatprep.subr.mxu0 %v402
  %1191 = vmatpush1.msra.mxu0 %v401
  %1192 = vmatprep.subr.mxu0 %v410
  %1193 = vmatpush1.msra.mxu0 %v409
  %1194 = vmatprep.subr.mxu0 %v418
  %1195 = vmatpush1.msra.mxu0 %v417
  %1196 = vmatprep.subr.mxu0 %v426
  %1197 = vmatpush1.msra.mxu0 %v425
  %1198 = vmatprep.subr.mxu0 %v434
  %1199 = vmatpush1.msra.mxu0 %v433
  %1200 = vmatprep.subr.mxu0 %v442
  %1201 = vmatpush1.msra.mxu0 %v441
  %1202 = vmatprep.subr.mxu0 %v450
  %1203 = vmatpush1.msra.mxu0 %v449
  %1204 = vmatprep.subr.mxu0 %v458
  %1205 = vmatpush1.msra.mxu0 %v457
  %1206 = vmatprep.subr.mxu0 %v466
  %1207 = vmatpush1.msra.mxu0 %v465
  %1208 = vmatprep.subr.mxu0 %v474
  %1209 = vmatpush1.msra.mxu0 %v473
  %1210 = vmatprep.subr.mxu0 %v482
  %1211 = vmatpush1.msra.mxu0 %v481
  %1212 = vmatprep.subr.mxu0 %v490
  %1213 = vmatpush1.msra.mxu0 %v489
  %1214 = vmatprep.subr.mxu0 %v498
  %1215 = vmatpush1.msra.mxu0 %v497
  %1216 = vmatprep.subr.mxu0 %v506
  %1217 = vmatpush1.msra.mxu0 %v505
  %1218 = vmatprep.subr.mxu0 %v514
  %1219 = vmatpush1.msra.mxu0 %v513
  %1220 = vmatprep.subr.mxu0 %v522
  %1221 = vmatpush1.msra.mxu0 %v521
  %1222 = vmatprep.subr.mxu0 %v530
  %1223 = vmatpush1.msra.mxu0 %v529
  %1224 = vmatprep.subr.mxu0 %v538
  %1225 = vmatpush1.msra.mxu0 %v537
  %1226 = vmatprep.mubr.f32.mxu0 %v14
  %1227 = vmatmul.mubr.f32.gmra.mrb[0].mxu0 %v13
  %v1228 = vpop.f32.mrb[0].mxu0
  %v1229 = vadd.f32 %v1140, %v1228
  %v1230 = vpop.f32.mrb[0].mxu0
  %v1231 = vadd.f32 %v1142, %v1230
  %1232 = vmatprep.mubr.f32.mxu0 %v18
  %1233 = vmatmul.mubr.f32.gmra.mrb[0].mxu0 %v17
  %v1234 = vpop.f32.mrb[0].mxu0
  %v1235 = vadd.f32 %v1146, %v1234
  %v1236 = vpop.f32.mrb[0].mxu0
  %v1237 = vadd.f32 %v1148, %v1236
  %1238 = vmatprep.mubr.f32.mxu0 %v22
  %1239 = vmatmul.mubr.f32.gmra.mrb[0].mxu0 %v21
  %v1240 = vpop.f32.mrb[0].mxu0
  %v1241 = vadd.f32 %v1152, %v1240
  %v1242 = vpop.f32.mrb[0].mxu0
  %v1243 = vadd.f32 %v1154, %v1242
  %1244 = vmatprep.mubr.f32.mxu0 %v26
  %1245 = vmatmul.mubr.f32.gmra.mrb[0].mxu0 %v25
  %v1246 = vpop.f32.mrb[0].mxu0
  %v1247 = vadd.f32 %v1158, %v1246
  %v1248 = vpop.f32.mrb[0].mxu0
  %v1249 = vadd.f32 %v1160, %v1248
  %1250 = vdwg.mxu0
  %1251 = vst [vmem:[%s2] sm:$0xff] %v695
  %1252 = vst [vmem:[%s2 + $0x8] sm:$0xff] %v697
  %1253 = vst [vmem:[%s2 + $0x10] sm:$0xff] %v873
  %1254 = vst [vmem:[%s2 + $0x18] sm:$0xff] %v875
  %1255 = vst [vmem:[%s2 + $0x20] sm:$0xff] %v1051
  %1256 = vst [vmem:[%s2 + $0x28] sm:$0xff] %v1053
  %1257 = vst [vmem:[%s2 + $0x30] sm:$0xff] %v1229
  %1258 = vst [vmem:[%s2 + $0x38] sm:$0xff] %v1231
  %1259 = vst [vmem:[%s2 + $0x40] sm:$0xff] %v701
  %1260 = vst [vmem:[%s2 + $0x48] sm:$0xff] %v703
  %1261 = vst [vmem:[%s2 + $0x50] sm:$0xff] %v879
  %1262 = vst [vmem:[%s2 + $0x58] sm:$0xff] %v881
  %1263 = vst [vmem:[%s2 + $0x60] sm:$0xff] %v1057
  %1264 = vst [vmem:[%s2 + $0x68] sm:$0xff] %v1059
  %1265 = vst [vmem:[%s2 + $0x70] sm:$0xff] %v1235
  %1266 = vst [vmem:[%s2 + $0x78] sm:$0xff] %v1237
  %1267 = vst [vmem:[%s2 + $0x80] sm:$0xff] %v707
  %1268 = vst [vmem:[%s2 + $0x88] sm:$0xff] %v709
  %1269 = vst [vmem:[%s2 + $0x90] sm:$0xff] %v885
  %1270 = vst [vmem:[%s2 + $0x98] sm:$0xff] %v887
  %1271 = vst [vmem:[%s2 + $0xa0] sm:$0xff] %v1063
  %1272 = vst [vmem:[%s2 + $0xa8] sm:$0xff] %v1065
  %1273 = vst [vmem:[%s2 + $0xb0] sm:$0xff] %v1241
  %1274 = vst [vmem:[%s2 + $0xb8] sm:$0xff] %v1243
  %1275 = vst [vmem:[%s2 + $0xc0] sm:$0xff] %v713
  %1276 = vst [vmem:[%s2 + $0xc8] sm:$0xff] %v715
  %1277 = vst [vmem:[%s2 + $0xd0] sm:$0xff] %v891
  %1278 = vst [vmem:[%s2 + $0xd8] sm:$0xff] %v893
  %1279 = vst [vmem:[%s2 + $0xe0] sm:$0xff] %v1069
  %1280 = vst [vmem:[%s2 + $0xe8] sm:$0xff] %v1071
  %1281 = vst [vmem:[%s2 + $0xf0] sm:$0xff] %v1247
  %1282 = vst [vmem:[%s2 + $0xf8] sm:$0xff] %v1249
  // Predicated region
  $region10: #{so3_conv_forward.1} parent=0 // pred_check
    _
  $region11: #{so3_conv_forward.1} parent=0 // pred_check_branch
    %1284 = sbr.rel (0) target = $region13
  $region12: #{so3_conv_forward.1} parent=0 // pred_region
    _
  $region13: #{so3_conv_forward.1} parent=0 // pred_fallthru
    _
  // Predicated region
  $region14: #{so3_conv_forward.1} parent=0 // pred_check
    _
  $region15: #{so3_conv_forward.1} parent=0 // pred_check_branch
    %1286 = sbr.rel (0) target = $region17
  $region16: #{so3_conv_forward.1} parent=0 // pred_region
    _
  $region17: #{so3_conv_forward.1} parent=0 // pred_fallthru
    _

</llo_original>
